<compile_context>
chip_gen: v6e
topology: v6e:2x2x1
jax: 0.10.0
libtpu: 0.0.40
codegen_flags: <defaults>
</compile_context>

<pallas_src>
import jax
import jax.numpy as jnp
from jax.experimental import pallas as pl
from jax.experimental.pallas import tpu as pltpu

EPS = 1e-5
LANES = 128


def _round_up(x, m):
    return (x + m - 1) // m * m


def _pick_tile_h(H, W, target_m=2048):
    """Largest divisor of H (preferring multiples of 8) with TH*W <= ~target_m."""
    cap = max(1, min(H, max(1, target_m // max(W, 1))))
    best = 0
    for t in range(1, cap + 1):
        if H % t == 0 and t % 8 == 0:
            best = t
    if best == 0:
        for t in range(1, cap + 1):
            if H % t == 0:
                best = t
    return best


# --------------------------------------------------------------------------- #
# kernels
# --------------------------------------------------------------------------- #
def conv1_kernel(top_ref, mid_ref, bot_ref, w_ref, h1_ref, stats_ref):
    """3x3 'same' conv of one raw-input row band; bf16 output + BN1 partial stats.

    top/mid/bot: 1-row halo above / TH-row band / 1-row halo below of the
    W-padded, channel-padded bf16 input.  The 9 taps are accumulated with 9
    direct small-K dots (Cin is tiny) -- no im2col patch, no narrow masked
    stores.  Conv bias intentionally omitted (cancelled by batch-stats BN).
    """
    _, TH, Wp, Ci = mid_ref.shape
    W = Wp - 2
    CP = h1_ref.shape[-1]
    i = pl.program_id(1)
    last = pl.num_programs(1) - 1

    top = top_ref[0]
    bot = bot_ref[0]
    top = jnp.where(i == 0, jnp.zeros_like(top), top)
    bot = jnp.where(i == last, jnp.zeros_like(bot), bot)
    x = jnp.concatenate([top, mid_ref[0], bot], axis=0)       # (TH+2, Wp, Ci) bf16

    acc = jnp.zeros((TH * W, CP), jnp.float32)
    for ky in range(3):
        for kx in range(3):
            slab = x[ky:ky + TH, kx:kx + W, :].reshape(TH * W, Ci)
            acc = acc + jnp.dot(slab, w_ref[ky * 3 + kx],
                                preferred_element_type=jnp.float32)

    s = jnp.sum(acc, axis=0, keepdims=True)                   # (1, CP)
    ss = jnp.sum(acc * acc, axis=0, keepdims=True)
    stats_ref[...] = jnp.concatenate([s, ss], axis=0).reshape(1, 1, 2, CP)

    # single aligned full-tile store (output is NOT W-padded in HBM)
    h1_ref[...] = acc.reshape(1, TH, W, CP).astype(h1_ref.dtype)


def conv2_kernel(top_ref, mid_ref, bot_ref, scale_ref, shift_ref, w_ref,
                 h2_ref, stats_ref, band_ref, patch_ref):
    """Fused BN1+ReLU prologue -> 3x3 conv (one K=9*CP MXU matmul) -> raw bf16 out + BN2 stats."""
    _, TH, W, CP = mid_ref.shape
    Wp = W + 2
    M = TH * W
    i = pl.program_id(1)
    last = pl.num_programs(1) - 1

    def prep(x):
        y = x.astype(jnp.float32) * scale_ref[...] + shift_ref[...]
        return jnp.maximum(y, 0.0).astype(jnp.bfloat16)

    top = prep(top_ref[0])                                    # (1, W, CP)
    mid = prep(mid_ref[0])                                    # (TH, W, CP)
    bot = prep(bot_ref[0])                                    # (1, W, CP)

    # Assemble the halo'd, zero-padded band ONCE in a bf16 VMEM scratch.  The
    # padding columns / out-of-image halo rows are conv2's zero padding in the
    # post-BN domain, written explicitly (never touched by prep).
    zcol = jnp.zeros((TH + 2, 1, CP), jnp.bfloat16)
    band_ref[:, 0:1, :] = zcol
    band_ref[:, Wp - 1:Wp, :] = zcol
    band_ref[0:1, 1:W + 1, :] = jnp.where(i == 0, jnp.zeros_like(top), top)
    band_ref[1:TH + 1, 1:W + 1, :] = mid
    band_ref[TH + 1:TH + 2, 1:W + 1, :] = jnp.where(i == last,
                                                    jnp.zeros_like(bot), bot)

    # im2col with 128-lane-aligned column stores, then a single big-K matmul.
    for ky in range(3):
        for kx in range(3):
            t = ky * 3 + kx
            slab = band_ref[ky:ky + TH, kx:kx + W, :].reshape(M, CP)
            patch_ref[:, t * CP:(t + 1) * CP] = slab

    acc = jnp.dot(patch_ref[...], w_ref[...],
                  preferred_element_type=jnp.float32)         # (M, CP) f32

    s = jnp.sum(acc, axis=0, keepdims=True)
    ss = jnp.sum(acc * acc, axis=0, keepdims=True)
    stats_ref[...] = jnp.concatenate([s, ss], axis=0).reshape(1, 1, 2, CP)

    h2_ref[...] = acc.reshape(1, TH, W, CP).astype(h2_ref.dtype)


def bn_relu_out_kernel(x_ref, scale_ref, shift_ref, out_ref):
    """BN2 + ReLU; writes only the Cout (unpadded) channels in f32."""
    Cout = out_ref.shape[-1]
    y = x_ref[...].astype(jnp.float32) * scale_ref[...] + shift_ref[...]
    y = jnp.maximum(y, 0.0)
    out_ref[...] = y[:, :, :, :Cout]


# --------------------------------------------------------------------------- #
# wrapper
# --------------------------------------------------------------------------- #
def _bn_scale_shift(stats, gamma, beta, count):
    """Finalize training-mode BatchNorm from accumulated (sum, sumsq) stats."""
    s = jnp.sum(stats, axis=(0, 1))                           # (2, CP)
    mean = s[0] / count
    var = jnp.maximum(s[1] / count - mean * mean, 0.0)
    scale = gamma * jax.lax.rsqrt(var + EPS)
    shift = beta - mean * scale
    return (scale.reshape(1, -1).astype(jnp.float32),
            shift.reshape(1, -1).astype(jnp.float32))


def in_conv_forward(x_nchw, params, *, target_m=2048):
    """InConv forward.  Input NCHW (PyTorch layout), output NCHW f32."""
    N, Cin, H, W = x_nchw.shape
    Cout = params["w1"].shape[-1]
    CP = _round_up(Cout, LANES)            # lane-dense channels inside kernels
    CI = _round_up(Cin, 8)                 # conv1 K padded to packing granularity
    TH = _pick_tile_h(H, W, target_m)      # divisor of H -> no masked remainder
    T = H // TH
    Wp = W + 2
    grid = (N, T)

    # NHWC, bf16; zero-pad W by 1 (for conv1) and channels to CI.
    x = jnp.transpose(x_nchw, (0, 2, 3, 1)).astype(jnp.float32)
    xw = jnp.pad(x, ((0, 0), (0, 0), (1, 1), (0, CI - Cin))).astype(jnp.bfloat16)

    # conv1 weights per tap: (9, CI, CP) bf16.
    w1 = jnp.pad(params["w1"].astype(jnp.float32),
                 ((0, 0), (0, 0), (0, CI - Cin), (0, CP - Cout)))
    w1f = w1.reshape(9, CI, CP).astype(jnp.bfloat16)
    # conv2 weights with the 9 taps folded into the contraction dim: (9*CP, CP).
    w2 = jnp.pad(params["w2"].astype(jnp.float32),
                 ((0, 0), (0, 0), (0, CP - Cout), (0, CP - Cout)))
    w2f = w2.reshape(9 * CP, CP).astype(jnp.bfloat16)

    g1 = jnp.pad(params["g1"].reshape(-1).astype(jnp.float32), (0, CP - Cout))
    be1 = jnp.pad(params["be1"].reshape(-1).astype(jnp.float32), (0, CP - Cout))
    g2 = jnp.pad(params["g2"].reshape(-1).astype(jnp.float32), (0, CP - Cout))
    be2 = jnp.pad(params["be2"].reshape(-1).astype(jnp.float32), (0, CP - Cout))
    # conv biases b1/b2 intentionally unused (cancelled by batch-stats BN).

    cparams = pltpu.CompilerParams(
        dimension_semantics=("parallel", "parallel"),   # v7x: shard over 2 TCs
        # Worst-case per-step VMEM at the default tile target (TH*W~2048,
        # CP=128): double-buffered in/out blocks (~3 MiB) + band (~0.8 MiB)
        # + im2col patch (~4.7 MiB) + weights (~0.6 MiB) ~= 9-10 MiB, so 32 MiB
        # is safe on v7x's 64 MiB VMEM as well as v5e/v6e's 128 MiB.
        vmem_limit_bytes=32 * 1024 * 1024)

    def halo_specs(Wdim, C):
        """Center band + 1-row top/bottom halos of an (N, H, Wdim, C) array."""
        top = pl.BlockSpec((1, 1, Wdim, C),
                           lambda n, i: (n, jnp.maximum(i * TH - 1, 0), 0, 0))
        mid = pl.BlockSpec((1, TH, Wdim, C), lambda n, i: (n, i, 0, 0))
        bot = pl.BlockSpec((1, 1, Wdim, C),
                           lambda n, i: (n, jnp.minimum((i + 1) * TH, H - 1), 0, 0))
        return [top, mid, bot]

    def full_spec(a):
        return pl.BlockSpec(a.shape, lambda n, i: (0,) * a.ndim)

    band_spec = pl.BlockSpec((1, TH, W, CP), lambda n, i: (n, i, 0, 0))
    stats_spec = pl.BlockSpec((1, 1, 2, CP), lambda n, i: (n, i, 0, 0))
    stats_shape = jax.ShapeDtypeStruct((N, T, 2, CP), jnp.float32)

    # ---- conv1: raw bf16 output + per-tile BN1 statistics --------------------
    h1, stats1 = pl.pallas_call(
        conv1_kernel,
        grid=grid,
        in_specs=halo_specs(Wp, CI) + [full_spec(w1f)],
        out_specs=[band_spec, stats_spec],
        out_shape=[jax.ShapeDtypeStruct((N, H, W, CP), jnp.bfloat16),
                   stats_shape],
        compiler_params=cparams,
    )(xw, xw, xw, w1f)

    scale1, shift1 = _bn_scale_shift(stats1, g1, be1, N * H * W)

    # ---- fused BN1+ReLU prologue -> conv2 (raw bf16) + per-tile BN2 stats ----
    h2, stats2 = pl.pallas_call(
        conv2_kernel,
        grid=grid,
        in_specs=halo_specs(W, CP) + [full_spec(scale1), full_spec(shift1),
                                      full_spec(w2f)],
        out_specs=[band_spec, stats_spec],
        out_shape=[jax.ShapeDtypeStruct((N, H, W, CP), jnp.bfloat16),
                   stats_shape],
        scratch_shapes=[pltpu.VMEM((TH + 2, Wp, CP), jnp.bfloat16),
                        pltpu.VMEM((TH * W, 9 * CP), jnp.bfloat16)],
        compiler_params=cparams,
    )(h1, h1, h1, scale1, shift1, w2f)

    scale2, shift2 = _bn_scale_shift(stats2, g2, be2, N * H * W)

    # ---- BN2 + ReLU, emitting only the Cout (unpadded) channels --------------
    out = pl.pallas_call(
        bn_relu_out_kernel,
        grid=grid,
        in_specs=[band_spec, full_spec(scale2), full_spec(shift2)],
        out_specs=pl.BlockSpec((1, TH, W, Cout), lambda n, i: (n, i, 0, 0)),
        out_shape=jax.ShapeDtypeStruct((N, H, W, Cout), jnp.float32),
        compiler_params=cparams,
    )(h2, scale2, shift2)

    return jnp.transpose(out, (0, 3, 1, 2))


# --------------------------------------------------------------------------- #
# reference (mirrors the bf16-operand / f32-accumulate matmul precision;
# BatchNorm uses training-mode batch statistics, biases included as in PyTorch)
# --------------------------------------------------------------------------- #
def in_conv_reference(x_nchw, params):
    x = jnp.transpose(x_nchw, (0, 2, 3, 1)).astype(jnp.float32)

    def conv_bn_relu(h, w, b, g, be):
        y = jax.lax.conv_general_dilated(
            h.astype(jnp.bfloat16), w.astype(jnp.bfloat16),
            window_strides=(1, 1), padding="SAME",
            dimension_numbers=("NHWC", "HWIO", "NHWC"),
            preferred_element_type=jnp.float32)
        y = y + b.reshape(1, 1, 1, -1)
        m = jnp.mean(y, axis=(0, 1, 2), keepdims=True)
        v = jnp.mean((y - m) ** 2, axis=(0, 1, 2), keepdims=True)
        y = (y - m) * jax.lax.rsqrt(v + EPS) * g.reshape(1, 1, 1, -1) \
            + be.reshape(1, 1, 1, -1)
        return jnp.maximum(y, 0.0)

    h = conv_bn_relu(x, params["w1"], params["b1"], params["g1"], params["be1"])
    h = conv_bn_relu(h, params["w2"], params["b2"], params["g2"], params["be2"])
    return jnp.transpose(h, (0, 3, 1, 2))


if __name__ == "__main__":
    in_ch, out_ch = 4, 8
    N, H, W = 2, 16, 16

    key = jax.random.PRNGKey(0)
    ks = jax.random.split(key, 9)
    x = jax.random.normal(ks[0], (N, in_ch, H, W), jnp.float32)

    params = dict(
        # conv1: Conv2d(in_ch, out_ch, 3, padding=1)  (HWIO weights)
        w1=0.1 * jax.random.normal(ks[1], (3, 3, in_ch, out_ch), jnp.float32),
        b1=0.1 * jax.random.normal(ks[2], (out_ch,), jnp.float32),
        g1=1.0 + 0.1 * jax.random.normal(ks[3], (out_ch,), jnp.float32),
        be1=0.1 * jax.random.normal(ks[4], (out_ch,), jnp.float32),
        # conv2: Conv2d(out_ch, out_ch, 3, padding=1)
        w2=0.1 * jax.random.normal(ks[5], (3, 3, out_ch, out_ch), jnp.float32),
        b2=0.1 * jax.random.normal(ks[6], (out_ch,), jnp.float32),
        g2=1.0 + 0.1 * jax.random.normal(ks[7], (out_ch,), jnp.float32),
        be2=0.1 * jax.random.normal(ks[8], (out_ch,), jnp.float32),
    )

    y = jax.jit(in_conv_forward)(x, params)
    jax.block_until_ready(y)

    y_ref = in_conv_reference(x, params)
    assert y.shape == (N, out_ch, H, W), y.shape
    err = float(jnp.max(jnp.abs(y - y_ref)))
    # Tolerance reflects bf16 MXU operands + bf16-stored intermediates (f32
    # accumulation / BN); structural errors would show up as O(0.1..1).
    assert jnp.allclose(y, y_ref, atol=3e-2, rtol=3e-2), err

    print("KERNEL_OK")
</pallas_src>

<mosaic_0001>
module attributes {stable_mosaic.version = 11 : i64} {
  func.func @conv1_kernel(%arg0: i32, %arg1: i32, %arg2: memref<1x1x18x8xbf16, #tpu.memory_space<vmem>>, %arg3: memref<1x16x18x8xbf16, #tpu.memory_space<vmem>>, %arg4: memref<1x1x18x8xbf16, #tpu.memory_space<vmem>>, %arg5: memref<9x8x128xbf16, #tpu.memory_space<vmem>>, %arg6: memref<1x16x16x128xbf16, #tpu.memory_space<vmem>>, %arg7: memref<1x1x2x128xf32, #tpu.memory_space<vmem>>) attributes {dimension_semantics = [#tpu.dimension_semantics<parallel>, #tpu.dimension_semantics<parallel>], iteration_bounds = array<i64: 2, 1>, scalar_prefetch = 0 : i64, scratch_operands = 0 : i64, tpu.core_type = #tpu.core_type<tc>, window_params = [{transform_indices = @transform_0, window_bounds = array<i64: 1, 1, 18, 8>}, {transform_indices = @transform_1, window_bounds = array<i64: 1, 16, 18, 8>}, {transform_indices = @transform_2, window_bounds = array<i64: 1, 1, 18, 8>}, {pipeline_mode = #tpu.pipeline_mode<synchronous>, transform_indices = @transform_3, window_bounds = array<i64: 9, 8, 128>}, {transform_indices = @transform_4, window_bounds = array<i64: 1, 16, 16, 128>}, {transform_indices = @transform_5, window_bounds = array<i64: 1, 1, 2, 128>}]} {
    %c0 = arith.constant 0 : index
    %c0_0 = arith.constant 0 : index
    %c0_1 = arith.constant 0 : index
    %c0_2 = arith.constant 0 : index
    %0 = vector.load %arg2[%c0, %c0_0, %c0_1, %c0_2] : memref<1x1x18x8xbf16, #tpu.memory_space<vmem>>, vector<1x1x18x8xbf16>
    %1 = vector.shape_cast %0 : vector<1x1x18x8xbf16> to vector<1x18x8xbf16>
    %c0_3 = arith.constant 0 : index
    %c0_4 = arith.constant 0 : index
    %c0_5 = arith.constant 0 : index
    %c0_6 = arith.constant 0 : index
    %2 = vector.load %arg4[%c0_3, %c0_4, %c0_5, %c0_6] : memref<1x1x18x8xbf16, #tpu.memory_space<vmem>>, vector<1x1x18x8xbf16>
    %3 = vector.shape_cast %2 : vector<1x1x18x8xbf16> to vector<1x18x8xbf16>
    %c0_i32 = arith.constant 0 : i32
    %4 = arith.cmpi eq, %arg1, %c0_i32 : i32
    %cst = arith.constant 0.000000e+00 : bf16
    %5 = vector.broadcast %cst : bf16 to vector<1x18x8xbf16>
    %6 = arith.select %4, %5, %1 : vector<1x18x8xbf16>
    %c0_i32_7 = arith.constant 0 : i32
    %7 = arith.cmpi eq, %arg1, %c0_i32_7 : i32
    %cst_8 = arith.constant 0.000000e+00 : bf16
    %8 = vector.broadcast %cst_8 : bf16 to vector<1x18x8xbf16>
    %9 = arith.select %7, %8, %3 : vector<1x18x8xbf16>
    %c0_9 = arith.constant 0 : index
    %c0_10 = arith.constant 0 : index
    %c0_11 = arith.constant 0 : index
    %c0_12 = arith.constant 0 : index
    %10 = vector.load %arg3[%c0_9, %c0_10, %c0_11, %c0_12] : memref<1x16x18x8xbf16, #tpu.memory_space<vmem>>, vector<1x16x18x8xbf16>
    %11 = vector.shape_cast %10 : vector<1x16x18x8xbf16> to vector<16x18x8xbf16>
    %12 = tpu.concatenate %6, %11, %9 in 0 : vector<1x18x8xbf16>, vector<16x18x8xbf16>, vector<1x18x8xbf16> -> vector<18x18x8xbf16>
    %cst_13 = arith.constant 0.000000e+00 : f32
    %13 = vector.broadcast %cst_13 : f32 to vector<256x128xf32>
    %14 = vector.extract_strided_slice %12 {offsets = [0, 0, 0], sizes = [16, 16, 8], strides = [1, 1, 1]} : vector<18x18x8xbf16> to vector<16x16x8xbf16>
    %15 = vector.shape_cast %14 : vector<16x16x8xbf16> to vector<256x8xbf16>
    %c0_14 = arith.constant 0 : index
    %c0_15 = arith.constant 0 : index
    %c0_16 = arith.constant 0 : index
    %16 = vector.load %arg5[%c0_14, %c0_15, %c0_16] : memref<9x8x128xbf16, #tpu.memory_space<vmem>>, vector<1x8x128xbf16>
    %17 = vector.shape_cast %16 : vector<1x8x128xbf16> to vector<8x128xbf16>
    %cst_17 = arith.constant dense<0.000000e+00> : vector<256x128xf32>
    %18 = tpu.matmul %15, %17, %cst_17 {dimension_numbers = #tpu.dot_dimension_numbers<[1], [0], [0], [1], [0, 0, 1, 1], [], []>} : vector<256x8xbf16>, vector<8x128xbf16>, vector<256x128xf32> -> vector<256x128xf32>
    %19 = arith.addf %13, %18 : vector<256x128xf32>
    %20 = vector.extract_strided_slice %12 {offsets = [0, 1, 0], sizes = [16, 16, 8], strides = [1, 1, 1]} : vector<18x18x8xbf16> to vector<16x16x8xbf16>
    %21 = vector.shape_cast %20 : vector<16x16x8xbf16> to vector<256x8xbf16>
    %c1 = arith.constant 1 : index
    %c0_18 = arith.constant 0 : index
    %c0_19 = arith.constant 0 : index
    %22 = vector.load %arg5[%c1, %c0_18, %c0_19] : memref<9x8x128xbf16, #tpu.memory_space<vmem>>, vector<1x8x128xbf16>
    %23 = vector.shape_cast %22 : vector<1x8x128xbf16> to vector<8x128xbf16>
    %cst_20 = arith.constant dense<0.000000e+00> : vector<256x128xf32>
    %24 = tpu.matmul %21, %23, %cst_20 {dimension_numbers = #tpu.dot_dimension_numbers<[1], [0], [0], [1], [0, 0, 1, 1], [], []>} : vector<256x8xbf16>, vector<8x128xbf16>, vector<256x128xf32> -> vector<256x128xf32>
    %25 = arith.addf %19, %24 : vector<256x128xf32>
    %26 = vector.extract_strided_slice %12 {offsets = [0, 2, 0], sizes = [16, 16, 8], strides = [1, 1, 1]} : vector<18x18x8xbf16> to vector<16x16x8xbf16>
    %27 = vector.shape_cast %26 : vector<16x16x8xbf16> to vector<256x8xbf16>
    %c2 = arith.constant 2 : index
    %c0_21 = arith.constant 0 : index
    %c0_22 = arith.constant 0 : index
    %28 = vector.load %arg5[%c2, %c0_21, %c0_22] : memref<9x8x128xbf16, #tpu.memory_space<vmem>>, vector<1x8x128xbf16>
    %29 = vector.shape_cast %28 : vector<1x8x128xbf16> to vector<8x128xbf16>
    %cst_23 = arith.constant dense<0.000000e+00> : vector<256x128xf32>
    %30 = tpu.matmul %27, %29, %cst_23 {dimension_numbers = #tpu.dot_dimension_numbers<[1], [0], [0], [1], [0, 0, 1, 1], [], []>} : vector<256x8xbf16>, vector<8x128xbf16>, vector<256x128xf32> -> vector<256x128xf32>
    %31 = arith.addf %25, %30 : vector<256x128xf32>
    %32 = vector.extract_strided_slice %12 {offsets = [1, 0, 0], sizes = [16, 16, 8], strides = [1, 1, 1]} : vector<18x18x8xbf16> to vector<16x16x8xbf16>
    %33 = vector.shape_cast %32 : vector<16x16x8xbf16> to vector<256x8xbf16>
    %c3 = arith.constant 3 : index
    %c0_24 = arith.constant 0 : index
    %c0_25 = arith.constant 0 : index
    %34 = vector.load %arg5[%c3, %c0_24, %c0_25] : memref<9x8x128xbf16, #tpu.memory_space<vmem>>, vector<1x8x128xbf16>
    %35 = vector.shape_cast %34 : vector<1x8x128xbf16> to vector<8x128xbf16>
    %cst_26 = arith.constant dense<0.000000e+00> : vector<256x128xf32>
    %36 = tpu.matmul %33, %35, %cst_26 {dimension_numbers = #tpu.dot_dimension_numbers<[1], [0], [0], [1], [0, 0, 1, 1], [], []>} : vector<256x8xbf16>, vector<8x128xbf16>, vector<256x128xf32> -> vector<256x128xf32>
    %37 = arith.addf %31, %36 : vector<256x128xf32>
    %38 = vector.extract_strided_slice %12 {offsets = [1, 1, 0], sizes = [16, 16, 8], strides = [1, 1, 1]} : vector<18x18x8xbf16> to vector<16x16x8xbf16>
    %39 = vector.shape_cast %38 : vector<16x16x8xbf16> to vector<256x8xbf16>
    %c4 = arith.constant 4 : index
    %c0_27 = arith.constant 0 : index
    %c0_28 = arith.constant 0 : index
    %40 = vector.load %arg5[%c4, %c0_27, %c0_28] : memref<9x8x128xbf16, #tpu.memory_space<vmem>>, vector<1x8x128xbf16>
    %41 = vector.shape_cast %40 : vector<1x8x128xbf16> to vector<8x128xbf16>
    %cst_29 = arith.constant dense<0.000000e+00> : vector<256x128xf32>
    %42 = tpu.matmul %39, %41, %cst_29 {dimension_numbers = #tpu.dot_dimension_numbers<[1], [0], [0], [1], [0, 0, 1, 1], [], []>} : vector<256x8xbf16>, vector<8x128xbf16>, vector<256x128xf32> -> vector<256x128xf32>
    %43 = arith.addf %37, %42 : vector<256x128xf32>
    %44 = vector.extract_strided_slice %12 {offsets = [1, 2, 0], sizes = [16, 16, 8], strides = [1, 1, 1]} : vector<18x18x8xbf16> to vector<16x16x8xbf16>
    %45 = vector.shape_cast %44 : vector<16x16x8xbf16> to vector<256x8xbf16>
    %c5 = arith.constant 5 : index
    %c0_30 = arith.constant 0 : index
    %c0_31 = arith.constant 0 : index
    %46 = vector.load %arg5[%c5, %c0_30, %c0_31] : memref<9x8x128xbf16, #tpu.memory_space<vmem>>, vector<1x8x128xbf16>
    %47 = vector.shape_cast %46 : vector<1x8x128xbf16> to vector<8x128xbf16>
    %cst_32 = arith.constant dense<0.000000e+00> : vector<256x128xf32>
    %48 = tpu.matmul %45, %47, %cst_32 {dimension_numbers = #tpu.dot_dimension_numbers<[1], [0], [0], [1], [0, 0, 1, 1], [], []>} : vector<256x8xbf16>, vector<8x128xbf16>, vector<256x128xf32> -> vector<256x128xf32>
    %49 = arith.addf %43, %48 : vector<256x128xf32>
    %50 = vector.extract_strided_slice %12 {offsets = [2, 0, 0], sizes = [16, 16, 8], strides = [1, 1, 1]} : vector<18x18x8xbf16> to vector<16x16x8xbf16>
    %51 = vector.shape_cast %50 : vector<16x16x8xbf16> to vector<256x8xbf16>
    %c6 = arith.constant 6 : index
    %c0_33 = arith.constant 0 : index
    %c0_34 = arith.constant 0 : index
    %52 = vector.load %arg5[%c6, %c0_33, %c0_34] : memref<9x8x128xbf16, #tpu.memory_space<vmem>>, vector<1x8x128xbf16>
    %53 = vector.shape_cast %52 : vector<1x8x128xbf16> to vector<8x128xbf16>
    %cst_35 = arith.constant dense<0.000000e+00> : vector<256x128xf32>
    %54 = tpu.matmul %51, %53, %cst_35 {dimension_numbers = #tpu.dot_dimension_numbers<[1], [0], [0], [1], [0, 0, 1, 1], [], []>} : vector<256x8xbf16>, vector<8x128xbf16>, vector<256x128xf32> -> vector<256x128xf32>
    %55 = arith.addf %49, %54 : vector<256x128xf32>
    %56 = vector.extract_strided_slice %12 {offsets = [2, 1, 0], sizes = [16, 16, 8], strides = [1, 1, 1]} : vector<18x18x8xbf16> to vector<16x16x8xbf16>
    %57 = vector.shape_cast %56 : vector<16x16x8xbf16> to vector<256x8xbf16>
    %c7 = arith.constant 7 : index
    %c0_36 = arith.constant 0 : index
    %c0_37 = arith.constant 0 : index
    %58 = vector.load %arg5[%c7, %c0_36, %c0_37] : memref<9x8x128xbf16, #tpu.memory_space<vmem>>, vector<1x8x128xbf16>
    %59 = vector.shape_cast %58 : vector<1x8x128xbf16> to vector<8x128xbf16>
    %cst_38 = arith.constant dense<0.000000e+00> : vector<256x128xf32>
    %60 = tpu.matmul %57, %59, %cst_38 {dimension_numbers = #tpu.dot_dimension_numbers<[1], [0], [0], [1], [0, 0, 1, 1], [], []>} : vector<256x8xbf16>, vector<8x128xbf16>, vector<256x128xf32> -> vector<256x128xf32>
    %61 = arith.addf %55, %60 : vector<256x128xf32>
    %62 = vector.extract_strided_slice %12 {offsets = [2, 2, 0], sizes = [16, 16, 8], strides = [1, 1, 1]} : vector<18x18x8xbf16> to vector<16x16x8xbf16>
    %63 = vector.shape_cast %62 : vector<16x16x8xbf16> to vector<256x8xbf16>
    %c8 = arith.constant 8 : index
    %c0_39 = arith.constant 0 : index
    %c0_40 = arith.constant 0 : index
    %64 = vector.load %arg5[%c8, %c0_39, %c0_40] : memref<9x8x128xbf16, #tpu.memory_space<vmem>>, vector<1x8x128xbf16>
    %65 = vector.shape_cast %64 : vector<1x8x128xbf16> to vector<8x128xbf16>
    %cst_41 = arith.constant dense<0.000000e+00> : vector<256x128xf32>
    %66 = tpu.matmul %63, %65, %cst_41 {dimension_numbers = #tpu.dot_dimension_numbers<[1], [0], [0], [1], [0, 0, 1, 1], [], []>} : vector<256x8xbf16>, vector<8x128xbf16>, vector<256x128xf32> -> vector<256x128xf32>
    %67 = arith.addf %61, %66 : vector<256x128xf32>
    %cst_42 = arith.constant dense<0.000000e+00> : vector<128xf32>
    %68 = vector.multi_reduction <add>, %67, %cst_42 [0] : vector<256x128xf32> to vector<128xf32>
    %69 = vector.shape_cast %68 : vector<128xf32> to vector<1x128xf32>
    %70 = arith.mulf %67, %67 : vector<256x128xf32>
    %cst_43 = arith.constant dense<0.000000e+00> : vector<128xf32>
    %71 = vector.multi_reduction <add>, %70, %cst_43 [0] : vector<256x128xf32> to vector<128xf32>
    %72 = vector.shape_cast %71 : vector<128xf32> to vector<1x128xf32>
    %73 = tpu.concatenate %69, %72 in 0 : vector<1x128xf32>, vector<1x128xf32> -> vector<2x128xf32>
    %74 = vector.shape_cast %73 : vector<2x128xf32> to vector<1x1x2x128xf32>
    %c0_44 = arith.constant 0 : index
    %c0_45 = arith.constant 0 : index
    %c0_46 = arith.constant 0 : index
    %c0_47 = arith.constant 0 : index
    %75 = vector.load %arg7[%c0_44, %c0_45, %c0_46, %c0_47] : memref<1x1x2x128xf32, #tpu.memory_space<vmem>>, vector<1x1x2x128xf32>
    tpu.vector_store %arg7[%c0_44, %c0_45, %c0_46, %c0_47], %74 {strides = array<i32>} : memref<1x1x2x128xf32, #tpu.memory_space<vmem>>, vector<1x1x2x128xf32>,
    %76 = vector.shape_cast %67 : vector<256x128xf32> to vector<1x16x16x128xf32>
    %77 = arith.truncf %76 : vector<1x16x16x128xf32> to vector<1x16x16x128xbf16>
    %c0_48 = arith.constant 0 : index
    %c0_49 = arith.constant 0 : index
    %c0_50 = arith.constant 0 : index
    %c0_51 = arith.constant 0 : index
    %78 = vector.load %arg6[%c0_48, %c0_49, %c0_50, %c0_51] : memref<1x16x16x128xbf16, #tpu.memory_space<vmem>>, vector<1x16x16x128xbf16>
    tpu.vector_store %arg6[%c0_48, %c0_49, %c0_50, %c0_51], %77 {strides = array<i32>} : memref<1x16x16x128xbf16, #tpu.memory_space<vmem>>, vector<1x16x16x128xbf16>,
    return
  }
  func.func @transform_0(%arg0: i32, %arg1: i32) -> (i32, i32, i32, i32) {
    %c16_i32 = arith.constant 16 : i32
    %0 = arith.muli %arg1, %c16_i32 : i32
    %c1_i32 = arith.constant 1 : i32
    %1 = arith.subi %0, %c1_i32 : i32
    %c0_i32 = arith.constant 0 : i32
    %2 = arith.maxsi %1, %c0_i32 : i32
    %c0_i32_0 = arith.constant 0 : i32
    %c0_i32_1 = arith.constant 0 : i32
    %c0_i32_2 = arith.constant 0 : i32
    return %arg0, %2, %c0_i32_0, %c0_i32_1 : i32, i32, i32, i32
  }
  func.func @transform_1(%arg0: i32, %arg1: i32) -> (i32, i32, i32, i32) {
    %c0_i32 = arith.constant 0 : i32
    %c0_i32_0 = arith.constant 0 : i32
    %c0_i32_1 = arith.constant 0 : i32
    return %arg0, %arg1, %c0_i32, %c0_i32_0 : i32, i32, i32, i32
  }
  func.func @transform_2(%arg0: i32, %arg1: i32) -> (i32, i32, i32, i32) {
    %c1_i32 = arith.constant 1 : i32
    %0 = arith.addi %arg1, %c1_i32 : i32
    %c16_i32 = arith.constant 16 : i32
    %1 = arith.muli %0, %c16_i32 : i32
    %c15_i32 = arith.constant 15 : i32
    %2 = arith.minsi %1, %c15_i32 : i32
    %c0_i32 = arith.constant 0 : i32
    %c0_i32_0 = arith.constant 0 : i32
    %c0_i32_1 = arith.constant 0 : i32
    return %arg0, %2, %c0_i32, %c0_i32_0 : i32, i32, i32, i32
  }
  func.func @transform_3(%arg0: i32, %arg1: i32) -> (i32, i32, i32) {
    %c0_i32 = arith.constant 0 : i32
    %c0_i32_0 = arith.constant 0 : i32
    %c0_i32_1 = arith.constant 0 : i32
    %c0_i32_2 = arith.constant 0 : i32
    return %c0_i32, %c0_i32_0, %c0_i32_1 : i32, i32, i32
  }
  func.func @transform_4(%arg0: i32, %arg1: i32) -> (i32, i32, i32, i32) {
    %c0_i32 = arith.constant 0 : i32
    %c0_i32_0 = arith.constant 0 : i32
    %c0_i32_1 = arith.constant 0 : i32
    return %arg0, %arg1, %c0_i32, %c0_i32_0 : i32, i32, i32, i32
  }
  func.func @transform_5(%arg0: i32, %arg1: i32) -> (i32, i32, i32, i32) {
    %c0_i32 = arith.constant 0 : i32
    %c0_i32_0 = arith.constant 0 : i32
    %c0_i32_1 = arith.constant 0 : i32
    return %arg0, %arg1, %c0_i32, %c0_i32_0 : i32, i32, i32, i32
  }
}

module attributes {stable_mosaic.version = 11 : i64} {
  func.func @conv2_kernel(%arg0: i32, %arg1: i32, %arg2: memref<1x1x16x128xbf16, #tpu.memory_space<vmem>>, %arg3: memref<1x16x16x128xbf16, #tpu.memory_space<vmem>>, %arg4: memref<1x1x16x128xbf16, #tpu.memory_space<vmem>>, %arg5: memref<1x128xf32, #tpu.memory_space<vmem>>, %arg6: memref<1x128xf32, #tpu.memory_space<vmem>>, %arg7: memref<1152x128xbf16, #tpu.memory_space<vmem>>, %arg8: memref<1x16x16x128xbf16, #tpu.memory_space<vmem>>, %arg9: memref<1x1x2x128xf32, #tpu.memory_space<vmem>>, %arg10: memref<18x18x128xbf16, #tpu.memory_space<vmem>>, %arg11: memref<256x1152xbf16, #tpu.memory_space<vmem>>) attributes {dimension_semantics = [#tpu.dimension_semantics<parallel>, #tpu.dimension_semantics<parallel>], iteration_bounds = array<i64: 2, 1>, scalar_prefetch = 0 : i64, scratch_operands = 2 : i64, tpu.core_type = #tpu.core_type<tc>, window_params = [{transform_indices = @transform_0, window_bounds = array<i64: 1, 1, 16, 128>}, {transform_indices = @transform_1, window_bounds = array<i64: 1, 16, 16, 128>}, {transform_indices = @transform_2, window_bounds = array<i64: 1, 1, 16, 128>}, {pipeline_mode = #tpu.pipeline_mode<synchronous>, transform_indices = @transform_3, window_bounds = array<i64: 1, 128>}, {pipeline_mode = #tpu.pipeline_mode<synchronous>, transform_indices = @transform_4, window_bounds = array<i64: 1, 128>}, {pipeline_mode = #tpu.pipeline_mode<synchronous>, transform_indices = @transform_5, window_bounds = array<i64: 1152, 128>}, {transform_indices = @transform_6, window_bounds = array<i64: 1, 16, 16, 128>}, {transform_indices = @transform_7, window_bounds = array<i64: 1, 1, 2, 128>}]} {
    %c0 = arith.constant 0 : index
    %c0_0 = arith.constant 0 : index
    %c0_1 = arith.constant 0 : index
    %c0_2 = arith.constant 0 : index
    %0 = vector.load %arg2[%c0, %c0_0, %c0_1, %c0_2] : memref<1x1x16x128xbf16, #tpu.memory_space<vmem>>, vector<1x1x16x128xbf16>
    %1 = vector.shape_cast %0 : vector<1x1x16x128xbf16> to vector<1x16x128xbf16>
    %2 = arith.extf %1 : vector<1x16x128xbf16> to vector<1x16x128xf32>
    %c0_3 = arith.constant 0 : index
    %c0_4 = arith.constant 0 : index
    %3 = vector.load %arg5[%c0_3, %c0_4] : memref<1x128xf32, #tpu.memory_space<vmem>>, vector<1x128xf32>
    %4 = vector.shape_cast %3 : vector<1x128xf32> to vector<1x1x128xf32>
    %5 = vector.broadcast %4 : vector<1x1x128xf32> to vector<1x16x128xf32>
    %6 = arith.mulf %2, %5 : vector<1x16x128xf32>
    %c0_5 = arith.constant 0 : index
    %c0_6 = arith.constant 0 : index
    %7 = vector.load %arg6[%c0_5, %c0_6] : memref<1x128xf32, #tpu.memory_space<vmem>>, vector<1x128xf32>
    %8 = vector.shape_cast %7 : vector<1x128xf32> to vector<1x1x128xf32>
    %9 = vector.broadcast %8 : vector<1x1x128xf32> to vector<1x16x128xf32>
    %10 = arith.addf %6, %9 : vector<1x16x128xf32>
    %cst = arith.constant 0.000000e+00 : f32
    %11 = vector.broadcast %cst : f32 to vector<1x16x128xf32>
    %12 = arith.maximumf %10, %11 : vector<1x16x128xf32>
    %13 = arith.truncf %12 : vector<1x16x128xf32> to vector<1x16x128xbf16>
    %c0_7 = arith.constant 0 : index
    %c0_8 = arith.constant 0 : index
    %c0_9 = arith.constant 0 : index
    %c0_10 = arith.constant 0 : index
    %14 = vector.load %arg3[%c0_7, %c0_8, %c0_9, %c0_10] : memref<1x16x16x128xbf16, #tpu.memory_space<vmem>>, vector<1x16x16x128xbf16>
    %15 = vector.shape_cast %14 : vector<1x16x16x128xbf16> to vector<16x16x128xbf16>
    %16 = arith.extf %15 : vector<16x16x128xbf16> to vector<16x16x128xf32>
    %c0_11 = arith.constant 0 : index
    %c0_12 = arith.constant 0 : index
    %17 = vector.load %arg5[%c0_11, %c0_12] : memref<1x128xf32, #tpu.memory_space<vmem>>, vector<1x128xf32>
    %18 = vector.shape_cast %17 : vector<1x128xf32> to vector<1x1x128xf32>
    %19 = vector.broadcast %18 : vector<1x1x128xf32> to vector<16x16x128xf32>
    %20 = arith.mulf %16, %19 : vector<16x16x128xf32>
    %c0_13 = arith.constant 0 : index
    %c0_14 = arith.constant 0 : index
    %21 = vector.load %arg6[%c0_13, %c0_14] : memref<1x128xf32, #tpu.memory_space<vmem>>, vector<1x128xf32>
    %22 = vector.shape_cast %21 : vector<1x128xf32> to vector<1x1x128xf32>
    %23 = vector.broadcast %22 : vector<1x1x128xf32> to vector<16x16x128xf32>
    %24 = arith.addf %20, %23 : vector<16x16x128xf32>
    %cst_15 = arith.constant 0.000000e+00 : f32
    %25 = vector.broadcast %cst_15 : f32 to vector<16x16x128xf32>
    %26 = arith.maximumf %24, %25 : vector<16x16x128xf32>
    %27 = arith.truncf %26 : vector<16x16x128xf32> to vector<16x16x128xbf16>
    %c0_16 = arith.constant 0 : index
    %c0_17 = arith.constant 0 : index
    %c0_18 = arith.constant 0 : index
    %c0_19 = arith.constant 0 : index
    %28 = vector.load %arg4[%c0_16, %c0_17, %c0_18, %c0_19] : memref<1x1x16x128xbf16, #tpu.memory_space<vmem>>, vector<1x1x16x128xbf16>
    %29 = vector.shape_cast %28 : vector<1x1x16x128xbf16> to vector<1x16x128xbf16>
    %30 = arith.extf %29 : vector<1x16x128xbf16> to vector<1x16x128xf32>
    %c0_20 = arith.constant 0 : index
    %c0_21 = arith.constant 0 : index
    %31 = vector.load %arg5[%c0_20, %c0_21] : memref<1x128xf32, #tpu.memory_space<vmem>>, vector<1x128xf32>
    %32 = vector.shape_cast %31 : vector<1x128xf32> to vector<1x1x128xf32>
    %33 = vector.broadcast %32 : vector<1x1x128xf32> to vector<1x16x128xf32>
    %34 = arith.mulf %30, %33 : vector<1x16x128xf32>
    %c0_22 = arith.constant 0 : index
    %c0_23 = arith.constant 0 : index
    %35 = vector.load %arg6[%c0_22, %c0_23] : memref<1x128xf32, #tpu.memory_space<vmem>>, vector<1x128xf32>
    %36 = vector.shape_cast %35 : vector<1x128xf32> to vector<1x1x128xf32>
    %37 = vector.broadcast %36 : vector<1x1x128xf32> to vector<1x16x128xf32>
    %38 = arith.addf %34, %37 : vector<1x16x128xf32>
    %cst_24 = arith.constant 0.000000e+00 : f32
    %39 = vector.broadcast %cst_24 : f32 to vector<1x16x128xf32>
    %40 = arith.maximumf %38, %39 : vector<1x16x128xf32>
    %41 = arith.truncf %40 : vector<1x16x128xf32> to vector<1x16x128xbf16>
    %cst_25 = arith.constant 0.000000e+00 : bf16
    %42 = vector.broadcast %cst_25 : bf16 to vector<18x1x128xbf16>
    %c0_26 = arith.constant 0 : index
    %c0_27 = arith.constant 0 : index
    %c0_28 = arith.constant 0 : index
    %43 = vector.load %arg10[%c0_26, %c0_27, %c0_28] : memref<18x18x128xbf16, #tpu.memory_space<vmem>>, vector<18x1x128xbf16>
    tpu.vector_store %arg10[%c0_26, %c0_27, %c0_28], %42 {strides = array<i32>} : memref<18x18x128xbf16, #tpu.memory_space<vmem>>, vector<18x1x128xbf16>,
    %c0_29 = arith.constant 0 : index
    %c17 = arith.constant 17 : index
    %c0_30 = arith.constant 0 : index
    %44 = vector.load %arg10[%c0_29, %c17, %c0_30] : memref<18x18x128xbf16, #tpu.memory_space<vmem>>, vector<18x1x128xbf16>
    tpu.vector_store %arg10[%c0_29, %c17, %c0_30], %42 {strides = array<i32>} : memref<18x18x128xbf16, #tpu.memory_space<vmem>>, vector<18x1x128xbf16>,
    %c0_i32 = arith.constant 0 : i32
    %45 = arith.cmpi eq, %arg1, %c0_i32 : i32
    %cst_31 = arith.constant 0.000000e+00 : bf16
    %46 = vector.broadcast %cst_31 : bf16 to vector<1x16x128xbf16>
    %47 = arith.select %45, %46, %13 : vector<1x16x128xbf16>
    %c0_32 = arith.constant 0 : index
    %c1 = arith.constant 1 : index
    %c0_33 = arith.constant 0 : index
    %48 = vector.load %arg10[%c0_32, %c1, %c0_33] : memref<18x18x128xbf16, #tpu.memory_space<vmem>>, vector<1x16x128xbf16>
    tpu.vector_store %arg10[%c0_32, %c1, %c0_33], %47 {strides = array<i32>} : memref<18x18x128xbf16, #tpu.memory_space<vmem>>, vector<1x16x128xbf16>,
    %c1_34 = arith.constant 1 : index
    %c1_35 = arith.constant 1 : index
    %c0_36 = arith.constant 0 : index
    %49 = vector.load %arg10[%c1_34, %c1_35, %c0_36] : memref<18x18x128xbf16, #tpu.memory_space<vmem>>, vector<16x16x128xbf16>
    tpu.vector_store %arg10[%c1_34, %c1_35, %c0_36], %27 {strides = array<i32>} : memref<18x18x128xbf16, #tpu.memory_space<vmem>>, vector<16x16x128xbf16>,
    %c0_i32_37 = arith.constant 0 : i32
    %50 = arith.cmpi eq, %arg1, %c0_i32_37 : i32
    %cst_38 = arith.constant 0.000000e+00 : bf16
    %51 = vector.broadcast %cst_38 : bf16 to vector<1x16x128xbf16>
    %52 = arith.select %50, %51, %41 : vector<1x16x128xbf16>
    %c17_39 = arith.constant 17 : index
    %c1_40 = arith.constant 1 : index
    %c0_41 = arith.constant 0 : index
    %53 = vector.load %arg10[%c17_39, %c1_40, %c0_41] : memref<18x18x128xbf16, #tpu.memory_space<vmem>>, vector<1x16x128xbf16>
    tpu.vector_store %arg10[%c17_39, %c1_40, %c0_41], %52 {strides = array<i32>} : memref<18x18x128xbf16, #tpu.memory_space<vmem>>, vector<1x16x128xbf16>,
    %c0_42 = arith.constant 0 : index
    %c0_43 = arith.constant 0 : index
    %c0_44 = arith.constant 0 : index
    %54 = vector.load %arg10[%c0_42, %c0_43, %c0_44] : memref<18x18x128xbf16, #tpu.memory_space<vmem>>, vector<16x16x128xbf16>
    %55 = vector.shape_cast %54 : vector<16x16x128xbf16> to vector<256x128xbf16>
    %c0_45 = arith.constant 0 : index
    %c0_46 = arith.constant 0 : index
    %56 = vector.load %arg11[%c0_45, %c0_46] : memref<256x1152xbf16, #tpu.memory_space<vmem>>, vector<256x128xbf16>
    tpu.vector_store %arg11[%c0_45, %c0_46], %55 {strides = array<i32>} : memref<256x1152xbf16, #tpu.memory_space<vmem>>, vector<256x128xbf16>,
    %c0_47 = arith.constant 0 : index
    %c1_48 = arith.constant 1 : index
    %c0_49 = arith.constant 0 : index
    %57 = vector.load %arg10[%c0_47, %c1_48, %c0_49] : memref<18x18x128xbf16, #tpu.memory_space<vmem>>, vector<16x16x128xbf16>
    %58 = vector.shape_cast %57 : vector<16x16x128xbf16> to vector<256x128xbf16>
    %c0_50 = arith.constant 0 : index
    %c128 = arith.constant 128 : index
    %59 = vector.load %arg11[%c0_50, %c128] : memref<256x1152xbf16, #tpu.memory_space<vmem>>, vector<256x128xbf16>
    tpu.vector_store %arg11[%c0_50, %c128], %58 {strides = array<i32>} : memref<256x1152xbf16, #tpu.memory_space<vmem>>, vector<256x128xbf16>,
    %c0_51 = arith.constant 0 : index
    %c2 = arith.constant 2 : index
    %c0_52 = arith.constant 0 : index
    %60 = vector.load %arg10[%c0_51, %c2, %c0_52] : memref<18x18x128xbf16, #tpu.memory_space<vmem>>, vector<16x16x128xbf16>
    %61 = vector.shape_cast %60 : vector<16x16x128xbf16> to vector<256x128xbf16>
    %c0_53 = arith.constant 0 : index
    %c256 = arith.constant 256 : index
    %62 = vector.load %arg11[%c0_53, %c256] : memref<256x1152xbf16, #tpu.memory_space<vmem>>, vector<256x128xbf16>
    tpu.vector_store %arg11[%c0_53, %c256], %61 {strides = array<i32>} : memref<256x1152xbf16, #tpu.memory_space<vmem>>, vector<256x128xbf16>,
    %c1_54 = arith.constant 1 : index
    %c0_55 = arith.constant 0 : index
    %c0_56 = arith.constant 0 : index
    %63 = vector.load %arg10[%c1_54, %c0_55, %c0_56] : memref<18x18x128xbf16, #tpu.memory_space<vmem>>, vector<16x16x128xbf16>
    %64 = vector.shape_cast %63 : vector<16x16x128xbf16> to vector<256x128xbf16>
    %c0_57 = arith.constant 0 : index
    %c384 = arith.constant 384 : index
    %65 = vector.load %arg11[%c0_57, %c384] : memref<256x1152xbf16, #tpu.memory_space<vmem>>, vector<256x128xbf16>
    tpu.vector_store %arg11[%c0_57, %c384], %64 {strides = array<i32>} : memref<256x1152xbf16, #tpu.memory_space<vmem>>, vector<256x128xbf16>,
    %c1_58 = arith.constant 1 : index
    %c1_59 = arith.constant 1 : index
    %c0_60 = arith.constant 0 : index
    %66 = vector.load %arg10[%c1_58, %c1_59, %c0_60] : memref<18x18x128xbf16, #tpu.memory_space<vmem>>, vector<16x16x128xbf16>
    %67 = vector.shape_cast %66 : vector<16x16x128xbf16> to vector<256x128xbf16>
    %c0_61 = arith.constant 0 : index
    %c512 = arith.constant 512 : index
    %68 = vector.load %arg11[%c0_61, %c512] : memref<256x1152xbf16, #tpu.memory_space<vmem>>, vector<256x128xbf16>
    tpu.vector_store %arg11[%c0_61, %c512], %67 {strides = array<i32>} : memref<256x1152xbf16, #tpu.memory_space<vmem>>, vector<256x128xbf16>,
    %c1_62 = arith.constant 1 : index
    %c2_63 = arith.constant 2 : index
    %c0_64 = arith.constant 0 : index
    %69 = vector.load %arg10[%c1_62, %c2_63, %c0_64] : memref<18x18x128xbf16, #tpu.memory_space<vmem>>, vector<16x16x128xbf16>
    %70 = vector.shape_cast %69 : vector<16x16x128xbf16> to vector<256x128xbf16>
    %c0_65 = arith.constant 0 : index
    %c640 = arith.constant 640 : index
    %71 = vector.load %arg11[%c0_65, %c640] : memref<256x1152xbf16, #tpu.memory_space<vmem>>, vector<256x128xbf16>
    tpu.vector_store %arg11[%c0_65, %c640], %70 {strides = array<i32>} : memref<256x1152xbf16, #tpu.memory_space<vmem>>, vector<256x128xbf16>,
    %c2_66 = arith.constant 2 : index
    %c0_67 = arith.constant 0 : index
    %c0_68 = arith.constant 0 : index
    %72 = vector.load %arg10[%c2_66, %c0_67, %c0_68] : memref<18x18x128xbf16, #tpu.memory_space<vmem>>, vector<16x16x128xbf16>
    %73 = vector.shape_cast %72 : vector<16x16x128xbf16> to vector<256x128xbf16>
    %c0_69 = arith.constant 0 : index
    %c768 = arith.constant 768 : index
    %74 = vector.load %arg11[%c0_69, %c768] : memref<256x1152xbf16, #tpu.memory_space<vmem>>, vector<256x128xbf16>
    tpu.vector_store %arg11[%c0_69, %c768], %73 {strides = array<i32>} : memref<256x1152xbf16, #tpu.memory_space<vmem>>, vector<256x128xbf16>,
    %c2_70 = arith.constant 2 : index
    %c1_71 = arith.constant 1 : index
    %c0_72 = arith.constant 0 : index
    %75 = vector.load %arg10[%c2_70, %c1_71, %c0_72] : memref<18x18x128xbf16, #tpu.memory_space<vmem>>, vector<16x16x128xbf16>
    %76 = vector.shape_cast %75 : vector<16x16x128xbf16> to vector<256x128xbf16>
    %c0_73 = arith.constant 0 : index
    %c896 = arith.constant 896 : index
    %77 = vector.load %arg11[%c0_73, %c896] : memref<256x1152xbf16, #tpu.memory_space<vmem>>, vector<256x128xbf16>
    tpu.vector_store %arg11[%c0_73, %c896], %76 {strides = array<i32>} : memref<256x1152xbf16, #tpu.memory_space<vmem>>, vector<256x128xbf16>,
    %c2_74 = arith.constant 2 : index
    %c2_75 = arith.constant 2 : index
    %c0_76 = arith.constant 0 : index
    %78 = vector.load %arg10[%c2_74, %c2_75, %c0_76] : memref<18x18x128xbf16, #tpu.memory_space<vmem>>, vector<16x16x128xbf16>
    %79 = vector.shape_cast %78 : vector<16x16x128xbf16> to vector<256x128xbf16>
    %c0_77 = arith.constant 0 : index
    %c1024 = arith.constant 1024 : index
    %80 = vector.load %arg11[%c0_77, %c1024] : memref<256x1152xbf16, #tpu.memory_space<vmem>>, vector<256x128xbf16>
    tpu.vector_store %arg11[%c0_77, %c1024], %79 {strides = array<i32>} : memref<256x1152xbf16, #tpu.memory_space<vmem>>, vector<256x128xbf16>,
    %c0_78 = arith.constant 0 : index
    %c0_79 = arith.constant 0 : index
    %81 = vector.load %arg11[%c0_78, %c0_79] : memref<256x1152xbf16, #tpu.memory_space<vmem>>, vector<256x1152xbf16>
    %c0_80 = arith.constant 0 : index
    %c0_81 = arith.constant 0 : index
    %82 = vector.load %arg7[%c0_80, %c0_81] : memref<1152x128xbf16, #tpu.memory_space<vmem>>, vector<1152x128xbf16>
    %cst_82 = arith.constant dense<0.000000e+00> : vector<256x128xf32>
    %83 = tpu.matmul %81, %82, %cst_82 {dimension_numbers = #tpu.dot_dimension_numbers<[1], [0], [0], [1], [0, 0, 1, 1], [], []>} : vector<256x1152xbf16>, vector<1152x128xbf16>, vector<256x128xf32> -> vector<256x128xf32>
    %cst_83 = arith.constant dense<0.000000e+00> : vector<128xf32>
    %84 = vector.multi_reduction <add>, %83, %cst_83 [0] : vector<256x128xf32> to vector<128xf32>
    %85 = vector.shape_cast %84 : vector<128xf32> to vector<1x128xf32>
    %86 = arith.mulf %83, %83 : vector<256x128xf32>
    %cst_84 = arith.constant dense<0.000000e+00> : vector<128xf32>
    %87 = vector.multi_reduction <add>, %86, %cst_84 [0] : vector<256x128xf32> to vector<128xf32>
    %88 = vector.shape_cast %87 : vector<128xf32> to vector<1x128xf32>
    %89 = tpu.concatenate %85, %88 in 0 : vector<1x128xf32>, vector<1x128xf32> -> vector<2x128xf32>
    %90 = vector.shape_cast %89 : vector<2x128xf32> to vector<1x1x2x128xf32>
    %c0_85 = arith.constant 0 : index
    %c0_86 = arith.constant 0 : index
    %c0_87 = arith.constant 0 : index
    %c0_88 = arith.constant 0 : index
    %91 = vector.load %arg9[%c0_85, %c0_86, %c0_87, %c0_88] : memref<1x1x2x128xf32, #tpu.memory_space<vmem>>, vector<1x1x2x128xf32>
    tpu.vector_store %arg9[%c0_85, %c0_86, %c0_87, %c0_88], %90 {strides = array<i32>} : memref<1x1x2x128xf32, #tpu.memory_space<vmem>>, vector<1x1x2x128xf32>,
    %92 = vector.shape_cast %83 : vector<256x128xf32> to vector<1x16x16x128xf32>
    %93 = arith.truncf %92 : vector<1x16x16x128xf32> to vector<1x16x16x128xbf16>
    %c0_89 = arith.constant 0 : index
    %c0_90 = arith.constant 0 : index
    %c0_91 = arith.constant 0 : index
    %c0_92 = arith.constant 0 : index
    %94 = vector.load %arg8[%c0_89, %c0_90, %c0_91, %c0_92] : memref<1x16x16x128xbf16, #tpu.memory_space<vmem>>, vector<1x16x16x128xbf16>
    tpu.vector_store %arg8[%c0_89, %c0_90, %c0_91, %c0_92], %93 {strides = array<i32>} : memref<1x16x16x128xbf16, #tpu.memory_space<vmem>>, vector<1x16x16x128xbf16>,
    return
  }
  func.func @transform_0(%arg0: i32, %arg1: i32) -> (i32, i32, i32, i32) {
    %c16_i32 = arith.constant 16 : i32
    %0 = arith.muli %arg1, %c16_i32 : i32
    %c1_i32 = arith.constant 1 : i32
    %1 = arith.subi %0, %c1_i32 : i32
    %c0_i32 = arith.constant 0 : i32
    %2 = arith.maxsi %1, %c0_i32 : i32
    %c0_i32_0 = arith.constant 0 : i32
    %c0_i32_1 = arith.constant 0 : i32
    %c0_i32_2 = arith.constant 0 : i32
    return %arg0, %2, %c0_i32_0, %c0_i32_1 : i32, i32, i32, i32
  }
  func.func @transform_1(%arg0: i32, %arg1: i32) -> (i32, i32, i32, i32) {
    %c0_i32 = arith.constant 0 : i32
    %c0_i32_0 = arith.constant 0 : i32
    %c0_i32_1 = arith.constant 0 : i32
    return %arg0, %arg1, %c0_i32, %c0_i32_0 : i32, i32, i32, i32
  }
  func.func @transform_2(%arg0: i32, %arg1: i32) -> (i32, i32, i32, i32) {
    %c1_i32 = arith.constant 1 : i32
    %0 = arith.addi %arg1, %c1_i32 : i32
    %c16_i32 = arith.constant 16 : i32
    %1 = arith.muli %0, %c16_i32 : i32
    %c15_i32 = arith.constant 15 : i32
    %2 = arith.minsi %1, %c15_i32 : i32
    %c0_i32 = arith.constant 0 : i32
    %c0_i32_0 = arith.constant 0 : i32
    %c0_i32_1 = arith.constant 0 : i32
    return %arg0, %2, %c0_i32, %c0_i32_0 : i32, i32, i32, i32
  }
  func.func @transform_3(%arg0: i32, %arg1: i32) -> (i32, i32) {
    %c0_i32 = arith.constant 0 : i32
    %c0_i32_0 = arith.constant 0 : i32
    %c0_i32_1 = arith.constant 0 : i32
    return %c0_i32, %c0_i32_0 : i32, i32
  }
  func.func @transform_4(%arg0: i32, %arg1: i32) -> (i32, i32) {
    %c0_i32 = arith.constant 0 : i32
    %c0_i32_0 = arith.constant 0 : i32
    %c0_i32_1 = arith.constant 0 : i32
    return %c0_i32, %c0_i32_0 : i32, i32
  }
  func.func @transform_5(%arg0: i32, %arg1: i32) -> (i32, i32) {
    %c0_i32 = arith.constant 0 : i32
    %c0_i32_0 = arith.constant 0 : i32
    %c0_i32_1 = arith.constant 0 : i32
    return %c0_i32, %c0_i32_0 : i32, i32
  }
  func.func @transform_6(%arg0: i32, %arg1: i32) -> (i32, i32, i32, i32) {
    %c0_i32 = arith.constant 0 : i32
    %c0_i32_0 = arith.constant 0 : i32
    %c0_i32_1 = arith.constant 0 : i32
    return %arg0, %arg1, %c0_i32, %c0_i32_0 : i32, i32, i32, i32
  }
  func.func @transform_7(%arg0: i32, %arg1: i32) -> (i32, i32, i32, i32) {
    %c0_i32 = arith.constant 0 : i32
    %c0_i32_0 = arith.constant 0 : i32
    %c0_i32_1 = arith.constant 0 : i32
    return %arg0, %arg1, %c0_i32, %c0_i32_0 : i32, i32, i32, i32
  }
}

module attributes {stable_mosaic.version = 11 : i64} {
  func.func @bn_relu_out_kernel(%arg0: i32, %arg1: i32, %arg2: memref<1x16x16x128xbf16, #tpu.memory_space<vmem>>, %arg3: memref<1x128xf32, #tpu.memory_space<vmem>>, %arg4: memref<1x128xf32, #tpu.memory_space<vmem>>, %arg5: memref<1x16x16x8xf32, #tpu.memory_space<vmem>>) attributes {dimension_semantics = [#tpu.dimension_semantics<parallel>, #tpu.dimension_semantics<parallel>], iteration_bounds = array<i64: 2, 1>, scalar_prefetch = 0 : i64, scratch_operands = 0 : i64, tpu.core_type = #tpu.core_type<tc>, window_params = [{transform_indices = @transform_0, window_bounds = array<i64: 1, 16, 16, 128>}, {pipeline_mode = #tpu.pipeline_mode<synchronous>, transform_indices = @transform_1, window_bounds = array<i64: 1, 128>}, {pipeline_mode = #tpu.pipeline_mode<synchronous>, transform_indices = @transform_2, window_bounds = array<i64: 1, 128>}, {transform_indices = @transform_3, window_bounds = array<i64: 1, 16, 16, 8>}]} {
    %c0 = arith.constant 0 : index
    %c0_0 = arith.constant 0 : index
    %c0_1 = arith.constant 0 : index
    %c0_2 = arith.constant 0 : index
    %0 = vector.load %arg2[%c0, %c0_0, %c0_1, %c0_2] : memref<1x16x16x128xbf16, #tpu.memory_space<vmem>>, vector<1x16x16x128xbf16>
    %1 = arith.extf %0 : vector<1x16x16x128xbf16> to vector<1x16x16x128xf32>
    %c0_3 = arith.constant 0 : index
    %c0_4 = arith.constant 0 : index
    %2 = vector.load %arg3[%c0_3, %c0_4] : memref<1x128xf32, #tpu.memory_space<vmem>>, vector<1x128xf32>
    %3 = vector.shape_cast %2 : vector<1x128xf32> to vector<1x1x1x128xf32>
    %4 = vector.broadcast %3 : vector<1x1x1x128xf32> to vector<1x16x16x128xf32>
    %5 = arith.mulf %1, %4 : vector<1x16x16x128xf32>
    %c0_5 = arith.constant 0 : index
    %c0_6 = arith.constant 0 : index
    %6 = vector.load %arg4[%c0_5, %c0_6] : memref<1x128xf32, #tpu.memory_space<vmem>>, vector<1x128xf32>
    %7 = vector.shape_cast %6 : vector<1x128xf32> to vector<1x1x1x128xf32>
    %8 = vector.broadcast %7 : vector<1x1x1x128xf32> to vector<1x16x16x128xf32>
    %9 = arith.addf %5, %8 : vector<1x16x16x128xf32>
    %cst = arith.constant 0.000000e+00 : f32
    %10 = vector.broadcast %cst : f32 to vector<1x16x16x128xf32>
    %11 = arith.maximumf %9, %10 : vector<1x16x16x128xf32>
    %12 = vector.extract_strided_slice %11 {offsets = [0, 0, 0, 0], sizes = [1, 16, 16, 8], strides = [1, 1, 1, 1]} : vector<1x16x16x128xf32> to vector<1x16x16x8xf32>
    %c0_7 = arith.constant 0 : index
    %c0_8 = arith.constant 0 : index
    %c0_9 = arith.constant 0 : index
    %c0_10 = arith.constant 0 : index
    %13 = vector.load %arg5[%c0_7, %c0_8, %c0_9, %c0_10] : memref<1x16x16x8xf32, #tpu.memory_space<vmem>>, vector<1x16x16x8xf32>
    tpu.vector_store %arg5[%c0_7, %c0_8, %c0_9, %c0_10], %12 {strides = array<i32>} : memref<1x16x16x8xf32, #tpu.memory_space<vmem>>, vector<1x16x16x8xf32>,
    return
  }
  func.func @transform_0(%arg0: i32, %arg1: i32) -> (i32, i32, i32, i32) {
    %c0_i32 = arith.constant 0 : i32
    %c0_i32_0 = arith.constant 0 : i32
    %c0_i32_1 = arith.constant 0 : i32
    return %arg0, %arg1, %c0_i32, %c0_i32_0 : i32, i32, i32, i32
  }
  func.func @transform_1(%arg0: i32, %arg1: i32) -> (i32, i32) {
    %c0_i32 = arith.constant 0 : i32
    %c0_i32_0 = arith.constant 0 : i32
    %c0_i32_1 = arith.constant 0 : i32
    return %c0_i32, %c0_i32_0 : i32, i32
  }
  func.func @transform_2(%arg0: i32, %arg1: i32) -> (i32, i32) {
    %c0_i32 = arith.constant 0 : i32
    %c0_i32_0 = arith.constant 0 : i32
    %c0_i32_1 = arith.constant 0 : i32
    return %c0_i32, %c0_i32_0 : i32, i32
  }
  func.func @transform_3(%arg0: i32, %arg1: i32) -> (i32, i32, i32, i32) {
    %c0_i32 = arith.constant 0 : i32
    %c0_i32_0 = arith.constant 0 : i32
    %c0_i32_1 = arith.constant 0 : i32
    return %arg0, %arg1, %c0_i32, %c0_i32_0 : i32, i32, i32, i32
  }
}

</mosaic_0001>

<llo_original>
// kernel: in_conv_forward.5
$region0: #{in_conv_forward.5}
  #allocation0 [shape = 'u32[]', space=smem, size = 0x4, offset = 0x4, fixed_abs, tag = 'smem constant byte address 0x4 - core index']
  #allocation1 [shape = 'u32[144,128]{1,0:T(1,128)}', space=vmem, size = 0x12000, scoped, tag = 'internal scratch']
  %s0 = inlined_call_operand.vmem [shape: bf16[2,16,16,128], index: 0, kind: input, shape index: {}]
  %s1 = inlined_call_operand.vmem [shape: f32[1,128], index: 1, kind: input, shape index: {}]
  %s2 = inlined_call_operand.vmem [shape: f32[1,128], index: 2, kind: input, shape index: {}]
  %s3 = inlined_call_operand.vmem [shape: f32[2,16,16,8], index: 3, kind: output, shape index: {}]
  %s4 = sld [smem:[#allocation0]]
  $region45: #{in_conv_forward.5} parent=0
    _
  %s6 = ssub.s32 1, %s4
  %s7 = scalar_select 0, %s6, %s4
  loop: start=0, step=1, limit=4
  $region2: #{in_conv_forward.5} parent=0 // loop_pre_header
    _
  $region3: #{in_conv_forward.5} parent=0 // loop_header
    %s9 = sphi 0, %s13
    %p10 = scmp.ge.s32.totalorder %s9, 4
    %s16 = sphi 0, %s28
    %s17 = sphi 0, %s24
    %s18 = sphi 0, %s16
    %s19 = sphi 0, %s17
    %s20 = sphi 0, %s18
    %s21 = sphi 0, %s19
    %s33 = sphi 0, %s35
    %s36 = sphi 0, %s33
    %s37 = sphi 0, %s36
    %s53 = sphi 0, %s37
    %s57 = sphi 0, %s57
    %s59 = sphi 0, %s57
    %s60 = sphi 0, %s59
    %s74 = sphi 0, %s60
    %s78 = sphi 0, %s78
    %s80 = sphi 0, %s78
    %s81 = sphi 0, %s80
    %s95 = sphi 0, %s81
    %s103 = sphi 0, %s105
    %s106 = sphi 0, %s103
    %s107 = sphi 0, %s106
    %s123 = sphi 0, %s107
  $region4: #{in_conv_forward.5} parent=0 // loop_header_branch
    %12 = sbr.rel (%p10) target = $region8
  $region5: #{in_conv_forward.5} parent=0 // loop_body
    %s14 = ssub.s32 %s9, 1
    %s15 = ssub.s32 %s9, 2
    %s22 = sadd.s32 1, %s17
    %p23 = scmp.ge.s32.totalorder %s22, 1
    %s24 = scalar_select %p23, 0, %s22
    %s25 = sadd.s32 1, %s16
    %s26 = scalar_select %p23, %s25, %s16
    %p27 = scmp.ge.s32.totalorder %s26, 2
    %s28 = scalar_select %p27, 0, %s26
    %s29 = ssub.s32 %s16, %s28
    %s30 = ssub.s32 %s17, %s24
    %s31 = sor.u32 %s29, %s30
    %p32 = scmp.eq.s32.totalorder %s31, 0
    %s34 = sadd.s32 %s33, 1
    %s35 = scalar_select %p32, %s33, %s34
    %p38 = pneg %p32
    %p39 = scmp.eq.s32.totalorder %s9, 1
    %p40 = por %p38, %p39
    %p41 = scmp.ne.s32.totalorder %s33, %s36
    %p42 = scmp.eq.s32.totalorder %s9, 0
    %p43 = por %p41, %p42
    %p44 = scmp.ne.s32.totalorder %s33, %s36
    %p45 = scmp.eq.s32.totalorder %s14, 1
    %p46 = por %p44, %p45
    %p47 = scmp.ne.s32.totalorder %s36, %s37
    %p48 = scmp.eq.s32.totalorder %s14, 0
    %p49 = por %p47, %p48
    %p50 = scmp.ne.s32.totalorder %s36, %s37
    %p51 = scmp.eq.s32.totalorder %s15, 1
    %p52 = por %p50, %p51
    %p54 = scmp.ne.s32.totalorder %s37, %s53
    %p55 = scmp.eq.s32.totalorder %s15, 0
    %p56 = por %p54, %p55
    %s58 = sadd.s32 %s57, 1
    %p61 = scmp.eq.s32.totalorder %s9, 1
    %p62 = scmp.ne.s32.totalorder %s57, %s59
    %p63 = scmp.eq.s32.totalorder %s9, 0
    %p64 = por %p62, %p63
    %p65 = scmp.ne.s32.totalorder %s57, %s59
    %p66 = scmp.eq.s32.totalorder %s14, 1
    %p67 = por %p65, %p66
    %p68 = scmp.ne.s32.totalorder %s59, %s60
    %p69 = scmp.eq.s32.totalorder %s14, 0
    %p70 = por %p68, %p69
    %p71 = scmp.ne.s32.totalorder %s59, %s60
    %p72 = scmp.eq.s32.totalorder %s15, 1
    %p73 = por %p71, %p72
    %p75 = scmp.ne.s32.totalorder %s60, %s74
    %p76 = scmp.eq.s32.totalorder %s15, 0
    %p77 = por %p75, %p76
    %s79 = sadd.s32 %s78, 1
    %p82 = scmp.eq.s32.totalorder %s9, 1
    %p83 = scmp.ne.s32.totalorder %s78, %s80
    %p84 = scmp.eq.s32.totalorder %s9, 0
    %p85 = por %p83, %p84
    %p86 = scmp.ne.s32.totalorder %s78, %s80
    %p87 = scmp.eq.s32.totalorder %s14, 1
    %p88 = por %p86, %p87
    %p89 = scmp.ne.s32.totalorder %s80, %s81
    %p90 = scmp.eq.s32.totalorder %s14, 0
    %p91 = por %p89, %p90
    %p92 = scmp.ne.s32.totalorder %s80, %s81
    %p93 = scmp.eq.s32.totalorder %s15, 1
    %p94 = por %p92, %p93
    %p96 = scmp.ne.s32.totalorder %s81, %s95
    %p97 = scmp.eq.s32.totalorder %s15, 0
    %p98 = por %p96, %p97
    %s99 = ssub.s32 %s16, %s28
    %s100 = ssub.s32 %s17, %s24
    %s101 = sor.u32 %s99, %s100
    %p102 = scmp.eq.s32.totalorder %s101, 0
    %s104 = sadd.s32 %s103, 1
    %s105 = scalar_select %p102, %s103, %s104
    %p108 = pneg %p102
    %p109 = scmp.eq.s32.totalorder %s9, 1
    %p110 = por %p108, %p109
    %p111 = scmp.ne.s32.totalorder %s103, %s106
    %p112 = scmp.eq.s32.totalorder %s9, 0
    %p113 = por %p111, %p112
    %p114 = scmp.ne.s32.totalorder %s103, %s106
    %p115 = scmp.eq.s32.totalorder %s14, 1
    %p116 = por %p114, %p115
    %p117 = scmp.ne.s32.totalorder %s106, %s107
    %p118 = scmp.eq.s32.totalorder %s14, 0
    %p119 = por %p117, %p118
    %p120 = scmp.ne.s32.totalorder %s106, %s107
    %p121 = scmp.eq.s32.totalorder %s15, 1
    %p122 = por %p120, %p121
    %p124 = scmp.ne.s32.totalorder %s107, %s123
    %p125 = scmp.eq.s32.totalorder %s15, 0
    %p126 = por %p124, %p125
    %p127 = scmp.le.s32.totalorder 1, %s9
    %p128 = scmp.lt.s32.totalorder %s9, 3
    %p129 = pnand %p127, %p128
    %p130 = pneg %p129
    // Predicated region
    $region9: #{in_conv_forward.5} parent=5 // pred_check
      _
    $region10: #{in_conv_forward.5} parent=5 // pred_check_branch
      %132 = sbr.rel (%p129) target = $region12
    $region11: #{in_conv_forward.5} parent=5 // pred_region
      %s133 = ssub.s32 %s9, 1
      // Predicated region
      $region13: #{in_conv_forward.5} parent=11 // pred_check
        %p134 = pneg %p70
      $region14: #{in_conv_forward.5} parent=11 // pred_check_branch
        %136 = sbr.rel (%p134) target = $region16
      $region15: #{in_conv_forward.5} parent=11 // pred_region
        _
      $region16: #{in_conv_forward.5} parent=11 // pred_fallthru
        _
      // Predicated region
      $region17: #{in_conv_forward.5} parent=11 // pred_check
        %p137 = pneg %p91
      $region18: #{in_conv_forward.5} parent=11 // pred_check_branch
        %139 = sbr.rel (%p137) target = $region20
      $region19: #{in_conv_forward.5} parent=11 // pred_region
        _
      $region20: #{in_conv_forward.5} parent=11 // pred_fallthru
        _
    $region12: #{in_conv_forward.5} parent=5 // pred_fallthru
      _
    %p140 = scmp.lt.s32.totalorder %s9, 2
    // Predicated region
    $region21: #{in_conv_forward.5} parent=5 // pred_check
      %p141 = pneg %p140
    $region22: #{in_conv_forward.5} parent=5 // pred_check_branch
      %143 = sbr.rel (%p141) target = $region24
    $region23: #{in_conv_forward.5} parent=5 // pred_region
      // Predicated region
      $region25: #{in_conv_forward.5} parent=23 // pred_check
        %p144 = pneg %p43
      $region26: #{in_conv_forward.5} parent=23 // pred_check_branch
        %146 = sbr.rel (%p144) target = $region28
      $region27: #{in_conv_forward.5} parent=23 // pred_region
        %s147 = smul.u32 16, %s17
        %p148 = scmp.lt.s32.totalorder %s16, 1
        %s149 = scalar_select %p148, %s16, 1
        %p150 = scmp.lt.s32.totalorder %s147, 15
        %s151 = scalar_select %p150, %s147, 15
        %s152 = smul.addr %s151, 2
        %s153 = smul.addr %s149, 32
        %s154 = sadd.s32 %s152, %s153
        %s155 = smul.addr %s154, 4
        %s156 = scalar_lea.vmem %s0, %s155
        %s157 = smul.u32 16, %s17
      $region28: #{in_conv_forward.5} parent=23 // pred_fallthru
        _
    $region24: #{in_conv_forward.5} parent=5 // pred_fallthru
      _
    %p158 = scmp.le.s32.totalorder 1, %s9
    %p159 = scmp.lt.s32.totalorder %s9, 3
    %p160 = pnand %p158, %p159
    %p161 = pneg %p160
    // Predicated region
    $region29: #{in_conv_forward.5} parent=5 // pred_check
      _
    $region30: #{in_conv_forward.5} parent=5 // pred_check_branch
      %163 = sbr.rel (%p160) target = $region32
    $region31: #{in_conv_forward.5} parent=5 // pred_region
      %s164 = ssub.s32 %s9, 1
      %s165 = smul.u32 16, %s19
      %p166 = scmp.lt.s32.totalorder %s18, 1
      %s167 = scalar_select %p166, %s18, 1
      %p168 = scmp.lt.s32.totalorder %s165, 15
      %s169 = scalar_select %p168, %s165, 15
      %s170 = smul.addr %s169, 2
      %s171 = smul.addr %s167, 32
      %s172 = sadd.s32 %s170, %s171
      %s173 = smul.addr %s172, 4
      %s174 = scalar_lea.vmem %s0, %s173
      %p175 = pneg %p49
      %p176 = pneg %p46
      %p177 = pneg %p70
      %p178 = pneg %p67
      %p179 = pneg %p91
      %p180 = pneg %p88
      %p181 = pneg %p119
      %p182 = pneg %p116
      %s183 = smul.u32 16, %s19
      %p184 = scmp.lt.s32.totalorder %s18, 1
      %s185 = scalar_select %p184, %s18, 1
      %p186 = scmp.lt.s32.totalorder %s183, 15
      %s187 = scalar_select %p186, %s183, 15
      %s188 = smul.addr %s187, 2
      %s189 = smul.addr %s185, 32
      %s190 = sadd.s32 %s188, %s189
      %s191 = smul.addr %s190, 8
      %s192 = scalar_lea.vmem %s3, %s191
      %s193 = smul.u32 16, %s19
      %p194 = scmp.lt.s32.totalorder %s18, 1
      %s195 = scalar_select %p194, %s18, 1
      %p196 = scmp.lt.s32.totalorder %s193, 15
      %s197 = scalar_select %p196, %s193, 15
      %s198 = smul.addr %s197, 2
      %s199 = smul.addr %s195, 32
      %s200 = sadd.s32 %s198, %s199
      %s201 = smul.addr %s200, 4
      %s202 = scalar_lea.vmem %s0, %s201
      %s203 = smul.u32 16, %s19
      %s204 = smul.u32 16, %s19
      %p205 = scmp.lt.s32.totalorder %s18, 1
      %s206 = scalar_select %p205, %s18, 1
      %p207 = scmp.lt.s32.totalorder %s204, 15
      %s208 = scalar_select %p207, %s204, 15
      %s209 = smul.addr %s208, 2
      %s210 = smul.addr %s206, 32
      %s211 = sadd.s32 %s209, %s210
      %s212 = smul.addr %s211, 8
      %s213 = scalar_lea.vmem %s3, %s212
      %s214 = smul.u32 16, %s19
      %v215 = vld [vmem:[%s202] sm:$0xf]
      %v216 = vld [vmem:[%s202 + $0x4] sm:$0xf]
      %v217 = vld [vmem:[%s202 + $0x8] sm:$0xf]
      %v218 = vld [vmem:[%s202 + $0xc] sm:$0xf]
      %v219 = vld [vmem:[%s202 + $0x10] sm:$0xf]
      %v220 = vld [vmem:[%s202 + $0x14] sm:$0xf]
      %v221 = vld [vmem:[%s202 + $0x18] sm:$0xf]
      %v222 = vld [vmem:[%s202 + $0x1c] sm:$0xf]
      %v223 = vld [vmem:[%s202 + $0x20] sm:$0xf]
      %v224 = vld [vmem:[%s202 + $0x24] sm:$0xf]
      %v225 = vld [vmem:[%s202 + $0x28] sm:$0xf]
      %v226 = vld [vmem:[%s202 + $0x2c] sm:$0xf]
      %v227 = vld [vmem:[%s202 + $0x30] sm:$0xf]
      %v228 = vld [vmem:[%s202 + $0x34] sm:$0xf]
      %v229 = vld [vmem:[%s202 + $0x38] sm:$0xf]
      %v230 = vld [vmem:[%s202 + $0x3c] sm:$0xf]
      %v231 = vld [vmem:[%s202 + $0x40] sm:$0xf]
      %v232 = vld [vmem:[%s202 + $0x44] sm:$0xf]
      %v233 = vld [vmem:[%s202 + $0x48] sm:$0xf]
      %v234 = vld [vmem:[%s202 + $0x4c] sm:$0xf]
      %v235 = vld [vmem:[%s202 + $0x50] sm:$0xf]
      %v236 = vld [vmem:[%s202 + $0x54] sm:$0xf]
      %v237 = vld [vmem:[%s202 + $0x58] sm:$0xf]
      %v238 = vld [vmem:[%s202 + $0x5c] sm:$0xf]
      %v239 = vld [vmem:[%s202 + $0x60] sm:$0xf]
      %v240 = vld [vmem:[%s202 + $0x64] sm:$0xf]
      %v241 = vld [vmem:[%s202 + $0x68] sm:$0xf]
      %v242 = vld [vmem:[%s202 + $0x6c] sm:$0xf]
      %v243 = vld [vmem:[%s202 + $0x70] sm:$0xf]
      %v244 = vld [vmem:[%s202 + $0x74] sm:$0xf]
      %v245 = vld [vmem:[%s202 + $0x78] sm:$0xf]
      %v246 = vld [vmem:[%s202 + $0x7c] sm:$0xf]
      %v247 = vunpack.c.l.bf16 %v215
      %v248 = vunpack.c.l.bf16 %v216
      %v249 = vunpack.c.l.bf16 %v217
      %v250 = vunpack.c.l.bf16 %v218
      %v251 = vunpack.c.l.bf16 %v219
      %v252 = vunpack.c.l.bf16 %v220
      %v253 = vunpack.c.l.bf16 %v221
      %v254 = vunpack.c.l.bf16 %v222
      %v255 = vunpack.c.l.bf16 %v223
      %v256 = vunpack.c.l.bf16 %v224
      %v257 = vunpack.c.l.bf16 %v225
      %v258 = vunpack.c.l.bf16 %v226
      %v259 = vunpack.c.l.bf16 %v227
      %v260 = vunpack.c.l.bf16 %v228
      %v261 = vunpack.c.l.bf16 %v229
      %v262 = vunpack.c.l.bf16 %v230
      %v263 = vunpack.c.l.bf16 %v231
      %v264 = vunpack.c.l.bf16 %v232
      %v265 = vunpack.c.l.bf16 %v233
      %v266 = vunpack.c.l.bf16 %v234
      %v267 = vunpack.c.l.bf16 %v235
      %v268 = vunpack.c.l.bf16 %v236
      %v269 = vunpack.c.l.bf16 %v237
      %v270 = vunpack.c.l.bf16 %v238
      %v271 = vunpack.c.l.bf16 %v239
      %v272 = vunpack.c.l.bf16 %v240
      %v273 = vunpack.c.l.bf16 %v241
      %v274 = vunpack.c.l.bf16 %v242
      %v275 = vunpack.c.l.bf16 %v243
      %v276 = vunpack.c.l.bf16 %v244
      %v277 = vunpack.c.l.bf16 %v245
      %v278 = vunpack.c.l.bf16 %v246
      %v279 = vld [vmem:[%s1] sm:$0x1]
      %v281 = vlaneseq
      %v282 = vshrl.u32 %v281, 7
      %v283 = vsub.s32 0, %v282
      %v284 = vrot.slane %v279, %v283
      %v286 = vmul.f32 %v247, %v284
      %v287 = vmul.f32 %v248, %v284
      %v288 = vmul.f32 %v249, %v284
      %v289 = vmul.f32 %v250, %v284
      %v290 = vmul.f32 %v251, %v284
      %v291 = vmul.f32 %v252, %v284
      %v292 = vmul.f32 %v253, %v284
      %v293 = vmul.f32 %v254, %v284
      %v294 = vmul.f32 %v255, %v284
      %v295 = vmul.f32 %v256, %v284
      %v296 = vmul.f32 %v257, %v284
      %v297 = vmul.f32 %v258, %v284
      %v298 = vmul.f32 %v259, %v284
      %v299 = vmul.f32 %v260, %v284
      %v300 = vmul.f32 %v261, %v284
      %v301 = vmul.f32 %v262, %v284
      %v302 = vmul.f32 %v263, %v284
      %v303 = vmul.f32 %v264, %v284
      %v304 = vmul.f32 %v265, %v284
      %v305 = vmul.f32 %v266, %v284
      %v306 = vmul.f32 %v267, %v284
      %v307 = vmul.f32 %v268, %v284
      %v308 = vmul.f32 %v269, %v284
      %v309 = vmul.f32 %v270, %v284
      %v310 = vmul.f32 %v271, %v284
      %v311 = vmul.f32 %v272, %v284
      %v312 = vmul.f32 %v273, %v284
      %v313 = vmul.f32 %v274, %v284
      %v314 = vmul.f32 %v275, %v284
      %v315 = vmul.f32 %v276, %v284
      %v316 = vmul.f32 %v277, %v284
      %v317 = vmul.f32 %v278, %v284
      %v318 = vld [vmem:[%s2] sm:$0x1]
      %v320 = vlaneseq
      %v321 = vshrl.u32 %v320, 7
      %v322 = vsub.s32 0, %v321
      %v323 = vrot.slane %v318, %v322
      %v325 = vadd.f32 %v286, %v323
      %v326 = vadd.f32 %v287, %v323
      %v327 = vadd.f32 %v288, %v323
      %v328 = vadd.f32 %v289, %v323
      %v329 = vadd.f32 %v290, %v323
      %v330 = vadd.f32 %v291, %v323
      %v331 = vadd.f32 %v292, %v323
      %v332 = vadd.f32 %v293, %v323
      %v333 = vadd.f32 %v294, %v323
      %v334 = vadd.f32 %v295, %v323
      %v335 = vadd.f32 %v296, %v323
      %v336 = vadd.f32 %v297, %v323
      %v337 = vadd.f32 %v298, %v323
      %v338 = vadd.f32 %v299, %v323
      %v339 = vadd.f32 %v300, %v323
      %v340 = vadd.f32 %v301, %v323
      %v341 = vadd.f32 %v302, %v323
      %v342 = vadd.f32 %v303, %v323
      %v343 = vadd.f32 %v304, %v323
      %v344 = vadd.f32 %v305, %v323
      %v345 = vadd.f32 %v306, %v323
      %v346 = vadd.f32 %v307, %v323
      %v347 = vadd.f32 %v308, %v323
      %v348 = vadd.f32 %v309, %v323
      %v349 = vadd.f32 %v310, %v323
      %v350 = vadd.f32 %v311, %v323
      %v351 = vadd.f32 %v312, %v323
      %v352 = vadd.f32 %v313, %v323
      %v353 = vadd.f32 %v314, %v323
      %v354 = vadd.f32 %v315, %v323
      %v355 = vadd.f32 %v316, %v323
      %v356 = vadd.f32 %v317, %v323
      %v357 = vmax.f32 %v325, 0.0
      %v358 = vmax.f32 %v326, 0.0
      %v359 = vmax.f32 %v327, 0.0
      %v360 = vmax.f32 %v328, 0.0
      %v361 = vmax.f32 %v329, 0.0
      %v362 = vmax.f32 %v330, 0.0
      %v363 = vmax.f32 %v331, 0.0
      %v364 = vmax.f32 %v332, 0.0
      %v365 = vmax.f32 %v333, 0.0
      %v366 = vmax.f32 %v334, 0.0
      %v367 = vmax.f32 %v335, 0.0
      %v368 = vmax.f32 %v336, 0.0
      %v369 = vmax.f32 %v337, 0.0
      %v370 = vmax.f32 %v338, 0.0
      %v371 = vmax.f32 %v339, 0.0
      %v372 = vmax.f32 %v340, 0.0
      %v373 = vmax.f32 %v341, 0.0
      %v374 = vmax.f32 %v342, 0.0
      %v375 = vmax.f32 %v343, 0.0
      %v376 = vmax.f32 %v344, 0.0
      %v377 = vmax.f32 %v345, 0.0
      %v378 = vmax.f32 %v346, 0.0
      %v379 = vmax.f32 %v347, 0.0
      %v380 = vmax.f32 %v348, 0.0
      %v381 = vmax.f32 %v349, 0.0
      %v382 = vmax.f32 %v350, 0.0
      %v383 = vmax.f32 %v351, 0.0
      %v384 = vmax.f32 %v352, 0.0
      %v385 = vmax.f32 %v353, 0.0
      %v386 = vmax.f32 %v354, 0.0
      %v387 = vmax.f32 %v355, 0.0
      %v388 = vmax.f32 %v356, 0.0
      %vm389 = vcmask 64512
      %390 = vst.msk [vmem:[%s213] sm:$0xff] %vm389, %v357
      %391 = vst.msk [vmem:[%s213 + $0x8] sm:$0xff] %vm389, %v358
      %392 = vst.msk [vmem:[%s213 + $0x10] sm:$0xff] %vm389, %v359
      %393 = vst.msk [vmem:[%s213 + $0x18] sm:$0xff] %vm389, %v360
      %394 = vst.msk [vmem:[%s213 + $0x20] sm:$0xff] %vm389, %v361
      %395 = vst.msk [vmem:[%s213 + $0x28] sm:$0xff] %vm389, %v362
      %396 = vst.msk [vmem:[%s213 + $0x30] sm:$0xff] %vm389, %v363
      %397 = vst.msk [vmem:[%s213 + $0x38] sm:$0xff] %vm389, %v364
      %398 = vst.msk [vmem:[%s213 + $0x40] sm:$0xff] %vm389, %v365
      %399 = vst.msk [vmem:[%s213 + $0x48] sm:$0xff] %vm389, %v366
      %400 = vst.msk [vmem:[%s213 + $0x50] sm:$0xff] %vm389, %v367
      %401 = vst.msk [vmem:[%s213 + $0x58] sm:$0xff] %vm389, %v368
      %402 = vst.msk [vmem:[%s213 + $0x60] sm:$0xff] %vm389, %v369
      %403 = vst.msk [vmem:[%s213 + $0x68] sm:$0xff] %vm389, %v370
      %404 = vst.msk [vmem:[%s213 + $0x70] sm:$0xff] %vm389, %v371
      %405 = vst.msk [vmem:[%s213 + $0x78] sm:$0xff] %vm389, %v372
      %406 = vst.msk [vmem:[%s213 + $0x80] sm:$0xff] %vm389, %v373
      %407 = vst.msk [vmem:[%s213 + $0x88] sm:$0xff] %vm389, %v374
      %408 = vst.msk [vmem:[%s213 + $0x90] sm:$0xff] %vm389, %v375
      %409 = vst.msk [vmem:[%s213 + $0x98] sm:$0xff] %vm389, %v376
      %410 = vst.msk [vmem:[%s213 + $0xa0] sm:$0xff] %vm389, %v377
      %411 = vst.msk [vmem:[%s213 + $0xa8] sm:$0xff] %vm389, %v378
      %412 = vst.msk [vmem:[%s213 + $0xb0] sm:$0xff] %vm389, %v379
      %413 = vst.msk [vmem:[%s213 + $0xb8] sm:$0xff] %vm389, %v380
      %414 = vst.msk [vmem:[%s213 + $0xc0] sm:$0xff] %vm389, %v381
      %415 = vst.msk [vmem:[%s213 + $0xc8] sm:$0xff] %vm389, %v382
      %416 = vst.msk [vmem:[%s213 + $0xd0] sm:$0xff] %vm389, %v383
      %417 = vst.msk [vmem:[%s213 + $0xd8] sm:$0xff] %vm389, %v384
      %418 = vst.msk [vmem:[%s213 + $0xe0] sm:$0xff] %vm389, %v385
      %419 = vst.msk [vmem:[%s213 + $0xe8] sm:$0xff] %vm389, %v386
      %420 = vst.msk [vmem:[%s213 + $0xf0] sm:$0xff] %vm389, %v387
      %421 = vst.msk [vmem:[%s213 + $0xf8] sm:$0xff] %vm389, %v388
      %s422 = smul.u32 16, %s19
      %p423 = scmp.lt.s32.totalorder %s18, 1
      %s424 = scalar_select %p423, %s18, 1
      %p425 = scmp.lt.s32.totalorder %s422, 15
      %s426 = scalar_select %p425, %s422, 15
      %s427 = smul.addr %s426, 2
      %s428 = smul.addr %s424, 32
      %s429 = sadd.s32 %s427, %s428
      %s430 = smul.addr %s429, 8
      %s431 = scalar_lea.vmem %s3, %s430
      // Predicated region
      $region33: #{in_conv_forward.5} parent=31 // pred_check
        %p432 = pneg %p116
      $region34: #{in_conv_forward.5} parent=31 // pred_check_branch
        %434 = sbr.rel (%p432) target = $region36
      $region35: #{in_conv_forward.5} parent=31 // pred_region
        %s435 = smul.u32 16, %s19
      $region36: #{in_conv_forward.5} parent=31 // pred_fallthru
        _
    $region32: #{in_conv_forward.5} parent=5 // pred_fallthru
      _
    %p436 = scmp.le.s32.totalorder 2, %s9
    // Predicated region
    $region37: #{in_conv_forward.5} parent=5 // pred_check
      %p437 = pneg %p436
    $region38: #{in_conv_forward.5} parent=5 // pred_check_branch
      %439 = sbr.rel (%p437) target = $region40
    $region39: #{in_conv_forward.5} parent=5 // pred_region
      %s440 = ssub.s32 %s9, 2
      // Predicated region
      $region41: #{in_conv_forward.5} parent=39 // pred_check
        %p441 = pneg %p122
      $region42: #{in_conv_forward.5} parent=39 // pred_check_branch
        %443 = sbr.rel (%p441) target = $region44
      $region43: #{in_conv_forward.5} parent=39 // pred_region
        %s444 = smul.u32 16, %s21
        %p445 = scmp.lt.s32.totalorder %s20, 1
        %s446 = scalar_select %p445, %s20, 1
        %p447 = scmp.lt.s32.totalorder %s444, 15
        %s448 = scalar_select %p447, %s444, 15
        %s449 = smul.addr %s448, 2
        %s450 = smul.addr %s446, 32
        %s451 = sadd.s32 %s449, %s450
        %s452 = smul.addr %s451, 8
        %s453 = scalar_lea.vmem %s3, %s452
      $region44: #{in_conv_forward.5} parent=39 // pred_fallthru
        _
    $region40: #{in_conv_forward.5} parent=5 // pred_fallthru
      _
  $region6: #{in_conv_forward.5} parent=0 // loop_footer
    %s13 = sadd.s32 1, %s9
  $region7: #{in_conv_forward.5} parent=0 // loop_footer_branch
    %8 = sbr.rel target = $region3
  $region8: #{in_conv_forward.5} parent=0 // loop_exit
    _

// kernel: in_conv_forward.3
$region0: #{in_conv_forward.3}
  #allocation0 [shape = 'u32[]', space=smem, size = 0x4, offset = 0x4, fixed_abs, tag = 'smem constant byte address 0x4 - core index']
  #allocation1 [shape = 'u32[144,128]{1,0:T(1,128)}', space=vmem, size = 0x12000, scoped, tag = 'internal scratch']
  %s0 = inlined_call_operand.vmem [shape: bf16[2,16,18,8], index: 0, kind: input, shape index: {}, may-alias: {0,1,2}]
  %s1 = inlined_call_operand.vmem [shape: bf16[2,16,18,8], index: 1, kind: input, shape index: {}, may-alias: {0,1,2}]
  %s2 = inlined_call_operand.vmem [shape: bf16[2,16,18,8], index: 2, kind: input, shape index: {}, may-alias: {0,1,2}]
  %s3 = inlined_call_operand.vmem [shape: bf16[9,8,128], index: 3, kind: input, shape index: {}]
  %s4 = inlined_call_operand.vmem [shape: bf16[2,16,16,128], index: 4, kind: output, shape index: {0}]
  %s5 = inlined_call_operand.vmem [shape: f32[2,1,2,128], index: 5, kind: output, shape index: {1}]
  %6 = xla_tuple %s4, %s5
  %s7 = sld [smem:[#allocation0]]
  $region57: #{in_conv_forward.3} parent=0
    _
  %s9 = ssub.s32 1, %s7
  %s10 = scalar_select 0, %s9, %s7
  loop: start=0, step=1, limit=4
  $region2: #{in_conv_forward.3} parent=0 // loop_pre_header
    _
  $region3: #{in_conv_forward.3} parent=0 // loop_header
    %s12 = sphi 0, %s16
    %p13 = scmp.ge.s32.totalorder %s12, 4
    %s19 = sphi 0, %s31
    %s20 = sphi 0, %s27
    %s21 = sphi 0, %s19
    %s22 = sphi 0, %s20
    %s23 = sphi 0, %s21
    %s24 = sphi 0, %s22
    %s44 = sphi 0, %s46
    %s47 = sphi 0, %s44
    %s48 = sphi 0, %s47
    %s64 = sphi 0, %s48
    %s72 = sphi 0, %s74
    %s75 = sphi 0, %s72
    %s76 = sphi 0, %s75
    %s92 = sphi 0, %s76
    %s108 = sphi 0, %s110
    %s111 = sphi 0, %s108
    %s112 = sphi 0, %s111
    %s128 = sphi 0, %s112
    %s132 = sphi 0, %s132
    %s134 = sphi 0, %s132
    %s135 = sphi 0, %s134
    %s149 = sphi 0, %s135
    %s157 = sphi 0, %s159
    %s160 = sphi 0, %s157
    %s161 = sphi 0, %s160
    %s177 = sphi 0, %s161
    %s185 = sphi 0, %s187
    %s188 = sphi 0, %s185
    %s189 = sphi 0, %s188
    %s205 = sphi 0, %s189
  $region4: #{in_conv_forward.3} parent=0 // loop_header_branch
    %15 = sbr.rel (%p13) target = $region8
  $region5: #{in_conv_forward.3} parent=0 // loop_body
    %s17 = ssub.s32 %s12, 1
    %s18 = ssub.s32 %s12, 2
    %s25 = sadd.s32 1, %s20
    %p26 = scmp.ge.s32.totalorder %s25, 1
    %s27 = scalar_select %p26, 0, %s25
    %s28 = sadd.s32 1, %s19
    %s29 = scalar_select %p26, %s28, %s19
    %p30 = scmp.ge.s32.totalorder %s29, 2
    %s31 = scalar_select %p30, 0, %s29
    %s32 = smul.u32 %s20, 16
    %s33 = ssub.s32 %s32, 1
    %p34 = scmp.gt.s32.totalorder %s33, 0
    %s35 = scalar_select %p34, %s33, 0
    %s36 = smul.u32 %s27, 16
    %s37 = ssub.s32 %s36, 1
    %p38 = scmp.gt.s32.totalorder %s37, 0
    %s39 = scalar_select %p38, %s37, 0
    %s40 = ssub.s32 %s19, %s31
    %s41 = ssub.s32 %s35, %s39
    %s42 = sor.u32 %s40, %s41
    %p43 = scmp.eq.s32.totalorder %s42, 0
    %s45 = sadd.s32 %s44, 1
    %s46 = scalar_select %p43, %s44, %s45
    %p49 = pneg %p43
    %p50 = scmp.eq.s32.totalorder %s12, 1
    %p51 = por %p49, %p50
    %p52 = scmp.ne.s32.totalorder %s44, %s47
    %p53 = scmp.eq.s32.totalorder %s12, 0
    %p54 = por %p52, %p53
    %p55 = scmp.ne.s32.totalorder %s44, %s47
    %p56 = scmp.eq.s32.totalorder %s17, 1
    %p57 = por %p55, %p56
    %p58 = scmp.ne.s32.totalorder %s47, %s48
    %p59 = scmp.eq.s32.totalorder %s17, 0
    %p60 = por %p58, %p59
    %p61 = scmp.ne.s32.totalorder %s47, %s48
    %p62 = scmp.eq.s32.totalorder %s18, 1
    %p63 = por %p61, %p62
    %p65 = scmp.ne.s32.totalorder %s48, %s64
    %p66 = scmp.eq.s32.totalorder %s18, 0
    %p67 = por %p65, %p66
    %s68 = ssub.s32 %s19, %s31
    %s69 = ssub.s32 %s20, %s27
    %s70 = sor.u32 %s68, %s69
    %p71 = scmp.eq.s32.totalorder %s70, 0
    %s73 = sadd.s32 %s72, 1
    %s74 = scalar_select %p71, %s72, %s73
    %p77 = pneg %p71
    %p78 = scmp.eq.s32.totalorder %s12, 1
    %p79 = por %p77, %p78
    %p80 = scmp.ne.s32.totalorder %s72, %s75
    %p81 = scmp.eq.s32.totalorder %s12, 0
    %p82 = por %p80, %p81
    %p83 = scmp.ne.s32.totalorder %s72, %s75
    %p84 = scmp.eq.s32.totalorder %s17, 1
    %p85 = por %p83, %p84
    %p86 = scmp.ne.s32.totalorder %s75, %s76
    %p87 = scmp.eq.s32.totalorder %s17, 0
    %p88 = por %p86, %p87
    %p89 = scmp.ne.s32.totalorder %s75, %s76
    %p90 = scmp.eq.s32.totalorder %s18, 1
    %p91 = por %p89, %p90
    %p93 = scmp.ne.s32.totalorder %s76, %s92
    %p94 = scmp.eq.s32.totalorder %s18, 0
    %p95 = por %p93, %p94
    %s96 = sadd.s32 %s20, 1
    %s97 = smul.u32 %s96, 16
    %p98 = scmp.lt.s32.totalorder %s97, 15
    %s99 = scalar_select %p98, %s97, 15
    %s100 = sadd.s32 %s27, 1
    %s101 = smul.u32 %s100, 16
    %p102 = scmp.lt.s32.totalorder %s101, 15
    %s103 = scalar_select %p102, %s101, 15
    %s104 = ssub.s32 %s19, %s31
    %s105 = ssub.s32 %s99, %s103
    %s106 = sor.u32 %s104, %s105
    %p107 = scmp.eq.s32.totalorder %s106, 0
    %s109 = sadd.s32 %s108, 1
    %s110 = scalar_select %p107, %s108, %s109
    %p113 = pneg %p107
    %p114 = scmp.eq.s32.totalorder %s12, 1
    %p115 = por %p113, %p114
    %p116 = scmp.ne.s32.totalorder %s108, %s111
    %p117 = scmp.eq.s32.totalorder %s12, 0
    %p118 = por %p116, %p117
    %p119 = scmp.ne.s32.totalorder %s108, %s111
    %p120 = scmp.eq.s32.totalorder %s17, 1
    %p121 = por %p119, %p120
    %p122 = scmp.ne.s32.totalorder %s111, %s112
    %p123 = scmp.eq.s32.totalorder %s17, 0
    %p124 = por %p122, %p123
    %p125 = scmp.ne.s32.totalorder %s111, %s112
    %p126 = scmp.eq.s32.totalorder %s18, 1
    %p127 = por %p125, %p126
    %p129 = scmp.ne.s32.totalorder %s112, %s128
    %p130 = scmp.eq.s32.totalorder %s18, 0
    %p131 = por %p129, %p130
    %s133 = sadd.s32 %s132, 1
    %p136 = scmp.eq.s32.totalorder %s12, 1
    %p137 = scmp.ne.s32.totalorder %s132, %s134
    %p138 = scmp.eq.s32.totalorder %s12, 0
    %p139 = por %p137, %p138
    %p140 = scmp.ne.s32.totalorder %s132, %s134
    %p141 = scmp.eq.s32.totalorder %s17, 1
    %p142 = por %p140, %p141
    %p143 = scmp.ne.s32.totalorder %s134, %s135
    %p144 = scmp.eq.s32.totalorder %s17, 0
    %p145 = por %p143, %p144
    %p146 = scmp.ne.s32.totalorder %s134, %s135
    %p147 = scmp.eq.s32.totalorder %s18, 1
    %p148 = por %p146, %p147
    %p150 = scmp.ne.s32.totalorder %s135, %s149
    %p151 = scmp.eq.s32.totalorder %s18, 0
    %p152 = por %p150, %p151
    %s153 = ssub.s32 %s19, %s31
    %s154 = ssub.s32 %s20, %s27
    %s155 = sor.u32 %s153, %s154
    %p156 = scmp.eq.s32.totalorder %s155, 0
    %s158 = sadd.s32 %s157, 1
    %s159 = scalar_select %p156, %s157, %s158
    %p162 = pneg %p156
    %p163 = scmp.eq.s32.totalorder %s12, 1
    %p164 = por %p162, %p163
    %p165 = scmp.ne.s32.totalorder %s157, %s160
    %p166 = scmp.eq.s32.totalorder %s12, 0
    %p167 = por %p165, %p166
    %p168 = scmp.ne.s32.totalorder %s157, %s160
    %p169 = scmp.eq.s32.totalorder %s17, 1
    %p170 = por %p168, %p169
    %p171 = scmp.ne.s32.totalorder %s160, %s161
    %p172 = scmp.eq.s32.totalorder %s17, 0
    %p173 = por %p171, %p172
    %p174 = scmp.ne.s32.totalorder %s160, %s161
    %p175 = scmp.eq.s32.totalorder %s18, 1
    %p176 = por %p174, %p175
    %p178 = scmp.ne.s32.totalorder %s161, %s177
    %p179 = scmp.eq.s32.totalorder %s18, 0
    %p180 = por %p178, %p179
    %s181 = ssub.s32 %s19, %s31
    %s182 = ssub.s32 %s20, %s27
    %s183 = sor.u32 %s181, %s182
    %p184 = scmp.eq.s32.totalorder %s183, 0
    %s186 = sadd.s32 %s185, 1
    %s187 = scalar_select %p184, %s185, %s186
    %p190 = pneg %p184
    %p191 = scmp.eq.s32.totalorder %s12, 1
    %p192 = por %p190, %p191
    %p193 = scmp.ne.s32.totalorder %s185, %s188
    %p194 = scmp.eq.s32.totalorder %s12, 0
    %p195 = por %p193, %p194
    %p196 = scmp.ne.s32.totalorder %s185, %s188
    %p197 = scmp.eq.s32.totalorder %s17, 1
    %p198 = por %p196, %p197
    %p199 = scmp.ne.s32.totalorder %s188, %s189
    %p200 = scmp.eq.s32.totalorder %s17, 0
    %p201 = por %p199, %p200
    %p202 = scmp.ne.s32.totalorder %s188, %s189
    %p203 = scmp.eq.s32.totalorder %s18, 1
    %p204 = por %p202, %p203
    %p206 = scmp.ne.s32.totalorder %s189, %s205
    %p207 = scmp.eq.s32.totalorder %s18, 0
    %p208 = por %p206, %p207
    %p209 = scmp.le.s32.totalorder 1, %s12
    %p210 = scmp.lt.s32.totalorder %s12, 3
    %p211 = pnand %p209, %p210
    %p212 = pneg %p211
    // Predicated region
    $region9: #{in_conv_forward.3} parent=5 // pred_check
      _
    $region10: #{in_conv_forward.3} parent=5 // pred_check_branch
      %214 = sbr.rel (%p211) target = $region12
    $region11: #{in_conv_forward.3} parent=5 // pred_region
      %s215 = ssub.s32 %s12, 1
      // Predicated region
      $region13: #{in_conv_forward.3} parent=11 // pred_check
        %p216 = pneg %p145
      $region14: #{in_conv_forward.3} parent=11 // pred_check_branch
        %218 = sbr.rel (%p216) target = $region16
      $region15: #{in_conv_forward.3} parent=11 // pred_region
        _
      $region16: #{in_conv_forward.3} parent=11 // pred_fallthru
        _
    $region12: #{in_conv_forward.3} parent=5 // pred_fallthru
      _
    %p219 = scmp.lt.s32.totalorder %s12, 2
    // Predicated region
    $region17: #{in_conv_forward.3} parent=5 // pred_check
      %p220 = pneg %p219
    $region18: #{in_conv_forward.3} parent=5 // pred_check_branch
      %222 = sbr.rel (%p220) target = $region20
    $region19: #{in_conv_forward.3} parent=5 // pred_region
      // Predicated region
      $region21: #{in_conv_forward.3} parent=19 // pred_check
        %p223 = pneg %p54
      $region22: #{in_conv_forward.3} parent=19 // pred_check_branch
        %225 = sbr.rel (%p223) target = $region24
      $region23: #{in_conv_forward.3} parent=19 // pred_region
        %s226 = smul.u32 %s20, 16
        %s227 = ssub.s32 %s226, 1
        %p228 = scmp.gt.s32.totalorder %s227, 0
        %s229 = scalar_select %p228, %s227, 0
        %p230 = scmp.lt.s32.totalorder %s19, 1
        %s231 = scalar_select %p230, %s19, 1
        %p232 = scmp.lt.s32.totalorder %s229, 15
        %s233 = scalar_select %p232, %s229, 15
        %s234 = smul.addr %s233, 3
        %s235 = smul.addr %s231, 48
        %s236 = sadd.s32 %s234, %s235
        %s237 = smul.addr %s236, 4
        %s238 = scalar_lea.vmem %s0, %s237
        %s239 = smul.u32 %s20, 16
        %s240 = ssub.s32 %s239, 1
        %p241 = scmp.gt.s32.totalorder %s240, 0
        %s242 = scalar_select %p241, %s240, 0
      $region24: #{in_conv_forward.3} parent=19 // pred_fallthru
        _
      // Predicated region
      $region25: #{in_conv_forward.3} parent=19 // pred_check
        %p243 = pneg %p82
      $region26: #{in_conv_forward.3} parent=19 // pred_check_branch
        %245 = sbr.rel (%p243) target = $region28
      $region27: #{in_conv_forward.3} parent=19 // pred_region
        %s246 = smul.u32 16, %s20
        %p247 = scmp.lt.s32.totalorder %s19, 1
        %s248 = scalar_select %p247, %s19, 1
        %p249 = scmp.lt.s32.totalorder %s246, 15
        %s250 = scalar_select %p249, %s246, 15
        %s251 = smul.addr %s250, 3
        %s252 = smul.addr %s248, 48
        %s253 = sadd.s32 %s251, %s252
        %s254 = smul.addr %s253, 4
        %s255 = scalar_lea.vmem %s1, %s254
        %s256 = smul.u32 16, %s20
      $region28: #{in_conv_forward.3} parent=19 // pred_fallthru
        _
      // Predicated region
      $region29: #{in_conv_forward.3} parent=19 // pred_check
        %p257 = pneg %p118
      $region30: #{in_conv_forward.3} parent=19 // pred_check_branch
        %259 = sbr.rel (%p257) target = $region32
      $region31: #{in_conv_forward.3} parent=19 // pred_region
        %s260 = sadd.s32 %s20, 1
        %s261 = smul.u32 %s260, 16
        %p262 = scmp.lt.s32.totalorder %s261, 15
        %s263 = scalar_select %p262, %s261, 15
        %p264 = scmp.lt.s32.totalorder %s19, 1
        %s265 = scalar_select %p264, %s19, 1
        %p266 = scmp.lt.s32.totalorder %s263, 15
        %s267 = scalar_select %p266, %s263, 15
        %s268 = smul.addr %s267, 3
        %s269 = smul.addr %s265, 48
        %s270 = sadd.s32 %s268, %s269
        %s271 = smul.addr %s270, 4
        %s272 = scalar_lea.vmem %s2, %s271
        %s273 = sadd.s32 %s20, 1
        %s274 = smul.u32 %s273, 16
        %p275 = scmp.lt.s32.totalorder %s274, 15
        %s276 = scalar_select %p275, %s274, 15
      $region32: #{in_conv_forward.3} parent=19 // pred_fallthru
        _
    $region20: #{in_conv_forward.3} parent=5 // pred_fallthru
      _
    %p277 = scmp.le.s32.totalorder 1, %s12
    %p278 = scmp.lt.s32.totalorder %s12, 3
    %p279 = pnand %p277, %p278
    %p280 = pneg %p279
    // Predicated region
    $region33: #{in_conv_forward.3} parent=5 // pred_check
      _
    $region34: #{in_conv_forward.3} parent=5 // pred_check_branch
      %282 = sbr.rel (%p279) target = $region36
    $region35: #{in_conv_forward.3} parent=5 // pred_region
      %s283 = ssub.s32 %s12, 1
      %s284 = smul.u32 %s22, 16
      %s285 = ssub.s32 %s284, 1
      %p286 = scmp.gt.s32.totalorder %s285, 0
      %s287 = scalar_select %p286, %s285, 0
      %p288 = scmp.lt.s32.totalorder %s21, 1
      %s289 = scalar_select %p288, %s21, 1
      %p290 = scmp.lt.s32.totalorder %s287, 15
      %s291 = scalar_select %p290, %s287, 15
      %s292 = smul.addr %s291, 3
      %s293 = smul.addr %s289, 48
      %s294 = sadd.s32 %s292, %s293
      %s295 = smul.addr %s294, 4
      %s296 = scalar_lea.vmem %s0, %s295
      %p297 = pneg %p60
      %p298 = pneg %p57
      %s299 = smul.u32 16, %s22
      %p300 = scmp.lt.s32.totalorder %s21, 1
      %s301 = scalar_select %p300, %s21, 1
      %p302 = scmp.lt.s32.totalorder %s299, 15
      %s303 = scalar_select %p302, %s299, 15
      %s304 = smul.addr %s303, 3
      %s305 = smul.addr %s301, 48
      %s306 = sadd.s32 %s304, %s305
      %s307 = smul.addr %s306, 4
      %s308 = scalar_lea.vmem %s1, %s307
      %p309 = pneg %p88
      %p310 = pneg %p85
      %s311 = sadd.s32 %s22, 1
      %s312 = smul.u32 %s311, 16
      %p313 = scmp.lt.s32.totalorder %s312, 15
      %s314 = scalar_select %p313, %s312, 15
      %p315 = scmp.lt.s32.totalorder %s21, 1
      %s316 = scalar_select %p315, %s21, 1
      %p317 = scmp.lt.s32.totalorder %s314, 15
      %s318 = scalar_select %p317, %s314, 15
      %s319 = smul.addr %s318, 3
      %s320 = smul.addr %s316, 48
      %s321 = sadd.s32 %s319, %s320
      %s322 = smul.addr %s321, 4
      %s323 = scalar_lea.vmem %s2, %s322
      %p324 = pneg %p124
      %p325 = pneg %p121
      %p326 = pneg %p145
      %p327 = pneg %p142
      %p328 = pneg %p173
      %p329 = pneg %p170
      %s330 = smul.u32 16, %s22
      %p331 = scmp.lt.s32.totalorder %s21, 1
      %s332 = scalar_select %p331, %s21, 1
      %p333 = scmp.lt.s32.totalorder %s330, 15
      %s334 = scalar_select %p333, %s330, 15
      %s335 = smul.addr %s334, 2
      %s336 = smul.addr %s332, 32
      %s337 = sadd.s32 %s335, %s336
      %s338 = smul.addr %s337, 4
      %s339 = scalar_lea.vmem %s4, %s338
      %p340 = pneg %p201
      %p341 = pneg %p198
      %p342 = scmp.lt.s32.totalorder %s21, 1
      %s343 = scalar_select %p342, %s21, 1
      %p344 = scmp.lt.s32.totalorder %s22, 0
      %s345 = scalar_select %p344, %s22, 0
      %s346 = sadd.s32 %s345, %s343
      %s347 = smul.addr %s346, 2
      %s348 = scalar_lea.vmem %s5, %s347
      %s349 = smul.u32 %s22, 16
      %s350 = ssub.s32 %s349, 1
      %p351 = scmp.gt.s32.totalorder %s350, 0
      %s352 = scalar_select %p351, %s350, 0
      %p353 = scmp.lt.s32.totalorder %s21, 1
      %s354 = scalar_select %p353, %s21, 1
      %p355 = scmp.lt.s32.totalorder %s352, 15
      %s356 = scalar_select %p355, %s352, 15
      %s357 = smul.addr %s356, 3
      %s358 = smul.addr %s354, 48
      %s359 = sadd.s32 %s357, %s358
      %s360 = smul.addr %s359, 4
      %s361 = scalar_lea.vmem %s0, %s360
      %s362 = smul.u32 %s22, 16
      %s363 = ssub.s32 %s362, 1
      %p364 = scmp.gt.s32.totalorder %s363, 0
      %s365 = scalar_select %p364, %s363, 0
      %s366 = smul.u32 16, %s22
      %p367 = scmp.lt.s32.totalorder %s21, 1
      %s368 = scalar_select %p367, %s21, 1
      %p369 = scmp.lt.s32.totalorder %s366, 15
      %s370 = scalar_select %p369, %s366, 15
      %s371 = smul.addr %s370, 3
      %s372 = smul.addr %s368, 48
      %s373 = sadd.s32 %s371, %s372
      %s374 = smul.addr %s373, 4
      %s375 = scalar_lea.vmem %s1, %s374
      %s376 = smul.u32 16, %s22
      %s377 = sadd.s32 %s22, 1
      %s378 = smul.u32 %s377, 16
      %p379 = scmp.lt.s32.totalorder %s378, 15
      %s380 = scalar_select %p379, %s378, 15
      %p381 = scmp.lt.s32.totalorder %s21, 1
      %s382 = scalar_select %p381, %s21, 1
      %p383 = scmp.lt.s32.totalorder %s380, 15
      %s384 = scalar_select %p383, %s380, 15
      %s385 = smul.addr %s384, 3
      %s386 = smul.addr %s382, 48
      %s387 = sadd.s32 %s385, %s386
      %s388 = smul.addr %s387, 4
      %s389 = scalar_lea.vmem %s2, %s388
      %s390 = sadd.s32 %s22, 1
      %s391 = smul.u32 %s390, 16
      %p392 = scmp.lt.s32.totalorder %s391, 15
      %s393 = scalar_select %p392, %s391, 15
      %s394 = smul.u32 16, %s22
      %p395 = scmp.lt.s32.totalorder %s21, 1
      %s396 = scalar_select %p395, %s21, 1
      %p397 = scmp.lt.s32.totalorder %s394, 15
      %s398 = scalar_select %p397, %s394, 15
      %s399 = smul.addr %s398, 2
      %s400 = smul.addr %s396, 32
      %s401 = sadd.s32 %s399, %s400
      %s402 = smul.addr %s401, 4
      %s403 = scalar_lea.vmem %s4, %s402
      %s404 = smul.u32 16, %s22
      %p405 = scmp.lt.s32.totalorder %s21, 1
      %s406 = scalar_select %p405, %s21, 1
      %p407 = scmp.lt.s32.totalorder %s22, 0
      %s408 = scalar_select %p407, %s22, 0
      %s409 = sadd.s32 %s408, %s406
      %s410 = smul.addr %s409, 2
      %s411 = scalar_lea.vmem %s5, %s410
      %v413 = vld [vmem:[%s361] sm:$0xf]
      %v414 = vld [vmem:[%s361 + $0x4] sm:$0xf]
      %v415 = vld [vmem:[%s361 + $0x8] sm:$0x1]
      %v416 = vld [vmem:[%s389] sm:$0xf]
      %v417 = vld [vmem:[%s389 + $0x4] sm:$0xf]
      %v418 = vld [vmem:[%s389 + $0x8] sm:$0x1]
      %p419 = scmp.eq.s32.totalorder %s22, 0
      %s420 = scalar_select %p419, 1, 0
      %v421 = vstv %s420
      %vm422 = vcmp.eq.s32.totalorder %v421, 1
      %v423 = vsel %vm422, 0, %v413
      %v424 = vsel %vm422, 0, %v414
      %v425 = vsel %vm422, 0, %v415
      %v426 = vsel %vm422, 0, %v416
      %v427 = vsel %vm422, 0, %v417
      %v428 = vsel %vm422, 0, %v418
      %v429 = vld [vmem:[%s375] sm:$0xf]
      %v430 = vld [vmem:[%s375 + $0x4] sm:$0xf]
      %v431 = vld [vmem:[%s375 + $0x8] sm:$0x1]
      %v432 = vld [vmem:[%s375 + $0xc] sm:$0xf]
      %v433 = vld [vmem:[%s375 + $0x10] sm:$0xf]
      %v434 = vld [vmem:[%s375 + $0x14] sm:$0x1]
      %v435 = vld [vmem:[%s375 + $0x18] sm:$0xf]
      %v436 = vld [vmem:[%s375 + $0x1c] sm:$0xf]
      %v437 = vld [vmem:[%s375 + $0x20] sm:$0x1]
      %v438 = vld [vmem:[%s375 + $0x24] sm:$0xf]
      %v439 = vld [vmem:[%s375 + $0x28] sm:$0xf]
      %v440 = vld [vmem:[%s375 + $0x2c] sm:$0x1]
      %v441 = vld [vmem:[%s375 + $0x30] sm:$0xf]
      %v442 = vld [vmem:[%s375 + $0x34] sm:$0xf]
      %v443 = vld [vmem:[%s375 + $0x38] sm:$0x1]
      %v444 = vld [vmem:[%s375 + $0x3c] sm:$0xf]
      %v445 = vld [vmem:[%s375 + $0x40] sm:$0xf]
      %v446 = vld [vmem:[%s375 + $0x44] sm:$0x1]
      %v447 = vld [vmem:[%s375 + $0x48] sm:$0xf]
      %v448 = vld [vmem:[%s375 + $0x4c] sm:$0xf]
      %v449 = vld [vmem:[%s375 + $0x50] sm:$0x1]
      %v450 = vld [vmem:[%s375 + $0x54] sm:$0xf]
      %v451 = vld [vmem:[%s375 + $0x58] sm:$0xf]
      %v452 = vld [vmem:[%s375 + $0x5c] sm:$0x1]
      %v453 = vld [vmem:[%s375 + $0x60] sm:$0xf]
      %v454 = vld [vmem:[%s375 + $0x64] sm:$0xf]
      %v455 = vld [vmem:[%s375 + $0x68] sm:$0x1]
      %v456 = vld [vmem:[%s375 + $0x6c] sm:$0xf]
      %v457 = vld [vmem:[%s375 + $0x70] sm:$0xf]
      %v458 = vld [vmem:[%s375 + $0x74] sm:$0x1]
      %v459 = vld [vmem:[%s375 + $0x78] sm:$0xf]
      %v460 = vld [vmem:[%s375 + $0x7c] sm:$0xf]
      %v461 = vld [vmem:[%s375 + $0x80] sm:$0x1]
      %v462 = vld [vmem:[%s375 + $0x84] sm:$0xf]
      %v463 = vld [vmem:[%s375 + $0x88] sm:$0xf]
      %v464 = vld [vmem:[%s375 + $0x8c] sm:$0x1]
      %v465 = vld [vmem:[%s375 + $0x90] sm:$0xf]
      %v466 = vld [vmem:[%s375 + $0x94] sm:$0xf]
      %v467 = vld [vmem:[%s375 + $0x98] sm:$0x1]
      %v468 = vld [vmem:[%s375 + $0x9c] sm:$0xf]
      %v469 = vld [vmem:[%s375 + $0xa0] sm:$0xf]
      %v470 = vld [vmem:[%s375 + $0xa4] sm:$0x1]
      %v471 = vld [vmem:[%s375 + $0xa8] sm:$0xf]
      %v472 = vld [vmem:[%s375 + $0xac] sm:$0xf]
      %v473 = vld [vmem:[%s375 + $0xb0] sm:$0x1]
      %v474 = vld [vmem:[%s375 + $0xb4] sm:$0xf]
      %v475 = vld [vmem:[%s375 + $0xb8] sm:$0xf]
      %v476 = vld [vmem:[%s375 + $0xbc] sm:$0x1]
      %v477 = vld [vmem:[%s3] sm:$0xf]
      %vm478 = vsmask.f32 3328
      %vm479 = vsmask.f32 7440
      %vm480 = vmor %vm478, %vm479
      %v482 = vshrl.u32 %v423, 16
      %v484 = vrot.slane %v482, 4
      %v485 = vshll.u32 %v423, 16
      %v487 = vrot.slane %v485, 5
      %v488 = vor.u32 %v484, %v487
      %v489 = vrot.slane %v488, 4
      %v491 = vshll.u32 %v424, 16
      %v493 = vrot.slane %v491, 5
      %v494 = vsel %vm480, %v489, %v493
      %v495 = vshrl.u32 %v424, 16
      %v497 = vrot.slane %v495, 4
      %v498 = vor.u32 %v497, %v493
      %v499 = vrot.slane %v498, 4
      %v501 = vshll.u32 %v425, 16
      %v503 = vrot.slane %v501, 5
      %v504 = vsel %vm480, %v499, %v503
      %v506 = vshrl.u32 %v429, 16
      %v508 = vrot.slane %v506, 4
      %v509 = vshll.u32 %v429, 16
      %v511 = vrot.slane %v509, 5
      %v512 = vor.u32 %v508, %v511
      %v513 = vrot.slane %v512, 4
      %v515 = vshll.u32 %v430, 16
      %v517 = vrot.slane %v515, 5
      %v518 = vsel %vm480, %v513, %v517
      %v519 = vshrl.u32 %v430, 16
      %v521 = vrot.slane %v519, 4
      %v522 = vor.u32 %v521, %v517
      %v523 = vrot.slane %v522, 4
      %v525 = vshll.u32 %v431, 16
      %v527 = vrot.slane %v525, 5
      %v528 = vsel %vm480, %v523, %v527
      %v530 = vshrl.u32 %v432, 16
      %v532 = vrot.slane %v530, 4
      %v533 = vshll.u32 %v432, 16
      %v535 = vrot.slane %v533, 5
      %v536 = vor.u32 %v532, %v535
      %v537 = vrot.slane %v536, 4
      %v539 = vshll.u32 %v433, 16
      %v541 = vrot.slane %v539, 5
      %v542 = vsel %vm480, %v537, %v541
      %v543 = vshrl.u32 %v433, 16
      %v545 = vrot.slane %v543, 4
      %v546 = vor.u32 %v545, %v541
      %v547 = vrot.slane %v546, 4
      %v549 = vshll.u32 %v434, 16
      %v551 = vrot.slane %v549, 5
      %v552 = vsel %vm480, %v547, %v551
      %v554 = vshrl.u32 %v435, 16
      %v556 = vrot.slane %v554, 4
      %v557 = vshll.u32 %v435, 16
      %v559 = vrot.slane %v557, 5
      %v560 = vor.u32 %v556, %v559
      %v561 = vrot.slane %v560, 4
      %v563 = vshll.u32 %v436, 16
      %v565 = vrot.slane %v563, 5
      %v566 = vsel %vm480, %v561, %v565
      %v567 = vshrl.u32 %v436, 16
      %v569 = vrot.slane %v567, 4
      %v570 = vor.u32 %v569, %v565
      %v571 = vrot.slane %v570, 4
      %v573 = vshll.u32 %v437, 16
      %v575 = vrot.slane %v573, 5
      %v576 = vsel %vm480, %v571, %v575
      %v578 = vshrl.u32 %v438, 16
      %v580 = vrot.slane %v578, 4
      %v581 = vshll.u32 %v438, 16
      %v583 = vrot.slane %v581, 5
      %v584 = vor.u32 %v580, %v583
      %v585 = vrot.slane %v584, 4
      %v587 = vshll.u32 %v439, 16
      %v589 = vrot.slane %v587, 5
      %v590 = vsel %vm480, %v585, %v589
      %v591 = vshrl.u32 %v439, 16
      %v593 = vrot.slane %v591, 4
      %v594 = vor.u32 %v593, %v589
      %v595 = vrot.slane %v594, 4
      %v597 = vshll.u32 %v440, 16
      %v599 = vrot.slane %v597, 5
      %v600 = vsel %vm480, %v595, %v599
      %v602 = vshrl.u32 %v441, 16
      %v604 = vrot.slane %v602, 4
      %v605 = vshll.u32 %v441, 16
      %v607 = vrot.slane %v605, 5
      %v608 = vor.u32 %v604, %v607
      %v609 = vrot.slane %v608, 4
      %v611 = vshll.u32 %v442, 16
      %v613 = vrot.slane %v611, 5
      %v614 = vsel %vm480, %v609, %v613
      %v615 = vshrl.u32 %v442, 16
      %v617 = vrot.slane %v615, 4
      %v618 = vor.u32 %v617, %v613
      %v619 = vrot.slane %v618, 4
      %v621 = vshll.u32 %v443, 16
      %v623 = vrot.slane %v621, 5
      %v624 = vsel %vm480, %v619, %v623
      %v626 = vshrl.u32 %v444, 16
      %v628 = vrot.slane %v626, 4
      %v629 = vshll.u32 %v444, 16
      %v631 = vrot.slane %v629, 5
      %v632 = vor.u32 %v628, %v631
      %v633 = vrot.slane %v632, 4
      %v635 = vshll.u32 %v445, 16
      %v637 = vrot.slane %v635, 5
      %v638 = vsel %vm480, %v633, %v637
      %v639 = vshrl.u32 %v445, 16
      %v641 = vrot.slane %v639, 4
      %v642 = vor.u32 %v641, %v637
      %v643 = vrot.slane %v642, 4
      %v645 = vshll.u32 %v446, 16
      %v647 = vrot.slane %v645, 5
      %v648 = vsel %vm480, %v643, %v647
      %v650 = vshrl.u32 %v447, 16
      %v652 = vrot.slane %v650, 4
      %v653 = vshll.u32 %v447, 16
      %v655 = vrot.slane %v653, 5
      %v656 = vor.u32 %v652, %v655
      %v657 = vrot.slane %v656, 4
      %v659 = vshll.u32 %v448, 16
      %v661 = vrot.slane %v659, 5
      %v662 = vsel %vm480, %v657, %v661
      %v663 = vshrl.u32 %v448, 16
      %v665 = vrot.slane %v663, 4
      %v666 = vor.u32 %v665, %v661
      %v667 = vrot.slane %v666, 4
      %v669 = vshll.u32 %v449, 16
      %v671 = vrot.slane %v669, 5
      %v672 = vsel %vm480, %v667, %v671
      %v674 = vshrl.u32 %v450, 16
      %v676 = vrot.slane %v674, 4
      %v677 = vshll.u32 %v450, 16
      %v679 = vrot.slane %v677, 5
      %v680 = vor.u32 %v676, %v679
      %v681 = vrot.slane %v680, 4
      %v683 = vshll.u32 %v451, 16
      %v685 = vrot.slane %v683, 5
      %v686 = vsel %vm480, %v681, %v685
      %v687 = vshrl.u32 %v451, 16
      %v689 = vrot.slane %v687, 4
      %v690 = vor.u32 %v689, %v685
      %v691 = vrot.slane %v690, 4
      %v693 = vshll.u32 %v452, 16
      %v695 = vrot.slane %v693, 5
      %v696 = vsel %vm480, %v691, %v695
      %v698 = vshrl.u32 %v453, 16
      %v700 = vrot.slane %v698, 4
      %v701 = vshll.u32 %v453, 16
      %v703 = vrot.slane %v701, 5
      %v704 = vor.u32 %v700, %v703
      %v705 = vrot.slane %v704, 4
      %v707 = vshll.u32 %v454, 16
      %v709 = vrot.slane %v707, 5
      %v710 = vsel %vm480, %v705, %v709
      %v711 = vshrl.u32 %v454, 16
      %v713 = vrot.slane %v711, 4
      %v714 = vor.u32 %v713, %v709
      %v715 = vrot.slane %v714, 4
      %v717 = vshll.u32 %v455, 16
      %v719 = vrot.slane %v717, 5
      %v720 = vsel %vm480, %v715, %v719
      %v722 = vshrl.u32 %v456, 16
      %v724 = vrot.slane %v722, 4
      %v725 = vshll.u32 %v456, 16
      %v727 = vrot.slane %v725, 5
      %v728 = vor.u32 %v724, %v727
      %v729 = vrot.slane %v728, 4
      %v731 = vshll.u32 %v457, 16
      %v733 = vrot.slane %v731, 5
      %v734 = vsel %vm480, %v729, %v733
      %v735 = vshrl.u32 %v457, 16
      %v737 = vrot.slane %v735, 4
      %v738 = vor.u32 %v737, %v733
      %v739 = vrot.slane %v738, 4
      %v741 = vshll.u32 %v458, 16
      %v743 = vrot.slane %v741, 5
      %v744 = vsel %vm480, %v739, %v743
      %v746 = vshrl.u32 %v459, 16
      %v748 = vrot.slane %v746, 4
      %v749 = vshll.u32 %v459, 16
      %v751 = vrot.slane %v749, 5
      %v752 = vor.u32 %v748, %v751
      %v753 = vrot.slane %v752, 4
      %v755 = vshll.u32 %v460, 16
      %v757 = vrot.slane %v755, 5
      %v758 = vsel %vm480, %v753, %v757
      %v759 = vshrl.u32 %v460, 16
      %v761 = vrot.slane %v759, 4
      %v762 = vor.u32 %v761, %v757
      %v763 = vrot.slane %v762, 4
      %v765 = vshll.u32 %v461, 16
      %v767 = vrot.slane %v765, 5
      %v768 = vsel %vm480, %v763, %v767
      %v770 = vshrl.u32 %v462, 16
      %v772 = vrot.slane %v770, 4
      %v773 = vshll.u32 %v462, 16
      %v775 = vrot.slane %v773, 5
      %v776 = vor.u32 %v772, %v775
      %v777 = vrot.slane %v776, 4
      %v779 = vshll.u32 %v463, 16
      %v781 = vrot.slane %v779, 5
      %v782 = vsel %vm480, %v777, %v781
      %v783 = vshrl.u32 %v463, 16
      %v785 = vrot.slane %v783, 4
      %v786 = vor.u32 %v785, %v781
      %v787 = vrot.slane %v786, 4
      %v789 = vshll.u32 %v464, 16
      %v791 = vrot.slane %v789, 5
      %v792 = vsel %vm480, %v787, %v791
      %v794 = vshrl.u32 %v465, 16
      %v796 = vrot.slane %v794, 4
      %v797 = vshll.u32 %v465, 16
      %v799 = vrot.slane %v797, 5
      %v800 = vor.u32 %v796, %v799
      %v801 = vrot.slane %v800, 4
      %v803 = vshll.u32 %v466, 16
      %v805 = vrot.slane %v803, 5
      %v806 = vsel %vm480, %v801, %v805
      %v807 = vshrl.u32 %v466, 16
      %v809 = vrot.slane %v807, 4
      %v810 = vor.u32 %v809, %v805
      %v811 = vrot.slane %v810, 4
      %v813 = vshll.u32 %v467, 16
      %v815 = vrot.slane %v813, 5
      %v816 = vsel %vm480, %v811, %v815
      %v818 = vshrl.u32 %v468, 16
      %v820 = vrot.slane %v818, 4
      %v821 = vshll.u32 %v468, 16
      %v823 = vrot.slane %v821, 5
      %v824 = vor.u32 %v820, %v823
      %v825 = vrot.slane %v824, 4
      %v827 = vshll.u32 %v469, 16
      %v829 = vrot.slane %v827, 5
      %v830 = vsel %vm480, %v825, %v829
      %v831 = vshrl.u32 %v469, 16
      %v833 = vrot.slane %v831, 4
      %v834 = vor.u32 %v833, %v829
      %v835 = vrot.slane %v834, 4
      %v837 = vshll.u32 %v470, 16
      %v839 = vrot.slane %v837, 5
      %v840 = vsel %vm480, %v835, %v839
      %v842 = vshrl.u32 %v471, 16
      %v844 = vrot.slane %v842, 4
      %v845 = vshll.u32 %v471, 16
      %v847 = vrot.slane %v845, 5
      %v848 = vor.u32 %v844, %v847
      %v849 = vrot.slane %v848, 4
      %v851 = vshll.u32 %v472, 16
      %v853 = vrot.slane %v851, 5
      %v854 = vsel %vm480, %v849, %v853
      %v855 = vshrl.u32 %v472, 16
      %v857 = vrot.slane %v855, 4
      %v858 = vor.u32 %v857, %v853
      %v859 = vrot.slane %v858, 4
      %v861 = vshll.u32 %v473, 16
      %v863 = vrot.slane %v861, 5
      %v864 = vsel %vm480, %v859, %v863
      %s865 = scalar_lea.vmem %s3, 4
      %v866 = vld [vmem:[%s865] sm:$0xf]
      %v867 = vunpack.c.l.b16 %v494
      %v868 = vunpack.c.l.b16 %v504
      %v869 = vunpack.c.l.b16 %v518
      %v870 = vunpack.c.l.b16 %v528
      %v871 = vunpack.c.l.b16 %v542
      %v872 = vunpack.c.l.b16 %v552
      %v873 = vunpack.c.l.b16 %v566
      %v874 = vunpack.c.l.b16 %v576
      %v875 = vunpack.c.l.b16 %v590
      %v876 = vunpack.c.l.b16 %v600
      %v877 = vunpack.c.l.b16 %v614
      %v878 = vunpack.c.l.b16 %v624
      %v879 = vunpack.c.l.b16 %v638
      %v880 = vunpack.c.l.b16 %v648
      %v881 = vunpack.c.l.b16 %v662
      %v882 = vunpack.c.l.b16 %v672
      %v883 = vunpack.c.l.b16 %v686
      %v884 = vunpack.c.l.b16 %v696
      %v885 = vunpack.c.l.b16 %v710
      %v886 = vunpack.c.l.b16 %v720
      %v887 = vunpack.c.l.b16 %v734
      %v888 = vunpack.c.l.b16 %v744
      %v889 = vunpack.c.l.b16 %v758
      %v890 = vunpack.c.l.b16 %v768
      %v891 = vunpack.c.l.b16 %v782
      %v892 = vunpack.c.l.b16 %v792
      %v893 = vunpack.c.l.b16 %v806
      %v894 = vunpack.c.l.b16 %v816
      %v895 = vunpack.c.l.b16 %v830
      %v896 = vunpack.c.l.b16 %v840
      %v897 = vunpack.c.l.b16 %v854
      %v898 = vunpack.c.l.b16 %v864
      %v899 = vpack.c.b16 %v868, %v867
      %v900 = vpack.c.b16 %v870, %v869
      %v901 = vpack.c.b16 %v872, %v871
      %v902 = vpack.c.b16 %v874, %v873
      %v903 = vpack.c.b16 %v876, %v875
      %v904 = vpack.c.b16 %v878, %v877
      %v905 = vpack.c.b16 %v880, %v879
      %v906 = vpack.c.b16 %v882, %v881
      %v907 = vpack.c.b16 %v884, %v883
      %v908 = vpack.c.b16 %v886, %v885
      %v909 = vpack.c.b16 %v888, %v887
      %v910 = vpack.c.b16 %v890, %v889
      %v911 = vpack.c.b16 %v892, %v891
      %v912 = vpack.c.b16 %v894, %v893
      %v913 = vpack.c.b16 %v896, %v895
      %v914 = vpack.c.b16 %v898, %v897
      %vm915 = vcmask 64512
      %v917 = vsel %vm915, %v899, 0
      %v920 = vsel %vm915, %v900, 0
      %v923 = vsel %vm915, %v901, 0
      %v926 = vsel %vm915, %v902, 0
      %v929 = vsel %vm915, %v903, 0
      %v932 = vsel %vm915, %v904, 0
      %v935 = vsel %vm915, %v905, 0
      %v938 = vsel %vm915, %v906, 0
      %v941 = vsel %vm915, %v907, 0
      %v944 = vsel %vm915, %v908, 0
      %v947 = vsel %vm915, %v909, 0
      %v950 = vsel %vm915, %v910, 0
      %v953 = vsel %vm915, %v911, 0
      %v956 = vsel %vm915, %v912, 0
      %v959 = vsel %vm915, %v913, 0
      %v962 = vsel %vm915, %v914, 0
      %vm964 = vcmask 1043456
      %v966 = vsel %vm964, %v866, 0
      %968 = vmatprep.subr.bf16.mxu0 0
      %969 = vmatpush1.bf16.msra.mxu0 0
      %970 = vmatprep.subr.bf16.mxu0 0
      %971 = vmatpush1.bf16.msra.mxu0 0
      %972 = vmatprep.subr.bf16.mxu0 0
      %973 = vmatpush1.bf16.msra.mxu0 0
      %974 = vmatprep.subr.bf16.mxu0 0
      %975 = vmatpush1.bf16.msra.mxu0 0
      %976 = vmatprep.subr.bf16.mxu0 0
      %977 = vmatpush1.bf16.msra.mxu0 0
      %978 = vmatprep.subr.bf16.mxu0 0
      %979 = vmatpush1.bf16.msra.mxu0 0
      %980 = vmatprep.subr.bf16.mxu0 0
      %981 = vmatpush1.bf16.msra.mxu0 0
      %982 = vmatprep.subr.bf16.mxu0 0
      %983 = vmatpush1.bf16.msra.mxu0 %v966
      %984 = vmatprep.subr.bf16.mxu0 0
      %985 = vmatpush2.bf16.msra.mxu0 0
      %986 = vmatprep.subr.bf16.mxu0 0
      %987 = vmatpush2.bf16.msra.mxu0 0
      %988 = vmatprep.subr.bf16.mxu0 0
      %989 = vmatpush2.bf16.msra.mxu0 0
      %990 = vmatprep.subr.bf16.mxu0 0
      %991 = vmatpush2.bf16.msra.mxu0 0
      %992 = vmatprep.subr.bf16.mxu0 0
      %993 = vmatpush2.bf16.msra.mxu0 0
      %994 = vmatprep.subr.bf16.mxu0 0
      %995 = vmatpush2.bf16.msra.mxu0 0
      %996 = vmatprep.subr.bf16.mxu0 0
      %997 = vmatpush2.bf16.msra.mxu0 0
      %998 = vmatprep.subr.bf16.mxu0 0
      %999 = vmatpush2.bf16.msra.mxu0 0
      %1000 = vmatprep.mubr.bf16.mxu0 0
      %1001 = vmatmul.mubr.bf16.gmra.mxu0 %v917
      %v1002 = vpop.f32.mrf.mxu0
      %v1003 = vadd.f32 0.0, %v1002
      %v1004 = vpop.f32.mrf.mxu0
      %v1005 = vpop.f32.mrf.mxu0
      %v1006 = vadd.f32 0.0, %v1005
      %v1007 = vpop.f32.mrf.mxu0
      %1008 = vmatprep.mubr.bf16.mxu0 0
      %1009 = vmatmul.mubr.bf16.gmra.mxu0 %v920
      %v1010 = vpop.f32.mrf.mxu0
      %v1011 = vadd.f32 0.0, %v1010
      %v1012 = vpop.f32.mrf.mxu0
      %v1013 = vpop.f32.mrf.mxu0
      %v1014 = vadd.f32 0.0, %v1013
      %v1015 = vpop.f32.mrf.mxu0
      %1016 = vmatprep.mubr.bf16.mxu0 0
      %1017 = vmatmul.mubr.bf16.gmra.mxu0 %v923
      %v1018 = vpop.f32.mrf.mxu0
      %v1019 = vadd.f32 0.0, %v1018
      %v1020 = vpop.f32.mrf.mxu0
      %v1021 = vpop.f32.mrf.mxu0
      %v1022 = vadd.f32 0.0, %v1021
      %v1023 = vpop.f32.mrf.mxu0
      %1024 = vmatprep.mubr.bf16.mxu0 0
      %1025 = vmatmul.mubr.bf16.gmra.mxu0 %v926
      %v1026 = vpop.f32.mrf.mxu0
      %v1027 = vadd.f32 0.0, %v1026
      %v1028 = vpop.f32.mrf.mxu0
      %v1029 = vpop.f32.mrf.mxu0
      %v1030 = vadd.f32 0.0, %v1029
      %v1031 = vpop.f32.mrf.mxu0
      %1032 = vmatprep.mubr.bf16.mxu0 0
      %1033 = vmatmul.mubr.bf16.gmra.mxu0 %v929
      %v1034 = vpop.f32.mrf.mxu0
      %v1035 = vadd.f32 0.0, %v1034
      %v1036 = vpop.f32.mrf.mxu0
      %v1037 = vpop.f32.mrf.mxu0
      %v1038 = vadd.f32 0.0, %v1037
      %v1039 = vpop.f32.mrf.mxu0
      %1040 = vmatprep.mubr.bf16.mxu0 0
      %1041 = vmatmul.mubr.bf16.gmra.mxu0 %v932
      %v1042 = vpop.f32.mrf.mxu0
      %v1043 = vadd.f32 0.0, %v1042
      %v1044 = vpop.f32.mrf.mxu0
      %v1045 = vpop.f32.mrf.mxu0
      %v1046 = vadd.f32 0.0, %v1045
      %v1047 = vpop.f32.mrf.mxu0
      %1048 = vmatprep.mubr.bf16.mxu0 0
      %1049 = vmatmul.mubr.bf16.gmra.mxu0 %v935
      %v1050 = vpop.f32.mrf.mxu0
      %v1051 = vadd.f32 0.0, %v1050
      %v1052 = vpop.f32.mrf.mxu0
      %v1053 = vpop.f32.mrf.mxu0
      %v1054 = vadd.f32 0.0, %v1053
      %v1055 = vpop.f32.mrf.mxu0
      %1056 = vmatprep.mubr.bf16.mxu0 0
      %1057 = vmatmul.mubr.bf16.gmra.mxu0 %v938
      %v1058 = vpop.f32.mrf.mxu0
      %v1059 = vadd.f32 0.0, %v1058
      %v1060 = vpop.f32.mrf.mxu0
      %v1061 = vpop.f32.mrf.mxu0
      %v1062 = vadd.f32 0.0, %v1061
      %v1063 = vpop.f32.mrf.mxu0
      %1064 = vmatprep.mubr.bf16.mxu0 0
      %1065 = vmatmul.mubr.bf16.gmra.mxu0 %v941
      %v1066 = vpop.f32.mrf.mxu0
      %v1067 = vadd.f32 0.0, %v1066
      %v1068 = vpop.f32.mrf.mxu0
      %v1069 = vpop.f32.mrf.mxu0
      %v1070 = vadd.f32 0.0, %v1069
      %v1071 = vpop.f32.mrf.mxu0
      %1072 = vmatprep.mubr.bf16.mxu0 0
      %1073 = vmatmul.mubr.bf16.gmra.mxu0 %v944
      %v1074 = vpop.f32.mrf.mxu0
      %v1075 = vadd.f32 0.0, %v1074
      %v1076 = vpop.f32.mrf.mxu0
      %v1077 = vpop.f32.mrf.mxu0
      %v1078 = vadd.f32 0.0, %v1077
      %v1079 = vpop.f32.mrf.mxu0
      %1080 = vmatprep.mubr.bf16.mxu0 0
      %1081 = vmatmul.mubr.bf16.gmra.mxu0 %v947
      %v1082 = vpop.f32.mrf.mxu0
      %v1083 = vadd.f32 0.0, %v1082
      %v1084 = vpop.f32.mrf.mxu0
      %v1085 = vpop.f32.mrf.mxu0
      %v1086 = vadd.f32 0.0, %v1085
      %v1087 = vpop.f32.mrf.mxu0
      %1088 = vmatprep.mubr.bf16.mxu0 0
      %1089 = vmatmul.mubr.bf16.gmra.mxu0 %v950
      %v1090 = vpop.f32.mrf.mxu0
      %v1091 = vadd.f32 0.0, %v1090
      %v1092 = vpop.f32.mrf.mxu0
      %v1093 = vpop.f32.mrf.mxu0
      %v1094 = vadd.f32 0.0, %v1093
      %v1095 = vpop.f32.mrf.mxu0
      %1096 = vmatprep.mubr.bf16.mxu0 0
      %1097 = vmatmul.mubr.bf16.gmra.mxu0 %v953
      %v1098 = vpop.f32.mrf.mxu0
      %v1099 = vadd.f32 0.0, %v1098
      %v1100 = vpop.f32.mrf.mxu0
      %v1101 = vpop.f32.mrf.mxu0
      %v1102 = vadd.f32 0.0, %v1101
      %v1103 = vpop.f32.mrf.mxu0
      %1104 = vmatprep.mubr.bf16.mxu0 0
      %1105 = vmatmul.mubr.bf16.gmra.mxu0 %v956
      %v1106 = vpop.f32.mrf.mxu0
      %v1107 = vadd.f32 0.0, %v1106
      %v1108 = vpop.f32.mrf.mxu0
      %v1109 = vpop.f32.mrf.mxu0
      %v1110 = vadd.f32 0.0, %v1109
      %v1111 = vpop.f32.mrf.mxu0
      %1112 = vmatprep.mubr.bf16.mxu0 0
      %1113 = vmatmul.mubr.bf16.gmra.mxu0 %v959
      %v1114 = vpop.f32.mrf.mxu0
      %v1115 = vadd.f32 0.0, %v1114
      %v1116 = vpop.f32.mrf.mxu0
      %v1117 = vpop.f32.mrf.mxu0
      %v1118 = vadd.f32 0.0, %v1117
      %v1119 = vpop.f32.mrf.mxu0
      %1120 = vmatprep.mubr.bf16.mxu0 0
      %1121 = vmatmul.mubr.bf16.gmra.mxu0 %v962
      %v1122 = vpop.f32.mrf.mxu0
      %v1123 = vadd.f32 0.0, %v1122
      %v1124 = vpop.f32.mrf.mxu0
      %v1125 = vpop.f32.mrf.mxu0
      %v1126 = vadd.f32 0.0, %v1125
      %v1127 = vpop.f32.mrf.mxu0
      %1128 = vdwg.mxu0
      %v1161 = vunpack.c.l.b16 %v423
      %v1162 = vunpack.c.l.b16 %v424
      %v1163 = vunpack.c.l.b16 %v429
      %v1164 = vunpack.c.l.b16 %v430
      %v1165 = vunpack.c.l.b16 %v432
      %v1166 = vunpack.c.l.b16 %v433
      %v1167 = vunpack.c.l.b16 %v435
      %v1168 = vunpack.c.l.b16 %v436
      %v1169 = vunpack.c.l.b16 %v438
      %v1170 = vunpack.c.l.b16 %v439
      %v1171 = vunpack.c.l.b16 %v441
      %v1172 = vunpack.c.l.b16 %v442
      %v1173 = vunpack.c.l.b16 %v444
      %v1174 = vunpack.c.l.b16 %v445
      %v1175 = vunpack.c.l.b16 %v447
      %v1176 = vunpack.c.l.b16 %v448
      %v1177 = vunpack.c.l.b16 %v450
      %v1178 = vunpack.c.l.b16 %v451
      %v1179 = vunpack.c.l.b16 %v453
      %v1180 = vunpack.c.l.b16 %v454
      %v1181 = vunpack.c.l.b16 %v456
      %v1182 = vunpack.c.l.b16 %v457
      %v1183 = vunpack.c.l.b16 %v459
      %v1184 = vunpack.c.l.b16 %v460
      %v1185 = vunpack.c.l.b16 %v462
      %v1186 = vunpack.c.l.b16 %v463
      %v1187 = vunpack.c.l.b16 %v465
      %v1188 = vunpack.c.l.b16 %v466
      %v1189 = vunpack.c.l.b16 %v468
      %v1190 = vunpack.c.l.b16 %v469
      %v1191 = vunpack.c.l.b16 %v471
      %v1192 = vunpack.c.l.b16 %v472
      %v1193 = vpack.c.b16 %v1162, %v1161
      %v1194 = vpack.c.b16 %v1164, %v1163
      %v1195 = vpack.c.b16 %v1166, %v1165
      %v1196 = vpack.c.b16 %v1168, %v1167
      %v1197 = vpack.c.b16 %v1170, %v1169
      %v1198 = vpack.c.b16 %v1172, %v1171
      %v1199 = vpack.c.b16 %v1174, %v1173
      %v1200 = vpack.c.b16 %v1176, %v1175
      %v1201 = vpack.c.b16 %v1178, %v1177
      %v1202 = vpack.c.b16 %v1180, %v1179
      %v1203 = vpack.c.b16 %v1182, %v1181
      %v1204 = vpack.c.b16 %v1184, %v1183
      %v1205 = vpack.c.b16 %v1186, %v1185
      %v1206 = vpack.c.b16 %v1188, %v1187
      %v1207 = vpack.c.b16 %v1190, %v1189
      %v1208 = vpack.c.b16 %v1192, %v1191
      %v1210 = vsel %vm915, %v1193, 0
      %v1213 = vsel %vm915, %v1194, 0
      %v1216 = vsel %vm915, %v1195, 0
      %v1219 = vsel %vm915, %v1196, 0
      %v1222 = vsel %vm915, %v1197, 0
      %v1225 = vsel %vm915, %v1198, 0
      %v1228 = vsel %vm915, %v1199, 0
      %v1231 = vsel %vm915, %v1200, 0
      %v1234 = vsel %vm915, %v1201, 0
      %v1237 = vsel %vm915, %v1202, 0
      %v1240 = vsel %vm915, %v1203, 0
      %v1243 = vsel %vm915, %v1204, 0
      %v1246 = vsel %vm915, %v1205, 0
      %v1249 = vsel %vm915, %v1206, 0
      %v1252 = vsel %vm915, %v1207, 0
      %v1255 = vsel %vm915, %v1208, 0
      %v1258 = vsel %vm964, %v477, 0
      %1260 = vmatprep.subr.bf16.mxu0 0
      %1261 = vmatpush1.bf16.msra.mxu0 0
      %1262 = vmatprep.subr.bf16.mxu0 0
      %1263 = vmatpush1.bf16.msra.mxu0 0
      %1264 = vmatprep.subr.bf16.mxu0 0
      %1265 = vmatpush1.bf16.msra.mxu0 0
      %1266 = vmatprep.subr.bf16.mxu0 0
      %1267 = vmatpush1.bf16.msra.mxu0 0
      %1268 = vmatprep.subr.bf16.mxu0 0
      %1269 = vmatpush1.bf16.msra.mxu0 0
      %1270 = vmatprep.subr.bf16.mxu0 0
      %1271 = vmatpush1.bf16.msra.mxu0 0
      %1272 = vmatprep.subr.bf16.mxu0 0
      %1273 = vmatpush1.bf16.msra.mxu0 0
      %1274 = vmatprep.subr.bf16.mxu0 0
      %1275 = vmatpush1.bf16.msra.mxu0 %v1258
      %1276 = vmatprep.subr.bf16.mxu0 0
      %1277 = vmatpush2.bf16.msra.mxu0 0
      %1278 = vmatprep.subr.bf16.mxu0 0
      %1279 = vmatpush2.bf16.msra.mxu0 0
      %1280 = vmatprep.subr.bf16.mxu0 0
      %1281 = vmatpush2.bf16.msra.mxu0 0
      %1282 = vmatprep.subr.bf16.mxu0 0
      %1283 = vmatpush2.bf16.msra.mxu0 0
      %1284 = vmatprep.subr.bf16.mxu0 0
      %1285 = vmatpush2.bf16.msra.mxu0 0
      %1286 = vmatprep.subr.bf16.mxu0 0
      %1287 = vmatpush2.bf16.msra.mxu0 0
      %1288 = vmatprep.subr.bf16.mxu0 0
      %1289 = vmatpush2.bf16.msra.mxu0 0
      %1290 = vmatprep.subr.bf16.mxu0 0
      %1291 = vmatpush2.bf16.msra.mxu0 0
      %1292 = vmatprep.mubr.bf16.mxu0 0
      %1293 = vmatmul.mubr.bf16.gmra.mxu0 %v1210
      %v1294 = vpop.f32.mrf.mxu0
      %v1295 = vadd.f32 %v1003, %v1294
      %v1296 = vpop.f32.mrf.mxu0
      %v1297 = vpop.f32.mrf.mxu0
      %v1298 = vadd.f32 %v1006, %v1297
      %v1299 = vpop.f32.mrf.mxu0
      %1300 = vmatprep.mubr.bf16.mxu0 0
      %1301 = vmatmul.mubr.bf16.gmra.mxu0 %v1213
      %v1302 = vpop.f32.mrf.mxu0
      %v1303 = vadd.f32 %v1011, %v1302
      %v1304 = vpop.f32.mrf.mxu0
      %v1305 = vpop.f32.mrf.mxu0
      %v1306 = vadd.f32 %v1014, %v1305
      %v1307 = vpop.f32.mrf.mxu0
      %1308 = vmatprep.mubr.bf16.mxu0 0
      %1309 = vmatmul.mubr.bf16.gmra.mxu0 %v1216
      %v1310 = vpop.f32.mrf.mxu0
      %v1311 = vadd.f32 %v1019, %v1310
      %v1312 = vpop.f32.mrf.mxu0
      %v1313 = vpop.f32.mrf.mxu0
      %v1314 = vadd.f32 %v1022, %v1313
      %v1315 = vpop.f32.mrf.mxu0
      %1316 = vmatprep.mubr.bf16.mxu0 0
      %1317 = vmatmul.mubr.bf16.gmra.mxu0 %v1219
      %v1318 = vpop.f32.mrf.mxu0
      %v1319 = vadd.f32 %v1027, %v1318
      %v1320 = vpop.f32.mrf.mxu0
      %v1321 = vpop.f32.mrf.mxu0
      %v1322 = vadd.f32 %v1030, %v1321
      %v1323 = vpop.f32.mrf.mxu0
      %1324 = vmatprep.mubr.bf16.mxu0 0
      %1325 = vmatmul.mubr.bf16.gmra.mxu0 %v1222
      %v1326 = vpop.f32.mrf.mxu0
      %v1327 = vadd.f32 %v1035, %v1326
      %v1328 = vpop.f32.mrf.mxu0
      %v1329 = vpop.f32.mrf.mxu0
      %v1330 = vadd.f32 %v1038, %v1329
      %v1331 = vpop.f32.mrf.mxu0
      %1332 = vmatprep.mubr.bf16.mxu0 0
      %1333 = vmatmul.mubr.bf16.gmra.mxu0 %v1225
      %v1334 = vpop.f32.mrf.mxu0
      %v1335 = vadd.f32 %v1043, %v1334
      %v1336 = vpop.f32.mrf.mxu0
      %v1337 = vpop.f32.mrf.mxu0
      %v1338 = vadd.f32 %v1046, %v1337
      %v1339 = vpop.f32.mrf.mxu0
      %1340 = vmatprep.mubr.bf16.mxu0 0
      %1341 = vmatmul.mubr.bf16.gmra.mxu0 %v1228
      %v1342 = vpop.f32.mrf.mxu0
      %v1343 = vadd.f32 %v1051, %v1342
      %v1344 = vpop.f32.mrf.mxu0
      %v1345 = vpop.f32.mrf.mxu0
      %v1346 = vadd.f32 %v1054, %v1345
      %v1347 = vpop.f32.mrf.mxu0
      %1348 = vmatprep.mubr.bf16.mxu0 0
      %1349 = vmatmul.mubr.bf16.gmra.mxu0 %v1231
      %v1350 = vpop.f32.mrf.mxu0
      %v1351 = vadd.f32 %v1059, %v1350
      %v1352 = vpop.f32.mrf.mxu0
      %v1353 = vpop.f32.mrf.mxu0
      %v1354 = vadd.f32 %v1062, %v1353
      %v1355 = vpop.f32.mrf.mxu0
      %1356 = vmatprep.mubr.bf16.mxu0 0
      %1357 = vmatmul.mubr.bf16.gmra.mxu0 %v1234
      %v1358 = vpop.f32.mrf.mxu0
      %v1359 = vadd.f32 %v1067, %v1358
      %v1360 = vpop.f32.mrf.mxu0
      %v1361 = vpop.f32.mrf.mxu0
      %v1362 = vadd.f32 %v1070, %v1361
      %v1363 = vpop.f32.mrf.mxu0
      %1364 = vmatprep.mubr.bf16.mxu0 0
      %1365 = vmatmul.mubr.bf16.gmra.mxu0 %v1237
      %v1366 = vpop.f32.mrf.mxu0
      %v1367 = vadd.f32 %v1075, %v1366
      %v1368 = vpop.f32.mrf.mxu0
      %v1369 = vpop.f32.mrf.mxu0
      %v1370 = vadd.f32 %v1078, %v1369
      %v1371 = vpop.f32.mrf.mxu0
      %1372 = vmatprep.mubr.bf16.mxu0 0
      %1373 = vmatmul.mubr.bf16.gmra.mxu0 %v1240
      %v1374 = vpop.f32.mrf.mxu0
      %v1375 = vadd.f32 %v1083, %v1374
      %v1376 = vpop.f32.mrf.mxu0
      %v1377 = vpop.f32.mrf.mxu0
      %v1378 = vadd.f32 %v1086, %v1377
      %v1379 = vpop.f32.mrf.mxu0
      %1380 = vmatprep.mubr.bf16.mxu0 0
      %1381 = vmatmul.mubr.bf16.gmra.mxu0 %v1243
      %v1382 = vpop.f32.mrf.mxu0
      %v1383 = vadd.f32 %v1091, %v1382
      %v1384 = vpop.f32.mrf.mxu0
      %v1385 = vpop.f32.mrf.mxu0
      %v1386 = vadd.f32 %v1094, %v1385
      %v1387 = vpop.f32.mrf.mxu0
      %1388 = vmatprep.mubr.bf16.mxu0 0
      %1389 = vmatmul.mubr.bf16.gmra.mxu0 %v1246
      %v1390 = vpop.f32.mrf.mxu0
      %v1391 = vadd.f32 %v1099, %v1390
      %v1392 = vpop.f32.mrf.mxu0
      %v1393 = vpop.f32.mrf.mxu0
      %v1394 = vadd.f32 %v1102, %v1393
      %v1395 = vpop.f32.mrf.mxu0
      %1396 = vmatprep.mubr.bf16.mxu0 0
      %1397 = vmatmul.mubr.bf16.gmra.mxu0 %v1249
      %v1398 = vpop.f32.mrf.mxu0
      %v1399 = vadd.f32 %v1107, %v1398
      %v1400 = vpop.f32.mrf.mxu0
      %v1401 = vpop.f32.mrf.mxu0
      %v1402 = vadd.f32 %v1110, %v1401
      %v1403 = vpop.f32.mrf.mxu0
      %1404 = vmatprep.mubr.bf16.mxu0 0
      %1405 = vmatmul.mubr.bf16.gmra.mxu0 %v1252
      %v1406 = vpop.f32.mrf.mxu0
      %v1407 = vadd.f32 %v1115, %v1406
      %v1408 = vpop.f32.mrf.mxu0
      %v1409 = vpop.f32.mrf.mxu0
      %v1410 = vadd.f32 %v1118, %v1409
      %v1411 = vpop.f32.mrf.mxu0
      %1412 = vmatprep.mubr.bf16.mxu0 0
      %1413 = vmatmul.mubr.bf16.gmra.mxu0 %v1255
      %v1414 = vpop.f32.mrf.mxu0
      %v1415 = vadd.f32 %v1123, %v1414
      %v1416 = vpop.f32.mrf.mxu0
      %v1417 = vpop.f32.mrf.mxu0
      %v1418 = vadd.f32 %v1126, %v1417
      %v1419 = vpop.f32.mrf.mxu0
      %1420 = vdwg.mxu0
      %vm1437 = vcmask 1042432
      %vm1438 = vcmask 1046532
      %vm1439 = vmor %vm1437, %vm1438
      %v1440 = vrot.slane %v423, 5
      %v1441 = vrot.slane %v1440, 4
      %v1442 = vrot.slane %v424, 5
      %v1443 = vsel %vm1439, %v1441, %v1442
      %v1444 = vrot.slane %v1442, 4
      %v1445 = vrot.slane %v425, 5
      %v1446 = vsel %vm1439, %v1444, %v1445
      %v1447 = vrot.slane %v429, 5
      %v1448 = vrot.slane %v1447, 4
      %v1449 = vrot.slane %v430, 5
      %v1450 = vsel %vm1439, %v1448, %v1449
      %v1451 = vrot.slane %v1449, 4
      %v1452 = vrot.slane %v431, 5
      %v1453 = vsel %vm1439, %v1451, %v1452
      %v1454 = vrot.slane %v432, 5
      %v1455 = vrot.slane %v1454, 4
      %v1456 = vrot.slane %v433, 5
      %v1457 = vsel %vm1439, %v1455, %v1456
      %v1458 = vrot.slane %v1456, 4
      %v1459 = vrot.slane %v434, 5
      %v1460 = vsel %vm1439, %v1458, %v1459
      %v1461 = vrot.slane %v435, 5
      %v1462 = vrot.slane %v1461, 4
      %v1463 = vrot.slane %v436, 5
      %v1464 = vsel %vm1439, %v1462, %v1463
      %v1465 = vrot.slane %v1463, 4
      %v1466 = vrot.slane %v437, 5
      %v1467 = vsel %vm1439, %v1465, %v1466
      %v1468 = vrot.slane %v438, 5
      %v1469 = vrot.slane %v1468, 4
      %v1470 = vrot.slane %v439, 5
      %v1471 = vsel %vm1439, %v1469, %v1470
      %v1472 = vrot.slane %v1470, 4
      %v1473 = vrot.slane %v440, 5
      %v1474 = vsel %vm1439, %v1472, %v1473
      %v1475 = vrot.slane %v441, 5
      %v1476 = vrot.slane %v1475, 4
      %v1477 = vrot.slane %v442, 5
      %v1478 = vsel %vm1439, %v1476, %v1477
      %v1479 = vrot.slane %v1477, 4
      %v1480 = vrot.slane %v443, 5
      %v1481 = vsel %vm1439, %v1479, %v1480
      %v1482 = vrot.slane %v444, 5
      %v1483 = vrot.slane %v1482, 4
      %v1484 = vrot.slane %v445, 5
      %v1485 = vsel %vm1439, %v1483, %v1484
      %v1486 = vrot.slane %v1484, 4
      %v1487 = vrot.slane %v446, 5
      %v1488 = vsel %vm1439, %v1486, %v1487
      %v1489 = vrot.slane %v447, 5
      %v1490 = vrot.slane %v1489, 4
      %v1491 = vrot.slane %v448, 5
      %v1492 = vsel %vm1439, %v1490, %v1491
      %v1493 = vrot.slane %v1491, 4
      %v1494 = vrot.slane %v449, 5
      %v1495 = vsel %vm1439, %v1493, %v1494
      %v1496 = vrot.slane %v450, 5
      %v1497 = vrot.slane %v1496, 4
      %v1498 = vrot.slane %v451, 5
      %v1499 = vsel %vm1439, %v1497, %v1498
      %v1500 = vrot.slane %v1498, 4
      %v1501 = vrot.slane %v452, 5
      %v1502 = vsel %vm1439, %v1500, %v1501
      %v1503 = vrot.slane %v453, 5
      %v1504 = vrot.slane %v1503, 4
      %v1505 = vrot.slane %v454, 5
      %v1506 = vsel %vm1439, %v1504, %v1505
      %v1507 = vrot.slane %v1505, 4
      %v1508 = vrot.slane %v455, 5
      %v1509 = vsel %vm1439, %v1507, %v1508
      %v1510 = vrot.slane %v456, 5
      %v1511 = vrot.slane %v1510, 4
      %v1512 = vrot.slane %v457, 5
      %v1513 = vsel %vm1439, %v1511, %v1512
      %v1514 = vrot.slane %v1512, 4
      %v1515 = vrot.slane %v458, 5
      %v1516 = vsel %vm1439, %v1514, %v1515
      %v1517 = vrot.slane %v459, 5
      %v1518 = vrot.slane %v1517, 4
      %v1519 = vrot.slane %v460, 5
      %v1520 = vsel %vm1439, %v1518, %v1519
      %v1521 = vrot.slane %v1519, 4
      %v1522 = vrot.slane %v461, 5
      %v1523 = vsel %vm1439, %v1521, %v1522
      %v1524 = vrot.slane %v462, 5
      %v1525 = vrot.slane %v1524, 4
      %v1526 = vrot.slane %v463, 5
      %v1527 = vsel %vm1439, %v1525, %v1526
      %v1528 = vrot.slane %v1526, 4
      %v1529 = vrot.slane %v464, 5
      %v1530 = vsel %vm1439, %v1528, %v1529
      %v1531 = vrot.slane %v465, 5
      %v1532 = vrot.slane %v1531, 4
      %v1533 = vrot.slane %v466, 5
      %v1534 = vsel %vm1439, %v1532, %v1533
      %v1535 = vrot.slane %v1533, 4
      %v1536 = vrot.slane %v467, 5
      %v1537 = vsel %vm1439, %v1535, %v1536
      %v1538 = vrot.slane %v468, 5
      %v1539 = vrot.slane %v1538, 4
      %v1540 = vrot.slane %v469, 5
      %v1541 = vsel %vm1439, %v1539, %v1540
      %v1542 = vrot.slane %v1540, 4
      %v1543 = vrot.slane %v470, 5
      %v1544 = vsel %vm1439, %v1542, %v1543
      %v1545 = vrot.slane %v471, 5
      %v1546 = vrot.slane %v1545, 4
      %v1547 = vrot.slane %v472, 5
      %v1548 = vsel %vm1439, %v1546, %v1547
      %v1549 = vrot.slane %v1547, 4
      %v1550 = vrot.slane %v473, 5
      %v1551 = vsel %vm1439, %v1549, %v1550
      %s1552 = scalar_lea.vmem %s3, 8
      %v1553 = vld [vmem:[%s1552] sm:$0xf]
      %v1554 = vunpack.c.l.b16 %v1443
      %v1555 = vunpack.c.l.b16 %v1446
      %v1556 = vunpack.c.l.b16 %v1450
      %v1557 = vunpack.c.l.b16 %v1453
      %v1558 = vunpack.c.l.b16 %v1457
      %v1559 = vunpack.c.l.b16 %v1460
      %v1560 = vunpack.c.l.b16 %v1464
      %v1561 = vunpack.c.l.b16 %v1467
      %v1562 = vunpack.c.l.b16 %v1471
      %v1563 = vunpack.c.l.b16 %v1474
      %v1564 = vunpack.c.l.b16 %v1478
      %v1565 = vunpack.c.l.b16 %v1481
      %v1566 = vunpack.c.l.b16 %v1485
      %v1567 = vunpack.c.l.b16 %v1488
      %v1568 = vunpack.c.l.b16 %v1492
      %v1569 = vunpack.c.l.b16 %v1495
      %v1570 = vunpack.c.l.b16 %v1499
      %v1571 = vunpack.c.l.b16 %v1502
      %v1572 = vunpack.c.l.b16 %v1506
      %v1573 = vunpack.c.l.b16 %v1509
      %v1574 = vunpack.c.l.b16 %v1513
      %v1575 = vunpack.c.l.b16 %v1516
      %v1576 = vunpack.c.l.b16 %v1520
      %v1577 = vunpack.c.l.b16 %v1523
      %v1578 = vunpack.c.l.b16 %v1527
      %v1579 = vunpack.c.l.b16 %v1530
      %v1580 = vunpack.c.l.b16 %v1534
      %v1581 = vunpack.c.l.b16 %v1537
      %v1582 = vunpack.c.l.b16 %v1541
      %v1583 = vunpack.c.l.b16 %v1544
      %v1584 = vunpack.c.l.b16 %v1548
      %v1585 = vunpack.c.l.b16 %v1551
      %v1586 = vpack.c.b16 %v1555, %v1554
      %v1587 = vpack.c.b16 %v1557, %v1556
      %v1588 = vpack.c.b16 %v1559, %v1558
      %v1589 = vpack.c.b16 %v1561, %v1560
      %v1590 = vpack.c.b16 %v1563, %v1562
      %v1591 = vpack.c.b16 %v1565, %v1564
      %v1592 = vpack.c.b16 %v1567, %v1566
      %v1593 = vpack.c.b16 %v1569, %v1568
      %v1594 = vpack.c.b16 %v1571, %v1570
      %v1595 = vpack.c.b16 %v1573, %v1572
      %v1596 = vpack.c.b16 %v1575, %v1574
      %v1597 = vpack.c.b16 %v1577, %v1576
      %v1598 = vpack.c.b16 %v1579, %v1578
      %v1599 = vpack.c.b16 %v1581, %v1580
      %v1600 = vpack.c.b16 %v1583, %v1582
      %v1601 = vpack.c.b16 %v1585, %v1584
      %v1603 = vsel %vm915, %v1586, 0
      %v1606 = vsel %vm915, %v1587, 0
      %v1609 = vsel %vm915, %v1588, 0
      %v1612 = vsel %vm915, %v1589, 0
      %v1615 = vsel %vm915, %v1590, 0
      %v1618 = vsel %vm915, %v1591, 0
      %v1621 = vsel %vm915, %v1592, 0
      %v1624 = vsel %vm915, %v1593, 0
      %v1627 = vsel %vm915, %v1594, 0
      %v1630 = vsel %vm915, %v1595, 0
      %v1633 = vsel %vm915, %v1596, 0
      %v1636 = vsel %vm915, %v1597, 0
      %v1639 = vsel %vm915, %v1598, 0
      %v1642 = vsel %vm915, %v1599, 0
      %v1645 = vsel %vm915, %v1600, 0
      %v1648 = vsel %vm915, %v1601, 0
      %v1651 = vsel %vm964, %v1553, 0
      %1653 = vmatprep.subr.bf16.mxu0 0
      %1654 = vmatpush1.bf16.msra.mxu0 0
      %1655 = vmatprep.subr.bf16.mxu0 0
      %1656 = vmatpush1.bf16.msra.mxu0 0
      %1657 = vmatprep.subr.bf16.mxu0 0
      %1658 = vmatpush1.bf16.msra.mxu0 0
      %1659 = vmatprep.subr.bf16.mxu0 0
      %1660 = vmatpush1.bf16.msra.mxu0 0
      %1661 = vmatprep.subr.bf16.mxu0 0
      %1662 = vmatpush1.bf16.msra.mxu0 0
      %1663 = vmatprep.subr.bf16.mxu0 0
      %1664 = vmatpush1.bf16.msra.mxu0 0
      %1665 = vmatprep.subr.bf16.mxu0 0
      %1666 = vmatpush1.bf16.msra.mxu0 0
      %1667 = vmatprep.subr.bf16.mxu0 0
      %1668 = vmatpush1.bf16.msra.mxu0 %v1651
      %1669 = vmatprep.subr.bf16.mxu0 0
      %1670 = vmatpush2.bf16.msra.mxu0 0
      %1671 = vmatprep.subr.bf16.mxu0 0
      %1672 = vmatpush2.bf16.msra.mxu0 0
      %1673 = vmatprep.subr.bf16.mxu0 0
      %1674 = vmatpush2.bf16.msra.mxu0 0
      %1675 = vmatprep.subr.bf16.mxu0 0
      %1676 = vmatpush2.bf16.msra.mxu0 0
      %1677 = vmatprep.subr.bf16.mxu0 0
      %1678 = vmatpush2.bf16.msra.mxu0 0
      %1679 = vmatprep.subr.bf16.mxu0 0
      %1680 = vmatpush2.bf16.msra.mxu0 0
      %1681 = vmatprep.subr.bf16.mxu0 0
      %1682 = vmatpush2.bf16.msra.mxu0 0
      %1683 = vmatprep.subr.bf16.mxu0 0
      %1684 = vmatpush2.bf16.msra.mxu0 0
      %1685 = vmatprep.mubr.bf16.mxu0 0
      %1686 = vmatmul.mubr.bf16.gmra.mxu0 %v1603
      %v1687 = vpop.f32.mrf.mxu0
      %v1688 = vadd.f32 0.0, %v1687
      %v1689 = vpop.f32.mrf.mxu0
      %v1690 = vpop.f32.mrf.mxu0
      %v1691 = vadd.f32 0.0, %v1690
      %v1692 = vpop.f32.mrf.mxu0
      %1693 = vmatprep.mubr.bf16.mxu0 0
      %1694 = vmatmul.mubr.bf16.gmra.mxu0 %v1606
      %v1695 = vpop.f32.mrf.mxu0
      %v1696 = vadd.f32 0.0, %v1695
      %v1697 = vpop.f32.mrf.mxu0
      %v1698 = vpop.f32.mrf.mxu0
      %v1699 = vadd.f32 0.0, %v1698
      %v1700 = vpop.f32.mrf.mxu0
      %1701 = vmatprep.mubr.bf16.mxu0 0
      %1702 = vmatmul.mubr.bf16.gmra.mxu0 %v1609
      %v1703 = vpop.f32.mrf.mxu0
      %v1704 = vadd.f32 0.0, %v1703
      %v1705 = vpop.f32.mrf.mxu0
      %v1706 = vpop.f32.mrf.mxu0
      %v1707 = vadd.f32 0.0, %v1706
      %v1708 = vpop.f32.mrf.mxu0
      %1709 = vmatprep.mubr.bf16.mxu0 0
      %1710 = vmatmul.mubr.bf16.gmra.mxu0 %v1612
      %v1711 = vpop.f32.mrf.mxu0
      %v1712 = vadd.f32 0.0, %v1711
      %v1713 = vpop.f32.mrf.mxu0
      %v1714 = vpop.f32.mrf.mxu0
      %v1715 = vadd.f32 0.0, %v1714
      %v1716 = vpop.f32.mrf.mxu0
      %1717 = vmatprep.mubr.bf16.mxu0 0
      %1718 = vmatmul.mubr.bf16.gmra.mxu0 %v1615
      %v1719 = vpop.f32.mrf.mxu0
      %v1720 = vadd.f32 0.0, %v1719
      %v1721 = vpop.f32.mrf.mxu0
      %v1722 = vpop.f32.mrf.mxu0
      %v1723 = vadd.f32 0.0, %v1722
      %v1724 = vpop.f32.mrf.mxu0
      %1725 = vmatprep.mubr.bf16.mxu0 0
      %1726 = vmatmul.mubr.bf16.gmra.mxu0 %v1618
      %v1727 = vpop.f32.mrf.mxu0
      %v1728 = vadd.f32 0.0, %v1727
      %v1729 = vpop.f32.mrf.mxu0
      %v1730 = vpop.f32.mrf.mxu0
      %v1731 = vadd.f32 0.0, %v1730
      %v1732 = vpop.f32.mrf.mxu0
      %1733 = vmatprep.mubr.bf16.mxu0 0
      %1734 = vmatmul.mubr.bf16.gmra.mxu0 %v1621
      %v1735 = vpop.f32.mrf.mxu0
      %v1736 = vadd.f32 0.0, %v1735
      %v1737 = vpop.f32.mrf.mxu0
      %v1738 = vpop.f32.mrf.mxu0
      %v1739 = vadd.f32 0.0, %v1738
      %v1740 = vpop.f32.mrf.mxu0
      %1741 = vmatprep.mubr.bf16.mxu0 0
      %1742 = vmatmul.mubr.bf16.gmra.mxu0 %v1624
      %v1743 = vpop.f32.mrf.mxu0
      %v1744 = vadd.f32 0.0, %v1743
      %v1745 = vpop.f32.mrf.mxu0
      %v1746 = vpop.f32.mrf.mxu0
      %v1747 = vadd.f32 0.0, %v1746
      %v1748 = vpop.f32.mrf.mxu0
      %1749 = vmatprep.mubr.bf16.mxu0 0
      %1750 = vmatmul.mubr.bf16.gmra.mxu0 %v1627
      %v1751 = vpop.f32.mrf.mxu0
      %v1752 = vadd.f32 0.0, %v1751
      %v1753 = vpop.f32.mrf.mxu0
      %v1754 = vpop.f32.mrf.mxu0
      %v1755 = vadd.f32 0.0, %v1754
      %v1756 = vpop.f32.mrf.mxu0
      %1757 = vmatprep.mubr.bf16.mxu0 0
      %1758 = vmatmul.mubr.bf16.gmra.mxu0 %v1630
      %v1759 = vpop.f32.mrf.mxu0
      %v1760 = vadd.f32 0.0, %v1759
      %v1761 = vpop.f32.mrf.mxu0
      %v1762 = vpop.f32.mrf.mxu0
      %v1763 = vadd.f32 0.0, %v1762
      %v1764 = vpop.f32.mrf.mxu0
      %1765 = vmatprep.mubr.bf16.mxu0 0
      %1766 = vmatmul.mubr.bf16.gmra.mxu0 %v1633
      %v1767 = vpop.f32.mrf.mxu0
      %v1768 = vadd.f32 0.0, %v1767
      %v1769 = vpop.f32.mrf.mxu0
      %v1770 = vpop.f32.mrf.mxu0
      %v1771 = vadd.f32 0.0, %v1770
      %v1772 = vpop.f32.mrf.mxu0
      %1773 = vmatprep.mubr.bf16.mxu0 0
      %1774 = vmatmul.mubr.bf16.gmra.mxu0 %v1636
      %v1775 = vpop.f32.mrf.mxu0
      %v1776 = vadd.f32 0.0, %v1775
      %v1777 = vpop.f32.mrf.mxu0
      %v1778 = vpop.f32.mrf.mxu0
      %v1779 = vadd.f32 0.0, %v1778
      %v1780 = vpop.f32.mrf.mxu0
      %1781 = vmatprep.mubr.bf16.mxu0 0
      %1782 = vmatmul.mubr.bf16.gmra.mxu0 %v1639
      %v1783 = vpop.f32.mrf.mxu0
      %v1784 = vadd.f32 0.0, %v1783
      %v1785 = vpop.f32.mrf.mxu0
      %v1786 = vpop.f32.mrf.mxu0
      %v1787 = vadd.f32 0.0, %v1786
      %v1788 = vpop.f32.mrf.mxu0
      %1789 = vmatprep.mubr.bf16.mxu0 0
      %1790 = vmatmul.mubr.bf16.gmra.mxu0 %v1642
      %v1791 = vpop.f32.mrf.mxu0
      %v1792 = vadd.f32 0.0, %v1791
      %v1793 = vpop.f32.mrf.mxu0
      %v1794 = vpop.f32.mrf.mxu0
      %v1795 = vadd.f32 0.0, %v1794
      %v1796 = vpop.f32.mrf.mxu0
      %1797 = vmatprep.mubr.bf16.mxu0 0
      %1798 = vmatmul.mubr.bf16.gmra.mxu0 %v1645
      %v1799 = vpop.f32.mrf.mxu0
      %v1800 = vadd.f32 0.0, %v1799
      %v1801 = vpop.f32.mrf.mxu0
      %v1802 = vpop.f32.mrf.mxu0
      %v1803 = vadd.f32 0.0, %v1802
      %v1804 = vpop.f32.mrf.mxu0
      %1805 = vmatprep.mubr.bf16.mxu0 0
      %1806 = vmatmul.mubr.bf16.gmra.mxu0 %v1648
      %v1807 = vpop.f32.mrf.mxu0
      %v1808 = vadd.f32 0.0, %v1807
      %v1809 = vpop.f32.mrf.mxu0
      %v1810 = vpop.f32.mrf.mxu0
      %v1811 = vadd.f32 0.0, %v1810
      %v1812 = vpop.f32.mrf.mxu0
      %1813 = vdwg.mxu0
      %v1814 = vadd.f32 %v1295, %v1688
      %v1815 = vadd.f32 %v1298, %v1691
      %v1816 = vadd.f32 %v1303, %v1696
      %v1817 = vadd.f32 %v1306, %v1699
      %v1818 = vadd.f32 %v1311, %v1704
      %v1819 = vadd.f32 %v1314, %v1707
      %v1820 = vadd.f32 %v1319, %v1712
      %v1821 = vadd.f32 %v1322, %v1715
      %v1822 = vadd.f32 %v1327, %v1720
      %v1823 = vadd.f32 %v1330, %v1723
      %v1824 = vadd.f32 %v1335, %v1728
      %v1825 = vadd.f32 %v1338, %v1731
      %v1826 = vadd.f32 %v1343, %v1736
      %v1827 = vadd.f32 %v1346, %v1739
      %v1828 = vadd.f32 %v1351, %v1744
      %v1829 = vadd.f32 %v1354, %v1747
      %v1830 = vadd.f32 %v1359, %v1752
      %v1831 = vadd.f32 %v1362, %v1755
      %v1832 = vadd.f32 %v1367, %v1760
      %v1833 = vadd.f32 %v1370, %v1763
      %v1834 = vadd.f32 %v1375, %v1768
      %v1835 = vadd.f32 %v1378, %v1771
      %v1836 = vadd.f32 %v1383, %v1776
      %v1837 = vadd.f32 %v1386, %v1779
      %v1838 = vadd.f32 %v1391, %v1784
      %v1839 = vadd.f32 %v1394, %v1787
      %v1840 = vadd.f32 %v1399, %v1792
      %v1841 = vadd.f32 %v1402, %v1795
      %v1842 = vadd.f32 %v1407, %v1800
      %v1843 = vadd.f32 %v1410, %v1803
      %v1844 = vadd.f32 %v1415, %v1808
      %v1845 = vadd.f32 %v1418, %v1811
      %s1846 = scalar_lea.vmem %s3, 12
      %v1847 = vld [vmem:[%s1846] sm:$0xf]
      %v1850 = vunpack.c.l.b16 %v474
      %v1851 = vunpack.c.l.b16 %v475
      %v1852 = vpack.c.b16 %v1851, %v1850
      %v1854 = vsel %vm915, %v1852, 0
      %v1857 = vsel %vm964, %v1847, 0
      %1859 = vmatprep.subr.bf16.mxu0 0
      %1860 = vmatpush1.bf16.msra.mxu0 0
      %1861 = vmatprep.subr.bf16.mxu0 0
      %1862 = vmatpush1.bf16.msra.mxu0 0
      %1863 = vmatprep.subr.bf16.mxu0 0
      %1864 = vmatpush1.bf16.msra.mxu0 0
      %1865 = vmatprep.subr.bf16.mxu0 0
      %1866 = vmatpush1.bf16.msra.mxu0 0
      %1867 = vmatprep.subr.bf16.mxu0 0
      %1868 = vmatpush1.bf16.msra.mxu0 0
      %1869 = vmatprep.subr.bf16.mxu0 0
      %1870 = vmatpush1.bf16.msra.mxu0 0
      %1871 = vmatprep.subr.bf16.mxu0 0
      %1872 = vmatpush1.bf16.msra.mxu0 0
      %1873 = vmatprep.subr.bf16.mxu0 0
      %1874 = vmatpush1.bf16.msra.mxu0 %v1857
      %1875 = vmatprep.subr.bf16.mxu0 0
      %1876 = vmatpush2.bf16.msra.mxu0 0
      %1877 = vmatprep.subr.bf16.mxu0 0
      %1878 = vmatpush2.bf16.msra.mxu0 0
      %1879 = vmatprep.subr.bf16.mxu0 0
      %1880 = vmatpush2.bf16.msra.mxu0 0
      %1881 = vmatprep.subr.bf16.mxu0 0
      %1882 = vmatpush2.bf16.msra.mxu0 0
      %1883 = vmatprep.subr.bf16.mxu0 0
      %1884 = vmatpush2.bf16.msra.mxu0 0
      %1885 = vmatprep.subr.bf16.mxu0 0
      %1886 = vmatpush2.bf16.msra.mxu0 0
      %1887 = vmatprep.subr.bf16.mxu0 0
      %1888 = vmatpush2.bf16.msra.mxu0 0
      %1889 = vmatprep.subr.bf16.mxu0 0
      %1890 = vmatpush2.bf16.msra.mxu0 0
      %1891 = vmatprep.mubr.bf16.mxu0 0
      %1892 = vmatmul.mubr.bf16.gmra.mxu0 %v1213
      %v1893 = vpop.f32.mrf.mxu0
      %v1894 = vadd.f32 0.0, %v1893
      %v1895 = vpop.f32.mrf.mxu0
      %v1896 = vpop.f32.mrf.mxu0
      %v1897 = vadd.f32 0.0, %v1896
      %v1898 = vpop.f32.mrf.mxu0
      %1899 = vmatprep.mubr.bf16.mxu0 0
      %1900 = vmatmul.mubr.bf16.gmra.mxu0 %v1216
      %v1901 = vpop.f32.mrf.mxu0
      %v1902 = vadd.f32 0.0, %v1901
      %v1903 = vpop.f32.mrf.mxu0
      %v1904 = vpop.f32.mrf.mxu0
      %v1905 = vadd.f32 0.0, %v1904
      %v1906 = vpop.f32.mrf.mxu0
      %1907 = vmatprep.mubr.bf16.mxu0 0
      %1908 = vmatmul.mubr.bf16.gmra.mxu0 %v1219
      %v1909 = vpop.f32.mrf.mxu0
      %v1910 = vadd.f32 0.0, %v1909
      %v1911 = vpop.f32.mrf.mxu0
      %v1912 = vpop.f32.mrf.mxu0
      %v1913 = vadd.f32 0.0, %v1912
      %v1914 = vpop.f32.mrf.mxu0
      %1915 = vmatprep.mubr.bf16.mxu0 0
      %1916 = vmatmul.mubr.bf16.gmra.mxu0 %v1222
      %v1917 = vpop.f32.mrf.mxu0
      %v1918 = vadd.f32 0.0, %v1917
      %v1919 = vpop.f32.mrf.mxu0
      %v1920 = vpop.f32.mrf.mxu0
      %v1921 = vadd.f32 0.0, %v1920
      %v1922 = vpop.f32.mrf.mxu0
      %1923 = vmatprep.mubr.bf16.mxu0 0
      %1924 = vmatmul.mubr.bf16.gmra.mxu0 %v1225
      %v1925 = vpop.f32.mrf.mxu0
      %v1926 = vadd.f32 0.0, %v1925
      %v1927 = vpop.f32.mrf.mxu0
      %v1928 = vpop.f32.mrf.mxu0
      %v1929 = vadd.f32 0.0, %v1928
      %v1930 = vpop.f32.mrf.mxu0
      %1931 = vmatprep.mubr.bf16.mxu0 0
      %1932 = vmatmul.mubr.bf16.gmra.mxu0 %v1228
      %v1933 = vpop.f32.mrf.mxu0
      %v1934 = vadd.f32 0.0, %v1933
      %v1935 = vpop.f32.mrf.mxu0
      %v1936 = vpop.f32.mrf.mxu0
      %v1937 = vadd.f32 0.0, %v1936
      %v1938 = vpop.f32.mrf.mxu0
      %1939 = vmatprep.mubr.bf16.mxu0 0
      %1940 = vmatmul.mubr.bf16.gmra.mxu0 %v1231
      %v1941 = vpop.f32.mrf.mxu0
      %v1942 = vadd.f32 0.0, %v1941
      %v1943 = vpop.f32.mrf.mxu0
      %v1944 = vpop.f32.mrf.mxu0
      %v1945 = vadd.f32 0.0, %v1944
      %v1946 = vpop.f32.mrf.mxu0
      %1947 = vmatprep.mubr.bf16.mxu0 0
      %1948 = vmatmul.mubr.bf16.gmra.mxu0 %v1234
      %v1949 = vpop.f32.mrf.mxu0
      %v1950 = vadd.f32 0.0, %v1949
      %v1951 = vpop.f32.mrf.mxu0
      %v1952 = vpop.f32.mrf.mxu0
      %v1953 = vadd.f32 0.0, %v1952
      %v1954 = vpop.f32.mrf.mxu0
      %1955 = vmatprep.mubr.bf16.mxu0 0
      %1956 = vmatmul.mubr.bf16.gmra.mxu0 %v1237
      %v1957 = vpop.f32.mrf.mxu0
      %v1958 = vadd.f32 0.0, %v1957
      %v1959 = vpop.f32.mrf.mxu0
      %v1960 = vpop.f32.mrf.mxu0
      %v1961 = vadd.f32 0.0, %v1960
      %v1962 = vpop.f32.mrf.mxu0
      %1963 = vmatprep.mubr.bf16.mxu0 0
      %1964 = vmatmul.mubr.bf16.gmra.mxu0 %v1240
      %v1965 = vpop.f32.mrf.mxu0
      %v1966 = vadd.f32 0.0, %v1965
      %v1967 = vpop.f32.mrf.mxu0
      %v1968 = vpop.f32.mrf.mxu0
      %v1969 = vadd.f32 0.0, %v1968
      %v1970 = vpop.f32.mrf.mxu0
      %1971 = vmatprep.mubr.bf16.mxu0 0
      %1972 = vmatmul.mubr.bf16.gmra.mxu0 %v1243
      %v1973 = vpop.f32.mrf.mxu0
      %v1974 = vadd.f32 0.0, %v1973
      %v1975 = vpop.f32.mrf.mxu0
      %v1976 = vpop.f32.mrf.mxu0
      %v1977 = vadd.f32 0.0, %v1976
      %v1978 = vpop.f32.mrf.mxu0
      %1979 = vmatprep.mubr.bf16.mxu0 0
      %1980 = vmatmul.mubr.bf16.gmra.mxu0 %v1246
      %v1981 = vpop.f32.mrf.mxu0
      %v1982 = vadd.f32 0.0, %v1981
      %v1983 = vpop.f32.mrf.mxu0
      %v1984 = vpop.f32.mrf.mxu0
      %v1985 = vadd.f32 0.0, %v1984
      %v1986 = vpop.f32.mrf.mxu0
      %1987 = vmatprep.mubr.bf16.mxu0 0
      %1988 = vmatmul.mubr.bf16.gmra.mxu0 %v1249
      %v1989 = vpop.f32.mrf.mxu0
      %v1990 = vadd.f32 0.0, %v1989
      %v1991 = vpop.f32.mrf.mxu0
      %v1992 = vpop.f32.mrf.mxu0
      %v1993 = vadd.f32 0.0, %v1992
      %v1994 = vpop.f32.mrf.mxu0
      %1995 = vmatprep.mubr.bf16.mxu0 0
      %1996 = vmatmul.mubr.bf16.gmra.mxu0 %v1252
      %v1997 = vpop.f32.mrf.mxu0
      %v1998 = vadd.f32 0.0, %v1997
      %v1999 = vpop.f32.mrf.mxu0
      %v2000 = vpop.f32.mrf.mxu0
      %v2001 = vadd.f32 0.0, %v2000
      %v2002 = vpop.f32.mrf.mxu0
      %2003 = vmatprep.mubr.bf16.mxu0 0
      %2004 = vmatmul.mubr.bf16.gmra.mxu0 %v1255
      %v2005 = vpop.f32.mrf.mxu0
      %v2006 = vadd.f32 0.0, %v2005
      %v2007 = vpop.f32.mrf.mxu0
      %v2008 = vpop.f32.mrf.mxu0
      %v2009 = vadd.f32 0.0, %v2008
      %v2010 = vpop.f32.mrf.mxu0
      %2011 = vmatprep.mubr.bf16.mxu0 0
      %2012 = vmatmul.mubr.bf16.gmra.mxu0 %v1854
      %v2013 = vpop.f32.mrf.mxu0
      %v2014 = vadd.f32 0.0, %v2013
      %v2015 = vpop.f32.mrf.mxu0
      %v2016 = vpop.f32.mrf.mxu0
      %v2017 = vadd.f32 0.0, %v2016
      %v2018 = vpop.f32.mrf.mxu0
      %2019 = vdwg.mxu0
      %v2020 = vadd.f32 %v1814, %v1894
      %v2021 = vadd.f32 %v1815, %v1897
      %v2022 = vadd.f32 %v1816, %v1902
      %v2023 = vadd.f32 %v1817, %v1905
      %v2024 = vadd.f32 %v1818, %v1910
      %v2025 = vadd.f32 %v1819, %v1913
      %v2026 = vadd.f32 %v1820, %v1918
      %v2027 = vadd.f32 %v1821, %v1921
      %v2028 = vadd.f32 %v1822, %v1926
      %v2029 = vadd.f32 %v1823, %v1929
      %v2030 = vadd.f32 %v1824, %v1934
      %v2031 = vadd.f32 %v1825, %v1937
      %v2032 = vadd.f32 %v1826, %v1942
      %v2033 = vadd.f32 %v1827, %v1945
      %v2034 = vadd.f32 %v1828, %v1950
      %v2035 = vadd.f32 %v1829, %v1953
      %v2036 = vadd.f32 %v1830, %v1958
      %v2037 = vadd.f32 %v1831, %v1961
      %v2038 = vadd.f32 %v1832, %v1966
      %v2039 = vadd.f32 %v1833, %v1969
      %v2040 = vadd.f32 %v1834, %v1974
      %v2041 = vadd.f32 %v1835, %v1977
      %v2042 = vadd.f32 %v1836, %v1982
      %v2043 = vadd.f32 %v1837, %v1985
      %v2044 = vadd.f32 %v1838, %v1990
      %v2045 = vadd.f32 %v1839, %v1993
      %v2046 = vadd.f32 %v1840, %v1998
      %v2047 = vadd.f32 %v1841, %v2001
      %v2048 = vadd.f32 %v1842, %v2006
      %v2049 = vadd.f32 %v1843, %v2009
      %v2050 = vadd.f32 %v1844, %v2014
      %v2051 = vadd.f32 %v1845, %v2017
      %v2053 = vshrl.u32 %v474, 16
      %v2055 = vrot.slane %v2053, 4
      %v2056 = vshll.u32 %v474, 16
      %v2058 = vrot.slane %v2056, 5
      %v2059 = vor.u32 %v2055, %v2058
      %v2060 = vrot.slane %v2059, 4
      %v2062 = vshll.u32 %v475, 16
      %v2064 = vrot.slane %v2062, 5
      %v2065 = vsel %vm480, %v2060, %v2064
      %v2066 = vshrl.u32 %v475, 16
      %v2068 = vrot.slane %v2066, 4
      %v2069 = vor.u32 %v2068, %v2064
      %v2070 = vrot.slane %v2069, 4
      %v2072 = vshll.u32 %v476, 16
      %v2074 = vrot.slane %v2072, 5
      %v2075 = vsel %vm480, %v2070, %v2074
      %s2076 = scalar_lea.vmem %s3, 16
      %v2077 = vld [vmem:[%s2076] sm:$0xf]
      %v2078 = vunpack.c.l.b16 %v2065
      %v2079 = vunpack.c.l.b16 %v2075
      %v2080 = vpack.c.b16 %v2079, %v2078
      %v2082 = vsel %vm915, %v2080, 0
      %v2085 = vsel %vm964, %v2077, 0
      %2087 = vmatprep.subr.bf16.mxu0 0
      %2088 = vmatpush1.bf16.msra.mxu0 0
      %2089 = vmatprep.subr.bf16.mxu0 0
      %2090 = vmatpush1.bf16.msra.mxu0 0
      %2091 = vmatprep.subr.bf16.mxu0 0
      %2092 = vmatpush1.bf16.msra.mxu0 0
      %2093 = vmatprep.subr.bf16.mxu0 0
      %2094 = vmatpush1.bf16.msra.mxu0 0
      %2095 = vmatprep.subr.bf16.mxu0 0
      %2096 = vmatpush1.bf16.msra.mxu0 0
      %2097 = vmatprep.subr.bf16.mxu0 0
      %2098 = vmatpush1.bf16.msra.mxu0 0
      %2099 = vmatprep.subr.bf16.mxu0 0
      %2100 = vmatpush1.bf16.msra.mxu0 0
      %2101 = vmatprep.subr.bf16.mxu0 0
      %2102 = vmatpush1.bf16.msra.mxu0 %v2085
      %2103 = vmatprep.subr.bf16.mxu0 0
      %2104 = vmatpush2.bf16.msra.mxu0 0
      %2105 = vmatprep.subr.bf16.mxu0 0
      %2106 = vmatpush2.bf16.msra.mxu0 0
      %2107 = vmatprep.subr.bf16.mxu0 0
      %2108 = vmatpush2.bf16.msra.mxu0 0
      %2109 = vmatprep.subr.bf16.mxu0 0
      %2110 = vmatpush2.bf16.msra.mxu0 0
      %2111 = vmatprep.subr.bf16.mxu0 0
      %2112 = vmatpush2.bf16.msra.mxu0 0
      %2113 = vmatprep.subr.bf16.mxu0 0
      %2114 = vmatpush2.bf16.msra.mxu0 0
      %2115 = vmatprep.subr.bf16.mxu0 0
      %2116 = vmatpush2.bf16.msra.mxu0 0
      %2117 = vmatprep.subr.bf16.mxu0 0
      %2118 = vmatpush2.bf16.msra.mxu0 0
      %2119 = vmatprep.mubr.bf16.mxu0 0
      %2120 = vmatmul.mubr.bf16.gmra.mxu0 %v920
      %v2121 = vpop.f32.mrf.mxu0
      %v2122 = vadd.f32 0.0, %v2121
      %v2123 = vpop.f32.mrf.mxu0
      %v2124 = vpop.f32.mrf.mxu0
      %v2125 = vadd.f32 0.0, %v2124
      %v2126 = vpop.f32.mrf.mxu0
      %2127 = vmatprep.mubr.bf16.mxu0 0
      %2128 = vmatmul.mubr.bf16.gmra.mxu0 %v923
      %v2129 = vpop.f32.mrf.mxu0
      %v2130 = vadd.f32 0.0, %v2129
      %v2131 = vpop.f32.mrf.mxu0
      %v2132 = vpop.f32.mrf.mxu0
      %v2133 = vadd.f32 0.0, %v2132
      %v2134 = vpop.f32.mrf.mxu0
      %2135 = vmatprep.mubr.bf16.mxu0 0
      %2136 = vmatmul.mubr.bf16.gmra.mxu0 %v926
      %v2137 = vpop.f32.mrf.mxu0
      %v2138 = vadd.f32 0.0, %v2137
      %v2139 = vpop.f32.mrf.mxu0
      %v2140 = vpop.f32.mrf.mxu0
      %v2141 = vadd.f32 0.0, %v2140
      %v2142 = vpop.f32.mrf.mxu0
      %2143 = vmatprep.mubr.bf16.mxu0 0
      %2144 = vmatmul.mubr.bf16.gmra.mxu0 %v929
      %v2145 = vpop.f32.mrf.mxu0
      %v2146 = vadd.f32 0.0, %v2145
      %v2147 = vpop.f32.mrf.mxu0
      %v2148 = vpop.f32.mrf.mxu0
      %v2149 = vadd.f32 0.0, %v2148
      %v2150 = vpop.f32.mrf.mxu0
      %2151 = vmatprep.mubr.bf16.mxu0 0
      %2152 = vmatmul.mubr.bf16.gmra.mxu0 %v932
      %v2153 = vpop.f32.mrf.mxu0
      %v2154 = vadd.f32 0.0, %v2153
      %v2155 = vpop.f32.mrf.mxu0
      %v2156 = vpop.f32.mrf.mxu0
      %v2157 = vadd.f32 0.0, %v2156
      %v2158 = vpop.f32.mrf.mxu0
      %2159 = vmatprep.mubr.bf16.mxu0 0
      %2160 = vmatmul.mubr.bf16.gmra.mxu0 %v935
      %v2161 = vpop.f32.mrf.mxu0
      %v2162 = vadd.f32 0.0, %v2161
      %v2163 = vpop.f32.mrf.mxu0
      %v2164 = vpop.f32.mrf.mxu0
      %v2165 = vadd.f32 0.0, %v2164
      %v2166 = vpop.f32.mrf.mxu0
      %2167 = vmatprep.mubr.bf16.mxu0 0
      %2168 = vmatmul.mubr.bf16.gmra.mxu0 %v938
      %v2169 = vpop.f32.mrf.mxu0
      %v2170 = vadd.f32 0.0, %v2169
      %v2171 = vpop.f32.mrf.mxu0
      %v2172 = vpop.f32.mrf.mxu0
      %v2173 = vadd.f32 0.0, %v2172
      %v2174 = vpop.f32.mrf.mxu0
      %2175 = vmatprep.mubr.bf16.mxu0 0
      %2176 = vmatmul.mubr.bf16.gmra.mxu0 %v941
      %v2177 = vpop.f32.mrf.mxu0
      %v2178 = vadd.f32 0.0, %v2177
      %v2179 = vpop.f32.mrf.mxu0
      %v2180 = vpop.f32.mrf.mxu0
      %v2181 = vadd.f32 0.0, %v2180
      %v2182 = vpop.f32.mrf.mxu0
      %2183 = vmatprep.mubr.bf16.mxu0 0
      %2184 = vmatmul.mubr.bf16.gmra.mxu0 %v944
      %v2185 = vpop.f32.mrf.mxu0
      %v2186 = vadd.f32 0.0, %v2185
      %v2187 = vpop.f32.mrf.mxu0
      %v2188 = vpop.f32.mrf.mxu0
      %v2189 = vadd.f32 0.0, %v2188
      %v2190 = vpop.f32.mrf.mxu0
      %2191 = vmatprep.mubr.bf16.mxu0 0
      %2192 = vmatmul.mubr.bf16.gmra.mxu0 %v947
      %v2193 = vpop.f32.mrf.mxu0
      %v2194 = vadd.f32 0.0, %v2193
      %v2195 = vpop.f32.mrf.mxu0
      %v2196 = vpop.f32.mrf.mxu0
      %v2197 = vadd.f32 0.0, %v2196
      %v2198 = vpop.f32.mrf.mxu0
      %2199 = vmatprep.mubr.bf16.mxu0 0
      %2200 = vmatmul.mubr.bf16.gmra.mxu0 %v950
      %v2201 = vpop.f32.mrf.mxu0
      %v2202 = vadd.f32 0.0, %v2201
      %v2203 = vpop.f32.mrf.mxu0
      %v2204 = vpop.f32.mrf.mxu0
      %v2205 = vadd.f32 0.0, %v2204
      %v2206 = vpop.f32.mrf.mxu0
      %2207 = vmatprep.mubr.bf16.mxu0 0
      %2208 = vmatmul.mubr.bf16.gmra.mxu0 %v953
      %v2209 = vpop.f32.mrf.mxu0
      %v2210 = vadd.f32 0.0, %v2209
      %v2211 = vpop.f32.mrf.mxu0
      %v2212 = vpop.f32.mrf.mxu0
      %v2213 = vadd.f32 0.0, %v2212
      %v2214 = vpop.f32.mrf.mxu0
      %2215 = vmatprep.mubr.bf16.mxu0 0
      %2216 = vmatmul.mubr.bf16.gmra.mxu0 %v956
      %v2217 = vpop.f32.mrf.mxu0
      %v2218 = vadd.f32 0.0, %v2217
      %v2219 = vpop.f32.mrf.mxu0
      %v2220 = vpop.f32.mrf.mxu0
      %v2221 = vadd.f32 0.0, %v2220
      %v2222 = vpop.f32.mrf.mxu0
      %2223 = vmatprep.mubr.bf16.mxu0 0
      %2224 = vmatmul.mubr.bf16.gmra.mxu0 %v959
      %v2225 = vpop.f32.mrf.mxu0
      %v2226 = vadd.f32 0.0, %v2225
      %v2227 = vpop.f32.mrf.mxu0
      %v2228 = vpop.f32.mrf.mxu0
      %v2229 = vadd.f32 0.0, %v2228
      %v2230 = vpop.f32.mrf.mxu0
      %2231 = vmatprep.mubr.bf16.mxu0 0
      %2232 = vmatmul.mubr.bf16.gmra.mxu0 %v962
      %v2233 = vpop.f32.mrf.mxu0
      %v2234 = vadd.f32 0.0, %v2233
      %v2235 = vpop.f32.mrf.mxu0
      %v2236 = vpop.f32.mrf.mxu0
      %v2237 = vadd.f32 0.0, %v2236
      %v2238 = vpop.f32.mrf.mxu0
      %2239 = vmatprep.mubr.bf16.mxu0 0
      %2240 = vmatmul.mubr.bf16.gmra.mxu0 %v2082
      %v2241 = vpop.f32.mrf.mxu0
      %v2242 = vadd.f32 0.0, %v2241
      %v2243 = vpop.f32.mrf.mxu0
      %v2244 = vpop.f32.mrf.mxu0
      %v2245 = vadd.f32 0.0, %v2244
      %v2246 = vpop.f32.mrf.mxu0
      %2247 = vdwg.mxu0
      %v2248 = vadd.f32 %v2020, %v2122
      %v2249 = vadd.f32 %v2021, %v2125
      %v2250 = vadd.f32 %v2022, %v2130
      %v2251 = vadd.f32 %v2023, %v2133
      %v2252 = vadd.f32 %v2024, %v2138
      %v2253 = vadd.f32 %v2025, %v2141
      %v2254 = vadd.f32 %v2026, %v2146
      %v2255 = vadd.f32 %v2027, %v2149
      %v2256 = vadd.f32 %v2028, %v2154
      %v2257 = vadd.f32 %v2029, %v2157
      %v2258 = vadd.f32 %v2030, %v2162
      %v2259 = vadd.f32 %v2031, %v2165
      %v2260 = vadd.f32 %v2032, %v2170
      %v2261 = vadd.f32 %v2033, %v2173
      %v2262 = vadd.f32 %v2034, %v2178
      %v2263 = vadd.f32 %v2035, %v2181
      %v2264 = vadd.f32 %v2036, %v2186
      %v2265 = vadd.f32 %v2037, %v2189
      %v2266 = vadd.f32 %v2038, %v2194
      %v2267 = vadd.f32 %v2039, %v2197
      %v2268 = vadd.f32 %v2040, %v2202
      %v2269 = vadd.f32 %v2041, %v2205
      %v2270 = vadd.f32 %v2042, %v2210
      %v2271 = vadd.f32 %v2043, %v2213
      %v2272 = vadd.f32 %v2044, %v2218
      %v2273 = vadd.f32 %v2045, %v2221
      %v2274 = vadd.f32 %v2046, %v2226
      %v2275 = vadd.f32 %v2047, %v2229
      %v2276 = vadd.f32 %v2048, %v2234
      %v2277 = vadd.f32 %v2049, %v2237
      %v2278 = vadd.f32 %v2050, %v2242
      %v2279 = vadd.f32 %v2051, %v2245
      %v2281 = vrot.slane %v474, 5
      %v2282 = vrot.slane %v2281, 4
      %v2283 = vrot.slane %v475, 5
      %v2284 = vsel %vm1439, %v2282, %v2283
      %v2285 = vrot.slane %v2283, 4
      %v2286 = vrot.slane %v476, 5
      %v2287 = vsel %vm1439, %v2285, %v2286
      %s2288 = scalar_lea.vmem %s3, 20
      %v2289 = vld [vmem:[%s2288] sm:$0xf]
      %v2290 = vunpack.c.l.b16 %v2284
      %v2291 = vunpack.c.l.b16 %v2287
      %v2292 = vpack.c.b16 %v2291, %v2290
      %v2294 = vsel %vm915, %v2292, 0
      %v2297 = vsel %vm964, %v2289, 0
      %2299 = vmatprep.subr.bf16.mxu0 0
      %2300 = vmatpush1.bf16.msra.mxu0 0
      %2301 = vmatprep.subr.bf16.mxu0 0
      %2302 = vmatpush1.bf16.msra.mxu0 0
      %2303 = vmatprep.subr.bf16.mxu0 0
      %2304 = vmatpush1.bf16.msra.mxu0 0
      %2305 = vmatprep.subr.bf16.mxu0 0
      %2306 = vmatpush1.bf16.msra.mxu0 0
      %2307 = vmatprep.subr.bf16.mxu0 0
      %2308 = vmatpush1.bf16.msra.mxu0 0
      %2309 = vmatprep.subr.bf16.mxu0 0
      %2310 = vmatpush1.bf16.msra.mxu0 0
      %2311 = vmatprep.subr.bf16.mxu0 0
      %2312 = vmatpush1.bf16.msra.mxu0 0
      %2313 = vmatprep.subr.bf16.mxu0 0
      %2314 = vmatpush1.bf16.msra.mxu0 %v2297
      %2315 = vmatprep.subr.bf16.mxu0 0
      %2316 = vmatpush2.bf16.msra.mxu0 0
      %2317 = vmatprep.subr.bf16.mxu0 0
      %2318 = vmatpush2.bf16.msra.mxu0 0
      %2319 = vmatprep.subr.bf16.mxu0 0
      %2320 = vmatpush2.bf16.msra.mxu0 0
      %2321 = vmatprep.subr.bf16.mxu0 0
      %2322 = vmatpush2.bf16.msra.mxu0 0
      %2323 = vmatprep.subr.bf16.mxu0 0
      %2324 = vmatpush2.bf16.msra.mxu0 0
      %2325 = vmatprep.subr.bf16.mxu0 0
      %2326 = vmatpush2.bf16.msra.mxu0 0
      %2327 = vmatprep.subr.bf16.mxu0 0
      %2328 = vmatpush2.bf16.msra.mxu0 0
      %2329 = vmatprep.subr.bf16.mxu0 0
      %2330 = vmatpush2.bf16.msra.mxu0 0
      %2331 = vmatprep.mubr.bf16.mxu0 0
      %2332 = vmatmul.mubr.bf16.gmra.mxu0 %v1606
      %v2333 = vpop.f32.mrf.mxu0
      %v2334 = vadd.f32 0.0, %v2333
      %v2335 = vpop.f32.mrf.mxu0
      %v2336 = vpop.f32.mrf.mxu0
      %v2337 = vadd.f32 0.0, %v2336
      %v2338 = vpop.f32.mrf.mxu0
      %2339 = vmatprep.mubr.bf16.mxu0 0
      %2340 = vmatmul.mubr.bf16.gmra.mxu0 %v1609
      %v2341 = vpop.f32.mrf.mxu0
      %v2342 = vadd.f32 0.0, %v2341
      %v2343 = vpop.f32.mrf.mxu0
      %v2344 = vpop.f32.mrf.mxu0
      %v2345 = vadd.f32 0.0, %v2344
      %v2346 = vpop.f32.mrf.mxu0
      %2347 = vmatprep.mubr.bf16.mxu0 0
      %2348 = vmatmul.mubr.bf16.gmra.mxu0 %v1612
      %v2349 = vpop.f32.mrf.mxu0
      %v2350 = vadd.f32 0.0, %v2349
      %v2351 = vpop.f32.mrf.mxu0
      %v2352 = vpop.f32.mrf.mxu0
      %v2353 = vadd.f32 0.0, %v2352
      %v2354 = vpop.f32.mrf.mxu0
      %2355 = vmatprep.mubr.bf16.mxu0 0
      %2356 = vmatmul.mubr.bf16.gmra.mxu0 %v1615
      %v2357 = vpop.f32.mrf.mxu0
      %v2358 = vadd.f32 0.0, %v2357
      %v2359 = vpop.f32.mrf.mxu0
      %v2360 = vpop.f32.mrf.mxu0
      %v2361 = vadd.f32 0.0, %v2360
      %v2362 = vpop.f32.mrf.mxu0
      %2363 = vmatprep.mubr.bf16.mxu0 0
      %2364 = vmatmul.mubr.bf16.gmra.mxu0 %v1618
      %v2365 = vpop.f32.mrf.mxu0
      %v2366 = vadd.f32 0.0, %v2365
      %v2367 = vpop.f32.mrf.mxu0
      %v2368 = vpop.f32.mrf.mxu0
      %v2369 = vadd.f32 0.0, %v2368
      %v2370 = vpop.f32.mrf.mxu0
      %2371 = vmatprep.mubr.bf16.mxu0 0
      %2372 = vmatmul.mubr.bf16.gmra.mxu0 %v1621
      %v2373 = vpop.f32.mrf.mxu0
      %v2374 = vadd.f32 0.0, %v2373
      %v2375 = vpop.f32.mrf.mxu0
      %v2376 = vpop.f32.mrf.mxu0
      %v2377 = vadd.f32 0.0, %v2376
      %v2378 = vpop.f32.mrf.mxu0
      %2379 = vmatprep.mubr.bf16.mxu0 0
      %2380 = vmatmul.mubr.bf16.gmra.mxu0 %v1624
      %v2381 = vpop.f32.mrf.mxu0
      %v2382 = vadd.f32 0.0, %v2381
      %v2383 = vpop.f32.mrf.mxu0
      %v2384 = vpop.f32.mrf.mxu0
      %v2385 = vadd.f32 0.0, %v2384
      %v2386 = vpop.f32.mrf.mxu0
      %2387 = vmatprep.mubr.bf16.mxu0 0
      %2388 = vmatmul.mubr.bf16.gmra.mxu0 %v1627
      %v2389 = vpop.f32.mrf.mxu0
      %v2390 = vadd.f32 0.0, %v2389
      %v2391 = vpop.f32.mrf.mxu0
      %v2392 = vpop.f32.mrf.mxu0
      %v2393 = vadd.f32 0.0, %v2392
      %v2394 = vpop.f32.mrf.mxu0
      %2395 = vmatprep.mubr.bf16.mxu0 0
      %2396 = vmatmul.mubr.bf16.gmra.mxu0 %v1630
      %v2397 = vpop.f32.mrf.mxu0
      %v2398 = vadd.f32 0.0, %v2397
      %v2399 = vpop.f32.mrf.mxu0
      %v2400 = vpop.f32.mrf.mxu0
      %v2401 = vadd.f32 0.0, %v2400
      %v2402 = vpop.f32.mrf.mxu0
      %2403 = vmatprep.mubr.bf16.mxu0 0
      %2404 = vmatmul.mubr.bf16.gmra.mxu0 %v1633
      %v2405 = vpop.f32.mrf.mxu0
      %v2406 = vadd.f32 0.0, %v2405
      %v2407 = vpop.f32.mrf.mxu0
      %v2408 = vpop.f32.mrf.mxu0
      %v2409 = vadd.f32 0.0, %v2408
      %v2410 = vpop.f32.mrf.mxu0
      %2411 = vmatprep.mubr.bf16.mxu0 0
      %2412 = vmatmul.mubr.bf16.gmra.mxu0 %v1636
      %v2413 = vpop.f32.mrf.mxu0
      %v2414 = vadd.f32 0.0, %v2413
      %v2415 = vpop.f32.mrf.mxu0
      %v2416 = vpop.f32.mrf.mxu0
      %v2417 = vadd.f32 0.0, %v2416
      %v2418 = vpop.f32.mrf.mxu0
      %2419 = vmatprep.mubr.bf16.mxu0 0
      %2420 = vmatmul.mubr.bf16.gmra.mxu0 %v1639
      %v2421 = vpop.f32.mrf.mxu0
      %v2422 = vadd.f32 0.0, %v2421
      %v2423 = vpop.f32.mrf.mxu0
      %v2424 = vpop.f32.mrf.mxu0
      %v2425 = vadd.f32 0.0, %v2424
      %v2426 = vpop.f32.mrf.mxu0
      %2427 = vmatprep.mubr.bf16.mxu0 0
      %2428 = vmatmul.mubr.bf16.gmra.mxu0 %v1642
      %v2429 = vpop.f32.mrf.mxu0
      %v2430 = vadd.f32 0.0, %v2429
      %v2431 = vpop.f32.mrf.mxu0
      %v2432 = vpop.f32.mrf.mxu0
      %v2433 = vadd.f32 0.0, %v2432
      %v2434 = vpop.f32.mrf.mxu0
      %2435 = vmatprep.mubr.bf16.mxu0 0
      %2436 = vmatmul.mubr.bf16.gmra.mxu0 %v1645
      %v2437 = vpop.f32.mrf.mxu0
      %v2438 = vadd.f32 0.0, %v2437
      %v2439 = vpop.f32.mrf.mxu0
      %v2440 = vpop.f32.mrf.mxu0
      %v2441 = vadd.f32 0.0, %v2440
      %v2442 = vpop.f32.mrf.mxu0
      %2443 = vmatprep.mubr.bf16.mxu0 0
      %2444 = vmatmul.mubr.bf16.gmra.mxu0 %v1648
      %v2445 = vpop.f32.mrf.mxu0
      %v2446 = vadd.f32 0.0, %v2445
      %v2447 = vpop.f32.mrf.mxu0
      %v2448 = vpop.f32.mrf.mxu0
      %v2449 = vadd.f32 0.0, %v2448
      %v2450 = vpop.f32.mrf.mxu0
      %2451 = vmatprep.mubr.bf16.mxu0 0
      %2452 = vmatmul.mubr.bf16.gmra.mxu0 %v2294
      %v2453 = vpop.f32.mrf.mxu0
      %v2454 = vadd.f32 0.0, %v2453
      %v2455 = vpop.f32.mrf.mxu0
      %v2456 = vpop.f32.mrf.mxu0
      %v2457 = vadd.f32 0.0, %v2456
      %v2458 = vpop.f32.mrf.mxu0
      %2459 = vdwg.mxu0
      %v2460 = vadd.f32 %v2248, %v2334
      %v2461 = vadd.f32 %v2249, %v2337
      %v2462 = vadd.f32 %v2250, %v2342
      %v2463 = vadd.f32 %v2251, %v2345
      %v2464 = vadd.f32 %v2252, %v2350
      %v2465 = vadd.f32 %v2253, %v2353
      %v2466 = vadd.f32 %v2254, %v2358
      %v2467 = vadd.f32 %v2255, %v2361
      %v2468 = vadd.f32 %v2256, %v2366
      %v2469 = vadd.f32 %v2257, %v2369
      %v2470 = vadd.f32 %v2258, %v2374
      %v2471 = vadd.f32 %v2259, %v2377
      %v2472 = vadd.f32 %v2260, %v2382
      %v2473 = vadd.f32 %v2261, %v2385
      %v2474 = vadd.f32 %v2262, %v2390
      %v2475 = vadd.f32 %v2263, %v2393
      %v2476 = vadd.f32 %v2264, %v2398
      %v2477 = vadd.f32 %v2265, %v2401
      %v2478 = vadd.f32 %v2266, %v2406
      %v2479 = vadd.f32 %v2267, %v2409
      %v2480 = vadd.f32 %v2268, %v2414
      %v2481 = vadd.f32 %v2269, %v2417
      %v2482 = vadd.f32 %v2270, %v2422
      %v2483 = vadd.f32 %v2271, %v2425
      %v2484 = vadd.f32 %v2272, %v2430
      %v2485 = vadd.f32 %v2273, %v2433
      %v2486 = vadd.f32 %v2274, %v2438
      %v2487 = vadd.f32 %v2275, %v2441
      %v2488 = vadd.f32 %v2276, %v2446
      %v2489 = vadd.f32 %v2277, %v2449
      %v2490 = vadd.f32 %v2278, %v2454
      %v2491 = vadd.f32 %v2279, %v2457
      %s2492 = scalar_lea.vmem %s3, 24
      %v2493 = vld [vmem:[%s2492] sm:$0xf]
      %v2496 = vunpack.c.l.b16 %v426
      %v2497 = vunpack.c.l.b16 %v427
      %v2498 = vpack.c.b16 %v2497, %v2496
      %v2500 = vsel %vm915, %v2498, 0
      %v2503 = vsel %vm964, %v2493, 0
      %2505 = vmatprep.subr.bf16.mxu0 0
      %2506 = vmatpush1.bf16.msra.mxu0 0
      %2507 = vmatprep.subr.bf16.mxu0 0
      %2508 = vmatpush1.bf16.msra.mxu0 0
      %2509 = vmatprep.subr.bf16.mxu0 0
      %2510 = vmatpush1.bf16.msra.mxu0 0
      %2511 = vmatprep.subr.bf16.mxu0 0
      %2512 = vmatpush1.bf16.msra.mxu0 0
      %2513 = vmatprep.subr.bf16.mxu0 0
      %2514 = vmatpush1.bf16.msra.mxu0 0
      %2515 = vmatprep.subr.bf16.mxu0 0
      %2516 = vmatpush1.bf16.msra.mxu0 0
      %2517 = vmatprep.subr.bf16.mxu0 0
      %2518 = vmatpush1.bf16.msra.mxu0 0
      %2519 = vmatprep.subr.bf16.mxu0 0
      %2520 = vmatpush1.bf16.msra.mxu0 %v2503
      %2521 = vmatprep.subr.bf16.mxu0 0
      %2522 = vmatpush2.bf16.msra.mxu0 0
      %2523 = vmatprep.subr.bf16.mxu0 0
      %2524 = vmatpush2.bf16.msra.mxu0 0
      %2525 = vmatprep.subr.bf16.mxu0 0
      %2526 = vmatpush2.bf16.msra.mxu0 0
      %2527 = vmatprep.subr.bf16.mxu0 0
      %2528 = vmatpush2.bf16.msra.mxu0 0
      %2529 = vmatprep.subr.bf16.mxu0 0
      %2530 = vmatpush2.bf16.msra.mxu0 0
      %2531 = vmatprep.subr.bf16.mxu0 0
      %2532 = vmatpush2.bf16.msra.mxu0 0
      %2533 = vmatprep.subr.bf16.mxu0 0
      %2534 = vmatpush2.bf16.msra.mxu0 0
      %2535 = vmatprep.subr.bf16.mxu0 0
      %2536 = vmatpush2.bf16.msra.mxu0 0
      %2537 = vmatprep.mubr.bf16.mxu0 0
      %2538 = vmatmul.mubr.bf16.gmra.mxu0 %v1216
      %v2539 = vpop.f32.mrf.mxu0
      %v2540 = vadd.f32 0.0, %v2539
      %v2541 = vpop.f32.mrf.mxu0
      %v2542 = vpop.f32.mrf.mxu0
      %v2543 = vadd.f32 0.0, %v2542
      %v2544 = vpop.f32.mrf.mxu0
      %2545 = vmatprep.mubr.bf16.mxu0 0
      %2546 = vmatmul.mubr.bf16.gmra.mxu0 %v1219
      %v2547 = vpop.f32.mrf.mxu0
      %v2548 = vadd.f32 0.0, %v2547
      %v2549 = vpop.f32.mrf.mxu0
      %v2550 = vpop.f32.mrf.mxu0
      %v2551 = vadd.f32 0.0, %v2550
      %v2552 = vpop.f32.mrf.mxu0
      %2553 = vmatprep.mubr.bf16.mxu0 0
      %2554 = vmatmul.mubr.bf16.gmra.mxu0 %v1222
      %v2555 = vpop.f32.mrf.mxu0
      %v2556 = vadd.f32 0.0, %v2555
      %v2557 = vpop.f32.mrf.mxu0
      %v2558 = vpop.f32.mrf.mxu0
      %v2559 = vadd.f32 0.0, %v2558
      %v2560 = vpop.f32.mrf.mxu0
      %2561 = vmatprep.mubr.bf16.mxu0 0
      %2562 = vmatmul.mubr.bf16.gmra.mxu0 %v1225
      %v2563 = vpop.f32.mrf.mxu0
      %v2564 = vadd.f32 0.0, %v2563
      %v2565 = vpop.f32.mrf.mxu0
      %v2566 = vpop.f32.mrf.mxu0
      %v2567 = vadd.f32 0.0, %v2566
      %v2568 = vpop.f32.mrf.mxu0
      %2569 = vmatprep.mubr.bf16.mxu0 0
      %2570 = vmatmul.mubr.bf16.gmra.mxu0 %v1228
      %v2571 = vpop.f32.mrf.mxu0
      %v2572 = vadd.f32 0.0, %v2571
      %v2573 = vpop.f32.mrf.mxu0
      %v2574 = vpop.f32.mrf.mxu0
      %v2575 = vadd.f32 0.0, %v2574
      %v2576 = vpop.f32.mrf.mxu0
      %2577 = vmatprep.mubr.bf16.mxu0 0
      %2578 = vmatmul.mubr.bf16.gmra.mxu0 %v1231
      %v2579 = vpop.f32.mrf.mxu0
      %v2580 = vadd.f32 0.0, %v2579
      %v2581 = vpop.f32.mrf.mxu0
      %v2582 = vpop.f32.mrf.mxu0
      %v2583 = vadd.f32 0.0, %v2582
      %v2584 = vpop.f32.mrf.mxu0
      %2585 = vmatprep.mubr.bf16.mxu0 0
      %2586 = vmatmul.mubr.bf16.gmra.mxu0 %v1234
      %v2587 = vpop.f32.mrf.mxu0
      %v2588 = vadd.f32 0.0, %v2587
      %v2589 = vpop.f32.mrf.mxu0
      %v2590 = vpop.f32.mrf.mxu0
      %v2591 = vadd.f32 0.0, %v2590
      %v2592 = vpop.f32.mrf.mxu0
      %2593 = vmatprep.mubr.bf16.mxu0 0
      %2594 = vmatmul.mubr.bf16.gmra.mxu0 %v1237
      %v2595 = vpop.f32.mrf.mxu0
      %v2596 = vadd.f32 0.0, %v2595
      %v2597 = vpop.f32.mrf.mxu0
      %v2598 = vpop.f32.mrf.mxu0
      %v2599 = vadd.f32 0.0, %v2598
      %v2600 = vpop.f32.mrf.mxu0
      %2601 = vmatprep.mubr.bf16.mxu0 0
      %2602 = vmatmul.mubr.bf16.gmra.mxu0 %v1240
      %v2603 = vpop.f32.mrf.mxu0
      %v2604 = vadd.f32 0.0, %v2603
      %v2605 = vpop.f32.mrf.mxu0
      %v2606 = vpop.f32.mrf.mxu0
      %v2607 = vadd.f32 0.0, %v2606
      %v2608 = vpop.f32.mrf.mxu0
      %2609 = vmatprep.mubr.bf16.mxu0 0
      %2610 = vmatmul.mubr.bf16.gmra.mxu0 %v1243
      %v2611 = vpop.f32.mrf.mxu0
      %v2612 = vadd.f32 0.0, %v2611
      %v2613 = vpop.f32.mrf.mxu0
      %v2614 = vpop.f32.mrf.mxu0
      %v2615 = vadd.f32 0.0, %v2614
      %v2616 = vpop.f32.mrf.mxu0
      %2617 = vmatprep.mubr.bf16.mxu0 0
      %2618 = vmatmul.mubr.bf16.gmra.mxu0 %v1246
      %v2619 = vpop.f32.mrf.mxu0
      %v2620 = vadd.f32 0.0, %v2619
      %v2621 = vpop.f32.mrf.mxu0
      %v2622 = vpop.f32.mrf.mxu0
      %v2623 = vadd.f32 0.0, %v2622
      %v2624 = vpop.f32.mrf.mxu0
      %2625 = vmatprep.mubr.bf16.mxu0 0
      %2626 = vmatmul.mubr.bf16.gmra.mxu0 %v1249
      %v2627 = vpop.f32.mrf.mxu0
      %v2628 = vadd.f32 0.0, %v2627
      %v2629 = vpop.f32.mrf.mxu0
      %v2630 = vpop.f32.mrf.mxu0
      %v2631 = vadd.f32 0.0, %v2630
      %v2632 = vpop.f32.mrf.mxu0
      %2633 = vmatprep.mubr.bf16.mxu0 0
      %2634 = vmatmul.mubr.bf16.gmra.mxu0 %v1252
      %v2635 = vpop.f32.mrf.mxu0
      %v2636 = vadd.f32 0.0, %v2635
      %v2637 = vpop.f32.mrf.mxu0
      %v2638 = vpop.f32.mrf.mxu0
      %v2639 = vadd.f32 0.0, %v2638
      %v2640 = vpop.f32.mrf.mxu0
      %2641 = vmatprep.mubr.bf16.mxu0 0
      %2642 = vmatmul.mubr.bf16.gmra.mxu0 %v1255
      %v2643 = vpop.f32.mrf.mxu0
      %v2644 = vadd.f32 0.0, %v2643
      %v2645 = vpop.f32.mrf.mxu0
      %v2646 = vpop.f32.mrf.mxu0
      %v2647 = vadd.f32 0.0, %v2646
      %v2648 = vpop.f32.mrf.mxu0
      %2649 = vmatprep.mubr.bf16.mxu0 0
      %2650 = vmatmul.mubr.bf16.gmra.mxu0 %v1854
      %v2651 = vpop.f32.mrf.mxu0
      %v2652 = vadd.f32 0.0, %v2651
      %v2653 = vpop.f32.mrf.mxu0
      %v2654 = vpop.f32.mrf.mxu0
      %v2655 = vadd.f32 0.0, %v2654
      %v2656 = vpop.f32.mrf.mxu0
      %2657 = vmatprep.mubr.bf16.mxu0 0
      %2658 = vmatmul.mubr.bf16.gmra.mxu0 %v2500
      %v2659 = vpop.f32.mrf.mxu0
      %v2660 = vadd.f32 0.0, %v2659
      %v2661 = vpop.f32.mrf.mxu0
      %v2662 = vpop.f32.mrf.mxu0
      %v2663 = vadd.f32 0.0, %v2662
      %v2664 = vpop.f32.mrf.mxu0
      %2665 = vdwg.mxu0
      %v2666 = vadd.f32 %v2460, %v2540
      %v2667 = vadd.f32 %v2461, %v2543
      %v2668 = vadd.f32 %v2462, %v2548
      %v2669 = vadd.f32 %v2463, %v2551
      %v2670 = vadd.f32 %v2464, %v2556
      %v2671 = vadd.f32 %v2465, %v2559
      %v2672 = vadd.f32 %v2466, %v2564
      %v2673 = vadd.f32 %v2467, %v2567
      %v2674 = vadd.f32 %v2468, %v2572
      %v2675 = vadd.f32 %v2469, %v2575
      %v2676 = vadd.f32 %v2470, %v2580
      %v2677 = vadd.f32 %v2471, %v2583
      %v2678 = vadd.f32 %v2472, %v2588
      %v2679 = vadd.f32 %v2473, %v2591
      %v2680 = vadd.f32 %v2474, %v2596
      %v2681 = vadd.f32 %v2475, %v2599
      %v2682 = vadd.f32 %v2476, %v2604
      %v2683 = vadd.f32 %v2477, %v2607
      %v2684 = vadd.f32 %v2478, %v2612
      %v2685 = vadd.f32 %v2479, %v2615
      %v2686 = vadd.f32 %v2480, %v2620
      %v2687 = vadd.f32 %v2481, %v2623
      %v2688 = vadd.f32 %v2482, %v2628
      %v2689 = vadd.f32 %v2483, %v2631
      %v2690 = vadd.f32 %v2484, %v2636
      %v2691 = vadd.f32 %v2485, %v2639
      %v2692 = vadd.f32 %v2486, %v2644
      %v2693 = vadd.f32 %v2487, %v2647
      %v2694 = vadd.f32 %v2488, %v2652
      %v2695 = vadd.f32 %v2489, %v2655
      %v2696 = vadd.f32 %v2490, %v2660
      %v2697 = vadd.f32 %v2491, %v2663
      %v2699 = vshrl.u32 %v426, 16
      %v2701 = vrot.slane %v2699, 4
      %v2702 = vshll.u32 %v426, 16
      %v2704 = vrot.slane %v2702, 5
      %v2705 = vor.u32 %v2701, %v2704
      %v2706 = vrot.slane %v2705, 4
      %v2708 = vshll.u32 %v427, 16
      %v2710 = vrot.slane %v2708, 5
      %v2711 = vsel %vm480, %v2706, %v2710
      %v2712 = vshrl.u32 %v427, 16
      %v2714 = vrot.slane %v2712, 4
      %v2715 = vor.u32 %v2714, %v2710
      %v2716 = vrot.slane %v2715, 4
      %v2718 = vshll.u32 %v428, 16
      %v2720 = vrot.slane %v2718, 5
      %v2721 = vsel %vm480, %v2716, %v2720
      %s2722 = scalar_lea.vmem %s3, 28
      %v2723 = vld [vmem:[%s2722] sm:$0xf]
      %v2724 = vunpack.c.l.b16 %v2711
      %v2725 = vunpack.c.l.b16 %v2721
      %v2726 = vpack.c.b16 %v2725, %v2724
      %v2728 = vsel %vm915, %v2726, 0
      %v2731 = vsel %vm964, %v2723, 0
      %2733 = vmatprep.subr.bf16.mxu0 0
      %2734 = vmatpush1.bf16.msra.mxu0 0
      %2735 = vmatprep.subr.bf16.mxu0 0
      %2736 = vmatpush1.bf16.msra.mxu0 0
      %2737 = vmatprep.subr.bf16.mxu0 0
      %2738 = vmatpush1.bf16.msra.mxu0 0
      %2739 = vmatprep.subr.bf16.mxu0 0
      %2740 = vmatpush1.bf16.msra.mxu0 0
      %2741 = vmatprep.subr.bf16.mxu0 0
      %2742 = vmatpush1.bf16.msra.mxu0 0
      %2743 = vmatprep.subr.bf16.mxu0 0
      %2744 = vmatpush1.bf16.msra.mxu0 0
      %2745 = vmatprep.subr.bf16.mxu0 0
      %2746 = vmatpush1.bf16.msra.mxu0 0
      %2747 = vmatprep.subr.bf16.mxu0 0
      %2748 = vmatpush1.bf16.msra.mxu0 %v2731
      %2749 = vmatprep.subr.bf16.mxu0 0
      %2750 = vmatpush2.bf16.msra.mxu0 0
      %2751 = vmatprep.subr.bf16.mxu0 0
      %2752 = vmatpush2.bf16.msra.mxu0 0
      %2753 = vmatprep.subr.bf16.mxu0 0
      %2754 = vmatpush2.bf16.msra.mxu0 0
      %2755 = vmatprep.subr.bf16.mxu0 0
      %2756 = vmatpush2.bf16.msra.mxu0 0
      %2757 = vmatprep.subr.bf16.mxu0 0
      %2758 = vmatpush2.bf16.msra.mxu0 0
      %2759 = vmatprep.subr.bf16.mxu0 0
      %2760 = vmatpush2.bf16.msra.mxu0 0
      %2761 = vmatprep.subr.bf16.mxu0 0
      %2762 = vmatpush2.bf16.msra.mxu0 0
      %2763 = vmatprep.subr.bf16.mxu0 0
      %2764 = vmatpush2.bf16.msra.mxu0 0
      %2765 = vmatprep.mubr.bf16.mxu0 0
      %2766 = vmatmul.mubr.bf16.gmra.mxu0 %v923
      %v2767 = vpop.f32.mrf.mxu0
      %v2768 = vadd.f32 0.0, %v2767
      %v2769 = vpop.f32.mrf.mxu0
      %v2770 = vpop.f32.mrf.mxu0
      %v2771 = vadd.f32 0.0, %v2770
      %v2772 = vpop.f32.mrf.mxu0
      %2773 = vmatprep.mubr.bf16.mxu0 0
      %2774 = vmatmul.mubr.bf16.gmra.mxu0 %v926
      %v2775 = vpop.f32.mrf.mxu0
      %v2776 = vadd.f32 0.0, %v2775
      %v2777 = vpop.f32.mrf.mxu0
      %v2778 = vpop.f32.mrf.mxu0
      %v2779 = vadd.f32 0.0, %v2778
      %v2780 = vpop.f32.mrf.mxu0
      %2781 = vmatprep.mubr.bf16.mxu0 0
      %2782 = vmatmul.mubr.bf16.gmra.mxu0 %v929
      %v2783 = vpop.f32.mrf.mxu0
      %v2784 = vadd.f32 0.0, %v2783
      %v2785 = vpop.f32.mrf.mxu0
      %v2786 = vpop.f32.mrf.mxu0
      %v2787 = vadd.f32 0.0, %v2786
      %v2788 = vpop.f32.mrf.mxu0
      %2789 = vmatprep.mubr.bf16.mxu0 0
      %2790 = vmatmul.mubr.bf16.gmra.mxu0 %v932
      %v2791 = vpop.f32.mrf.mxu0
      %v2792 = vadd.f32 0.0, %v2791
      %v2793 = vpop.f32.mrf.mxu0
      %v2794 = vpop.f32.mrf.mxu0
      %v2795 = vadd.f32 0.0, %v2794
      %v2796 = vpop.f32.mrf.mxu0
      %2797 = vmatprep.mubr.bf16.mxu0 0
      %2798 = vmatmul.mubr.bf16.gmra.mxu0 %v935
      %v2799 = vpop.f32.mrf.mxu0
      %v2800 = vadd.f32 0.0, %v2799
      %v2801 = vpop.f32.mrf.mxu0
      %v2802 = vpop.f32.mrf.mxu0
      %v2803 = vadd.f32 0.0, %v2802
      %v2804 = vpop.f32.mrf.mxu0
      %2805 = vmatprep.mubr.bf16.mxu0 0
      %2806 = vmatmul.mubr.bf16.gmra.mxu0 %v938
      %v2807 = vpop.f32.mrf.mxu0
      %v2808 = vadd.f32 0.0, %v2807
      %v2809 = vpop.f32.mrf.mxu0
      %v2810 = vpop.f32.mrf.mxu0
      %v2811 = vadd.f32 0.0, %v2810
      %v2812 = vpop.f32.mrf.mxu0
      %2813 = vmatprep.mubr.bf16.mxu0 0
      %2814 = vmatmul.mubr.bf16.gmra.mxu0 %v941
      %v2815 = vpop.f32.mrf.mxu0
      %v2816 = vadd.f32 0.0, %v2815
      %v2817 = vpop.f32.mrf.mxu0
      %v2818 = vpop.f32.mrf.mxu0
      %v2819 = vadd.f32 0.0, %v2818
      %v2820 = vpop.f32.mrf.mxu0
      %2821 = vmatprep.mubr.bf16.mxu0 0
      %2822 = vmatmul.mubr.bf16.gmra.mxu0 %v944
      %v2823 = vpop.f32.mrf.mxu0
      %v2824 = vadd.f32 0.0, %v2823
      %v2825 = vpop.f32.mrf.mxu0
      %v2826 = vpop.f32.mrf.mxu0
      %v2827 = vadd.f32 0.0, %v2826
      %v2828 = vpop.f32.mrf.mxu0
      %2829 = vmatprep.mubr.bf16.mxu0 0
      %2830 = vmatmul.mubr.bf16.gmra.mxu0 %v947
      %v2831 = vpop.f32.mrf.mxu0
      %v2832 = vadd.f32 0.0, %v2831
      %v2833 = vpop.f32.mrf.mxu0
      %v2834 = vpop.f32.mrf.mxu0
      %v2835 = vadd.f32 0.0, %v2834
      %v2836 = vpop.f32.mrf.mxu0
      %2837 = vmatprep.mubr.bf16.mxu0 0
      %2838 = vmatmul.mubr.bf16.gmra.mxu0 %v950
      %v2839 = vpop.f32.mrf.mxu0
      %v2840 = vadd.f32 0.0, %v2839
      %v2841 = vpop.f32.mrf.mxu0
      %v2842 = vpop.f32.mrf.mxu0
      %v2843 = vadd.f32 0.0, %v2842
      %v2844 = vpop.f32.mrf.mxu0
      %2845 = vmatprep.mubr.bf16.mxu0 0
      %2846 = vmatmul.mubr.bf16.gmra.mxu0 %v953
      %v2847 = vpop.f32.mrf.mxu0
      %v2848 = vadd.f32 0.0, %v2847
      %v2849 = vpop.f32.mrf.mxu0
      %v2850 = vpop.f32.mrf.mxu0
      %v2851 = vadd.f32 0.0, %v2850
      %v2852 = vpop.f32.mrf.mxu0
      %2853 = vmatprep.mubr.bf16.mxu0 0
      %2854 = vmatmul.mubr.bf16.gmra.mxu0 %v956
      %v2855 = vpop.f32.mrf.mxu0
      %v2856 = vadd.f32 0.0, %v2855
      %v2857 = vpop.f32.mrf.mxu0
      %v2858 = vpop.f32.mrf.mxu0
      %v2859 = vadd.f32 0.0, %v2858
      %v2860 = vpop.f32.mrf.mxu0
      %2861 = vmatprep.mubr.bf16.mxu0 0
      %2862 = vmatmul.mubr.bf16.gmra.mxu0 %v959
      %v2863 = vpop.f32.mrf.mxu0
      %v2864 = vadd.f32 0.0, %v2863
      %v2865 = vpop.f32.mrf.mxu0
      %v2866 = vpop.f32.mrf.mxu0
      %v2867 = vadd.f32 0.0, %v2866
      %v2868 = vpop.f32.mrf.mxu0
      %2869 = vmatprep.mubr.bf16.mxu0 0
      %2870 = vmatmul.mubr.bf16.gmra.mxu0 %v962
      %v2871 = vpop.f32.mrf.mxu0
      %v2872 = vadd.f32 0.0, %v2871
      %v2873 = vpop.f32.mrf.mxu0
      %v2874 = vpop.f32.mrf.mxu0
      %v2875 = vadd.f32 0.0, %v2874
      %v2876 = vpop.f32.mrf.mxu0
      %2877 = vmatprep.mubr.bf16.mxu0 0
      %2878 = vmatmul.mubr.bf16.gmra.mxu0 %v2082
      %v2879 = vpop.f32.mrf.mxu0
      %v2880 = vadd.f32 0.0, %v2879
      %v2881 = vpop.f32.mrf.mxu0
      %v2882 = vpop.f32.mrf.mxu0
      %v2883 = vadd.f32 0.0, %v2882
      %v2884 = vpop.f32.mrf.mxu0
      %2885 = vmatprep.mubr.bf16.mxu0 0
      %2886 = vmatmul.mubr.bf16.gmra.mxu0 %v2728
      %v2887 = vpop.f32.mrf.mxu0
      %v2888 = vadd.f32 0.0, %v2887
      %v2889 = vpop.f32.mrf.mxu0
      %v2890 = vpop.f32.mrf.mxu0
      %v2891 = vadd.f32 0.0, %v2890
      %v2892 = vpop.f32.mrf.mxu0
      %2893 = vdwg.mxu0
      %v2894 = vadd.f32 %v2666, %v2768
      %v2895 = vadd.f32 %v2667, %v2771
      %v2896 = vadd.f32 %v2668, %v2776
      %v2897 = vadd.f32 %v2669, %v2779
      %v2898 = vadd.f32 %v2670, %v2784
      %v2899 = vadd.f32 %v2671, %v2787
      %v2900 = vadd.f32 %v2672, %v2792
      %v2901 = vadd.f32 %v2673, %v2795
      %v2902 = vadd.f32 %v2674, %v2800
      %v2903 = vadd.f32 %v2675, %v2803
      %v2904 = vadd.f32 %v2676, %v2808
      %v2905 = vadd.f32 %v2677, %v2811
      %v2906 = vadd.f32 %v2678, %v2816
      %v2907 = vadd.f32 %v2679, %v2819
      %v2908 = vadd.f32 %v2680, %v2824
      %v2909 = vadd.f32 %v2681, %v2827
      %v2910 = vadd.f32 %v2682, %v2832
      %v2911 = vadd.f32 %v2683, %v2835
      %v2912 = vadd.f32 %v2684, %v2840
      %v2913 = vadd.f32 %v2685, %v2843
      %v2914 = vadd.f32 %v2686, %v2848
      %v2915 = vadd.f32 %v2687, %v2851
      %v2916 = vadd.f32 %v2688, %v2856
      %v2917 = vadd.f32 %v2689, %v2859
      %v2918 = vadd.f32 %v2690, %v2864
      %v2919 = vadd.f32 %v2691, %v2867
      %v2920 = vadd.f32 %v2692, %v2872
      %v2921 = vadd.f32 %v2693, %v2875
      %v2922 = vadd.f32 %v2694, %v2880
      %v2923 = vadd.f32 %v2695, %v2883
      %v2924 = vadd.f32 %v2696, %v2888
      %v2925 = vadd.f32 %v2697, %v2891
      %v2927 = vrot.slane %v426, 5
      %v2928 = vrot.slane %v2927, 4
      %v2929 = vrot.slane %v427, 5
      %v2930 = vsel %vm1439, %v2928, %v2929
      %v2931 = vrot.slane %v2929, 4
      %v2932 = vrot.slane %v428, 5
      %v2933 = vsel %vm1439, %v2931, %v2932
      %s2934 = scalar_lea.vmem %s3, 32
      %v2935 = vld [vmem:[%s2934] sm:$0xf]
      %v2936 = vunpack.c.l.b16 %v2930
      %v2937 = vunpack.c.l.b16 %v2933
      %v2938 = vpack.c.b16 %v2937, %v2936
      %v2940 = vsel %vm915, %v2938, 0
      %v2943 = vsel %vm964, %v2935, 0
      %2945 = vmatprep.subr.bf16.mxu0 0
      %2946 = vmatpush1.bf16.msra.mxu0 0
      %2947 = vmatprep.subr.bf16.mxu0 0
      %2948 = vmatpush1.bf16.msra.mxu0 0
      %2949 = vmatprep.subr.bf16.mxu0 0
      %2950 = vmatpush1.bf16.msra.mxu0 0
      %2951 = vmatprep.subr.bf16.mxu0 0
      %2952 = vmatpush1.bf16.msra.mxu0 0
      %2953 = vmatprep.subr.bf16.mxu0 0
      %2954 = vmatpush1.bf16.msra.mxu0 0
      %2955 = vmatprep.subr.bf16.mxu0 0
      %2956 = vmatpush1.bf16.msra.mxu0 0
      %2957 = vmatprep.subr.bf16.mxu0 0
      %2958 = vmatpush1.bf16.msra.mxu0 0
      %2959 = vmatprep.subr.bf16.mxu0 0
      %2960 = vmatpush1.bf16.msra.mxu0 %v2943
      %2961 = vmatprep.subr.bf16.mxu0 0
      %2962 = vmatpush2.bf16.msra.mxu0 0
      %2963 = vmatprep.subr.bf16.mxu0 0
      %2964 = vmatpush2.bf16.msra.mxu0 0
      %2965 = vmatprep.subr.bf16.mxu0 0
      %2966 = vmatpush2.bf16.msra.mxu0 0
      %2967 = vmatprep.subr.bf16.mxu0 0
      %2968 = vmatpush2.bf16.msra.mxu0 0
      %2969 = vmatprep.subr.bf16.mxu0 0
      %2970 = vmatpush2.bf16.msra.mxu0 0
      %2971 = vmatprep.subr.bf16.mxu0 0
      %2972 = vmatpush2.bf16.msra.mxu0 0
      %2973 = vmatprep.subr.bf16.mxu0 0
      %2974 = vmatpush2.bf16.msra.mxu0 0
      %2975 = vmatprep.subr.bf16.mxu0 0
      %2976 = vmatpush2.bf16.msra.mxu0 0
      %2977 = vmatprep.mubr.bf16.mxu0 0
      %2978 = vmatmul.mubr.bf16.gmra.mxu0 %v1609
      %v2979 = vpop.f32.mrf.mxu0
      %v2980 = vadd.f32 0.0, %v2979
      %v2981 = vpop.f32.mrf.mxu0
      %v2982 = vpop.f32.mrf.mxu0
      %v2983 = vadd.f32 0.0, %v2982
      %v2984 = vpop.f32.mrf.mxu0
      %2985 = vmatprep.mubr.bf16.mxu0 0
      %2986 = vmatmul.mubr.bf16.gmra.mxu0 %v1612
      %v2987 = vpop.f32.mrf.mxu0
      %v2988 = vadd.f32 0.0, %v2987
      %v2989 = vpop.f32.mrf.mxu0
      %v2990 = vpop.f32.mrf.mxu0
      %v2991 = vadd.f32 0.0, %v2990
      %v2992 = vpop.f32.mrf.mxu0
      %2993 = vmatprep.mubr.bf16.mxu0 0
      %2994 = vmatmul.mubr.bf16.gmra.mxu0 %v1615
      %v2995 = vpop.f32.mrf.mxu0
      %v2996 = vadd.f32 0.0, %v2995
      %v2997 = vpop.f32.mrf.mxu0
      %v2998 = vpop.f32.mrf.mxu0
      %v2999 = vadd.f32 0.0, %v2998
      %v3000 = vpop.f32.mrf.mxu0
      %3001 = vmatprep.mubr.bf16.mxu0 0
      %3002 = vmatmul.mubr.bf16.gmra.mxu0 %v1618
      %v3003 = vpop.f32.mrf.mxu0
      %v3004 = vadd.f32 0.0, %v3003
      %v3005 = vpop.f32.mrf.mxu0
      %v3006 = vpop.f32.mrf.mxu0
      %v3007 = vadd.f32 0.0, %v3006
      %v3008 = vpop.f32.mrf.mxu0
      %3009 = vmatprep.mubr.bf16.mxu0 0
      %3010 = vmatmul.mubr.bf16.gmra.mxu0 %v1621
      %v3011 = vpop.f32.mrf.mxu0
      %v3012 = vadd.f32 0.0, %v3011
      %v3013 = vpop.f32.mrf.mxu0
      %v3014 = vpop.f32.mrf.mxu0
      %v3015 = vadd.f32 0.0, %v3014
      %v3016 = vpop.f32.mrf.mxu0
      %3017 = vmatprep.mubr.bf16.mxu0 0
      %3018 = vmatmul.mubr.bf16.gmra.mxu0 %v1624
      %v3019 = vpop.f32.mrf.mxu0
      %v3020 = vadd.f32 0.0, %v3019
      %v3021 = vpop.f32.mrf.mxu0
      %v3022 = vpop.f32.mrf.mxu0
      %v3023 = vadd.f32 0.0, %v3022
      %v3024 = vpop.f32.mrf.mxu0
      %3025 = vmatprep.mubr.bf16.mxu0 0
      %3026 = vmatmul.mubr.bf16.gmra.mxu0 %v1627
      %v3027 = vpop.f32.mrf.mxu0
      %v3028 = vadd.f32 0.0, %v3027
      %v3029 = vpop.f32.mrf.mxu0
      %v3030 = vpop.f32.mrf.mxu0
      %v3031 = vadd.f32 0.0, %v3030
      %v3032 = vpop.f32.mrf.mxu0
      %3033 = vmatprep.mubr.bf16.mxu0 0
      %3034 = vmatmul.mubr.bf16.gmra.mxu0 %v1630
      %v3035 = vpop.f32.mrf.mxu0
      %v3036 = vadd.f32 0.0, %v3035
      %v3037 = vpop.f32.mrf.mxu0
      %v3038 = vpop.f32.mrf.mxu0
      %v3039 = vadd.f32 0.0, %v3038
      %v3040 = vpop.f32.mrf.mxu0
      %3041 = vmatprep.mubr.bf16.mxu0 0
      %3042 = vmatmul.mubr.bf16.gmra.mxu0 %v1633
      %v3043 = vpop.f32.mrf.mxu0
      %v3044 = vadd.f32 0.0, %v3043
      %v3045 = vpop.f32.mrf.mxu0
      %v3046 = vpop.f32.mrf.mxu0
      %v3047 = vadd.f32 0.0, %v3046
      %v3048 = vpop.f32.mrf.mxu0
      %3049 = vmatprep.mubr.bf16.mxu0 0
      %3050 = vmatmul.mubr.bf16.gmra.mxu0 %v1636
      %v3051 = vpop.f32.mrf.mxu0
      %v3052 = vadd.f32 0.0, %v3051
      %v3053 = vpop.f32.mrf.mxu0
      %v3054 = vpop.f32.mrf.mxu0
      %v3055 = vadd.f32 0.0, %v3054
      %v3056 = vpop.f32.mrf.mxu0
      %3057 = vmatprep.mubr.bf16.mxu0 0
      %3058 = vmatmul.mubr.bf16.gmra.mxu0 %v1639
      %v3059 = vpop.f32.mrf.mxu0
      %v3060 = vadd.f32 0.0, %v3059
      %v3061 = vpop.f32.mrf.mxu0
      %v3062 = vpop.f32.mrf.mxu0
      %v3063 = vadd.f32 0.0, %v3062
      %v3064 = vpop.f32.mrf.mxu0
      %3065 = vmatprep.mubr.bf16.mxu0 0
      %3066 = vmatmul.mubr.bf16.gmra.mxu0 %v1642
      %v3067 = vpop.f32.mrf.mxu0
      %v3068 = vadd.f32 0.0, %v3067
      %v3069 = vpop.f32.mrf.mxu0
      %v3070 = vpop.f32.mrf.mxu0
      %v3071 = vadd.f32 0.0, %v3070
      %v3072 = vpop.f32.mrf.mxu0
      %3073 = vmatprep.mubr.bf16.mxu0 0
      %3074 = vmatmul.mubr.bf16.gmra.mxu0 %v1645
      %v3075 = vpop.f32.mrf.mxu0
      %v3076 = vadd.f32 0.0, %v3075
      %v3077 = vpop.f32.mrf.mxu0
      %v3078 = vpop.f32.mrf.mxu0
      %v3079 = vadd.f32 0.0, %v3078
      %v3080 = vpop.f32.mrf.mxu0
      %3081 = vmatprep.mubr.bf16.mxu0 0
      %3082 = vmatmul.mubr.bf16.gmra.mxu0 %v1648
      %v3083 = vpop.f32.mrf.mxu0
      %v3084 = vadd.f32 0.0, %v3083
      %v3085 = vpop.f32.mrf.mxu0
      %v3086 = vpop.f32.mrf.mxu0
      %v3087 = vadd.f32 0.0, %v3086
      %v3088 = vpop.f32.mrf.mxu0
      %3089 = vmatprep.mubr.bf16.mxu0 0
      %3090 = vmatmul.mubr.bf16.gmra.mxu0 %v2294
      %v3091 = vpop.f32.mrf.mxu0
      %v3092 = vadd.f32 0.0, %v3091
      %v3093 = vpop.f32.mrf.mxu0
      %v3094 = vpop.f32.mrf.mxu0
      %v3095 = vadd.f32 0.0, %v3094
      %v3096 = vpop.f32.mrf.mxu0
      %3097 = vmatprep.mubr.bf16.mxu0 0
      %3098 = vmatmul.mubr.bf16.gmra.mxu0 %v2940
      %v3099 = vpop.f32.mrf.mxu0
      %v3100 = vadd.f32 0.0, %v3099
      %v3101 = vpop.f32.mrf.mxu0
      %v3102 = vpop.f32.mrf.mxu0
      %v3103 = vadd.f32 0.0, %v3102
      %v3104 = vpop.f32.mrf.mxu0
      %3105 = vdwg.mxu0
      %v3106 = vadd.f32 %v2894, %v2980
      %v3107 = vadd.f32 %v2895, %v2983
      %v3108 = vadd.f32 %v2896, %v2988
      %v3109 = vadd.f32 %v2897, %v2991
      %v3110 = vadd.f32 %v2898, %v2996
      %v3111 = vadd.f32 %v2899, %v2999
      %v3112 = vadd.f32 %v2900, %v3004
      %v3113 = vadd.f32 %v2901, %v3007
      %v3114 = vadd.f32 %v2902, %v3012
      %v3115 = vadd.f32 %v2903, %v3015
      %v3116 = vadd.f32 %v2904, %v3020
      %v3117 = vadd.f32 %v2905, %v3023
      %v3118 = vadd.f32 %v2906, %v3028
      %v3119 = vadd.f32 %v2907, %v3031
      %v3120 = vadd.f32 %v2908, %v3036
      %v3121 = vadd.f32 %v2909, %v3039
      %v3122 = vadd.f32 %v2910, %v3044
      %v3123 = vadd.f32 %v2911, %v3047
      %v3124 = vadd.f32 %v2912, %v3052
      %v3125 = vadd.f32 %v2913, %v3055
      %v3126 = vadd.f32 %v2914, %v3060
      %v3127 = vadd.f32 %v2915, %v3063
      %v3128 = vadd.f32 %v2916, %v3068
      %v3129 = vadd.f32 %v2917, %v3071
      %v3130 = vadd.f32 %v2918, %v3076
      %v3131 = vadd.f32 %v2919, %v3079
      %v3132 = vadd.f32 %v2920, %v3084
      %v3133 = vadd.f32 %v2921, %v3087
      %v3134 = vadd.f32 %v2922, %v3092
      %v3135 = vadd.f32 %v2923, %v3095
      %v3136 = vadd.f32 %v2924, %v3100
      %v3137 = vadd.f32 %v2925, %v3103
      %v3138 = vadd.f32 %v3106, %v3107
      %v3139 = vadd.f32 %v3138, %v3108
      %v3140 = vadd.f32 %v3139, %v3109
      %v3141 = vadd.f32 %v3140, %v3110
      %v3142 = vadd.f32 %v3141, %v3111
      %v3143 = vadd.f32 %v3142, %v3112
      %v3144 = vadd.f32 %v3143, %v3113
      %v3145 = vadd.f32 %v3144, %v3114
      %v3146 = vadd.f32 %v3145, %v3115
      %v3147 = vadd.f32 %v3146, %v3116
      %v3148 = vadd.f32 %v3147, %v3117
      %v3149 = vadd.f32 %v3148, %v3118
      %v3150 = vadd.f32 %v3149, %v3119
      %v3151 = vadd.f32 %v3150, %v3120
      %v3152 = vadd.f32 %v3151, %v3121
      %v3153 = vadd.f32 %v3152, %v3122
      %v3154 = vadd.f32 %v3153, %v3123
      %v3155 = vadd.f32 %v3154, %v3124
      %v3156 = vadd.f32 %v3155, %v3125
      %v3157 = vadd.f32 %v3156, %v3126
      %v3158 = vadd.f32 %v3157, %v3127
      %v3159 = vadd.f32 %v3158, %v3128
      %v3160 = vadd.f32 %v3159, %v3129
      %v3161 = vadd.f32 %v3160, %v3130
      %v3162 = vadd.f32 %v3161, %v3131
      %v3163 = vadd.f32 %v3162, %v3132
      %v3164 = vadd.f32 %v3163, %v3133
      %v3165 = vadd.f32 %v3164, %v3134
      %v3166 = vadd.f32 %v3165, %v3135
      %v3167 = vadd.f32 %v3166, %v3136
      %v3168 = vadd.f32 %v3167, %v3137
      %v3169 = vrot.slane %v3168, 4
      %v3170 = vadd.f32 %v3168, %v3169
      %v3171 = vrot.slane %v3170, 2
      %v3172 = vadd.f32 %v3170, %v3171
      %v3173 = vrot.slane %v3172, 1
      %v3174 = vadd.f32 %v3172, %v3173
      %v3175 = vmul.f32 %v3106, %v3106
      %v3176 = vmul.f32 %v3107, %v3107
      %v3177 = vmul.f32 %v3108, %v3108
      %v3178 = vmul.f32 %v3109, %v3109
      %v3179 = vmul.f32 %v3110, %v3110
      %v3180 = vmul.f32 %v3111, %v3111
      %v3181 = vmul.f32 %v3112, %v3112
      %v3182 = vmul.f32 %v3113, %v3113
      %v3183 = vmul.f32 %v3114, %v3114
      %v3184 = vmul.f32 %v3115, %v3115
      %v3185 = vmul.f32 %v3116, %v3116
      %v3186 = vmul.f32 %v3117, %v3117
      %v3187 = vmul.f32 %v3118, %v3118
      %v3188 = vmul.f32 %v3119, %v3119
      %v3189 = vmul.f32 %v3120, %v3120
      %v3190 = vmul.f32 %v3121, %v3121
      %v3191 = vmul.f32 %v3122, %v3122
      %v3192 = vmul.f32 %v3123, %v3123
      %v3193 = vmul.f32 %v3124, %v3124
      %v3194 = vmul.f32 %v3125, %v3125
      %v3195 = vmul.f32 %v3126, %v3126
      %v3196 = vmul.f32 %v3127, %v3127
      %v3197 = vmul.f32 %v3128, %v3128
      %v3198 = vmul.f32 %v3129, %v3129
      %v3199 = vmul.f32 %v3130, %v3130
      %v3200 = vmul.f32 %v3131, %v3131
      %v3201 = vmul.f32 %v3132, %v3132
      %v3202 = vmul.f32 %v3133, %v3133
      %v3203 = vmul.f32 %v3134, %v3134
      %v3204 = vmul.f32 %v3135, %v3135
      %v3205 = vmul.f32 %v3136, %v3136
      %v3206 = vmul.f32 %v3137, %v3137
      %v3207 = vadd.f32 %v3175, %v3176
      %v3208 = vadd.f32 %v3207, %v3177
      %v3209 = vadd.f32 %v3208, %v3178
      %v3210 = vadd.f32 %v3209, %v3179
      %v3211 = vadd.f32 %v3210, %v3180
      %v3212 = vadd.f32 %v3211, %v3181
      %v3213 = vadd.f32 %v3212, %v3182
      %v3214 = vadd.f32 %v3213, %v3183
      %v3215 = vadd.f32 %v3214, %v3184
      %v3216 = vadd.f32 %v3215, %v3185
      %v3217 = vadd.f32 %v3216, %v3186
      %v3218 = vadd.f32 %v3217, %v3187
      %v3219 = vadd.f32 %v3218, %v3188
      %v3220 = vadd.f32 %v3219, %v3189
      %v3221 = vadd.f32 %v3220, %v3190
      %v3222 = vadd.f32 %v3221, %v3191
      %v3223 = vadd.f32 %v3222, %v3192
      %v3224 = vadd.f32 %v3223, %v3193
      %v3225 = vadd.f32 %v3224, %v3194
      %v3226 = vadd.f32 %v3225, %v3195
      %v3227 = vadd.f32 %v3226, %v3196
      %v3228 = vadd.f32 %v3227, %v3197
      %v3229 = vadd.f32 %v3228, %v3198
      %v3230 = vadd.f32 %v3229, %v3199
      %v3231 = vadd.f32 %v3230, %v3200
      %v3232 = vadd.f32 %v3231, %v3201
      %v3233 = vadd.f32 %v3232, %v3202
      %v3234 = vadd.f32 %v3233, %v3203
      %v3235 = vadd.f32 %v3234, %v3204
      %v3236 = vadd.f32 %v3235, %v3205
      %v3237 = vadd.f32 %v3236, %v3206
      %v3238 = vrot.slane %v3237, 4
      %v3239 = vadd.f32 %v3237, %v3238
      %v3240 = vrot.slane %v3239, 2
      %v3241 = vadd.f32 %v3239, %v3240
      %v3242 = vrot.slane %v3241, 1
      %v3243 = vadd.f32 %v3241, %v3242
      %vm3244 = vcmask 1040384
      %v3245 = vsel %vm3244, %v3174, %v3243
      %3246 = vst [vmem:[%s411] sm:$0x3] %v3245
      %v3247 = vpack.c.bf16 %v3107, %v3106
      %v3248 = vpack.c.bf16 %v3109, %v3108
      %v3249 = vpack.c.bf16 %v3111, %v3110
      %v3250 = vpack.c.bf16 %v3113, %v3112
      %v3251 = vpack.c.bf16 %v3115, %v3114
      %v3252 = vpack.c.bf16 %v3117, %v3116
      %v3253 = vpack.c.bf16 %v3119, %v3118
      %v3254 = vpack.c.bf16 %v3121, %v3120
      %v3255 = vpack.c.bf16 %v3123, %v3122
      %v3256 = vpack.c.bf16 %v3125, %v3124
      %v3257 = vpack.c.bf16 %v3127, %v3126
      %v3258 = vpack.c.bf16 %v3129, %v3128
      %v3259 = vpack.c.bf16 %v3131, %v3130
      %v3260 = vpack.c.bf16 %v3133, %v3132
      %v3261 = vpack.c.bf16 %v3135, %v3134
      %v3262 = vpack.c.bf16 %v3137, %v3136
      %v3279 = vunpack.c.l.b16 %v3247
      %v3280 = vunpack.c.h.b16 %v3247
      %v3281 = vunpack.c.l.b16 %v3248
      %v3282 = vunpack.c.h.b16 %v3248
      %v3283 = vunpack.c.l.b16 %v3249
      %v3284 = vunpack.c.h.b16 %v3249
      %v3285 = vunpack.c.l.b16 %v3250
      %v3286 = vunpack.c.h.b16 %v3250
      %v3287 = vunpack.c.l.b16 %v3251
      %v3288 = vunpack.c.h.b16 %v3251
      %v3289 = vunpack.c.l.b16 %v3252
      %v3290 = vunpack.c.h.b16 %v3252
      %v3291 = vunpack.c.l.b16 %v3253
      %v3292 = vunpack.c.h.b16 %v3253
      %v3293 = vunpack.c.l.b16 %v3254
      %v3294 = vunpack.c.h.b16 %v3254
      %v3295 = vunpack.c.l.b16 %v3255
      %v3296 = vunpack.c.h.b16 %v3255
      %v3297 = vunpack.c.l.b16 %v3256
      %v3298 = vunpack.c.h.b16 %v3256
      %v3299 = vunpack.c.l.b16 %v3257
      %v3300 = vunpack.c.h.b16 %v3257
      %v3301 = vunpack.c.l.b16 %v3258
      %v3302 = vunpack.c.h.b16 %v3258
      %v3303 = vunpack.c.l.b16 %v3259
      %v3304 = vunpack.c.h.b16 %v3259
      %v3305 = vunpack.c.l.b16 %v3260
      %v3306 = vunpack.c.h.b16 %v3260
      %v3307 = vunpack.c.l.b16 %v3261
      %v3308 = vunpack.c.h.b16 %v3261
      %v3309 = vunpack.c.l.b16 %v3262
      %v3310 = vunpack.c.h.b16 %v3262
      %v3311 = vpack.c.b16 %v3279, %v3279
      %v3312 = vpack.c.b16 %v3280, %v3280
      %v3313 = vpack.c.b16 %v3281, %v3281
      %v3314 = vpack.c.b16 %v3282, %v3282
      %v3315 = vpack.c.b16 %v3283, %v3283
      %v3316 = vpack.c.b16 %v3284, %v3284
      %v3317 = vpack.c.b16 %v3285, %v3285
      %v3318 = vpack.c.b16 %v3286, %v3286
      %v3319 = vpack.c.b16 %v3287, %v3287
      %v3320 = vpack.c.b16 %v3288, %v3288
      %v3321 = vpack.c.b16 %v3289, %v3289
      %v3322 = vpack.c.b16 %v3290, %v3290
      %v3323 = vpack.c.b16 %v3291, %v3291
      %v3324 = vpack.c.b16 %v3292, %v3292
      %v3325 = vpack.c.b16 %v3293, %v3293
      %v3326 = vpack.c.b16 %v3294, %v3294
      %v3327 = vpack.c.b16 %v3295, %v3295
      %v3328 = vpack.c.b16 %v3296, %v3296
      %v3329 = vpack.c.b16 %v3297, %v3297
      %v3330 = vpack.c.b16 %v3298, %v3298
      %v3331 = vpack.c.b16 %v3299, %v3299
      %v3332 = vpack.c.b16 %v3300, %v3300
      %v3333 = vpack.c.b16 %v3301, %v3301
      %v3334 = vpack.c.b16 %v3302, %v3302
      %v3335 = vpack.c.b16 %v3303, %v3303
      %v3336 = vpack.c.b16 %v3304, %v3304
      %v3337 = vpack.c.b16 %v3305, %v3305
      %v3338 = vpack.c.b16 %v3306, %v3306
      %v3339 = vpack.c.b16 %v3307, %v3307
      %v3340 = vpack.c.b16 %v3308, %v3308
      %v3341 = vpack.c.b16 %v3309, %v3309
      %v3342 = vpack.c.b16 %v3310, %v3310
      %3375 = vst [vmem:[%s403] sm:$0xf] %v3311
      %3376 = vst [vmem:[%s403 + $0x4] sm:$0xf] %v3312
      %3377 = vst [vmem:[%s403 + $0x8] sm:$0xf] %v3313
      %3378 = vst [vmem:[%s403 + $0xc] sm:$0xf] %v3314
      %3379 = vst [vmem:[%s403 + $0x10] sm:$0xf] %v3315
      %3380 = vst [vmem:[%s403 + $0x14] sm:$0xf] %v3316
      %3381 = vst [vmem:[%s403 + $0x18] sm:$0xf] %v3317
      %3382 = vst [vmem:[%s403 + $0x1c] sm:$0xf] %v3318
      %3383 = vst [vmem:[%s403 + $0x20] sm:$0xf] %v3319
      %3384 = vst [vmem:[%s403 + $0x24] sm:$0xf] %v3320
      %3385 = vst [vmem:[%s403 + $0x28] sm:$0xf] %v3321
      %3386 = vst [vmem:[%s403 + $0x2c] sm:$0xf] %v3322
      %3387 = vst [vmem:[%s403 + $0x30] sm:$0xf] %v3323
      %3388 = vst [vmem:[%s403 + $0x34] sm:$0xf] %v3324
      %3389 = vst [vmem:[%s403 + $0x38] sm:$0xf] %v3325
      %3390 = vst [vmem:[%s403 + $0x3c] sm:$0xf] %v3326
      %3391 = vst [vmem:[%s403 + $0x40] sm:$0xf] %v3327
      %3392 = vst [vmem:[%s403 + $0x44] sm:$0xf] %v3328
      %3393 = vst [vmem:[%s403 + $0x48] sm:$0xf] %v3329
      %3394 = vst [vmem:[%s403 + $0x4c] sm:$0xf] %v3330
      %3395 = vst [vmem:[%s403 + $0x50] sm:$0xf] %v3331
      %3396 = vst [vmem:[%s403 + $0x54] sm:$0xf] %v3332
      %3397 = vst [vmem:[%s403 + $0x58] sm:$0xf] %v3333
      %3398 = vst [vmem:[%s403 + $0x5c] sm:$0xf] %v3334
      %3399 = vst [vmem:[%s403 + $0x60] sm:$0xf] %v3335
      %3400 = vst [vmem:[%s403 + $0x64] sm:$0xf] %v3336
      %3401 = vst [vmem:[%s403 + $0x68] sm:$0xf] %v3337
      %3402 = vst [vmem:[%s403 + $0x6c] sm:$0xf] %v3338
      %3403 = vst [vmem:[%s403 + $0x70] sm:$0xf] %v3339
      %3404 = vst [vmem:[%s403 + $0x74] sm:$0xf] %v3340
      %3405 = vst [vmem:[%s403 + $0x78] sm:$0xf] %v3341
      %3406 = vst [vmem:[%s403 + $0x7c] sm:$0xf] %v3342
      %s3407 = smul.u32 16, %s22
      %p3408 = scmp.lt.s32.totalorder %s21, 1
      %s3409 = scalar_select %p3408, %s21, 1
      %p3410 = scmp.lt.s32.totalorder %s3407, 15
      %s3411 = scalar_select %p3410, %s3407, 15
      %s3412 = smul.addr %s3411, 2
      %s3413 = smul.addr %s3409, 32
      %s3414 = sadd.s32 %s3412, %s3413
      %s3415 = smul.addr %s3414, 4
      %s3416 = scalar_lea.vmem %s4, %s3415
      %p3417 = scmp.lt.s32.totalorder %s21, 1
      %s3418 = scalar_select %p3417, %s21, 1
      %p3419 = scmp.lt.s32.totalorder %s22, 0
      %s3420 = scalar_select %p3419, %s22, 0
      %s3421 = sadd.s32 %s3420, %s3418
      %s3422 = smul.addr %s3421, 2
      %s3423 = scalar_lea.vmem %s5, %s3422
      // Predicated region
      $region37: #{in_conv_forward.3} parent=35 // pred_check
        %p3424 = pneg %p170
      $region38: #{in_conv_forward.3} parent=35 // pred_check_branch
        %3426 = sbr.rel (%p3424) target = $region40
      $region39: #{in_conv_forward.3} parent=35 // pred_region
        %s3427 = smul.u32 16, %s22
      $region40: #{in_conv_forward.3} parent=35 // pred_fallthru
        _
      // Predicated region
      $region41: #{in_conv_forward.3} parent=35 // pred_check
        %p3428 = pneg %p198
      $region42: #{in_conv_forward.3} parent=35 // pred_check_branch
        %3430 = sbr.rel (%p3428) target = $region44
      $region43: #{in_conv_forward.3} parent=35 // pred_region
        _
      $region44: #{in_conv_forward.3} parent=35 // pred_fallthru
        _
    $region36: #{in_conv_forward.3} parent=5 // pred_fallthru
      _
    %p3431 = scmp.le.s32.totalorder 2, %s12
    // Predicated region
    $region45: #{in_conv_forward.3} parent=5 // pred_check
      %p3432 = pneg %p3431
    $region46: #{in_conv_forward.3} parent=5 // pred_check_branch
      %3434 = sbr.rel (%p3432) target = $region48
    $region47: #{in_conv_forward.3} parent=5 // pred_region
      %s3435 = ssub.s32 %s12, 2
      // Predicated region
      $region49: #{in_conv_forward.3} parent=47 // pred_check
        %p3436 = pneg %p176
      $region50: #{in_conv_forward.3} parent=47 // pred_check_branch
        %3438 = sbr.rel (%p3436) target = $region52
      $region51: #{in_conv_forward.3} parent=47 // pred_region
        %s3439 = smul.u32 16, %s24
        %p3440 = scmp.lt.s32.totalorder %s23, 1
        %s3441 = scalar_select %p3440, %s23, 1
        %p3442 = scmp.lt.s32.totalorder %s3439, 15
        %s3443 = scalar_select %p3442, %s3439, 15
        %s3444 = smul.addr %s3443, 2
        %s3445 = smul.addr %s3441, 32
        %s3446 = sadd.s32 %s3444, %s3445
        %s3447 = smul.addr %s3446, 4
        %s3448 = scalar_lea.vmem %s4, %s3447
      $region52: #{in_conv_forward.3} parent=47 // pred_fallthru
        _
      // Predicated region
      $region53: #{in_conv_forward.3} parent=47 // pred_check
        %p3449 = pneg %p204
      $region54: #{in_conv_forward.3} parent=47 // pred_check_branch
        %3451 = sbr.rel (%p3449) target = $region56
      $region55: #{in_conv_forward.3} parent=47 // pred_region
        %p3452 = scmp.lt.s32.totalorder %s23, 1
        %s3453 = scalar_select %p3452, %s23, 1
        %p3454 = scmp.lt.s32.totalorder %s24, 0
        %s3455 = scalar_select %p3454, %s24, 0
        %s3456 = sadd.s32 %s3455, %s3453
        %s3457 = smul.addr %s3456, 2
        %s3458 = scalar_lea.vmem %s5, %s3457
      $region56: #{in_conv_forward.3} parent=47 // pred_fallthru
        _
    $region48: #{in_conv_forward.3} parent=5 // pred_fallthru
      _
  $region6: #{in_conv_forward.3} parent=0 // loop_footer
    %s16 = sadd.s32 1, %s12
  $region7: #{in_conv_forward.3} parent=0 // loop_footer_branch
    %11 = sbr.rel target = $region3
  $region8: #{in_conv_forward.3} parent=0 // loop_exit
    _

// kernel: in_conv_forward.4
$region0: #{in_conv_forward.4}
  #allocation0 [shape = 'u32[]', space=smem, size = 0x4, offset = 0x4, fixed_abs, tag = 'smem constant byte address 0x4 - core index']
  #allocation1 [shape = 'u32[144,128]{1,0:T(1,128)}', space=vmem, size = 0x12000, scoped, tag = 'internal scratch']
  #allocation2 [shape = 'bf16[18,18,128]{2,1,0:T(8,128)(2,1)}', space=vmem, size = 0x1b000, scoped, tag = 'scratch operand']
  #allocation3 [shape = 'bf16[256,1152]{1,0:T(8,128)(2,1)}', space=vmem, size = 0x90000, scoped, tag = 'scratch operand']
  %s0 = inlined_call_operand.vmem [shape: bf16[2,16,16,128], index: 0, kind: input, shape index: {}, may-alias: {0,1,2}]
  %s1 = inlined_call_operand.vmem [shape: bf16[2,16,16,128], index: 1, kind: input, shape index: {}, may-alias: {0,1,2}]
  %s2 = inlined_call_operand.vmem [shape: bf16[2,16,16,128], index: 2, kind: input, shape index: {}, may-alias: {0,1,2}]
  %s3 = inlined_call_operand.vmem [shape: f32[1,128], index: 3, kind: input, shape index: {}]
  %s4 = inlined_call_operand.vmem [shape: f32[1,128], index: 4, kind: input, shape index: {}]
  %s5 = inlined_call_operand.vmem [shape: bf16[1152,128], index: 5, kind: input, shape index: {}]
  %s6 = inlined_call_operand.vmem [shape: bf16[2,16,16,128], index: 6, kind: output, shape index: {0}]
  %s7 = inlined_call_operand.vmem [shape: f32[2,1,2,128], index: 7, kind: output, shape index: {1}]
  %8 = xla_tuple %s6, %s7
  %s9 = sld [smem:[#allocation0]]
  $region65: #{in_conv_forward.4} parent=0
    _
  %s11 = ssub.s32 1, %s9
  %s12 = scalar_select 0, %s11, %s9
  loop: start=0, step=1, limit=4
  $region2: #{in_conv_forward.4} parent=0 // loop_pre_header
    _
  $region3: #{in_conv_forward.4} parent=0 // loop_header
    %s14 = sphi 0, %s18
    %p15 = scmp.ge.s32.totalorder %s14, 4
    %s21 = sphi 0, %s33
    %s22 = sphi 0, %s29
    %s23 = sphi 0, %s21
    %s24 = sphi 0, %s22
    %s25 = sphi 0, %s23
    %s26 = sphi 0, %s24
    %s46 = sphi 0, %s48
    %s49 = sphi 0, %s46
    %s50 = sphi 0, %s49
    %s66 = sphi 0, %s50
    %s74 = sphi 0, %s76
    %s77 = sphi 0, %s74
    %s78 = sphi 0, %s77
    %s94 = sphi 0, %s78
    %s110 = sphi 0, %s112
    %s113 = sphi 0, %s110
    %s114 = sphi 0, %s113
    %s130 = sphi 0, %s114
    %s134 = sphi 0, %s134
    %s136 = sphi 0, %s134
    %s137 = sphi 0, %s136
    %s151 = sphi 0, %s137
    %s155 = sphi 0, %s155
    %s157 = sphi 0, %s155
    %s158 = sphi 0, %s157
    %s172 = sphi 0, %s158
    %s176 = sphi 0, %s176
    %s178 = sphi 0, %s176
    %s179 = sphi 0, %s178
    %s193 = sphi 0, %s179
    %s201 = sphi 0, %s203
    %s204 = sphi 0, %s201
    %s205 = sphi 0, %s204
    %s221 = sphi 0, %s205
    %s229 = sphi 0, %s231
    %s232 = sphi 0, %s229
    %s233 = sphi 0, %s232
    %s249 = sphi 0, %s233
  $region4: #{in_conv_forward.4} parent=0 // loop_header_branch
    %17 = sbr.rel (%p15) target = $region8
  $region5: #{in_conv_forward.4} parent=0 // loop_body
    %s19 = ssub.s32 %s14, 1
    %s20 = ssub.s32 %s14, 2
    %s27 = sadd.s32 1, %s22
    %p28 = scmp.ge.s32.totalorder %s27, 1
    %s29 = scalar_select %p28, 0, %s27
    %s30 = sadd.s32 1, %s21
    %s31 = scalar_select %p28, %s30, %s21
    %p32 = scmp.ge.s32.totalorder %s31, 2
    %s33 = scalar_select %p32, 0, %s31
    %s34 = smul.u32 %s22, 16
    %s35 = ssub.s32 %s34, 1
    %p36 = scmp.gt.s32.totalorder %s35, 0
    %s37 = scalar_select %p36, %s35, 0
    %s38 = smul.u32 %s29, 16
    %s39 = ssub.s32 %s38, 1
    %p40 = scmp.gt.s32.totalorder %s39, 0
    %s41 = scalar_select %p40, %s39, 0
    %s42 = ssub.s32 %s21, %s33
    %s43 = ssub.s32 %s37, %s41
    %s44 = sor.u32 %s42, %s43
    %p45 = scmp.eq.s32.totalorder %s44, 0
    %s47 = sadd.s32 %s46, 1
    %s48 = scalar_select %p45, %s46, %s47
    %p51 = pneg %p45
    %p52 = scmp.eq.s32.totalorder %s14, 1
    %p53 = por %p51, %p52
    %p54 = scmp.ne.s32.totalorder %s46, %s49
    %p55 = scmp.eq.s32.totalorder %s14, 0
    %p56 = por %p54, %p55
    %p57 = scmp.ne.s32.totalorder %s46, %s49
    %p58 = scmp.eq.s32.totalorder %s19, 1
    %p59 = por %p57, %p58
    %p60 = scmp.ne.s32.totalorder %s49, %s50
    %p61 = scmp.eq.s32.totalorder %s19, 0
    %p62 = por %p60, %p61
    %p63 = scmp.ne.s32.totalorder %s49, %s50
    %p64 = scmp.eq.s32.totalorder %s20, 1
    %p65 = por %p63, %p64
    %p67 = scmp.ne.s32.totalorder %s50, %s66
    %p68 = scmp.eq.s32.totalorder %s20, 0
    %p69 = por %p67, %p68
    %s70 = ssub.s32 %s21, %s33
    %s71 = ssub.s32 %s22, %s29
    %s72 = sor.u32 %s70, %s71
    %p73 = scmp.eq.s32.totalorder %s72, 0
    %s75 = sadd.s32 %s74, 1
    %s76 = scalar_select %p73, %s74, %s75
    %p79 = pneg %p73
    %p80 = scmp.eq.s32.totalorder %s14, 1
    %p81 = por %p79, %p80
    %p82 = scmp.ne.s32.totalorder %s74, %s77
    %p83 = scmp.eq.s32.totalorder %s14, 0
    %p84 = por %p82, %p83
    %p85 = scmp.ne.s32.totalorder %s74, %s77
    %p86 = scmp.eq.s32.totalorder %s19, 1
    %p87 = por %p85, %p86
    %p88 = scmp.ne.s32.totalorder %s77, %s78
    %p89 = scmp.eq.s32.totalorder %s19, 0
    %p90 = por %p88, %p89
    %p91 = scmp.ne.s32.totalorder %s77, %s78
    %p92 = scmp.eq.s32.totalorder %s20, 1
    %p93 = por %p91, %p92
    %p95 = scmp.ne.s32.totalorder %s78, %s94
    %p96 = scmp.eq.s32.totalorder %s20, 0
    %p97 = por %p95, %p96
    %s98 = sadd.s32 %s22, 1
    %s99 = smul.u32 %s98, 16
    %p100 = scmp.lt.s32.totalorder %s99, 15
    %s101 = scalar_select %p100, %s99, 15
    %s102 = sadd.s32 %s29, 1
    %s103 = smul.u32 %s102, 16
    %p104 = scmp.lt.s32.totalorder %s103, 15
    %s105 = scalar_select %p104, %s103, 15
    %s106 = ssub.s32 %s21, %s33
    %s107 = ssub.s32 %s101, %s105
    %s108 = sor.u32 %s106, %s107
    %p109 = scmp.eq.s32.totalorder %s108, 0
    %s111 = sadd.s32 %s110, 1
    %s112 = scalar_select %p109, %s110, %s111
    %p115 = pneg %p109
    %p116 = scmp.eq.s32.totalorder %s14, 1
    %p117 = por %p115, %p116
    %p118 = scmp.ne.s32.totalorder %s110, %s113
    %p119 = scmp.eq.s32.totalorder %s14, 0
    %p120 = por %p118, %p119
    %p121 = scmp.ne.s32.totalorder %s110, %s113
    %p122 = scmp.eq.s32.totalorder %s19, 1
    %p123 = por %p121, %p122
    %p124 = scmp.ne.s32.totalorder %s113, %s114
    %p125 = scmp.eq.s32.totalorder %s19, 0
    %p126 = por %p124, %p125
    %p127 = scmp.ne.s32.totalorder %s113, %s114
    %p128 = scmp.eq.s32.totalorder %s20, 1
    %p129 = por %p127, %p128
    %p131 = scmp.ne.s32.totalorder %s114, %s130
    %p132 = scmp.eq.s32.totalorder %s20, 0
    %p133 = por %p131, %p132
    %s135 = sadd.s32 %s134, 1
    %p138 = scmp.eq.s32.totalorder %s14, 1
    %p139 = scmp.ne.s32.totalorder %s134, %s136
    %p140 = scmp.eq.s32.totalorder %s14, 0
    %p141 = por %p139, %p140
    %p142 = scmp.ne.s32.totalorder %s134, %s136
    %p143 = scmp.eq.s32.totalorder %s19, 1
    %p144 = por %p142, %p143
    %p145 = scmp.ne.s32.totalorder %s136, %s137
    %p146 = scmp.eq.s32.totalorder %s19, 0
    %p147 = por %p145, %p146
    %p148 = scmp.ne.s32.totalorder %s136, %s137
    %p149 = scmp.eq.s32.totalorder %s20, 1
    %p150 = por %p148, %p149
    %p152 = scmp.ne.s32.totalorder %s137, %s151
    %p153 = scmp.eq.s32.totalorder %s20, 0
    %p154 = por %p152, %p153
    %s156 = sadd.s32 %s155, 1
    %p159 = scmp.eq.s32.totalorder %s14, 1
    %p160 = scmp.ne.s32.totalorder %s155, %s157
    %p161 = scmp.eq.s32.totalorder %s14, 0
    %p162 = por %p160, %p161
    %p163 = scmp.ne.s32.totalorder %s155, %s157
    %p164 = scmp.eq.s32.totalorder %s19, 1
    %p165 = por %p163, %p164
    %p166 = scmp.ne.s32.totalorder %s157, %s158
    %p167 = scmp.eq.s32.totalorder %s19, 0
    %p168 = por %p166, %p167
    %p169 = scmp.ne.s32.totalorder %s157, %s158
    %p170 = scmp.eq.s32.totalorder %s20, 1
    %p171 = por %p169, %p170
    %p173 = scmp.ne.s32.totalorder %s158, %s172
    %p174 = scmp.eq.s32.totalorder %s20, 0
    %p175 = por %p173, %p174
    %s177 = sadd.s32 %s176, 1
    %p180 = scmp.eq.s32.totalorder %s14, 1
    %p181 = scmp.ne.s32.totalorder %s176, %s178
    %p182 = scmp.eq.s32.totalorder %s14, 0
    %p183 = por %p181, %p182
    %p184 = scmp.ne.s32.totalorder %s176, %s178
    %p185 = scmp.eq.s32.totalorder %s19, 1
    %p186 = por %p184, %p185
    %p187 = scmp.ne.s32.totalorder %s178, %s179
    %p188 = scmp.eq.s32.totalorder %s19, 0
    %p189 = por %p187, %p188
    %p190 = scmp.ne.s32.totalorder %s178, %s179
    %p191 = scmp.eq.s32.totalorder %s20, 1
    %p192 = por %p190, %p191
    %p194 = scmp.ne.s32.totalorder %s179, %s193
    %p195 = scmp.eq.s32.totalorder %s20, 0
    %p196 = por %p194, %p195
    %s197 = ssub.s32 %s21, %s33
    %s198 = ssub.s32 %s22, %s29
    %s199 = sor.u32 %s197, %s198
    %p200 = scmp.eq.s32.totalorder %s199, 0
    %s202 = sadd.s32 %s201, 1
    %s203 = scalar_select %p200, %s201, %s202
    %p206 = pneg %p200
    %p207 = scmp.eq.s32.totalorder %s14, 1
    %p208 = por %p206, %p207
    %p209 = scmp.ne.s32.totalorder %s201, %s204
    %p210 = scmp.eq.s32.totalorder %s14, 0
    %p211 = por %p209, %p210
    %p212 = scmp.ne.s32.totalorder %s201, %s204
    %p213 = scmp.eq.s32.totalorder %s19, 1
    %p214 = por %p212, %p213
    %p215 = scmp.ne.s32.totalorder %s204, %s205
    %p216 = scmp.eq.s32.totalorder %s19, 0
    %p217 = por %p215, %p216
    %p218 = scmp.ne.s32.totalorder %s204, %s205
    %p219 = scmp.eq.s32.totalorder %s20, 1
    %p220 = por %p218, %p219
    %p222 = scmp.ne.s32.totalorder %s205, %s221
    %p223 = scmp.eq.s32.totalorder %s20, 0
    %p224 = por %p222, %p223
    %s225 = ssub.s32 %s21, %s33
    %s226 = ssub.s32 %s22, %s29
    %s227 = sor.u32 %s225, %s226
    %p228 = scmp.eq.s32.totalorder %s227, 0
    %s230 = sadd.s32 %s229, 1
    %s231 = scalar_select %p228, %s229, %s230
    %p234 = pneg %p228
    %p235 = scmp.eq.s32.totalorder %s14, 1
    %p236 = por %p234, %p235
    %p237 = scmp.ne.s32.totalorder %s229, %s232
    %p238 = scmp.eq.s32.totalorder %s14, 0
    %p239 = por %p237, %p238
    %p240 = scmp.ne.s32.totalorder %s229, %s232
    %p241 = scmp.eq.s32.totalorder %s19, 1
    %p242 = por %p240, %p241
    %p243 = scmp.ne.s32.totalorder %s232, %s233
    %p244 = scmp.eq.s32.totalorder %s19, 0
    %p245 = por %p243, %p244
    %p246 = scmp.ne.s32.totalorder %s232, %s233
    %p247 = scmp.eq.s32.totalorder %s20, 1
    %p248 = por %p246, %p247
    %p250 = scmp.ne.s32.totalorder %s233, %s249
    %p251 = scmp.eq.s32.totalorder %s20, 0
    %p252 = por %p250, %p251
    %p253 = scmp.le.s32.totalorder 1, %s14
    %p254 = scmp.lt.s32.totalorder %s14, 3
    %p255 = pnand %p253, %p254
    %p256 = pneg %p255
    // Predicated region
    $region9: #{in_conv_forward.4} parent=5 // pred_check
      _
    $region10: #{in_conv_forward.4} parent=5 // pred_check_branch
      %258 = sbr.rel (%p255) target = $region12
    $region11: #{in_conv_forward.4} parent=5 // pred_region
      %s259 = ssub.s32 %s14, 1
      // Predicated region
      $region13: #{in_conv_forward.4} parent=11 // pred_check
        %p260 = pneg %p147
      $region14: #{in_conv_forward.4} parent=11 // pred_check_branch
        %262 = sbr.rel (%p260) target = $region16
      $region15: #{in_conv_forward.4} parent=11 // pred_region
        _
      $region16: #{in_conv_forward.4} parent=11 // pred_fallthru
        _
      // Predicated region
      $region17: #{in_conv_forward.4} parent=11 // pred_check
        %p263 = pneg %p168
      $region18: #{in_conv_forward.4} parent=11 // pred_check_branch
        %265 = sbr.rel (%p263) target = $region20
      $region19: #{in_conv_forward.4} parent=11 // pred_region
        _
      $region20: #{in_conv_forward.4} parent=11 // pred_fallthru
        _
      // Predicated region
      $region21: #{in_conv_forward.4} parent=11 // pred_check
        %p266 = pneg %p189
      $region22: #{in_conv_forward.4} parent=11 // pred_check_branch
        %268 = sbr.rel (%p266) target = $region24
      $region23: #{in_conv_forward.4} parent=11 // pred_region
        _
      $region24: #{in_conv_forward.4} parent=11 // pred_fallthru
        _
    $region12: #{in_conv_forward.4} parent=5 // pred_fallthru
      _
    %p269 = scmp.lt.s32.totalorder %s14, 2
    // Predicated region
    $region25: #{in_conv_forward.4} parent=5 // pred_check
      %p270 = pneg %p269
    $region26: #{in_conv_forward.4} parent=5 // pred_check_branch
      %272 = sbr.rel (%p270) target = $region28
    $region27: #{in_conv_forward.4} parent=5 // pred_region
      // Predicated region
      $region29: #{in_conv_forward.4} parent=27 // pred_check
        %p273 = pneg %p56
      $region30: #{in_conv_forward.4} parent=27 // pred_check_branch
        %275 = sbr.rel (%p273) target = $region32
      $region31: #{in_conv_forward.4} parent=27 // pred_region
        %s276 = smul.u32 %s22, 16
        %s277 = ssub.s32 %s276, 1
        %p278 = scmp.gt.s32.totalorder %s277, 0
        %s279 = scalar_select %p278, %s277, 0
        %p280 = scmp.lt.s32.totalorder %s21, 1
        %s281 = scalar_select %p280, %s21, 1
        %p282 = scmp.lt.s32.totalorder %s279, 15
        %s283 = scalar_select %p282, %s279, 15
        %s284 = smul.addr %s283, 2
        %s285 = smul.addr %s281, 32
        %s286 = sadd.s32 %s284, %s285
        %s287 = smul.addr %s286, 4
        %s288 = scalar_lea.vmem %s0, %s287
        %s289 = smul.u32 %s22, 16
        %s290 = ssub.s32 %s289, 1
        %p291 = scmp.gt.s32.totalorder %s290, 0
        %s292 = scalar_select %p291, %s290, 0
      $region32: #{in_conv_forward.4} parent=27 // pred_fallthru
        _
      // Predicated region
      $region33: #{in_conv_forward.4} parent=27 // pred_check
        %p293 = pneg %p84
      $region34: #{in_conv_forward.4} parent=27 // pred_check_branch
        %295 = sbr.rel (%p293) target = $region36
      $region35: #{in_conv_forward.4} parent=27 // pred_region
        %s296 = smul.u32 16, %s22
        %p297 = scmp.lt.s32.totalorder %s21, 1
        %s298 = scalar_select %p297, %s21, 1
        %p299 = scmp.lt.s32.totalorder %s296, 15
        %s300 = scalar_select %p299, %s296, 15
        %s301 = smul.addr %s300, 2
        %s302 = smul.addr %s298, 32
        %s303 = sadd.s32 %s301, %s302
        %s304 = smul.addr %s303, 4
        %s305 = scalar_lea.vmem %s1, %s304
        %s306 = smul.u32 16, %s22
      $region36: #{in_conv_forward.4} parent=27 // pred_fallthru
        _
      // Predicated region
      $region37: #{in_conv_forward.4} parent=27 // pred_check
        %p307 = pneg %p120
      $region38: #{in_conv_forward.4} parent=27 // pred_check_branch
        %309 = sbr.rel (%p307) target = $region40
      $region39: #{in_conv_forward.4} parent=27 // pred_region
        %s310 = sadd.s32 %s22, 1
        %s311 = smul.u32 %s310, 16
        %p312 = scmp.lt.s32.totalorder %s311, 15
        %s313 = scalar_select %p312, %s311, 15
        %p314 = scmp.lt.s32.totalorder %s21, 1
        %s315 = scalar_select %p314, %s21, 1
        %p316 = scmp.lt.s32.totalorder %s313, 15
        %s317 = scalar_select %p316, %s313, 15
        %s318 = smul.addr %s317, 2
        %s319 = smul.addr %s315, 32
        %s320 = sadd.s32 %s318, %s319
        %s321 = smul.addr %s320, 4
        %s322 = scalar_lea.vmem %s2, %s321
        %s323 = sadd.s32 %s22, 1
        %s324 = smul.u32 %s323, 16
        %p325 = scmp.lt.s32.totalorder %s324, 15
        %s326 = scalar_select %p325, %s324, 15
      $region40: #{in_conv_forward.4} parent=27 // pred_fallthru
        _
    $region28: #{in_conv_forward.4} parent=5 // pred_fallthru
      _
    %p327 = scmp.le.s32.totalorder 1, %s14
    %p328 = scmp.lt.s32.totalorder %s14, 3
    %p329 = pnand %p327, %p328
    %p330 = pneg %p329
    // Predicated region
    $region41: #{in_conv_forward.4} parent=5 // pred_check
      _
    $region42: #{in_conv_forward.4} parent=5 // pred_check_branch
      %332 = sbr.rel (%p329) target = $region44
    $region43: #{in_conv_forward.4} parent=5 // pred_region
      %s333 = ssub.s32 %s14, 1
      %s334 = smul.u32 %s24, 16
      %s335 = ssub.s32 %s334, 1
      %p336 = scmp.gt.s32.totalorder %s335, 0
      %s337 = scalar_select %p336, %s335, 0
      %p338 = scmp.lt.s32.totalorder %s23, 1
      %s339 = scalar_select %p338, %s23, 1
      %p340 = scmp.lt.s32.totalorder %s337, 15
      %s341 = scalar_select %p340, %s337, 15
      %s342 = smul.addr %s341, 2
      %s343 = smul.addr %s339, 32
      %s344 = sadd.s32 %s342, %s343
      %s345 = smul.addr %s344, 4
      %s346 = scalar_lea.vmem %s0, %s345
      %p347 = pneg %p62
      %p348 = pneg %p59
      %s349 = smul.u32 16, %s24
      %p350 = scmp.lt.s32.totalorder %s23, 1
      %s351 = scalar_select %p350, %s23, 1
      %p352 = scmp.lt.s32.totalorder %s349, 15
      %s353 = scalar_select %p352, %s349, 15
      %s354 = smul.addr %s353, 2
      %s355 = smul.addr %s351, 32
      %s356 = sadd.s32 %s354, %s355
      %s357 = smul.addr %s356, 4
      %s358 = scalar_lea.vmem %s1, %s357
      %p359 = pneg %p90
      %p360 = pneg %p87
      %s361 = sadd.s32 %s24, 1
      %s362 = smul.u32 %s361, 16
      %p363 = scmp.lt.s32.totalorder %s362, 15
      %s364 = scalar_select %p363, %s362, 15
      %p365 = scmp.lt.s32.totalorder %s23, 1
      %s366 = scalar_select %p365, %s23, 1
      %p367 = scmp.lt.s32.totalorder %s364, 15
      %s368 = scalar_select %p367, %s364, 15
      %s369 = smul.addr %s368, 2
      %s370 = smul.addr %s366, 32
      %s371 = sadd.s32 %s369, %s370
      %s372 = smul.addr %s371, 4
      %s373 = scalar_lea.vmem %s2, %s372
      %p374 = pneg %p126
      %p375 = pneg %p123
      %p376 = pneg %p147
      %p377 = pneg %p144
      %p378 = pneg %p168
      %p379 = pneg %p165
      %p380 = pneg %p189
      %p381 = pneg %p186
      %p382 = pneg %p217
      %p383 = pneg %p214
      %s384 = smul.u32 16, %s24
      %p385 = scmp.lt.s32.totalorder %s23, 1
      %s386 = scalar_select %p385, %s23, 1
      %p387 = scmp.lt.s32.totalorder %s384, 15
      %s388 = scalar_select %p387, %s384, 15
      %s389 = smul.addr %s388, 2
      %s390 = smul.addr %s386, 32
      %s391 = sadd.s32 %s389, %s390
      %s392 = smul.addr %s391, 4
      %s393 = scalar_lea.vmem %s6, %s392
      %p394 = pneg %p245
      %p395 = pneg %p242
      %p396 = scmp.lt.s32.totalorder %s23, 1
      %s397 = scalar_select %p396, %s23, 1
      %p398 = scmp.lt.s32.totalorder %s24, 0
      %s399 = scalar_select %p398, %s24, 0
      %s400 = sadd.s32 %s399, %s397
      %s401 = smul.addr %s400, 2
      %s402 = scalar_lea.vmem %s7, %s401
      %s403 = smul.u32 %s24, 16
      %s404 = ssub.s32 %s403, 1
      %p405 = scmp.gt.s32.totalorder %s404, 0
      %s406 = scalar_select %p405, %s404, 0
      %p407 = scmp.lt.s32.totalorder %s23, 1
      %s408 = scalar_select %p407, %s23, 1
      %p409 = scmp.lt.s32.totalorder %s406, 15
      %s410 = scalar_select %p409, %s406, 15
      %s411 = smul.addr %s410, 2
      %s412 = smul.addr %s408, 32
      %s413 = sadd.s32 %s411, %s412
      %s414 = smul.addr %s413, 4
      %s415 = scalar_lea.vmem %s0, %s414
      %s416 = smul.u32 %s24, 16
      %s417 = ssub.s32 %s416, 1
      %p418 = scmp.gt.s32.totalorder %s417, 0
      %s419 = scalar_select %p418, %s417, 0
      %s420 = smul.u32 16, %s24
      %p421 = scmp.lt.s32.totalorder %s23, 1
      %s422 = scalar_select %p421, %s23, 1
      %p423 = scmp.lt.s32.totalorder %s420, 15
      %s424 = scalar_select %p423, %s420, 15
      %s425 = smul.addr %s424, 2
      %s426 = smul.addr %s422, 32
      %s427 = sadd.s32 %s425, %s426
      %s428 = smul.addr %s427, 4
      %s429 = scalar_lea.vmem %s1, %s428
      %s430 = smul.u32 16, %s24
      %s431 = sadd.s32 %s24, 1
      %s432 = smul.u32 %s431, 16
      %p433 = scmp.lt.s32.totalorder %s432, 15
      %s434 = scalar_select %p433, %s432, 15
      %p435 = scmp.lt.s32.totalorder %s23, 1
      %s436 = scalar_select %p435, %s23, 1
      %p437 = scmp.lt.s32.totalorder %s434, 15
      %s438 = scalar_select %p437, %s434, 15
      %s439 = smul.addr %s438, 2
      %s440 = smul.addr %s436, 32
      %s441 = sadd.s32 %s439, %s440
      %s442 = smul.addr %s441, 4
      %s443 = scalar_lea.vmem %s2, %s442
      %s444 = sadd.s32 %s24, 1
      %s445 = smul.u32 %s444, 16
      %p446 = scmp.lt.s32.totalorder %s445, 15
      %s447 = scalar_select %p446, %s445, 15
      %s448 = smul.u32 16, %s24
      %p449 = scmp.lt.s32.totalorder %s23, 1
      %s450 = scalar_select %p449, %s23, 1
      %p451 = scmp.lt.s32.totalorder %s448, 15
      %s452 = scalar_select %p451, %s448, 15
      %s453 = smul.addr %s452, 2
      %s454 = smul.addr %s450, 32
      %s455 = sadd.s32 %s453, %s454
      %s456 = smul.addr %s455, 4
      %s457 = scalar_lea.vmem %s6, %s456
      %s458 = smul.u32 16, %s24
      %p459 = scmp.lt.s32.totalorder %s23, 1
      %s460 = scalar_select %p459, %s23, 1
      %p461 = scmp.lt.s32.totalorder %s24, 0
      %s462 = scalar_select %p461, %s24, 0
      %s463 = sadd.s32 %s462, %s460
      %s464 = smul.addr %s463, 2
      %s465 = scalar_lea.vmem %s7, %s464
      %v467 = vld [vmem:[%s415] sm:$0xf]
      %v468 = vld [vmem:[%s415 + $0x4] sm:$0xf]
      %v469 = vunpack.c.l.bf16 %v467
      %v470 = vunpack.c.l.bf16 %v468
      %v471 = vld [vmem:[%s3] sm:$0x1]
      %v473 = vlaneseq
      %v474 = vshrl.u32 %v473, 7
      %v475 = vsub.s32 0, %v474
      %v476 = vrot.slane %v471, %v475
      %v478 = vmul.f32 %v469, %v476
      %v479 = vmul.f32 %v470, %v476
      %v480 = vld [vmem:[%s4] sm:$0x1]
      %v482 = vlaneseq
      %v483 = vshrl.u32 %v482, 7
      %v484 = vsub.s32 0, %v483
      %v485 = vrot.slane %v480, %v484
      %v487 = vadd.f32 %v478, %v485
      %v488 = vadd.f32 %v479, %v485
      %v489 = vmax.f32 %v487, 0.0
      %v490 = vmax.f32 %v488, 0.0
      %v491 = vpack.c.bf16 %v490, %v489
      %v492 = vld [vmem:[%s429] sm:$0xf]
      %v493 = vld [vmem:[%s429 + $0x4] sm:$0xf]
      %v494 = vld [vmem:[%s429 + $0x8] sm:$0xf]
      %v495 = vld [vmem:[%s429 + $0xc] sm:$0xf]
      %v496 = vld [vmem:[%s429 + $0x10] sm:$0xf]
      %v497 = vld [vmem:[%s429 + $0x14] sm:$0xf]
      %v498 = vld [vmem:[%s429 + $0x18] sm:$0xf]
      %v499 = vld [vmem:[%s429 + $0x1c] sm:$0xf]
      %v500 = vld [vmem:[%s429 + $0x20] sm:$0xf]
      %v501 = vld [vmem:[%s429 + $0x24] sm:$0xf]
      %v502 = vld [vmem:[%s429 + $0x28] sm:$0xf]
      %v503 = vld [vmem:[%s429 + $0x2c] sm:$0xf]
      %v504 = vld [vmem:[%s429 + $0x30] sm:$0xf]
      %v505 = vld [vmem:[%s429 + $0x34] sm:$0xf]
      %v506 = vld [vmem:[%s429 + $0x38] sm:$0xf]
      %v507 = vld [vmem:[%s429 + $0x3c] sm:$0xf]
      %v508 = vld [vmem:[%s429 + $0x40] sm:$0xf]
      %v509 = vld [vmem:[%s429 + $0x44] sm:$0xf]
      %v510 = vld [vmem:[%s429 + $0x48] sm:$0xf]
      %v511 = vld [vmem:[%s429 + $0x4c] sm:$0xf]
      %v512 = vld [vmem:[%s429 + $0x50] sm:$0xf]
      %v513 = vld [vmem:[%s429 + $0x54] sm:$0xf]
      %v514 = vld [vmem:[%s429 + $0x58] sm:$0xf]
      %v515 = vld [vmem:[%s429 + $0x5c] sm:$0xf]
      %v516 = vld [vmem:[%s429 + $0x60] sm:$0xf]
      %v517 = vld [vmem:[%s429 + $0x64] sm:$0xf]
      %v518 = vld [vmem:[%s429 + $0x68] sm:$0xf]
      %v519 = vld [vmem:[%s429 + $0x6c] sm:$0xf]
      %v520 = vld [vmem:[%s429 + $0x70] sm:$0xf]
      %v521 = vld [vmem:[%s429 + $0x74] sm:$0xf]
      %v522 = vld [vmem:[%s429 + $0x78] sm:$0xf]
      %v523 = vld [vmem:[%s429 + $0x7c] sm:$0xf]
      %v524 = vunpack.c.l.bf16 %v492
      %v525 = vunpack.c.l.bf16 %v493
      %v526 = vunpack.c.l.bf16 %v494
      %v527 = vunpack.c.l.bf16 %v495
      %v528 = vunpack.c.l.bf16 %v496
      %v529 = vunpack.c.l.bf16 %v497
      %v530 = vunpack.c.l.bf16 %v498
      %v531 = vunpack.c.l.bf16 %v499
      %v532 = vunpack.c.l.bf16 %v500
      %v533 = vunpack.c.l.bf16 %v501
      %v534 = vunpack.c.l.bf16 %v502
      %v535 = vunpack.c.l.bf16 %v503
      %v536 = vunpack.c.l.bf16 %v504
      %v537 = vunpack.c.l.bf16 %v505
      %v538 = vunpack.c.l.bf16 %v506
      %v539 = vunpack.c.l.bf16 %v507
      %v540 = vunpack.c.l.bf16 %v508
      %v541 = vunpack.c.l.bf16 %v509
      %v542 = vunpack.c.l.bf16 %v510
      %v543 = vunpack.c.l.bf16 %v511
      %v544 = vunpack.c.l.bf16 %v512
      %v545 = vunpack.c.l.bf16 %v513
      %v546 = vunpack.c.l.bf16 %v514
      %v547 = vunpack.c.l.bf16 %v515
      %v548 = vunpack.c.l.bf16 %v516
      %v549 = vunpack.c.l.bf16 %v517
      %v550 = vunpack.c.l.bf16 %v518
      %v551 = vunpack.c.l.bf16 %v519
      %v552 = vunpack.c.l.bf16 %v520
      %v553 = vunpack.c.l.bf16 %v521
      %v554 = vunpack.c.l.bf16 %v522
      %v555 = vunpack.c.l.bf16 %v523
      %v556 = vmul.f32 %v524, %v476
      %v557 = vmul.f32 %v525, %v476
      %v558 = vmul.f32 %v526, %v476
      %v559 = vmul.f32 %v527, %v476
      %v560 = vmul.f32 %v528, %v476
      %v561 = vmul.f32 %v529, %v476
      %v562 = vmul.f32 %v530, %v476
      %v563 = vmul.f32 %v531, %v476
      %v564 = vmul.f32 %v532, %v476
      %v565 = vmul.f32 %v533, %v476
      %v566 = vmul.f32 %v534, %v476
      %v567 = vmul.f32 %v535, %v476
      %v568 = vmul.f32 %v536, %v476
      %v569 = vmul.f32 %v537, %v476
      %v570 = vmul.f32 %v538, %v476
      %v571 = vmul.f32 %v539, %v476
      %v572 = vmul.f32 %v540, %v476
      %v573 = vmul.f32 %v541, %v476
      %v574 = vmul.f32 %v542, %v476
      %v575 = vmul.f32 %v543, %v476
      %v576 = vmul.f32 %v544, %v476
      %v577 = vmul.f32 %v545, %v476
      %v578 = vmul.f32 %v546, %v476
      %v579 = vmul.f32 %v547, %v476
      %v580 = vmul.f32 %v548, %v476
      %v581 = vmul.f32 %v549, %v476
      %v582 = vmul.f32 %v550, %v476
      %v583 = vmul.f32 %v551, %v476
      %v584 = vmul.f32 %v552, %v476
      %v585 = vmul.f32 %v553, %v476
      %v586 = vmul.f32 %v554, %v476
      %v587 = vmul.f32 %v555, %v476
      %v588 = vadd.f32 %v556, %v485
      %v589 = vadd.f32 %v557, %v485
      %v590 = vadd.f32 %v558, %v485
      %v591 = vadd.f32 %v559, %v485
      %v592 = vadd.f32 %v560, %v485
      %v593 = vadd.f32 %v561, %v485
      %v594 = vadd.f32 %v562, %v485
      %v595 = vadd.f32 %v563, %v485
      %v596 = vadd.f32 %v564, %v485
      %v597 = vadd.f32 %v565, %v485
      %v598 = vadd.f32 %v566, %v485
      %v599 = vadd.f32 %v567, %v485
      %v600 = vadd.f32 %v568, %v485
      %v601 = vadd.f32 %v569, %v485
      %v602 = vadd.f32 %v570, %v485
      %v603 = vadd.f32 %v571, %v485
      %v604 = vadd.f32 %v572, %v485
      %v605 = vadd.f32 %v573, %v485
      %v606 = vadd.f32 %v574, %v485
      %v607 = vadd.f32 %v575, %v485
      %v608 = vadd.f32 %v576, %v485
      %v609 = vadd.f32 %v577, %v485
      %v610 = vadd.f32 %v578, %v485
      %v611 = vadd.f32 %v579, %v485
      %v612 = vadd.f32 %v580, %v485
      %v613 = vadd.f32 %v581, %v485
      %v614 = vadd.f32 %v582, %v485
      %v615 = vadd.f32 %v583, %v485
      %v616 = vadd.f32 %v584, %v485
      %v617 = vadd.f32 %v585, %v485
      %v618 = vadd.f32 %v586, %v485
      %v619 = vadd.f32 %v587, %v485
      %v620 = vmax.f32 %v588, 0.0
      %v621 = vmax.f32 %v589, 0.0
      %v622 = vmax.f32 %v590, 0.0
      %v623 = vmax.f32 %v591, 0.0
      %v624 = vmax.f32 %v592, 0.0
      %v625 = vmax.f32 %v593, 0.0
      %v626 = vmax.f32 %v594, 0.0
      %v627 = vmax.f32 %v595, 0.0
      %v628 = vmax.f32 %v596, 0.0
      %v629 = vmax.f32 %v597, 0.0
      %v630 = vmax.f32 %v598, 0.0
      %v631 = vmax.f32 %v599, 0.0
      %v632 = vmax.f32 %v600, 0.0
      %v633 = vmax.f32 %v601, 0.0
      %v634 = vmax.f32 %v602, 0.0
      %v635 = vmax.f32 %v603, 0.0
      %v636 = vmax.f32 %v604, 0.0
      %v637 = vmax.f32 %v605, 0.0
      %v638 = vmax.f32 %v606, 0.0
      %v639 = vmax.f32 %v607, 0.0
      %v640 = vmax.f32 %v608, 0.0
      %v641 = vmax.f32 %v609, 0.0
      %v642 = vmax.f32 %v610, 0.0
      %v643 = vmax.f32 %v611, 0.0
      %v644 = vmax.f32 %v612, 0.0
      %v645 = vmax.f32 %v613, 0.0
      %v646 = vmax.f32 %v614, 0.0
      %v647 = vmax.f32 %v615, 0.0
      %v648 = vmax.f32 %v616, 0.0
      %v649 = vmax.f32 %v617, 0.0
      %v650 = vmax.f32 %v618, 0.0
      %v651 = vmax.f32 %v619, 0.0
      %v652 = vpack.c.bf16 %v621, %v620
      %v653 = vpack.c.bf16 %v623, %v622
      %v654 = vpack.c.bf16 %v625, %v624
      %v655 = vpack.c.bf16 %v627, %v626
      %v656 = vpack.c.bf16 %v629, %v628
      %v657 = vpack.c.bf16 %v631, %v630
      %v658 = vpack.c.bf16 %v633, %v632
      %v659 = vpack.c.bf16 %v635, %v634
      %v660 = vpack.c.bf16 %v637, %v636
      %v661 = vpack.c.bf16 %v639, %v638
      %v662 = vpack.c.bf16 %v641, %v640
      %v663 = vpack.c.bf16 %v643, %v642
      %v664 = vpack.c.bf16 %v645, %v644
      %v665 = vpack.c.bf16 %v647, %v646
      %v666 = vpack.c.bf16 %v649, %v648
      %v667 = vpack.c.bf16 %v651, %v650
      %v668 = vld [vmem:[%s443] sm:$0xf]
      %v669 = vld [vmem:[%s443 + $0x4] sm:$0xf]
      %v670 = vunpack.c.l.bf16 %v668
      %v671 = vunpack.c.l.bf16 %v669
      %v672 = vmul.f32 %v670, %v476
      %v673 = vmul.f32 %v671, %v476
      %v674 = vadd.f32 %v672, %v485
      %v675 = vadd.f32 %v673, %v485
      %v676 = vmax.f32 %v674, 0.0
      %v677 = vmax.f32 %v675, 0.0
      %v678 = vpack.c.bf16 %v677, %v676
      %vm679 = vcmask 1040384
      %vm680 = vsmask.f32 256
      %vm681 = vmand %vm679, %vm680
      %v682 = vld [vmem:[#allocation2] sm:$0x1]
      %v683 = vsel %vm681, 0, %v682
      %684 = vst [vmem:[#allocation2] sm:$0x1] %v683
      %v685 = vld [vmem:[#allocation2 + $0xc] sm:$0x1]
      %v686 = vsel %vm681, 0, %v685
      %687 = vst [vmem:[#allocation2 + $0xc] sm:$0x1] %v686
      %v688 = vld [vmem:[#allocation2 + $0x18] sm:$0x1]
      %v689 = vsel %vm681, 0, %v688
      %690 = vst [vmem:[#allocation2 + $0x18] sm:$0x1] %v689
      %v691 = vld [vmem:[#allocation2 + $0x24] sm:$0x1]
      %v692 = vsel %vm681, 0, %v691
      %693 = vst [vmem:[#allocation2 + $0x24] sm:$0x1] %v692
      %v694 = vld [vmem:[#allocation2 + $0x30] sm:$0x1]
      %v695 = vsel %vm681, 0, %v694
      %696 = vst [vmem:[#allocation2 + $0x30] sm:$0x1] %v695
      %v697 = vld [vmem:[#allocation2 + $0x3c] sm:$0x1]
      %v698 = vsel %vm681, 0, %v697
      %699 = vst [vmem:[#allocation2 + $0x3c] sm:$0x1] %v698
      %v700 = vld [vmem:[#allocation2 + $0x48] sm:$0x1]
      %v701 = vsel %vm681, 0, %v700
      %702 = vst [vmem:[#allocation2 + $0x48] sm:$0x1] %v701
      %v703 = vld [vmem:[#allocation2 + $0x54] sm:$0x1]
      %v704 = vsel %vm681, 0, %v703
      %705 = vst [vmem:[#allocation2 + $0x54] sm:$0x1] %v704
      %v706 = vld [vmem:[#allocation2 + $0x60] sm:$0x1]
      %v707 = vsel %vm681, 0, %v706
      %708 = vst [vmem:[#allocation2 + $0x60] sm:$0x1] %v707
      %v709 = vld [vmem:[#allocation2 + $0x6c] sm:$0x1]
      %v710 = vsel %vm681, 0, %v709
      %711 = vst [vmem:[#allocation2 + $0x6c] sm:$0x1] %v710
      %v712 = vld [vmem:[#allocation2 + $0x78] sm:$0x1]
      %v713 = vsel %vm681, 0, %v712
      %714 = vst [vmem:[#allocation2 + $0x78] sm:$0x1] %v713
      %v715 = vld [vmem:[#allocation2 + $0x84] sm:$0x1]
      %v716 = vsel %vm681, 0, %v715
      %717 = vst [vmem:[#allocation2 + $0x84] sm:$0x1] %v716
      %v718 = vld [vmem:[#allocation2 + $0x90] sm:$0x1]
      %v719 = vsel %vm681, 0, %v718
      %720 = vst [vmem:[#allocation2 + $0x90] sm:$0x1] %v719
      %v721 = vld [vmem:[#allocation2 + $0x9c] sm:$0x1]
      %v722 = vsel %vm681, 0, %v721
      %723 = vst [vmem:[#allocation2 + $0x9c] sm:$0x1] %v722
      %v724 = vld [vmem:[#allocation2 + $0xa8] sm:$0x1]
      %v725 = vsel %vm681, 0, %v724
      %726 = vst [vmem:[#allocation2 + $0xa8] sm:$0x1] %v725
      %v727 = vld [vmem:[#allocation2 + $0xb4] sm:$0x1]
      %v728 = vsel %vm681, 0, %v727
      %729 = vst [vmem:[#allocation2 + $0xb4] sm:$0x1] %v728
      %v730 = vld [vmem:[#allocation2 + $0xc0] sm:$0x1]
      %v731 = vsel %vm681, 0, %v730
      %732 = vst [vmem:[#allocation2 + $0xc0] sm:$0x1] %v731
      %v733 = vld [vmem:[#allocation2 + $0xcc] sm:$0x1]
      %v734 = vsel %vm681, 0, %v733
      %735 = vst [vmem:[#allocation2 + $0xcc] sm:$0x1] %v734
      %vm736 = vsmask.f32 7938
      %vm737 = vmand %vm679, %vm736
      %v738 = vld [vmem:[#allocation2 + $0x8] sm:$0x1]
      %v739 = vsel %vm737, 0, %v738
      %740 = vst [vmem:[#allocation2 + $0x8] sm:$0x1] %v739
      %v741 = vld [vmem:[#allocation2 + $0x14] sm:$0x1]
      %v742 = vsel %vm737, 0, %v741
      %743 = vst [vmem:[#allocation2 + $0x14] sm:$0x1] %v742
      %v744 = vld [vmem:[#allocation2 + $0x20] sm:$0x1]
      %v745 = vsel %vm737, 0, %v744
      %746 = vst [vmem:[#allocation2 + $0x20] sm:$0x1] %v745
      %v747 = vld [vmem:[#allocation2 + $0x2c] sm:$0x1]
      %v748 = vsel %vm737, 0, %v747
      %749 = vst [vmem:[#allocation2 + $0x2c] sm:$0x1] %v748
      %v750 = vld [vmem:[#allocation2 + $0x38] sm:$0x1]
      %v751 = vsel %vm737, 0, %v750
      %752 = vst [vmem:[#allocation2 + $0x38] sm:$0x1] %v751
      %v753 = vld [vmem:[#allocation2 + $0x44] sm:$0x1]
      %v754 = vsel %vm737, 0, %v753
      %755 = vst [vmem:[#allocation2 + $0x44] sm:$0x1] %v754
      %v756 = vld [vmem:[#allocation2 + $0x50] sm:$0x1]
      %v757 = vsel %vm737, 0, %v756
      %758 = vst [vmem:[#allocation2 + $0x50] sm:$0x1] %v757
      %v759 = vld [vmem:[#allocation2 + $0x5c] sm:$0x1]
      %v760 = vsel %vm737, 0, %v759
      %761 = vst [vmem:[#allocation2 + $0x5c] sm:$0x1] %v760
      %v762 = vld [vmem:[#allocation2 + $0x68] sm:$0x1]
      %v763 = vsel %vm737, 0, %v762
      %764 = vst [vmem:[#allocation2 + $0x68] sm:$0x1] %v763
      %v765 = vld [vmem:[#allocation2 + $0x74] sm:$0x1]
      %v766 = vsel %vm737, 0, %v765
      %767 = vst [vmem:[#allocation2 + $0x74] sm:$0x1] %v766
      %v768 = vld [vmem:[#allocation2 + $0x80] sm:$0x1]
      %v769 = vsel %vm737, 0, %v768
      %770 = vst [vmem:[#allocation2 + $0x80] sm:$0x1] %v769
      %v771 = vld [vmem:[#allocation2 + $0x8c] sm:$0x1]
      %v772 = vsel %vm737, 0, %v771
      %773 = vst [vmem:[#allocation2 + $0x8c] sm:$0x1] %v772
      %v774 = vld [vmem:[#allocation2 + $0x98] sm:$0x1]
      %v775 = vsel %vm737, 0, %v774
      %776 = vst [vmem:[#allocation2 + $0x98] sm:$0x1] %v775
      %v777 = vld [vmem:[#allocation2 + $0xa4] sm:$0x1]
      %v778 = vsel %vm737, 0, %v777
      %779 = vst [vmem:[#allocation2 + $0xa4] sm:$0x1] %v778
      %v780 = vld [vmem:[#allocation2 + $0xb0] sm:$0x1]
      %v781 = vsel %vm737, 0, %v780
      %782 = vst [vmem:[#allocation2 + $0xb0] sm:$0x1] %v781
      %v783 = vld [vmem:[#allocation2 + $0xbc] sm:$0x1]
      %v784 = vsel %vm737, 0, %v783
      %785 = vst [vmem:[#allocation2 + $0xbc] sm:$0x1] %v784
      %v786 = vld [vmem:[#allocation2 + $0xc8] sm:$0x1]
      %v787 = vsel %vm737, 0, %v786
      %788 = vst [vmem:[#allocation2 + $0xc8] sm:$0x1] %v787
      %v789 = vld [vmem:[#allocation2 + $0xd4] sm:$0x1]
      %v790 = vsel %vm737, 0, %v789
      %791 = vst [vmem:[#allocation2 + $0xd4] sm:$0x1] %v790
      %p792 = scmp.eq.s32.totalorder %s24, 0
      %s793 = scalar_select %p792, 1, 0
      %v794 = vstv %s793
      %vm795 = vcmp.eq.s32.totalorder %v794, 1
      %v796 = vsel %vm795, 0, %v491
      %v798 = vunpack.c.l.b16 %v796
      %v799 = vunpack.c.h.b16 %v796
      %v800 = vpack.c.b16 %v798, %v798
      %v801 = vpack.c.b16 %v799, %v799
      %vm802 = vsmask.f32 4368
      %vm803 = vmor %vm680, %vm802
      %v805 = vshrl.u32 %v800, 16
      %v807 = vrot.slane %v805, 7
      %v808 = vshll.u32 %v800, 16
      %v810 = vor.u32 %v807, %v808
      %v811 = vrot.slane %v807, 4
      %v813 = vshrl.u32 %v801, 16
      %v815 = vrot.slane %v813, 7
      %v816 = vshll.u32 %v801, 16
      %v818 = vor.u32 %v815, %v816
      %v819 = vsel %vm803, %v811, %v818
      %v820 = vrot.slane %v815, 4
      %vm824 = vcmask 1043456
      %vm825 = vmand %vm824, %vm736
      %v826 = vld [vmem:[#allocation2] sm:$0xf]
      %v827 = vsel %vm825, %v810, %v826
      %828 = vst [vmem:[#allocation2] sm:$0xf] %v827
      %829 = vst [vmem:[#allocation2 + $0x4] sm:$0xf] %v819
      %v830 = vld [vmem:[#allocation2 + $0x8] sm:$0x1]
      %v831 = vsel %vm681, %v820, %v830
      %832 = vst [vmem:[#allocation2 + $0x8] sm:$0x1] %v831
      %v849 = vunpack.c.l.b16 %v652
      %v850 = vunpack.c.h.b16 %v652
      %v851 = vunpack.c.l.b16 %v653
      %v852 = vunpack.c.h.b16 %v653
      %v853 = vunpack.c.l.b16 %v654
      %v854 = vunpack.c.h.b16 %v654
      %v855 = vunpack.c.l.b16 %v655
      %v856 = vunpack.c.h.b16 %v655
      %v857 = vunpack.c.l.b16 %v656
      %v858 = vunpack.c.h.b16 %v656
      %v859 = vunpack.c.l.b16 %v657
      %v860 = vunpack.c.h.b16 %v657
      %v861 = vunpack.c.l.b16 %v658
      %v862 = vunpack.c.h.b16 %v658
      %v863 = vunpack.c.l.b16 %v659
      %v864 = vunpack.c.h.b16 %v659
      %v865 = vunpack.c.l.b16 %v660
      %v866 = vunpack.c.h.b16 %v660
      %v867 = vunpack.c.l.b16 %v661
      %v868 = vunpack.c.h.b16 %v661
      %v869 = vunpack.c.l.b16 %v662
      %v870 = vunpack.c.h.b16 %v662
      %v871 = vunpack.c.l.b16 %v663
      %v872 = vunpack.c.h.b16 %v663
      %v873 = vunpack.c.l.b16 %v664
      %v874 = vunpack.c.h.b16 %v664
      %v875 = vunpack.c.l.b16 %v665
      %v876 = vunpack.c.h.b16 %v665
      %v877 = vunpack.c.l.b16 %v666
      %v878 = vunpack.c.h.b16 %v666
      %v879 = vunpack.c.l.b16 %v667
      %v880 = vunpack.c.h.b16 %v667
      %v881 = vpack.c.b16 %v849, %v849
      %v882 = vpack.c.b16 %v850, %v850
      %v883 = vpack.c.b16 %v851, %v851
      %v884 = vpack.c.b16 %v852, %v852
      %v885 = vpack.c.b16 %v853, %v853
      %v886 = vpack.c.b16 %v854, %v854
      %v887 = vpack.c.b16 %v855, %v855
      %v888 = vpack.c.b16 %v856, %v856
      %v889 = vpack.c.b16 %v857, %v857
      %v890 = vpack.c.b16 %v858, %v858
      %v891 = vpack.c.b16 %v859, %v859
      %v892 = vpack.c.b16 %v860, %v860
      %v893 = vpack.c.b16 %v861, %v861
      %v894 = vpack.c.b16 %v862, %v862
      %v895 = vpack.c.b16 %v863, %v863
      %v896 = vpack.c.b16 %v864, %v864
      %v897 = vpack.c.b16 %v865, %v865
      %v898 = vpack.c.b16 %v866, %v866
      %v899 = vpack.c.b16 %v867, %v867
      %v900 = vpack.c.b16 %v868, %v868
      %v901 = vpack.c.b16 %v869, %v869
      %v902 = vpack.c.b16 %v870, %v870
      %v903 = vpack.c.b16 %v871, %v871
      %v904 = vpack.c.b16 %v872, %v872
      %v905 = vpack.c.b16 %v873, %v873
      %v906 = vpack.c.b16 %v874, %v874
      %v907 = vpack.c.b16 %v875, %v875
      %v908 = vpack.c.b16 %v876, %v876
      %v909 = vpack.c.b16 %v877, %v877
      %v910 = vpack.c.b16 %v878, %v878
      %v911 = vpack.c.b16 %v879, %v879
      %v912 = vpack.c.b16 %v880, %v880
      %v914 = vshrl.u32 %v881, 16
      %v916 = vrot.slane %v914, 7
      %v917 = vshll.u32 %v881, 16
      %v919 = vor.u32 %v916, %v917
      %v920 = vrot.slane %v916, 4
      %v922 = vshrl.u32 %v882, 16
      %v924 = vrot.slane %v922, 7
      %v925 = vshll.u32 %v882, 16
      %v927 = vor.u32 %v924, %v925
      %v928 = vsel %vm803, %v920, %v927
      %v929 = vrot.slane %v924, 4
      %v931 = vshrl.u32 %v883, 16
      %v933 = vrot.slane %v931, 7
      %v934 = vshll.u32 %v883, 16
      %v936 = vor.u32 %v933, %v934
      %v937 = vrot.slane %v933, 4
      %v939 = vshrl.u32 %v884, 16
      %v941 = vrot.slane %v939, 7
      %v942 = vshll.u32 %v884, 16
      %v944 = vor.u32 %v941, %v942
      %v945 = vsel %vm803, %v937, %v944
      %v946 = vrot.slane %v941, 4
      %v948 = vshrl.u32 %v885, 16
      %v950 = vrot.slane %v948, 7
      %v951 = vshll.u32 %v885, 16
      %v953 = vor.u32 %v950, %v951
      %v954 = vrot.slane %v950, 4
      %v956 = vshrl.u32 %v886, 16
      %v958 = vrot.slane %v956, 7
      %v959 = vshll.u32 %v886, 16
      %v961 = vor.u32 %v958, %v959
      %v962 = vsel %vm803, %v954, %v961
      %v963 = vrot.slane %v958, 4
      %v965 = vshrl.u32 %v887, 16
      %v967 = vrot.slane %v965, 7
      %v968 = vshll.u32 %v887, 16
      %v970 = vor.u32 %v967, %v968
      %v971 = vrot.slane %v967, 4
      %v973 = vshrl.u32 %v888, 16
      %v975 = vrot.slane %v973, 7
      %v976 = vshll.u32 %v888, 16
      %v978 = vor.u32 %v975, %v976
      %v979 = vsel %vm803, %v971, %v978
      %v980 = vrot.slane %v975, 4
      %v982 = vshrl.u32 %v889, 16
      %v984 = vrot.slane %v982, 7
      %v985 = vshll.u32 %v889, 16
      %v987 = vor.u32 %v984, %v985
      %v988 = vrot.slane %v984, 4
      %v990 = vshrl.u32 %v890, 16
      %v992 = vrot.slane %v990, 7
      %v993 = vshll.u32 %v890, 16
      %v995 = vor.u32 %v992, %v993
      %v996 = vsel %vm803, %v988, %v995
      %v997 = vrot.slane %v992, 4
      %v999 = vshrl.u32 %v891, 16
      %v1001 = vrot.slane %v999, 7
      %v1002 = vshll.u32 %v891, 16
      %v1004 = vor.u32 %v1001, %v1002
      %v1005 = vrot.slane %v1001, 4
      %v1007 = vshrl.u32 %v892, 16
      %v1009 = vrot.slane %v1007, 7
      %v1010 = vshll.u32 %v892, 16
      %v1012 = vor.u32 %v1009, %v1010
      %v1013 = vsel %vm803, %v1005, %v1012
      %v1014 = vrot.slane %v1009, 4
      %v1016 = vshrl.u32 %v893, 16
      %v1018 = vrot.slane %v1016, 7
      %v1019 = vshll.u32 %v893, 16
      %v1021 = vor.u32 %v1018, %v1019
      %v1022 = vrot.slane %v1018, 4
      %v1024 = vshrl.u32 %v894, 16
      %v1026 = vrot.slane %v1024, 7
      %v1027 = vshll.u32 %v894, 16
      %v1029 = vor.u32 %v1026, %v1027
      %v1030 = vsel %vm803, %v1022, %v1029
      %v1031 = vrot.slane %v1026, 4
      %v1033 = vshrl.u32 %v895, 16
      %v1035 = vrot.slane %v1033, 7
      %v1036 = vshll.u32 %v895, 16
      %v1038 = vor.u32 %v1035, %v1036
      %v1039 = vrot.slane %v1035, 4
      %v1041 = vshrl.u32 %v896, 16
      %v1043 = vrot.slane %v1041, 7
      %v1044 = vshll.u32 %v896, 16
      %v1046 = vor.u32 %v1043, %v1044
      %v1047 = vsel %vm803, %v1039, %v1046
      %v1048 = vrot.slane %v1043, 4
      %v1050 = vshrl.u32 %v897, 16
      %v1052 = vrot.slane %v1050, 7
      %v1053 = vshll.u32 %v897, 16
      %v1055 = vor.u32 %v1052, %v1053
      %v1056 = vrot.slane %v1052, 4
      %v1058 = vshrl.u32 %v898, 16
      %v1060 = vrot.slane %v1058, 7
      %v1061 = vshll.u32 %v898, 16
      %v1063 = vor.u32 %v1060, %v1061
      %v1064 = vsel %vm803, %v1056, %v1063
      %v1065 = vrot.slane %v1060, 4
      %v1067 = vshrl.u32 %v899, 16
      %v1069 = vrot.slane %v1067, 7
      %v1070 = vshll.u32 %v899, 16
      %v1072 = vor.u32 %v1069, %v1070
      %v1073 = vrot.slane %v1069, 4
      %v1075 = vshrl.u32 %v900, 16
      %v1077 = vrot.slane %v1075, 7
      %v1078 = vshll.u32 %v900, 16
      %v1080 = vor.u32 %v1077, %v1078
      %v1081 = vsel %vm803, %v1073, %v1080
      %v1082 = vrot.slane %v1077, 4
      %v1084 = vshrl.u32 %v901, 16
      %v1086 = vrot.slane %v1084, 7
      %v1087 = vshll.u32 %v901, 16
      %v1089 = vor.u32 %v1086, %v1087
      %v1090 = vrot.slane %v1086, 4
      %v1092 = vshrl.u32 %v902, 16
      %v1094 = vrot.slane %v1092, 7
      %v1095 = vshll.u32 %v902, 16
      %v1097 = vor.u32 %v1094, %v1095
      %v1098 = vsel %vm803, %v1090, %v1097
      %v1099 = vrot.slane %v1094, 4
      %v1101 = vshrl.u32 %v903, 16
      %v1103 = vrot.slane %v1101, 7
      %v1104 = vshll.u32 %v903, 16
      %v1106 = vor.u32 %v1103, %v1104
      %v1107 = vrot.slane %v1103, 4
      %v1109 = vshrl.u32 %v904, 16
      %v1111 = vrot.slane %v1109, 7
      %v1112 = vshll.u32 %v904, 16
      %v1114 = vor.u32 %v1111, %v1112
      %v1115 = vsel %vm803, %v1107, %v1114
      %v1116 = vrot.slane %v1111, 4
      %v1118 = vshrl.u32 %v905, 16
      %v1120 = vrot.slane %v1118, 7
      %v1121 = vshll.u32 %v905, 16
      %v1123 = vor.u32 %v1120, %v1121
      %v1124 = vrot.slane %v1120, 4
      %v1126 = vshrl.u32 %v906, 16
      %v1128 = vrot.slane %v1126, 7
      %v1129 = vshll.u32 %v906, 16
      %v1131 = vor.u32 %v1128, %v1129
      %v1132 = vsel %vm803, %v1124, %v1131
      %v1133 = vrot.slane %v1128, 4
      %v1135 = vshrl.u32 %v907, 16
      %v1137 = vrot.slane %v1135, 7
      %v1138 = vshll.u32 %v907, 16
      %v1140 = vor.u32 %v1137, %v1138
      %v1141 = vrot.slane %v1137, 4
      %v1143 = vshrl.u32 %v908, 16
      %v1145 = vrot.slane %v1143, 7
      %v1146 = vshll.u32 %v908, 16
      %v1148 = vor.u32 %v1145, %v1146
      %v1149 = vsel %vm803, %v1141, %v1148
      %v1150 = vrot.slane %v1145, 4
      %v1152 = vshrl.u32 %v909, 16
      %v1154 = vrot.slane %v1152, 7
      %v1155 = vshll.u32 %v909, 16
      %v1157 = vor.u32 %v1154, %v1155
      %v1158 = vrot.slane %v1154, 4
      %v1160 = vshrl.u32 %v910, 16
      %v1162 = vrot.slane %v1160, 7
      %v1163 = vshll.u32 %v910, 16
      %v1165 = vor.u32 %v1162, %v1163
      %v1166 = vsel %vm803, %v1158, %v1165
      %v1167 = vrot.slane %v1162, 4
      %v1169 = vshrl.u32 %v911, 16
      %v1171 = vrot.slane %v1169, 7
      %v1172 = vshll.u32 %v911, 16
      %v1174 = vor.u32 %v1171, %v1172
      %v1175 = vrot.slane %v1171, 4
      %v1177 = vshrl.u32 %v912, 16
      %v1179 = vrot.slane %v1177, 7
      %v1180 = vshll.u32 %v912, 16
      %v1182 = vor.u32 %v1179, %v1180
      %v1183 = vsel %vm803, %v1175, %v1182
      %v1184 = vrot.slane %v1179, 4
      %s1233 = scalar_lea.vmem [#allocation2], 12
      %v1234 = vld [vmem:[%s1233] sm:$0xf]
      %v1235 = vsel %vm825, %v919, %v1234
      %1236 = vst [vmem:[%s1233] sm:$0xf] %v1235
      %1237 = vst [vmem:[%s1233 + $0x4] sm:$0xf] %v928
      %v1238 = vld [vmem:[%s1233 + $0x8] sm:$0x1]
      %v1239 = vsel %vm681, %v929, %v1238
      %1240 = vst [vmem:[%s1233 + $0x8] sm:$0x1] %v1239
      %v1241 = vld [vmem:[%s1233 + $0xc] sm:$0xf]
      %v1242 = vsel %vm825, %v936, %v1241
      %1243 = vst [vmem:[%s1233 + $0xc] sm:$0xf] %v1242
      %1244 = vst [vmem:[%s1233 + $0x10] sm:$0xf] %v945
      %v1245 = vld [vmem:[%s1233 + $0x14] sm:$0x1]
      %v1246 = vsel %vm681, %v946, %v1245
      %1247 = vst [vmem:[%s1233 + $0x14] sm:$0x1] %v1246
      %v1248 = vld [vmem:[%s1233 + $0x18] sm:$0xf]
      %v1249 = vsel %vm825, %v953, %v1248
      %1250 = vst [vmem:[%s1233 + $0x18] sm:$0xf] %v1249
      %1251 = vst [vmem:[%s1233 + $0x1c] sm:$0xf] %v962
      %v1252 = vld [vmem:[%s1233 + $0x20] sm:$0x1]
      %v1253 = vsel %vm681, %v963, %v1252
      %1254 = vst [vmem:[%s1233 + $0x20] sm:$0x1] %v1253
      %v1255 = vld [vmem:[%s1233 + $0x24] sm:$0xf]
      %v1256 = vsel %vm825, %v970, %v1255
      %1257 = vst [vmem:[%s1233 + $0x24] sm:$0xf] %v1256
      %1258 = vst [vmem:[%s1233 + $0x28] sm:$0xf] %v979
      %v1259 = vld [vmem:[%s1233 + $0x2c] sm:$0x1]
      %v1260 = vsel %vm681, %v980, %v1259
      %1261 = vst [vmem:[%s1233 + $0x2c] sm:$0x1] %v1260
      %v1262 = vld [vmem:[%s1233 + $0x30] sm:$0xf]
      %v1263 = vsel %vm825, %v987, %v1262
      %1264 = vst [vmem:[%s1233 + $0x30] sm:$0xf] %v1263
      %1265 = vst [vmem:[%s1233 + $0x34] sm:$0xf] %v996
      %v1266 = vld [vmem:[%s1233 + $0x38] sm:$0x1]
      %v1267 = vsel %vm681, %v997, %v1266
      %1268 = vst [vmem:[%s1233 + $0x38] sm:$0x1] %v1267
      %v1269 = vld [vmem:[%s1233 + $0x3c] sm:$0xf]
      %v1270 = vsel %vm825, %v1004, %v1269
      %1271 = vst [vmem:[%s1233 + $0x3c] sm:$0xf] %v1270
      %1272 = vst [vmem:[%s1233 + $0x40] sm:$0xf] %v1013
      %v1273 = vld [vmem:[%s1233 + $0x44] sm:$0x1]
      %v1274 = vsel %vm681, %v1014, %v1273
      %1275 = vst [vmem:[%s1233 + $0x44] sm:$0x1] %v1274
      %v1276 = vld [vmem:[%s1233 + $0x48] sm:$0xf]
      %v1277 = vsel %vm825, %v1021, %v1276
      %1278 = vst [vmem:[%s1233 + $0x48] sm:$0xf] %v1277
      %1279 = vst [vmem:[%s1233 + $0x4c] sm:$0xf] %v1030
      %v1280 = vld [vmem:[%s1233 + $0x50] sm:$0x1]
      %v1281 = vsel %vm681, %v1031, %v1280
      %1282 = vst [vmem:[%s1233 + $0x50] sm:$0x1] %v1281
      %v1283 = vld [vmem:[%s1233 + $0x54] sm:$0xf]
      %v1284 = vsel %vm825, %v1038, %v1283
      %1285 = vst [vmem:[%s1233 + $0x54] sm:$0xf] %v1284
      %1286 = vst [vmem:[%s1233 + $0x58] sm:$0xf] %v1047
      %v1287 = vld [vmem:[%s1233 + $0x5c] sm:$0x1]
      %v1288 = vsel %vm681, %v1048, %v1287
      %1289 = vst [vmem:[%s1233 + $0x5c] sm:$0x1] %v1288
      %v1290 = vld [vmem:[%s1233 + $0x60] sm:$0xf]
      %v1291 = vsel %vm825, %v1055, %v1290
      %1292 = vst [vmem:[%s1233 + $0x60] sm:$0xf] %v1291
      %1293 = vst [vmem:[%s1233 + $0x64] sm:$0xf] %v1064
      %v1294 = vld [vmem:[%s1233 + $0x68] sm:$0x1]
      %v1295 = vsel %vm681, %v1065, %v1294
      %1296 = vst [vmem:[%s1233 + $0x68] sm:$0x1] %v1295
      %v1297 = vld [vmem:[%s1233 + $0x6c] sm:$0xf]
      %v1298 = vsel %vm825, %v1072, %v1297
      %1299 = vst [vmem:[%s1233 + $0x6c] sm:$0xf] %v1298
      %1300 = vst [vmem:[%s1233 + $0x70] sm:$0xf] %v1081
      %v1301 = vld [vmem:[%s1233 + $0x74] sm:$0x1]
      %v1302 = vsel %vm681, %v1082, %v1301
      %1303 = vst [vmem:[%s1233 + $0x74] sm:$0x1] %v1302
      %v1304 = vld [vmem:[%s1233 + $0x78] sm:$0xf]
      %v1305 = vsel %vm825, %v1089, %v1304
      %1306 = vst [vmem:[%s1233 + $0x78] sm:$0xf] %v1305
      %1307 = vst [vmem:[%s1233 + $0x7c] sm:$0xf] %v1098
      %v1308 = vld [vmem:[%s1233 + $0x80] sm:$0x1]
      %v1309 = vsel %vm681, %v1099, %v1308
      %1310 = vst [vmem:[%s1233 + $0x80] sm:$0x1] %v1309
      %v1311 = vld [vmem:[%s1233 + $0x84] sm:$0xf]
      %v1312 = vsel %vm825, %v1106, %v1311
      %1313 = vst [vmem:[%s1233 + $0x84] sm:$0xf] %v1312
      %1314 = vst [vmem:[%s1233 + $0x88] sm:$0xf] %v1115
      %v1315 = vld [vmem:[%s1233 + $0x8c] sm:$0x1]
      %v1316 = vsel %vm681, %v1116, %v1315
      %1317 = vst [vmem:[%s1233 + $0x8c] sm:$0x1] %v1316
      %v1318 = vld [vmem:[%s1233 + $0x90] sm:$0xf]
      %v1319 = vsel %vm825, %v1123, %v1318
      %1320 = vst [vmem:[%s1233 + $0x90] sm:$0xf] %v1319
      %1321 = vst [vmem:[%s1233 + $0x94] sm:$0xf] %v1132
      %v1322 = vld [vmem:[%s1233 + $0x98] sm:$0x1]
      %v1323 = vsel %vm681, %v1133, %v1322
      %1324 = vst [vmem:[%s1233 + $0x98] sm:$0x1] %v1323
      %v1325 = vld [vmem:[%s1233 + $0x9c] sm:$0xf]
      %v1326 = vsel %vm825, %v1140, %v1325
      %1327 = vst [vmem:[%s1233 + $0x9c] sm:$0xf] %v1326
      %1328 = vst [vmem:[%s1233 + $0xa0] sm:$0xf] %v1149
      %v1329 = vld [vmem:[%s1233 + $0xa4] sm:$0x1]
      %v1330 = vsel %vm681, %v1150, %v1329
      %1331 = vst [vmem:[%s1233 + $0xa4] sm:$0x1] %v1330
      %v1332 = vld [vmem:[%s1233 + $0xa8] sm:$0xf]
      %v1333 = vsel %vm825, %v1157, %v1332
      %1334 = vst [vmem:[%s1233 + $0xa8] sm:$0xf] %v1333
      %1335 = vst [vmem:[%s1233 + $0xac] sm:$0xf] %v1166
      %v1336 = vld [vmem:[%s1233 + $0xb0] sm:$0x1]
      %v1337 = vsel %vm681, %v1167, %v1336
      %1338 = vst [vmem:[%s1233 + $0xb0] sm:$0x1] %v1337
      %v1339 = vld [vmem:[%s1233 + $0xb4] sm:$0xf]
      %v1340 = vsel %vm825, %v1174, %v1339
      %1341 = vst [vmem:[%s1233 + $0xb4] sm:$0xf] %v1340
      %1342 = vst [vmem:[%s1233 + $0xb8] sm:$0xf] %v1183
      %v1343 = vld [vmem:[%s1233 + $0xbc] sm:$0x1]
      %v1344 = vsel %vm681, %v1184, %v1343
      %1345 = vst [vmem:[%s1233 + $0xbc] sm:$0x1] %v1344
      %v1346 = vsel %vm795, 0, %v678
      %v1348 = vunpack.c.l.b16 %v1346
      %v1349 = vunpack.c.h.b16 %v1346
      %v1350 = vpack.c.b16 %v1348, %v1348
      %v1351 = vpack.c.b16 %v1349, %v1349
      %v1353 = vshrl.u32 %v1350, 16
      %v1355 = vrot.slane %v1353, 7
      %v1356 = vshll.u32 %v1350, 16
      %v1358 = vor.u32 %v1355, %v1356
      %v1359 = vrot.slane %v1355, 4
      %v1361 = vshrl.u32 %v1351, 16
      %v1363 = vrot.slane %v1361, 7
      %v1364 = vshll.u32 %v1351, 16
      %v1366 = vor.u32 %v1363, %v1364
      %v1367 = vsel %vm803, %v1359, %v1366
      %v1368 = vrot.slane %v1363, 4
      %s1372 = scalar_lea.vmem [#allocation2], 204
      %v1373 = vld [vmem:[%s1372] sm:$0xf]
      %v1374 = vsel %vm825, %v1358, %v1373
      %1375 = vst [vmem:[%s1372] sm:$0xf] %v1374
      %1376 = vst [vmem:[%s1372 + $0x4] sm:$0xf] %v1367
      %v1377 = vld [vmem:[%s1372 + $0x8] sm:$0x1]
      %v1378 = vsel %vm681, %v1368, %v1377
      %1379 = vst [vmem:[%s1372 + $0x8] sm:$0x1] %v1378
      %v1380 = vld [vmem:[#allocation2] sm:$0xf]
      %v1381 = vld [vmem:[#allocation2 + $0x4] sm:$0xf]
      %v1382 = vld [vmem:[#allocation2 + $0xc] sm:$0xf]
      %v1383 = vld [vmem:[#allocation2 + $0x10] sm:$0xf]
      %v1384 = vld [vmem:[#allocation2 + $0x18] sm:$0xf]
      %v1385 = vld [vmem:[#allocation2 + $0x1c] sm:$0xf]
      %v1386 = vld [vmem:[#allocation2 + $0x24] sm:$0xf]
      %v1387 = vld [vmem:[#allocation2 + $0x28] sm:$0xf]
      %v1388 = vld [vmem:[#allocation2 + $0x30] sm:$0xf]
      %v1389 = vld [vmem:[#allocation2 + $0x34] sm:$0xf]
      %v1390 = vld [vmem:[#allocation2 + $0x3c] sm:$0xf]
      %v1391 = vld [vmem:[#allocation2 + $0x40] sm:$0xf]
      %v1392 = vld [vmem:[#allocation2 + $0x48] sm:$0xf]
      %v1393 = vld [vmem:[#allocation2 + $0x4c] sm:$0xf]
      %v1394 = vld [vmem:[#allocation2 + $0x54] sm:$0xf]
      %v1395 = vld [vmem:[#allocation2 + $0x58] sm:$0xf]
      %v1396 = vld [vmem:[#allocation2 + $0x60] sm:$0xf]
      %v1397 = vld [vmem:[#allocation2 + $0x64] sm:$0xf]
      %v1398 = vld [vmem:[#allocation2 + $0x6c] sm:$0xf]
      %v1399 = vld [vmem:[#allocation2 + $0x70] sm:$0xf]
      %v1400 = vld [vmem:[#allocation2 + $0x78] sm:$0xf]
      %v1401 = vld [vmem:[#allocation2 + $0x7c] sm:$0xf]
      %v1402 = vld [vmem:[#allocation2 + $0x84] sm:$0xf]
      %v1403 = vld [vmem:[#allocation2 + $0x88] sm:$0xf]
      %v1404 = vld [vmem:[#allocation2 + $0x90] sm:$0xf]
      %v1405 = vld [vmem:[#allocation2 + $0x94] sm:$0xf]
      %v1406 = vld [vmem:[#allocation2 + $0x9c] sm:$0xf]
      %v1407 = vld [vmem:[#allocation2 + $0xa0] sm:$0xf]
      %v1408 = vld [vmem:[#allocation2 + $0xa8] sm:$0xf]
      %v1409 = vld [vmem:[#allocation2 + $0xac] sm:$0xf]
      %v1410 = vld [vmem:[#allocation2 + $0xb4] sm:$0xf]
      %v1411 = vld [vmem:[#allocation2 + $0xb8] sm:$0xf]
      %1412 = vst [vmem:[#allocation3] sm:$0xf] %v1380
      %1413 = vst [vmem:[#allocation3 + $0x24] sm:$0xf] %v1381
      %1414 = vst [vmem:[#allocation3 + $0x48] sm:$0xf] %v1382
      %1415 = vst [vmem:[#allocation3 + $0x6c] sm:$0xf] %v1383
      %1416 = vst [vmem:[#allocation3 + $0x90] sm:$0xf] %v1384
      %1417 = vst [vmem:[#allocation3 + $0xb4] sm:$0xf] %v1385
      %1418 = vst [vmem:[#allocation3 + $0xd8] sm:$0xf] %v1386
      %1419 = vst [vmem:[#allocation3 + $0xfc] sm:$0xf] %v1387
      %1420 = vst [vmem:[#allocation3 + $0x120] sm:$0xf] %v1388
      %1421 = vst [vmem:[#allocation3 + $0x144] sm:$0xf] %v1389
      %1422 = vst [vmem:[#allocation3 + $0x168] sm:$0xf] %v1390
      %1423 = vst [vmem:[#allocation3 + $0x18c] sm:$0xf] %v1391
      %1424 = vst [vmem:[#allocation3 + $0x1b0] sm:$0xf] %v1392
      %1425 = vst [vmem:[#allocation3 + $0x1d4] sm:$0xf] %v1393
      %1426 = vst [vmem:[#allocation3 + $0x1f8] sm:$0xf] %v1394
      %1427 = vst [vmem:[#allocation3 + $0x21c] sm:$0xf] %v1395
      %1428 = vst [vmem:[#allocation3 + $0x240] sm:$0xf] %v1396
      %1429 = vst [vmem:[#allocation3 + $0x264] sm:$0xf] %v1397
      %1430 = vst [vmem:[#allocation3 + $0x288] sm:$0xf] %v1398
      %1431 = vst [vmem:[#allocation3 + $0x2ac] sm:$0xf] %v1399
      %1432 = vst [vmem:[#allocation3 + $0x2d0] sm:$0xf] %v1400
      %1433 = vst [vmem:[#allocation3 + $0x2f4] sm:$0xf] %v1401
      %1434 = vst [vmem:[#allocation3 + $0x318] sm:$0xf] %v1402
      %1435 = vst [vmem:[#allocation3 + $0x33c] sm:$0xf] %v1403
      %1436 = vst [vmem:[#allocation3 + $0x360] sm:$0xf] %v1404
      %1437 = vst [vmem:[#allocation3 + $0x384] sm:$0xf] %v1405
      %1438 = vst [vmem:[#allocation3 + $0x3a8] sm:$0xf] %v1406
      %1439 = vst [vmem:[#allocation3 + $0x3cc] sm:$0xf] %v1407
      %1440 = vst [vmem:[#allocation3 + $0x3f0] sm:$0xf] %v1408
      %1441 = vst [vmem:[#allocation3 + $0x414] sm:$0xf] %v1409
      %1442 = vst [vmem:[#allocation3 + $0x438] sm:$0xf] %v1410
      %1443 = vst [vmem:[#allocation3 + $0x45c] sm:$0xf] %v1411
      %v1444 = vld [vmem:[#allocation2] sm:$0xf]
      %v1445 = vld [vmem:[#allocation2 + $0x4] sm:$0xf]
      %v1446 = vld [vmem:[#allocation2 + $0x8] sm:$0x1]
      %v1447 = vld [vmem:[#allocation2 + $0xc] sm:$0xf]
      %v1448 = vld [vmem:[#allocation2 + $0x10] sm:$0xf]
      %v1449 = vld [vmem:[#allocation2 + $0x14] sm:$0x1]
      %v1450 = vld [vmem:[#allocation2 + $0x18] sm:$0xf]
      %v1451 = vld [vmem:[#allocation2 + $0x1c] sm:$0xf]
      %v1452 = vld [vmem:[#allocation2 + $0x20] sm:$0x1]
      %v1453 = vld [vmem:[#allocation2 + $0x24] sm:$0xf]
      %v1454 = vld [vmem:[#allocation2 + $0x28] sm:$0xf]
      %v1455 = vld [vmem:[#allocation2 + $0x2c] sm:$0x1]
      %v1456 = vld [vmem:[#allocation2 + $0x30] sm:$0xf]
      %v1457 = vld [vmem:[#allocation2 + $0x34] sm:$0xf]
      %v1458 = vld [vmem:[#allocation2 + $0x38] sm:$0x1]
      %v1459 = vld [vmem:[#allocation2 + $0x3c] sm:$0xf]
      %v1460 = vld [vmem:[#allocation2 + $0x40] sm:$0xf]
      %v1461 = vld [vmem:[#allocation2 + $0x44] sm:$0x1]
      %v1462 = vld [vmem:[#allocation2 + $0x48] sm:$0xf]
      %v1463 = vld [vmem:[#allocation2 + $0x4c] sm:$0xf]
      %v1464 = vld [vmem:[#allocation2 + $0x50] sm:$0x1]
      %v1465 = vld [vmem:[#allocation2 + $0x54] sm:$0xf]
      %v1466 = vld [vmem:[#allocation2 + $0x58] sm:$0xf]
      %v1467 = vld [vmem:[#allocation2 + $0x5c] sm:$0x1]
      %v1468 = vld [vmem:[#allocation2 + $0x60] sm:$0xf]
      %v1469 = vld [vmem:[#allocation2 + $0x64] sm:$0xf]
      %v1470 = vld [vmem:[#allocation2 + $0x68] sm:$0x1]
      %v1471 = vld [vmem:[#allocation2 + $0x6c] sm:$0xf]
      %v1472 = vld [vmem:[#allocation2 + $0x70] sm:$0xf]
      %v1473 = vld [vmem:[#allocation2 + $0x74] sm:$0x1]
      %v1474 = vld [vmem:[#allocation2 + $0x78] sm:$0xf]
      %v1475 = vld [vmem:[#allocation2 + $0x7c] sm:$0xf]
      %v1476 = vld [vmem:[#allocation2 + $0x80] sm:$0x1]
      %v1477 = vld [vmem:[#allocation2 + $0x84] sm:$0xf]
      %v1478 = vld [vmem:[#allocation2 + $0x88] sm:$0xf]
      %v1479 = vld [vmem:[#allocation2 + $0x8c] sm:$0x1]
      %v1480 = vld [vmem:[#allocation2 + $0x90] sm:$0xf]
      %v1481 = vld [vmem:[#allocation2 + $0x94] sm:$0xf]
      %v1482 = vld [vmem:[#allocation2 + $0x98] sm:$0x1]
      %v1483 = vld [vmem:[#allocation2 + $0x9c] sm:$0xf]
      %v1484 = vld [vmem:[#allocation2 + $0xa0] sm:$0xf]
      %v1485 = vld [vmem:[#allocation2 + $0xa4] sm:$0x1]
      %v1486 = vld [vmem:[#allocation2 + $0xa8] sm:$0xf]
      %v1487 = vld [vmem:[#allocation2 + $0xac] sm:$0xf]
      %v1488 = vld [vmem:[#allocation2 + $0xb0] sm:$0x1]
      %v1489 = vld [vmem:[#allocation2 + $0xb4] sm:$0xf]
      %v1490 = vld [vmem:[#allocation2 + $0xb8] sm:$0xf]
      %v1491 = vld [vmem:[#allocation2 + $0xbc] sm:$0x1]
      %vm1492 = vsmask.f32 3328
      %vm1493 = vsmask.f32 7440
      %vm1494 = vmor %vm1492, %vm1493
      %v1496 = vshrl.u32 %v1444, 16
      %v1498 = vrot.slane %v1496, 4
      %v1499 = vshll.u32 %v1444, 16
      %v1501 = vrot.slane %v1499, 5
      %v1502 = vor.u32 %v1498, %v1501
      %v1503 = vrot.slane %v1502, 4
      %v1505 = vshll.u32 %v1445, 16
      %v1507 = vrot.slane %v1505, 5
      %v1508 = vsel %vm1494, %v1503, %v1507
      %v1509 = vshrl.u32 %v1445, 16
      %v1511 = vrot.slane %v1509, 4
      %v1512 = vor.u32 %v1511, %v1507
      %v1513 = vrot.slane %v1512, 4
      %v1515 = vshll.u32 %v1446, 16
      %v1517 = vrot.slane %v1515, 5
      %v1518 = vsel %vm1494, %v1513, %v1517
      %v1520 = vshrl.u32 %v1447, 16
      %v1522 = vrot.slane %v1520, 4
      %v1523 = vshll.u32 %v1447, 16
      %v1525 = vrot.slane %v1523, 5
      %v1526 = vor.u32 %v1522, %v1525
      %v1527 = vrot.slane %v1526, 4
      %v1529 = vshll.u32 %v1448, 16
      %v1531 = vrot.slane %v1529, 5
      %v1532 = vsel %vm1494, %v1527, %v1531
      %v1533 = vshrl.u32 %v1448, 16
      %v1535 = vrot.slane %v1533, 4
      %v1536 = vor.u32 %v1535, %v1531
      %v1537 = vrot.slane %v1536, 4
      %v1539 = vshll.u32 %v1449, 16
      %v1541 = vrot.slane %v1539, 5
      %v1542 = vsel %vm1494, %v1537, %v1541
      %v1544 = vshrl.u32 %v1450, 16
      %v1546 = vrot.slane %v1544, 4
      %v1547 = vshll.u32 %v1450, 16
      %v1549 = vrot.slane %v1547, 5
      %v1550 = vor.u32 %v1546, %v1549
      %v1551 = vrot.slane %v1550, 4
      %v1553 = vshll.u32 %v1451, 16
      %v1555 = vrot.slane %v1553, 5
      %v1556 = vsel %vm1494, %v1551, %v1555
      %v1557 = vshrl.u32 %v1451, 16
      %v1559 = vrot.slane %v1557, 4
      %v1560 = vor.u32 %v1559, %v1555
      %v1561 = vrot.slane %v1560, 4
      %v1563 = vshll.u32 %v1452, 16
      %v1565 = vrot.slane %v1563, 5
      %v1566 = vsel %vm1494, %v1561, %v1565
      %v1568 = vshrl.u32 %v1453, 16
      %v1570 = vrot.slane %v1568, 4
      %v1571 = vshll.u32 %v1453, 16
      %v1573 = vrot.slane %v1571, 5
      %v1574 = vor.u32 %v1570, %v1573
      %v1575 = vrot.slane %v1574, 4
      %v1577 = vshll.u32 %v1454, 16
      %v1579 = vrot.slane %v1577, 5
      %v1580 = vsel %vm1494, %v1575, %v1579
      %v1581 = vshrl.u32 %v1454, 16
      %v1583 = vrot.slane %v1581, 4
      %v1584 = vor.u32 %v1583, %v1579
      %v1585 = vrot.slane %v1584, 4
      %v1587 = vshll.u32 %v1455, 16
      %v1589 = vrot.slane %v1587, 5
      %v1590 = vsel %vm1494, %v1585, %v1589
      %v1592 = vshrl.u32 %v1456, 16
      %v1594 = vrot.slane %v1592, 4
      %v1595 = vshll.u32 %v1456, 16
      %v1597 = vrot.slane %v1595, 5
      %v1598 = vor.u32 %v1594, %v1597
      %v1599 = vrot.slane %v1598, 4
      %v1601 = vshll.u32 %v1457, 16
      %v1603 = vrot.slane %v1601, 5
      %v1604 = vsel %vm1494, %v1599, %v1603
      %v1605 = vshrl.u32 %v1457, 16
      %v1607 = vrot.slane %v1605, 4
      %v1608 = vor.u32 %v1607, %v1603
      %v1609 = vrot.slane %v1608, 4
      %v1611 = vshll.u32 %v1458, 16
      %v1613 = vrot.slane %v1611, 5
      %v1614 = vsel %vm1494, %v1609, %v1613
      %v1616 = vshrl.u32 %v1459, 16
      %v1618 = vrot.slane %v1616, 4
      %v1619 = vshll.u32 %v1459, 16
      %v1621 = vrot.slane %v1619, 5
      %v1622 = vor.u32 %v1618, %v1621
      %v1623 = vrot.slane %v1622, 4
      %v1625 = vshll.u32 %v1460, 16
      %v1627 = vrot.slane %v1625, 5
      %v1628 = vsel %vm1494, %v1623, %v1627
      %v1629 = vshrl.u32 %v1460, 16
      %v1631 = vrot.slane %v1629, 4
      %v1632 = vor.u32 %v1631, %v1627
      %v1633 = vrot.slane %v1632, 4
      %v1635 = vshll.u32 %v1461, 16
      %v1637 = vrot.slane %v1635, 5
      %v1638 = vsel %vm1494, %v1633, %v1637
      %v1640 = vshrl.u32 %v1462, 16
      %v1642 = vrot.slane %v1640, 4
      %v1643 = vshll.u32 %v1462, 16
      %v1645 = vrot.slane %v1643, 5
      %v1646 = vor.u32 %v1642, %v1645
      %v1647 = vrot.slane %v1646, 4
      %v1649 = vshll.u32 %v1463, 16
      %v1651 = vrot.slane %v1649, 5
      %v1652 = vsel %vm1494, %v1647, %v1651
      %v1653 = vshrl.u32 %v1463, 16
      %v1655 = vrot.slane %v1653, 4
      %v1656 = vor.u32 %v1655, %v1651
      %v1657 = vrot.slane %v1656, 4
      %v1659 = vshll.u32 %v1464, 16
      %v1661 = vrot.slane %v1659, 5
      %v1662 = vsel %vm1494, %v1657, %v1661
      %v1664 = vshrl.u32 %v1465, 16
      %v1666 = vrot.slane %v1664, 4
      %v1667 = vshll.u32 %v1465, 16
      %v1669 = vrot.slane %v1667, 5
      %v1670 = vor.u32 %v1666, %v1669
      %v1671 = vrot.slane %v1670, 4
      %v1673 = vshll.u32 %v1466, 16
      %v1675 = vrot.slane %v1673, 5
      %v1676 = vsel %vm1494, %v1671, %v1675
      %v1677 = vshrl.u32 %v1466, 16
      %v1679 = vrot.slane %v1677, 4
      %v1680 = vor.u32 %v1679, %v1675
      %v1681 = vrot.slane %v1680, 4
      %v1683 = vshll.u32 %v1467, 16
      %v1685 = vrot.slane %v1683, 5
      %v1686 = vsel %vm1494, %v1681, %v1685
      %v1688 = vshrl.u32 %v1468, 16
      %v1690 = vrot.slane %v1688, 4
      %v1691 = vshll.u32 %v1468, 16
      %v1693 = vrot.slane %v1691, 5
      %v1694 = vor.u32 %v1690, %v1693
      %v1695 = vrot.slane %v1694, 4
      %v1697 = vshll.u32 %v1469, 16
      %v1699 = vrot.slane %v1697, 5
      %v1700 = vsel %vm1494, %v1695, %v1699
      %v1701 = vshrl.u32 %v1469, 16
      %v1703 = vrot.slane %v1701, 4
      %v1704 = vor.u32 %v1703, %v1699
      %v1705 = vrot.slane %v1704, 4
      %v1707 = vshll.u32 %v1470, 16
      %v1709 = vrot.slane %v1707, 5
      %v1710 = vsel %vm1494, %v1705, %v1709
      %v1712 = vshrl.u32 %v1471, 16
      %v1714 = vrot.slane %v1712, 4
      %v1715 = vshll.u32 %v1471, 16
      %v1717 = vrot.slane %v1715, 5
      %v1718 = vor.u32 %v1714, %v1717
      %v1719 = vrot.slane %v1718, 4
      %v1721 = vshll.u32 %v1472, 16
      %v1723 = vrot.slane %v1721, 5
      %v1724 = vsel %vm1494, %v1719, %v1723
      %v1725 = vshrl.u32 %v1472, 16
      %v1727 = vrot.slane %v1725, 4
      %v1728 = vor.u32 %v1727, %v1723
      %v1729 = vrot.slane %v1728, 4
      %v1731 = vshll.u32 %v1473, 16
      %v1733 = vrot.slane %v1731, 5
      %v1734 = vsel %vm1494, %v1729, %v1733
      %v1736 = vshrl.u32 %v1474, 16
      %v1738 = vrot.slane %v1736, 4
      %v1739 = vshll.u32 %v1474, 16
      %v1741 = vrot.slane %v1739, 5
      %v1742 = vor.u32 %v1738, %v1741
      %v1743 = vrot.slane %v1742, 4
      %v1745 = vshll.u32 %v1475, 16
      %v1747 = vrot.slane %v1745, 5
      %v1748 = vsel %vm1494, %v1743, %v1747
      %v1749 = vshrl.u32 %v1475, 16
      %v1751 = vrot.slane %v1749, 4
      %v1752 = vor.u32 %v1751, %v1747
      %v1753 = vrot.slane %v1752, 4
      %v1755 = vshll.u32 %v1476, 16
      %v1757 = vrot.slane %v1755, 5
      %v1758 = vsel %vm1494, %v1753, %v1757
      %v1760 = vshrl.u32 %v1477, 16
      %v1762 = vrot.slane %v1760, 4
      %v1763 = vshll.u32 %v1477, 16
      %v1765 = vrot.slane %v1763, 5
      %v1766 = vor.u32 %v1762, %v1765
      %v1767 = vrot.slane %v1766, 4
      %v1769 = vshll.u32 %v1478, 16
      %v1771 = vrot.slane %v1769, 5
      %v1772 = vsel %vm1494, %v1767, %v1771
      %v1773 = vshrl.u32 %v1478, 16
      %v1775 = vrot.slane %v1773, 4
      %v1776 = vor.u32 %v1775, %v1771
      %v1777 = vrot.slane %v1776, 4
      %v1779 = vshll.u32 %v1479, 16
      %v1781 = vrot.slane %v1779, 5
      %v1782 = vsel %vm1494, %v1777, %v1781
      %v1784 = vshrl.u32 %v1480, 16
      %v1786 = vrot.slane %v1784, 4
      %v1787 = vshll.u32 %v1480, 16
      %v1789 = vrot.slane %v1787, 5
      %v1790 = vor.u32 %v1786, %v1789
      %v1791 = vrot.slane %v1790, 4
      %v1793 = vshll.u32 %v1481, 16
      %v1795 = vrot.slane %v1793, 5
      %v1796 = vsel %vm1494, %v1791, %v1795
      %v1797 = vshrl.u32 %v1481, 16
      %v1799 = vrot.slane %v1797, 4
      %v1800 = vor.u32 %v1799, %v1795
      %v1801 = vrot.slane %v1800, 4
      %v1803 = vshll.u32 %v1482, 16
      %v1805 = vrot.slane %v1803, 5
      %v1806 = vsel %vm1494, %v1801, %v1805
      %v1808 = vshrl.u32 %v1483, 16
      %v1810 = vrot.slane %v1808, 4
      %v1811 = vshll.u32 %v1483, 16
      %v1813 = vrot.slane %v1811, 5
      %v1814 = vor.u32 %v1810, %v1813
      %v1815 = vrot.slane %v1814, 4
      %v1817 = vshll.u32 %v1484, 16
      %v1819 = vrot.slane %v1817, 5
      %v1820 = vsel %vm1494, %v1815, %v1819
      %v1821 = vshrl.u32 %v1484, 16
      %v1823 = vrot.slane %v1821, 4
      %v1824 = vor.u32 %v1823, %v1819
      %v1825 = vrot.slane %v1824, 4
      %v1827 = vshll.u32 %v1485, 16
      %v1829 = vrot.slane %v1827, 5
      %v1830 = vsel %vm1494, %v1825, %v1829
      %v1832 = vshrl.u32 %v1486, 16
      %v1834 = vrot.slane %v1832, 4
      %v1835 = vshll.u32 %v1486, 16
      %v1837 = vrot.slane %v1835, 5
      %v1838 = vor.u32 %v1834, %v1837
      %v1839 = vrot.slane %v1838, 4
      %v1841 = vshll.u32 %v1487, 16
      %v1843 = vrot.slane %v1841, 5
      %v1844 = vsel %vm1494, %v1839, %v1843
      %v1845 = vshrl.u32 %v1487, 16
      %v1847 = vrot.slane %v1845, 4
      %v1848 = vor.u32 %v1847, %v1843
      %v1849 = vrot.slane %v1848, 4
      %v1851 = vshll.u32 %v1488, 16
      %v1853 = vrot.slane %v1851, 5
      %v1854 = vsel %vm1494, %v1849, %v1853
      %v1856 = vshrl.u32 %v1489, 16
      %v1858 = vrot.slane %v1856, 4
      %v1859 = vshll.u32 %v1489, 16
      %v1861 = vrot.slane %v1859, 5
      %v1862 = vor.u32 %v1858, %v1861
      %v1863 = vrot.slane %v1862, 4
      %v1865 = vshll.u32 %v1490, 16
      %v1867 = vrot.slane %v1865, 5
      %v1868 = vsel %vm1494, %v1863, %v1867
      %v1869 = vshrl.u32 %v1490, 16
      %v1871 = vrot.slane %v1869, 4
      %v1872 = vor.u32 %v1871, %v1867
      %v1873 = vrot.slane %v1872, 4
      %v1875 = vshll.u32 %v1491, 16
      %v1877 = vrot.slane %v1875, 5
      %v1878 = vsel %vm1494, %v1873, %v1877
      %1911 = vst [vmem:[#allocation3 + $0x4] sm:$0xf] %v1508
      %1912 = vst [vmem:[#allocation3 + $0x28] sm:$0xf] %v1518
      %1913 = vst [vmem:[#allocation3 + $0x4c] sm:$0xf] %v1532
      %1914 = vst [vmem:[#allocation3 + $0x70] sm:$0xf] %v1542
      %1915 = vst [vmem:[#allocation3 + $0x94] sm:$0xf] %v1556
      %1916 = vst [vmem:[#allocation3 + $0xb8] sm:$0xf] %v1566
      %1917 = vst [vmem:[#allocation3 + $0xdc] sm:$0xf] %v1580
      %1918 = vst [vmem:[#allocation3 + $0x100] sm:$0xf] %v1590
      %1919 = vst [vmem:[#allocation3 + $0x124] sm:$0xf] %v1604
      %1920 = vst [vmem:[#allocation3 + $0x148] sm:$0xf] %v1614
      %1921 = vst [vmem:[#allocation3 + $0x16c] sm:$0xf] %v1628
      %1922 = vst [vmem:[#allocation3 + $0x190] sm:$0xf] %v1638
      %1923 = vst [vmem:[#allocation3 + $0x1b4] sm:$0xf] %v1652
      %1924 = vst [vmem:[#allocation3 + $0x1d8] sm:$0xf] %v1662
      %1925 = vst [vmem:[#allocation3 + $0x1fc] sm:$0xf] %v1676
      %1926 = vst [vmem:[#allocation3 + $0x220] sm:$0xf] %v1686
      %1927 = vst [vmem:[#allocation3 + $0x244] sm:$0xf] %v1700
      %1928 = vst [vmem:[#allocation3 + $0x268] sm:$0xf] %v1710
      %1929 = vst [vmem:[#allocation3 + $0x28c] sm:$0xf] %v1724
      %1930 = vst [vmem:[#allocation3 + $0x2b0] sm:$0xf] %v1734
      %1931 = vst [vmem:[#allocation3 + $0x2d4] sm:$0xf] %v1748
      %1932 = vst [vmem:[#allocation3 + $0x2f8] sm:$0xf] %v1758
      %1933 = vst [vmem:[#allocation3 + $0x31c] sm:$0xf] %v1772
      %1934 = vst [vmem:[#allocation3 + $0x340] sm:$0xf] %v1782
      %1935 = vst [vmem:[#allocation3 + $0x364] sm:$0xf] %v1796
      %1936 = vst [vmem:[#allocation3 + $0x388] sm:$0xf] %v1806
      %1937 = vst [vmem:[#allocation3 + $0x3ac] sm:$0xf] %v1820
      %1938 = vst [vmem:[#allocation3 + $0x3d0] sm:$0xf] %v1830
      %1939 = vst [vmem:[#allocation3 + $0x3f4] sm:$0xf] %v1844
      %1940 = vst [vmem:[#allocation3 + $0x418] sm:$0xf] %v1854
      %1941 = vst [vmem:[#allocation3 + $0x43c] sm:$0xf] %v1868
      %1942 = vst [vmem:[#allocation3 + $0x460] sm:$0xf] %v1878
      %v1943 = vld [vmem:[#allocation2] sm:$0xe]
      %v1944 = vld [vmem:[#allocation2 + $0x4] sm:$0xf]
      %v1945 = vld [vmem:[#allocation2 + $0x8] sm:$0x1]
      %v1946 = vld [vmem:[#allocation2 + $0xc] sm:$0xe]
      %v1947 = vld [vmem:[#allocation2 + $0x10] sm:$0xf]
      %v1948 = vld [vmem:[#allocation2 + $0x14] sm:$0x1]
      %v1949 = vld [vmem:[#allocation2 + $0x18] sm:$0xe]
      %v1950 = vld [vmem:[#allocation2 + $0x1c] sm:$0xf]
      %v1951 = vld [vmem:[#allocation2 + $0x20] sm:$0x1]
      %v1952 = vld [vmem:[#allocation2 + $0x24] sm:$0xe]
      %v1953 = vld [vmem:[#allocation2 + $0x28] sm:$0xf]
      %v1954 = vld [vmem:[#allocation2 + $0x2c] sm:$0x1]
      %v1955 = vld [vmem:[#allocation2 + $0x30] sm:$0xe]
      %v1956 = vld [vmem:[#allocation2 + $0x34] sm:$0xf]
      %v1957 = vld [vmem:[#allocation2 + $0x38] sm:$0x1]
      %v1958 = vld [vmem:[#allocation2 + $0x3c] sm:$0xe]
      %v1959 = vld [vmem:[#allocation2 + $0x40] sm:$0xf]
      %v1960 = vld [vmem:[#allocation2 + $0x44] sm:$0x1]
      %v1961 = vld [vmem:[#allocation2 + $0x48] sm:$0xe]
      %v1962 = vld [vmem:[#allocation2 + $0x4c] sm:$0xf]
      %v1963 = vld [vmem:[#allocation2 + $0x50] sm:$0x1]
      %v1964 = vld [vmem:[#allocation2 + $0x54] sm:$0xe]
      %v1965 = vld [vmem:[#allocation2 + $0x58] sm:$0xf]
      %v1966 = vld [vmem:[#allocation2 + $0x5c] sm:$0x1]
      %v1967 = vld [vmem:[#allocation2 + $0x60] sm:$0xe]
      %v1968 = vld [vmem:[#allocation2 + $0x64] sm:$0xf]
      %v1969 = vld [vmem:[#allocation2 + $0x68] sm:$0x1]
      %v1970 = vld [vmem:[#allocation2 + $0x6c] sm:$0xe]
      %v1971 = vld [vmem:[#allocation2 + $0x70] sm:$0xf]
      %v1972 = vld [vmem:[#allocation2 + $0x74] sm:$0x1]
      %v1973 = vld [vmem:[#allocation2 + $0x78] sm:$0xe]
      %v1974 = vld [vmem:[#allocation2 + $0x7c] sm:$0xf]
      %v1975 = vld [vmem:[#allocation2 + $0x80] sm:$0x1]
      %v1976 = vld [vmem:[#allocation2 + $0x84] sm:$0xe]
      %v1977 = vld [vmem:[#allocation2 + $0x88] sm:$0xf]
      %v1978 = vld [vmem:[#allocation2 + $0x8c] sm:$0x1]
      %v1979 = vld [vmem:[#allocation2 + $0x90] sm:$0xe]
      %v1980 = vld [vmem:[#allocation2 + $0x94] sm:$0xf]
      %v1981 = vld [vmem:[#allocation2 + $0x98] sm:$0x1]
      %v1982 = vld [vmem:[#allocation2 + $0x9c] sm:$0xe]
      %v1983 = vld [vmem:[#allocation2 + $0xa0] sm:$0xf]
      %v1984 = vld [vmem:[#allocation2 + $0xa4] sm:$0x1]
      %v1985 = vld [vmem:[#allocation2 + $0xa8] sm:$0xe]
      %v1986 = vld [vmem:[#allocation2 + $0xac] sm:$0xf]
      %v1987 = vld [vmem:[#allocation2 + $0xb0] sm:$0x1]
      %v1988 = vld [vmem:[#allocation2 + $0xb4] sm:$0xe]
      %v1989 = vld [vmem:[#allocation2 + $0xb8] sm:$0xf]
      %v1990 = vld [vmem:[#allocation2 + $0xbc] sm:$0x1]
      %vm2039 = vcmask 1042432
      %vm2040 = vcmask 1046532
      %vm2041 = vmor %vm2039, %vm2040
      %v2042 = vrot.slane %v1943, 5
      %v2043 = vrot.slane %v2042, 4
      %v2044 = vrot.slane %v1944, 5
      %v2045 = vsel %vm2041, %v2043, %v2044
      %v2046 = vrot.slane %v2044, 4
      %v2047 = vrot.slane %v1945, 5
      %v2048 = vsel %vm2041, %v2046, %v2047
      %v2049 = vrot.slane %v1946, 5
      %v2050 = vrot.slane %v2049, 4
      %v2051 = vrot.slane %v1947, 5
      %v2052 = vsel %vm2041, %v2050, %v2051
      %v2053 = vrot.slane %v2051, 4
      %v2054 = vrot.slane %v1948, 5
      %v2055 = vsel %vm2041, %v2053, %v2054
      %v2056 = vrot.slane %v1949, 5
      %v2057 = vrot.slane %v2056, 4
      %v2058 = vrot.slane %v1950, 5
      %v2059 = vsel %vm2041, %v2057, %v2058
      %v2060 = vrot.slane %v2058, 4
      %v2061 = vrot.slane %v1951, 5
      %v2062 = vsel %vm2041, %v2060, %v2061
      %v2063 = vrot.slane %v1952, 5
      %v2064 = vrot.slane %v2063, 4
      %v2065 = vrot.slane %v1953, 5
      %v2066 = vsel %vm2041, %v2064, %v2065
      %v2067 = vrot.slane %v2065, 4
      %v2068 = vrot.slane %v1954, 5
      %v2069 = vsel %vm2041, %v2067, %v2068
      %v2070 = vrot.slane %v1955, 5
      %v2071 = vrot.slane %v2070, 4
      %v2072 = vrot.slane %v1956, 5
      %v2073 = vsel %vm2041, %v2071, %v2072
      %v2074 = vrot.slane %v2072, 4
      %v2075 = vrot.slane %v1957, 5
      %v2076 = vsel %vm2041, %v2074, %v2075
      %v2077 = vrot.slane %v1958, 5
      %v2078 = vrot.slane %v2077, 4
      %v2079 = vrot.slane %v1959, 5
      %v2080 = vsel %vm2041, %v2078, %v2079
      %v2081 = vrot.slane %v2079, 4
      %v2082 = vrot.slane %v1960, 5
      %v2083 = vsel %vm2041, %v2081, %v2082
      %v2084 = vrot.slane %v1961, 5
      %v2085 = vrot.slane %v2084, 4
      %v2086 = vrot.slane %v1962, 5
      %v2087 = vsel %vm2041, %v2085, %v2086
      %v2088 = vrot.slane %v2086, 4
      %v2089 = vrot.slane %v1963, 5
      %v2090 = vsel %vm2041, %v2088, %v2089
      %v2091 = vrot.slane %v1964, 5
      %v2092 = vrot.slane %v2091, 4
      %v2093 = vrot.slane %v1965, 5
      %v2094 = vsel %vm2041, %v2092, %v2093
      %v2095 = vrot.slane %v2093, 4
      %v2096 = vrot.slane %v1966, 5
      %v2097 = vsel %vm2041, %v2095, %v2096
      %v2098 = vrot.slane %v1967, 5
      %v2099 = vrot.slane %v2098, 4
      %v2100 = vrot.slane %v1968, 5
      %v2101 = vsel %vm2041, %v2099, %v2100
      %v2102 = vrot.slane %v2100, 4
      %v2103 = vrot.slane %v1969, 5
      %v2104 = vsel %vm2041, %v2102, %v2103
      %v2105 = vrot.slane %v1970, 5
      %v2106 = vrot.slane %v2105, 4
      %v2107 = vrot.slane %v1971, 5
      %v2108 = vsel %vm2041, %v2106, %v2107
      %v2109 = vrot.slane %v2107, 4
      %v2110 = vrot.slane %v1972, 5
      %v2111 = vsel %vm2041, %v2109, %v2110
      %v2112 = vrot.slane %v1973, 5
      %v2113 = vrot.slane %v2112, 4
      %v2114 = vrot.slane %v1974, 5
      %v2115 = vsel %vm2041, %v2113, %v2114
      %v2116 = vrot.slane %v2114, 4
      %v2117 = vrot.slane %v1975, 5
      %v2118 = vsel %vm2041, %v2116, %v2117
      %v2119 = vrot.slane %v1976, 5
      %v2120 = vrot.slane %v2119, 4
      %v2121 = vrot.slane %v1977, 5
      %v2122 = vsel %vm2041, %v2120, %v2121
      %v2123 = vrot.slane %v2121, 4
      %v2124 = vrot.slane %v1978, 5
      %v2125 = vsel %vm2041, %v2123, %v2124
      %v2126 = vrot.slane %v1979, 5
      %v2127 = vrot.slane %v2126, 4
      %v2128 = vrot.slane %v1980, 5
      %v2129 = vsel %vm2041, %v2127, %v2128
      %v2130 = vrot.slane %v2128, 4
      %v2131 = vrot.slane %v1981, 5
      %v2132 = vsel %vm2041, %v2130, %v2131
      %v2133 = vrot.slane %v1982, 5
      %v2134 = vrot.slane %v2133, 4
      %v2135 = vrot.slane %v1983, 5
      %v2136 = vsel %vm2041, %v2134, %v2135
      %v2137 = vrot.slane %v2135, 4
      %v2138 = vrot.slane %v1984, 5
      %v2139 = vsel %vm2041, %v2137, %v2138
      %v2140 = vrot.slane %v1985, 5
      %v2141 = vrot.slane %v2140, 4
      %v2142 = vrot.slane %v1986, 5
      %v2143 = vsel %vm2041, %v2141, %v2142
      %v2144 = vrot.slane %v2142, 4
      %v2145 = vrot.slane %v1987, 5
      %v2146 = vsel %vm2041, %v2144, %v2145
      %v2147 = vrot.slane %v1988, 5
      %v2148 = vrot.slane %v2147, 4
      %v2149 = vrot.slane %v1989, 5
      %v2150 = vsel %vm2041, %v2148, %v2149
      %v2151 = vrot.slane %v2149, 4
      %v2152 = vrot.slane %v1990, 5
      %v2153 = vsel %vm2041, %v2151, %v2152
      %2186 = vst [vmem:[#allocation3 + $0x8] sm:$0xf] %v2045
      %2187 = vst [vmem:[#allocation3 + $0x2c] sm:$0xf] %v2048
      %2188 = vst [vmem:[#allocation3 + $0x50] sm:$0xf] %v2052
      %2189 = vst [vmem:[#allocation3 + $0x74] sm:$0xf] %v2055
      %2190 = vst [vmem:[#allocation3 + $0x98] sm:$0xf] %v2059
      %2191 = vst [vmem:[#allocation3 + $0xbc] sm:$0xf] %v2062
      %2192 = vst [vmem:[#allocation3 + $0xe0] sm:$0xf] %v2066
      %2193 = vst [vmem:[#allocation3 + $0x104] sm:$0xf] %v2069
      %2194 = vst [vmem:[#allocation3 + $0x128] sm:$0xf] %v2073
      %2195 = vst [vmem:[#allocation3 + $0x14c] sm:$0xf] %v2076
      %2196 = vst [vmem:[#allocation3 + $0x170] sm:$0xf] %v2080
      %2197 = vst [vmem:[#allocation3 + $0x194] sm:$0xf] %v2083
      %2198 = vst [vmem:[#allocation3 + $0x1b8] sm:$0xf] %v2087
      %2199 = vst [vmem:[#allocation3 + $0x1dc] sm:$0xf] %v2090
      %2200 = vst [vmem:[#allocation3 + $0x200] sm:$0xf] %v2094
      %2201 = vst [vmem:[#allocation3 + $0x224] sm:$0xf] %v2097
      %2202 = vst [vmem:[#allocation3 + $0x248] sm:$0xf] %v2101
      %2203 = vst [vmem:[#allocation3 + $0x26c] sm:$0xf] %v2104
      %2204 = vst [vmem:[#allocation3 + $0x290] sm:$0xf] %v2108
      %2205 = vst [vmem:[#allocation3 + $0x2b4] sm:$0xf] %v2111
      %2206 = vst [vmem:[#allocation3 + $0x2d8] sm:$0xf] %v2115
      %2207 = vst [vmem:[#allocation3 + $0x2fc] sm:$0xf] %v2118
      %2208 = vst [vmem:[#allocation3 + $0x320] sm:$0xf] %v2122
      %2209 = vst [vmem:[#allocation3 + $0x344] sm:$0xf] %v2125
      %2210 = vst [vmem:[#allocation3 + $0x368] sm:$0xf] %v2129
      %2211 = vst [vmem:[#allocation3 + $0x38c] sm:$0xf] %v2132
      %2212 = vst [vmem:[#allocation3 + $0x3b0] sm:$0xf] %v2136
      %2213 = vst [vmem:[#allocation3 + $0x3d4] sm:$0xf] %v2139
      %2214 = vst [vmem:[#allocation3 + $0x3f8] sm:$0xf] %v2143
      %2215 = vst [vmem:[#allocation3 + $0x41c] sm:$0xf] %v2146
      %2216 = vst [vmem:[#allocation3 + $0x440] sm:$0xf] %v2150
      %2217 = vst [vmem:[#allocation3 + $0x464] sm:$0xf] %v2153
      %v2218 = vld [vmem:[%s1233] sm:$0xf]
      %v2219 = vld [vmem:[%s1233 + $0x4] sm:$0xf]
      %v2220 = vld [vmem:[%s1233 + $0xc] sm:$0xf]
      %v2221 = vld [vmem:[%s1233 + $0x10] sm:$0xf]
      %v2222 = vld [vmem:[%s1233 + $0x18] sm:$0xf]
      %v2223 = vld [vmem:[%s1233 + $0x1c] sm:$0xf]
      %v2224 = vld [vmem:[%s1233 + $0x24] sm:$0xf]
      %v2225 = vld [vmem:[%s1233 + $0x28] sm:$0xf]
      %v2226 = vld [vmem:[%s1233 + $0x30] sm:$0xf]
      %v2227 = vld [vmem:[%s1233 + $0x34] sm:$0xf]
      %v2228 = vld [vmem:[%s1233 + $0x3c] sm:$0xf]
      %v2229 = vld [vmem:[%s1233 + $0x40] sm:$0xf]
      %v2230 = vld [vmem:[%s1233 + $0x48] sm:$0xf]
      %v2231 = vld [vmem:[%s1233 + $0x4c] sm:$0xf]
      %v2232 = vld [vmem:[%s1233 + $0x54] sm:$0xf]
      %v2233 = vld [vmem:[%s1233 + $0x58] sm:$0xf]
      %v2234 = vld [vmem:[%s1233 + $0x60] sm:$0xf]
      %v2235 = vld [vmem:[%s1233 + $0x64] sm:$0xf]
      %v2236 = vld [vmem:[%s1233 + $0x6c] sm:$0xf]
      %v2237 = vld [vmem:[%s1233 + $0x70] sm:$0xf]
      %v2238 = vld [vmem:[%s1233 + $0x78] sm:$0xf]
      %v2239 = vld [vmem:[%s1233 + $0x7c] sm:$0xf]
      %v2240 = vld [vmem:[%s1233 + $0x84] sm:$0xf]
      %v2241 = vld [vmem:[%s1233 + $0x88] sm:$0xf]
      %v2242 = vld [vmem:[%s1233 + $0x90] sm:$0xf]
      %v2243 = vld [vmem:[%s1233 + $0x94] sm:$0xf]
      %v2244 = vld [vmem:[%s1233 + $0x9c] sm:$0xf]
      %v2245 = vld [vmem:[%s1233 + $0xa0] sm:$0xf]
      %v2246 = vld [vmem:[%s1233 + $0xa8] sm:$0xf]
      %v2247 = vld [vmem:[%s1233 + $0xac] sm:$0xf]
      %v2248 = vld [vmem:[%s1233 + $0xb4] sm:$0xf]
      %v2249 = vld [vmem:[%s1233 + $0xb8] sm:$0xf]
      %2250 = vst [vmem:[#allocation3 + $0xc] sm:$0xf] %v2218
      %2251 = vst [vmem:[#allocation3 + $0x30] sm:$0xf] %v2219
      %2252 = vst [vmem:[#allocation3 + $0x54] sm:$0xf] %v2220
      %2253 = vst [vmem:[#allocation3 + $0x78] sm:$0xf] %v2221
      %2254 = vst [vmem:[#allocation3 + $0x9c] sm:$0xf] %v2222
      %2255 = vst [vmem:[#allocation3 + $0xc0] sm:$0xf] %v2223
      %2256 = vst [vmem:[#allocation3 + $0xe4] sm:$0xf] %v2224
      %2257 = vst [vmem:[#allocation3 + $0x108] sm:$0xf] %v2225
      %2258 = vst [vmem:[#allocation3 + $0x12c] sm:$0xf] %v2226
      %2259 = vst [vmem:[#allocation3 + $0x150] sm:$0xf] %v2227
      %2260 = vst [vmem:[#allocation3 + $0x174] sm:$0xf] %v2228
      %2261 = vst [vmem:[#allocation3 + $0x198] sm:$0xf] %v2229
      %2262 = vst [vmem:[#allocation3 + $0x1bc] sm:$0xf] %v2230
      %2263 = vst [vmem:[#allocation3 + $0x1e0] sm:$0xf] %v2231
      %2264 = vst [vmem:[#allocation3 + $0x204] sm:$0xf] %v2232
      %2265 = vst [vmem:[#allocation3 + $0x228] sm:$0xf] %v2233
      %2266 = vst [vmem:[#allocation3 + $0x24c] sm:$0xf] %v2234
      %2267 = vst [vmem:[#allocation3 + $0x270] sm:$0xf] %v2235
      %2268 = vst [vmem:[#allocation3 + $0x294] sm:$0xf] %v2236
      %2269 = vst [vmem:[#allocation3 + $0x2b8] sm:$0xf] %v2237
      %2270 = vst [vmem:[#allocation3 + $0x2dc] sm:$0xf] %v2238
      %2271 = vst [vmem:[#allocation3 + $0x300] sm:$0xf] %v2239
      %2272 = vst [vmem:[#allocation3 + $0x324] sm:$0xf] %v2240
      %2273 = vst [vmem:[#allocation3 + $0x348] sm:$0xf] %v2241
      %2274 = vst [vmem:[#allocation3 + $0x36c] sm:$0xf] %v2242
      %2275 = vst [vmem:[#allocation3 + $0x390] sm:$0xf] %v2243
      %2276 = vst [vmem:[#allocation3 + $0x3b4] sm:$0xf] %v2244
      %2277 = vst [vmem:[#allocation3 + $0x3d8] sm:$0xf] %v2245
      %2278 = vst [vmem:[#allocation3 + $0x3fc] sm:$0xf] %v2246
      %2279 = vst [vmem:[#allocation3 + $0x420] sm:$0xf] %v2247
      %2280 = vst [vmem:[#allocation3 + $0x444] sm:$0xf] %v2248
      %2281 = vst [vmem:[#allocation3 + $0x468] sm:$0xf] %v2249
      %v2282 = vld [vmem:[%s1233] sm:$0xf]
      %v2283 = vld [vmem:[%s1233 + $0x4] sm:$0xf]
      %v2284 = vld [vmem:[%s1233 + $0x8] sm:$0x1]
      %v2285 = vld [vmem:[%s1233 + $0xc] sm:$0xf]
      %v2286 = vld [vmem:[%s1233 + $0x10] sm:$0xf]
      %v2287 = vld [vmem:[%s1233 + $0x14] sm:$0x1]
      %v2288 = vld [vmem:[%s1233 + $0x18] sm:$0xf]
      %v2289 = vld [vmem:[%s1233 + $0x1c] sm:$0xf]
      %v2290 = vld [vmem:[%s1233 + $0x20] sm:$0x1]
      %v2291 = vld [vmem:[%s1233 + $0x24] sm:$0xf]
      %v2292 = vld [vmem:[%s1233 + $0x28] sm:$0xf]
      %v2293 = vld [vmem:[%s1233 + $0x2c] sm:$0x1]
      %v2294 = vld [vmem:[%s1233 + $0x30] sm:$0xf]
      %v2295 = vld [vmem:[%s1233 + $0x34] sm:$0xf]
      %v2296 = vld [vmem:[%s1233 + $0x38] sm:$0x1]
      %v2297 = vld [vmem:[%s1233 + $0x3c] sm:$0xf]
      %v2298 = vld [vmem:[%s1233 + $0x40] sm:$0xf]
      %v2299 = vld [vmem:[%s1233 + $0x44] sm:$0x1]
      %v2300 = vld [vmem:[%s1233 + $0x48] sm:$0xf]
      %v2301 = vld [vmem:[%s1233 + $0x4c] sm:$0xf]
      %v2302 = vld [vmem:[%s1233 + $0x50] sm:$0x1]
      %v2303 = vld [vmem:[%s1233 + $0x54] sm:$0xf]
      %v2304 = vld [vmem:[%s1233 + $0x58] sm:$0xf]
      %v2305 = vld [vmem:[%s1233 + $0x5c] sm:$0x1]
      %v2306 = vld [vmem:[%s1233 + $0x60] sm:$0xf]
      %v2307 = vld [vmem:[%s1233 + $0x64] sm:$0xf]
      %v2308 = vld [vmem:[%s1233 + $0x68] sm:$0x1]
      %v2309 = vld [vmem:[%s1233 + $0x6c] sm:$0xf]
      %v2310 = vld [vmem:[%s1233 + $0x70] sm:$0xf]
      %v2311 = vld [vmem:[%s1233 + $0x74] sm:$0x1]
      %v2312 = vld [vmem:[%s1233 + $0x78] sm:$0xf]
      %v2313 = vld [vmem:[%s1233 + $0x7c] sm:$0xf]
      %v2314 = vld [vmem:[%s1233 + $0x80] sm:$0x1]
      %v2315 = vld [vmem:[%s1233 + $0x84] sm:$0xf]
      %v2316 = vld [vmem:[%s1233 + $0x88] sm:$0xf]
      %v2317 = vld [vmem:[%s1233 + $0x8c] sm:$0x1]
      %v2318 = vld [vmem:[%s1233 + $0x90] sm:$0xf]
      %v2319 = vld [vmem:[%s1233 + $0x94] sm:$0xf]
      %v2320 = vld [vmem:[%s1233 + $0x98] sm:$0x1]
      %v2321 = vld [vmem:[%s1233 + $0x9c] sm:$0xf]
      %v2322 = vld [vmem:[%s1233 + $0xa0] sm:$0xf]
      %v2323 = vld [vmem:[%s1233 + $0xa4] sm:$0x1]
      %v2324 = vld [vmem:[%s1233 + $0xa8] sm:$0xf]
      %v2325 = vld [vmem:[%s1233 + $0xac] sm:$0xf]
      %v2326 = vld [vmem:[%s1233 + $0xb0] sm:$0x1]
      %v2327 = vld [vmem:[%s1233 + $0xb4] sm:$0xf]
      %v2328 = vld [vmem:[%s1233 + $0xb8] sm:$0xf]
      %v2329 = vld [vmem:[%s1233 + $0xbc] sm:$0x1]
      %v2331 = vshrl.u32 %v2282, 16
      %v2333 = vrot.slane %v2331, 4
      %v2334 = vshll.u32 %v2282, 16
      %v2336 = vrot.slane %v2334, 5
      %v2337 = vor.u32 %v2333, %v2336
      %v2338 = vrot.slane %v2337, 4
      %v2340 = vshll.u32 %v2283, 16
      %v2342 = vrot.slane %v2340, 5
      %v2343 = vsel %vm1494, %v2338, %v2342
      %v2344 = vshrl.u32 %v2283, 16
      %v2346 = vrot.slane %v2344, 4
      %v2347 = vor.u32 %v2346, %v2342
      %v2348 = vrot.slane %v2347, 4
      %v2350 = vshll.u32 %v2284, 16
      %v2352 = vrot.slane %v2350, 5
      %v2353 = vsel %vm1494, %v2348, %v2352
      %v2355 = vshrl.u32 %v2285, 16
      %v2357 = vrot.slane %v2355, 4
      %v2358 = vshll.u32 %v2285, 16
      %v2360 = vrot.slane %v2358, 5
      %v2361 = vor.u32 %v2357, %v2360
      %v2362 = vrot.slane %v2361, 4
      %v2364 = vshll.u32 %v2286, 16
      %v2366 = vrot.slane %v2364, 5
      %v2367 = vsel %vm1494, %v2362, %v2366
      %v2368 = vshrl.u32 %v2286, 16
      %v2370 = vrot.slane %v2368, 4
      %v2371 = vor.u32 %v2370, %v2366
      %v2372 = vrot.slane %v2371, 4
      %v2374 = vshll.u32 %v2287, 16
      %v2376 = vrot.slane %v2374, 5
      %v2377 = vsel %vm1494, %v2372, %v2376
      %v2379 = vshrl.u32 %v2288, 16
      %v2381 = vrot.slane %v2379, 4
      %v2382 = vshll.u32 %v2288, 16
      %v2384 = vrot.slane %v2382, 5
      %v2385 = vor.u32 %v2381, %v2384
      %v2386 = vrot.slane %v2385, 4
      %v2388 = vshll.u32 %v2289, 16
      %v2390 = vrot.slane %v2388, 5
      %v2391 = vsel %vm1494, %v2386, %v2390
      %v2392 = vshrl.u32 %v2289, 16
      %v2394 = vrot.slane %v2392, 4
      %v2395 = vor.u32 %v2394, %v2390
      %v2396 = vrot.slane %v2395, 4
      %v2398 = vshll.u32 %v2290, 16
      %v2400 = vrot.slane %v2398, 5
      %v2401 = vsel %vm1494, %v2396, %v2400
      %v2403 = vshrl.u32 %v2291, 16
      %v2405 = vrot.slane %v2403, 4
      %v2406 = vshll.u32 %v2291, 16
      %v2408 = vrot.slane %v2406, 5
      %v2409 = vor.u32 %v2405, %v2408
      %v2410 = vrot.slane %v2409, 4
      %v2412 = vshll.u32 %v2292, 16
      %v2414 = vrot.slane %v2412, 5
      %v2415 = vsel %vm1494, %v2410, %v2414
      %v2416 = vshrl.u32 %v2292, 16
      %v2418 = vrot.slane %v2416, 4
      %v2419 = vor.u32 %v2418, %v2414
      %v2420 = vrot.slane %v2419, 4
      %v2422 = vshll.u32 %v2293, 16
      %v2424 = vrot.slane %v2422, 5
      %v2425 = vsel %vm1494, %v2420, %v2424
      %v2427 = vshrl.u32 %v2294, 16
      %v2429 = vrot.slane %v2427, 4
      %v2430 = vshll.u32 %v2294, 16
      %v2432 = vrot.slane %v2430, 5
      %v2433 = vor.u32 %v2429, %v2432
      %v2434 = vrot.slane %v2433, 4
      %v2436 = vshll.u32 %v2295, 16
      %v2438 = vrot.slane %v2436, 5
      %v2439 = vsel %vm1494, %v2434, %v2438
      %v2440 = vshrl.u32 %v2295, 16
      %v2442 = vrot.slane %v2440, 4
      %v2443 = vor.u32 %v2442, %v2438
      %v2444 = vrot.slane %v2443, 4
      %v2446 = vshll.u32 %v2296, 16
      %v2448 = vrot.slane %v2446, 5
      %v2449 = vsel %vm1494, %v2444, %v2448
      %v2451 = vshrl.u32 %v2297, 16
      %v2453 = vrot.slane %v2451, 4
      %v2454 = vshll.u32 %v2297, 16
      %v2456 = vrot.slane %v2454, 5
      %v2457 = vor.u32 %v2453, %v2456
      %v2458 = vrot.slane %v2457, 4
      %v2460 = vshll.u32 %v2298, 16
      %v2462 = vrot.slane %v2460, 5
      %v2463 = vsel %vm1494, %v2458, %v2462
      %v2464 = vshrl.u32 %v2298, 16
      %v2466 = vrot.slane %v2464, 4
      %v2467 = vor.u32 %v2466, %v2462
      %v2468 = vrot.slane %v2467, 4
      %v2470 = vshll.u32 %v2299, 16
      %v2472 = vrot.slane %v2470, 5
      %v2473 = vsel %vm1494, %v2468, %v2472
      %v2475 = vshrl.u32 %v2300, 16
      %v2477 = vrot.slane %v2475, 4
      %v2478 = vshll.u32 %v2300, 16
      %v2480 = vrot.slane %v2478, 5
      %v2481 = vor.u32 %v2477, %v2480
      %v2482 = vrot.slane %v2481, 4
      %v2484 = vshll.u32 %v2301, 16
      %v2486 = vrot.slane %v2484, 5
      %v2487 = vsel %vm1494, %v2482, %v2486
      %v2488 = vshrl.u32 %v2301, 16
      %v2490 = vrot.slane %v2488, 4
      %v2491 = vor.u32 %v2490, %v2486
      %v2492 = vrot.slane %v2491, 4
      %v2494 = vshll.u32 %v2302, 16
      %v2496 = vrot.slane %v2494, 5
      %v2497 = vsel %vm1494, %v2492, %v2496
      %v2499 = vshrl.u32 %v2303, 16
      %v2501 = vrot.slane %v2499, 4
      %v2502 = vshll.u32 %v2303, 16
      %v2504 = vrot.slane %v2502, 5
      %v2505 = vor.u32 %v2501, %v2504
      %v2506 = vrot.slane %v2505, 4
      %v2508 = vshll.u32 %v2304, 16
      %v2510 = vrot.slane %v2508, 5
      %v2511 = vsel %vm1494, %v2506, %v2510
      %v2512 = vshrl.u32 %v2304, 16
      %v2514 = vrot.slane %v2512, 4
      %v2515 = vor.u32 %v2514, %v2510
      %v2516 = vrot.slane %v2515, 4
      %v2518 = vshll.u32 %v2305, 16
      %v2520 = vrot.slane %v2518, 5
      %v2521 = vsel %vm1494, %v2516, %v2520
      %v2523 = vshrl.u32 %v2306, 16
      %v2525 = vrot.slane %v2523, 4
      %v2526 = vshll.u32 %v2306, 16
      %v2528 = vrot.slane %v2526, 5
      %v2529 = vor.u32 %v2525, %v2528
      %v2530 = vrot.slane %v2529, 4
      %v2532 = vshll.u32 %v2307, 16
      %v2534 = vrot.slane %v2532, 5
      %v2535 = vsel %vm1494, %v2530, %v2534
      %v2536 = vshrl.u32 %v2307, 16
      %v2538 = vrot.slane %v2536, 4
      %v2539 = vor.u32 %v2538, %v2534
      %v2540 = vrot.slane %v2539, 4
      %v2542 = vshll.u32 %v2308, 16
      %v2544 = vrot.slane %v2542, 5
      %v2545 = vsel %vm1494, %v2540, %v2544
      %v2547 = vshrl.u32 %v2309, 16
      %v2549 = vrot.slane %v2547, 4
      %v2550 = vshll.u32 %v2309, 16
      %v2552 = vrot.slane %v2550, 5
      %v2553 = vor.u32 %v2549, %v2552
      %v2554 = vrot.slane %v2553, 4
      %v2556 = vshll.u32 %v2310, 16
      %v2558 = vrot.slane %v2556, 5
      %v2559 = vsel %vm1494, %v2554, %v2558
      %v2560 = vshrl.u32 %v2310, 16
      %v2562 = vrot.slane %v2560, 4
      %v2563 = vor.u32 %v2562, %v2558
      %v2564 = vrot.slane %v2563, 4
      %v2566 = vshll.u32 %v2311, 16
      %v2568 = vrot.slane %v2566, 5
      %v2569 = vsel %vm1494, %v2564, %v2568
      %v2571 = vshrl.u32 %v2312, 16
      %v2573 = vrot.slane %v2571, 4
      %v2574 = vshll.u32 %v2312, 16
      %v2576 = vrot.slane %v2574, 5
      %v2577 = vor.u32 %v2573, %v2576
      %v2578 = vrot.slane %v2577, 4
      %v2580 = vshll.u32 %v2313, 16
      %v2582 = vrot.slane %v2580, 5
      %v2583 = vsel %vm1494, %v2578, %v2582
      %v2584 = vshrl.u32 %v2313, 16
      %v2586 = vrot.slane %v2584, 4
      %v2587 = vor.u32 %v2586, %v2582
      %v2588 = vrot.slane %v2587, 4
      %v2590 = vshll.u32 %v2314, 16
      %v2592 = vrot.slane %v2590, 5
      %v2593 = vsel %vm1494, %v2588, %v2592
      %v2595 = vshrl.u32 %v2315, 16
      %v2597 = vrot.slane %v2595, 4
      %v2598 = vshll.u32 %v2315, 16
      %v2600 = vrot.slane %v2598, 5
      %v2601 = vor.u32 %v2597, %v2600
      %v2602 = vrot.slane %v2601, 4
      %v2604 = vshll.u32 %v2316, 16
      %v2606 = vrot.slane %v2604, 5
      %v2607 = vsel %vm1494, %v2602, %v2606
      %v2608 = vshrl.u32 %v2316, 16
      %v2610 = vrot.slane %v2608, 4
      %v2611 = vor.u32 %v2610, %v2606
      %v2612 = vrot.slane %v2611, 4
      %v2614 = vshll.u32 %v2317, 16
      %v2616 = vrot.slane %v2614, 5
      %v2617 = vsel %vm1494, %v2612, %v2616
      %v2619 = vshrl.u32 %v2318, 16
      %v2621 = vrot.slane %v2619, 4
      %v2622 = vshll.u32 %v2318, 16
      %v2624 = vrot.slane %v2622, 5
      %v2625 = vor.u32 %v2621, %v2624
      %v2626 = vrot.slane %v2625, 4
      %v2628 = vshll.u32 %v2319, 16
      %v2630 = vrot.slane %v2628, 5
      %v2631 = vsel %vm1494, %v2626, %v2630
      %v2632 = vshrl.u32 %v2319, 16
      %v2634 = vrot.slane %v2632, 4
      %v2635 = vor.u32 %v2634, %v2630
      %v2636 = vrot.slane %v2635, 4
      %v2638 = vshll.u32 %v2320, 16
      %v2640 = vrot.slane %v2638, 5
      %v2641 = vsel %vm1494, %v2636, %v2640
      %v2643 = vshrl.u32 %v2321, 16
      %v2645 = vrot.slane %v2643, 4
      %v2646 = vshll.u32 %v2321, 16
      %v2648 = vrot.slane %v2646, 5
      %v2649 = vor.u32 %v2645, %v2648
      %v2650 = vrot.slane %v2649, 4
      %v2652 = vshll.u32 %v2322, 16
      %v2654 = vrot.slane %v2652, 5
      %v2655 = vsel %vm1494, %v2650, %v2654
      %v2656 = vshrl.u32 %v2322, 16
      %v2658 = vrot.slane %v2656, 4
      %v2659 = vor.u32 %v2658, %v2654
      %v2660 = vrot.slane %v2659, 4
      %v2662 = vshll.u32 %v2323, 16
      %v2664 = vrot.slane %v2662, 5
      %v2665 = vsel %vm1494, %v2660, %v2664
      %v2667 = vshrl.u32 %v2324, 16
      %v2669 = vrot.slane %v2667, 4
      %v2670 = vshll.u32 %v2324, 16
      %v2672 = vrot.slane %v2670, 5
      %v2673 = vor.u32 %v2669, %v2672
      %v2674 = vrot.slane %v2673, 4
      %v2676 = vshll.u32 %v2325, 16
      %v2678 = vrot.slane %v2676, 5
      %v2679 = vsel %vm1494, %v2674, %v2678
      %v2680 = vshrl.u32 %v2325, 16
      %v2682 = vrot.slane %v2680, 4
      %v2683 = vor.u32 %v2682, %v2678
      %v2684 = vrot.slane %v2683, 4
      %v2686 = vshll.u32 %v2326, 16
      %v2688 = vrot.slane %v2686, 5
      %v2689 = vsel %vm1494, %v2684, %v2688
      %v2691 = vshrl.u32 %v2327, 16
      %v2693 = vrot.slane %v2691, 4
      %v2694 = vshll.u32 %v2327, 16
      %v2696 = vrot.slane %v2694, 5
      %v2697 = vor.u32 %v2693, %v2696
      %v2698 = vrot.slane %v2697, 4
      %v2700 = vshll.u32 %v2328, 16
      %v2702 = vrot.slane %v2700, 5
      %v2703 = vsel %vm1494, %v2698, %v2702
      %v2704 = vshrl.u32 %v2328, 16
      %v2706 = vrot.slane %v2704, 4
      %v2707 = vor.u32 %v2706, %v2702
      %v2708 = vrot.slane %v2707, 4
      %v2710 = vshll.u32 %v2329, 16
      %v2712 = vrot.slane %v2710, 5
      %v2713 = vsel %vm1494, %v2708, %v2712
      %2746 = vst [vmem:[#allocation3 + $0x10] sm:$0xf] %v2343
      %2747 = vst [vmem:[#allocation3 + $0x34] sm:$0xf] %v2353
      %2748 = vst [vmem:[#allocation3 + $0x58] sm:$0xf] %v2367
      %2749 = vst [vmem:[#allocation3 + $0x7c] sm:$0xf] %v2377
      %2750 = vst [vmem:[#allocation3 + $0xa0] sm:$0xf] %v2391
      %2751 = vst [vmem:[#allocation3 + $0xc4] sm:$0xf] %v2401
      %2752 = vst [vmem:[#allocation3 + $0xe8] sm:$0xf] %v2415
      %2753 = vst [vmem:[#allocation3 + $0x10c] sm:$0xf] %v2425
      %2754 = vst [vmem:[#allocation3 + $0x130] sm:$0xf] %v2439
      %2755 = vst [vmem:[#allocation3 + $0x154] sm:$0xf] %v2449
      %2756 = vst [vmem:[#allocation3 + $0x178] sm:$0xf] %v2463
      %2757 = vst [vmem:[#allocation3 + $0x19c] sm:$0xf] %v2473
      %2758 = vst [vmem:[#allocation3 + $0x1c0] sm:$0xf] %v2487
      %2759 = vst [vmem:[#allocation3 + $0x1e4] sm:$0xf] %v2497
      %2760 = vst [vmem:[#allocation3 + $0x208] sm:$0xf] %v2511
      %2761 = vst [vmem:[#allocation3 + $0x22c] sm:$0xf] %v2521
      %2762 = vst [vmem:[#allocation3 + $0x250] sm:$0xf] %v2535
      %2763 = vst [vmem:[#allocation3 + $0x274] sm:$0xf] %v2545
      %2764 = vst [vmem:[#allocation3 + $0x298] sm:$0xf] %v2559
      %2765 = vst [vmem:[#allocation3 + $0x2bc] sm:$0xf] %v2569
      %2766 = vst [vmem:[#allocation3 + $0x2e0] sm:$0xf] %v2583
      %2767 = vst [vmem:[#allocation3 + $0x304] sm:$0xf] %v2593
      %2768 = vst [vmem:[#allocation3 + $0x328] sm:$0xf] %v2607
      %2769 = vst [vmem:[#allocation3 + $0x34c] sm:$0xf] %v2617
      %2770 = vst [vmem:[#allocation3 + $0x370] sm:$0xf] %v2631
      %2771 = vst [vmem:[#allocation3 + $0x394] sm:$0xf] %v2641
      %2772 = vst [vmem:[#allocation3 + $0x3b8] sm:$0xf] %v2655
      %2773 = vst [vmem:[#allocation3 + $0x3dc] sm:$0xf] %v2665
      %2774 = vst [vmem:[#allocation3 + $0x400] sm:$0xf] %v2679
      %2775 = vst [vmem:[#allocation3 + $0x424] sm:$0xf] %v2689
      %2776 = vst [vmem:[#allocation3 + $0x448] sm:$0xf] %v2703
      %2777 = vst [vmem:[#allocation3 + $0x46c] sm:$0xf] %v2713
      %v2778 = vld [vmem:[%s1233] sm:$0xe]
      %v2779 = vld [vmem:[%s1233 + $0x4] sm:$0xf]
      %v2780 = vld [vmem:[%s1233 + $0x8] sm:$0x1]
      %v2781 = vld [vmem:[%s1233 + $0xc] sm:$0xe]
      %v2782 = vld [vmem:[%s1233 + $0x10] sm:$0xf]
      %v2783 = vld [vmem:[%s1233 + $0x14] sm:$0x1]
      %v2784 = vld [vmem:[%s1233 + $0x18] sm:$0xe]
      %v2785 = vld [vmem:[%s1233 + $0x1c] sm:$0xf]
      %v2786 = vld [vmem:[%s1233 + $0x20] sm:$0x1]
      %v2787 = vld [vmem:[%s1233 + $0x24] sm:$0xe]
      %v2788 = vld [vmem:[%s1233 + $0x28] sm:$0xf]
      %v2789 = vld [vmem:[%s1233 + $0x2c] sm:$0x1]
      %v2790 = vld [vmem:[%s1233 + $0x30] sm:$0xe]
      %v2791 = vld [vmem:[%s1233 + $0x34] sm:$0xf]
      %v2792 = vld [vmem:[%s1233 + $0x38] sm:$0x1]
      %v2793 = vld [vmem:[%s1233 + $0x3c] sm:$0xe]
      %v2794 = vld [vmem:[%s1233 + $0x40] sm:$0xf]
      %v2795 = vld [vmem:[%s1233 + $0x44] sm:$0x1]
      %v2796 = vld [vmem:[%s1233 + $0x48] sm:$0xe]
      %v2797 = vld [vmem:[%s1233 + $0x4c] sm:$0xf]
      %v2798 = vld [vmem:[%s1233 + $0x50] sm:$0x1]
      %v2799 = vld [vmem:[%s1233 + $0x54] sm:$0xe]
      %v2800 = vld [vmem:[%s1233 + $0x58] sm:$0xf]
      %v2801 = vld [vmem:[%s1233 + $0x5c] sm:$0x1]
      %v2802 = vld [vmem:[%s1233 + $0x60] sm:$0xe]
      %v2803 = vld [vmem:[%s1233 + $0x64] sm:$0xf]
      %v2804 = vld [vmem:[%s1233 + $0x68] sm:$0x1]
      %v2805 = vld [vmem:[%s1233 + $0x6c] sm:$0xe]
      %v2806 = vld [vmem:[%s1233 + $0x70] sm:$0xf]
      %v2807 = vld [vmem:[%s1233 + $0x74] sm:$0x1]
      %v2808 = vld [vmem:[%s1233 + $0x78] sm:$0xe]
      %v2809 = vld [vmem:[%s1233 + $0x7c] sm:$0xf]
      %v2810 = vld [vmem:[%s1233 + $0x80] sm:$0x1]
      %v2811 = vld [vmem:[%s1233 + $0x84] sm:$0xe]
      %v2812 = vld [vmem:[%s1233 + $0x88] sm:$0xf]
      %v2813 = vld [vmem:[%s1233 + $0x8c] sm:$0x1]
      %v2814 = vld [vmem:[%s1233 + $0x90] sm:$0xe]
      %v2815 = vld [vmem:[%s1233 + $0x94] sm:$0xf]
      %v2816 = vld [vmem:[%s1233 + $0x98] sm:$0x1]
      %v2817 = vld [vmem:[%s1233 + $0x9c] sm:$0xe]
      %v2818 = vld [vmem:[%s1233 + $0xa0] sm:$0xf]
      %v2819 = vld [vmem:[%s1233 + $0xa4] sm:$0x1]
      %v2820 = vld [vmem:[%s1233 + $0xa8] sm:$0xe]
      %v2821 = vld [vmem:[%s1233 + $0xac] sm:$0xf]
      %v2822 = vld [vmem:[%s1233 + $0xb0] sm:$0x1]
      %v2823 = vld [vmem:[%s1233 + $0xb4] sm:$0xe]
      %v2824 = vld [vmem:[%s1233 + $0xb8] sm:$0xf]
      %v2825 = vld [vmem:[%s1233 + $0xbc] sm:$0x1]
      %v2874 = vrot.slane %v2778, 5
      %v2875 = vrot.slane %v2874, 4
      %v2876 = vrot.slane %v2779, 5
      %v2877 = vsel %vm2041, %v2875, %v2876
      %v2878 = vrot.slane %v2876, 4
      %v2879 = vrot.slane %v2780, 5
      %v2880 = vsel %vm2041, %v2878, %v2879
      %v2881 = vrot.slane %v2781, 5
      %v2882 = vrot.slane %v2881, 4
      %v2883 = vrot.slane %v2782, 5
      %v2884 = vsel %vm2041, %v2882, %v2883
      %v2885 = vrot.slane %v2883, 4
      %v2886 = vrot.slane %v2783, 5
      %v2887 = vsel %vm2041, %v2885, %v2886
      %v2888 = vrot.slane %v2784, 5
      %v2889 = vrot.slane %v2888, 4
      %v2890 = vrot.slane %v2785, 5
      %v2891 = vsel %vm2041, %v2889, %v2890
      %v2892 = vrot.slane %v2890, 4
      %v2893 = vrot.slane %v2786, 5
      %v2894 = vsel %vm2041, %v2892, %v2893
      %v2895 = vrot.slane %v2787, 5
      %v2896 = vrot.slane %v2895, 4
      %v2897 = vrot.slane %v2788, 5
      %v2898 = vsel %vm2041, %v2896, %v2897
      %v2899 = vrot.slane %v2897, 4
      %v2900 = vrot.slane %v2789, 5
      %v2901 = vsel %vm2041, %v2899, %v2900
      %v2902 = vrot.slane %v2790, 5
      %v2903 = vrot.slane %v2902, 4
      %v2904 = vrot.slane %v2791, 5
      %v2905 = vsel %vm2041, %v2903, %v2904
      %v2906 = vrot.slane %v2904, 4
      %v2907 = vrot.slane %v2792, 5
      %v2908 = vsel %vm2041, %v2906, %v2907
      %v2909 = vrot.slane %v2793, 5
      %v2910 = vrot.slane %v2909, 4
      %v2911 = vrot.slane %v2794, 5
      %v2912 = vsel %vm2041, %v2910, %v2911
      %v2913 = vrot.slane %v2911, 4
      %v2914 = vrot.slane %v2795, 5
      %v2915 = vsel %vm2041, %v2913, %v2914
      %v2916 = vrot.slane %v2796, 5
      %v2917 = vrot.slane %v2916, 4
      %v2918 = vrot.slane %v2797, 5
      %v2919 = vsel %vm2041, %v2917, %v2918
      %v2920 = vrot.slane %v2918, 4
      %v2921 = vrot.slane %v2798, 5
      %v2922 = vsel %vm2041, %v2920, %v2921
      %v2923 = vrot.slane %v2799, 5
      %v2924 = vrot.slane %v2923, 4
      %v2925 = vrot.slane %v2800, 5
      %v2926 = vsel %vm2041, %v2924, %v2925
      %v2927 = vrot.slane %v2925, 4
      %v2928 = vrot.slane %v2801, 5
      %v2929 = vsel %vm2041, %v2927, %v2928
      %v2930 = vrot.slane %v2802, 5
      %v2931 = vrot.slane %v2930, 4
      %v2932 = vrot.slane %v2803, 5
      %v2933 = vsel %vm2041, %v2931, %v2932
      %v2934 = vrot.slane %v2932, 4
      %v2935 = vrot.slane %v2804, 5
      %v2936 = vsel %vm2041, %v2934, %v2935
      %v2937 = vrot.slane %v2805, 5
      %v2938 = vrot.slane %v2937, 4
      %v2939 = vrot.slane %v2806, 5
      %v2940 = vsel %vm2041, %v2938, %v2939
      %v2941 = vrot.slane %v2939, 4
      %v2942 = vrot.slane %v2807, 5
      %v2943 = vsel %vm2041, %v2941, %v2942
      %v2944 = vrot.slane %v2808, 5
      %v2945 = vrot.slane %v2944, 4
      %v2946 = vrot.slane %v2809, 5
      %v2947 = vsel %vm2041, %v2945, %v2946
      %v2948 = vrot.slane %v2946, 4
      %v2949 = vrot.slane %v2810, 5
      %v2950 = vsel %vm2041, %v2948, %v2949
      %v2951 = vrot.slane %v2811, 5
      %v2952 = vrot.slane %v2951, 4
      %v2953 = vrot.slane %v2812, 5
      %v2954 = vsel %vm2041, %v2952, %v2953
      %v2955 = vrot.slane %v2953, 4
      %v2956 = vrot.slane %v2813, 5
      %v2957 = vsel %vm2041, %v2955, %v2956
      %v2958 = vrot.slane %v2814, 5
      %v2959 = vrot.slane %v2958, 4
      %v2960 = vrot.slane %v2815, 5
      %v2961 = vsel %vm2041, %v2959, %v2960
      %v2962 = vrot.slane %v2960, 4
      %v2963 = vrot.slane %v2816, 5
      %v2964 = vsel %vm2041, %v2962, %v2963
      %v2965 = vrot.slane %v2817, 5
      %v2966 = vrot.slane %v2965, 4
      %v2967 = vrot.slane %v2818, 5
      %v2968 = vsel %vm2041, %v2966, %v2967
      %v2969 = vrot.slane %v2967, 4
      %v2970 = vrot.slane %v2819, 5
      %v2971 = vsel %vm2041, %v2969, %v2970
      %v2972 = vrot.slane %v2820, 5
      %v2973 = vrot.slane %v2972, 4
      %v2974 = vrot.slane %v2821, 5
      %v2975 = vsel %vm2041, %v2973, %v2974
      %v2976 = vrot.slane %v2974, 4
      %v2977 = vrot.slane %v2822, 5
      %v2978 = vsel %vm2041, %v2976, %v2977
      %v2979 = vrot.slane %v2823, 5
      %v2980 = vrot.slane %v2979, 4
      %v2981 = vrot.slane %v2824, 5
      %v2982 = vsel %vm2041, %v2980, %v2981
      %v2983 = vrot.slane %v2981, 4
      %v2984 = vrot.slane %v2825, 5
      %v2985 = vsel %vm2041, %v2983, %v2984
      %3018 = vst [vmem:[#allocation3 + $0x14] sm:$0xf] %v2877
      %3019 = vst [vmem:[#allocation3 + $0x38] sm:$0xf] %v2880
      %3020 = vst [vmem:[#allocation3 + $0x5c] sm:$0xf] %v2884
      %3021 = vst [vmem:[#allocation3 + $0x80] sm:$0xf] %v2887
      %3022 = vst [vmem:[#allocation3 + $0xa4] sm:$0xf] %v2891
      %3023 = vst [vmem:[#allocation3 + $0xc8] sm:$0xf] %v2894
      %3024 = vst [vmem:[#allocation3 + $0xec] sm:$0xf] %v2898
      %3025 = vst [vmem:[#allocation3 + $0x110] sm:$0xf] %v2901
      %3026 = vst [vmem:[#allocation3 + $0x134] sm:$0xf] %v2905
      %3027 = vst [vmem:[#allocation3 + $0x158] sm:$0xf] %v2908
      %3028 = vst [vmem:[#allocation3 + $0x17c] sm:$0xf] %v2912
      %3029 = vst [vmem:[#allocation3 + $0x1a0] sm:$0xf] %v2915
      %3030 = vst [vmem:[#allocation3 + $0x1c4] sm:$0xf] %v2919
      %3031 = vst [vmem:[#allocation3 + $0x1e8] sm:$0xf] %v2922
      %3032 = vst [vmem:[#allocation3 + $0x20c] sm:$0xf] %v2926
      %3033 = vst [vmem:[#allocation3 + $0x230] sm:$0xf] %v2929
      %3034 = vst [vmem:[#allocation3 + $0x254] sm:$0xf] %v2933
      %3035 = vst [vmem:[#allocation3 + $0x278] sm:$0xf] %v2936
      %3036 = vst [vmem:[#allocation3 + $0x29c] sm:$0xf] %v2940
      %3037 = vst [vmem:[#allocation3 + $0x2c0] sm:$0xf] %v2943
      %3038 = vst [vmem:[#allocation3 + $0x2e4] sm:$0xf] %v2947
      %3039 = vst [vmem:[#allocation3 + $0x308] sm:$0xf] %v2950
      %3040 = vst [vmem:[#allocation3 + $0x32c] sm:$0xf] %v2954
      %3041 = vst [vmem:[#allocation3 + $0x350] sm:$0xf] %v2957
      %3042 = vst [vmem:[#allocation3 + $0x374] sm:$0xf] %v2961
      %3043 = vst [vmem:[#allocation3 + $0x398] sm:$0xf] %v2964
      %3044 = vst [vmem:[#allocation3 + $0x3bc] sm:$0xf] %v2968
      %3045 = vst [vmem:[#allocation3 + $0x3e0] sm:$0xf] %v2971
      %3046 = vst [vmem:[#allocation3 + $0x404] sm:$0xf] %v2975
      %3047 = vst [vmem:[#allocation3 + $0x428] sm:$0xf] %v2978
      %3048 = vst [vmem:[#allocation3 + $0x44c] sm:$0xf] %v2982
      %3049 = vst [vmem:[#allocation3 + $0x470] sm:$0xf] %v2985
      %s3050 = scalar_lea.vmem [#allocation2], 24
      %v3051 = vld [vmem:[%s3050] sm:$0xf]
      %v3052 = vld [vmem:[%s3050 + $0x4] sm:$0xf]
      %v3053 = vld [vmem:[%s3050 + $0xc] sm:$0xf]
      %v3054 = vld [vmem:[%s3050 + $0x10] sm:$0xf]
      %v3055 = vld [vmem:[%s3050 + $0x18] sm:$0xf]
      %v3056 = vld [vmem:[%s3050 + $0x1c] sm:$0xf]
      %v3057 = vld [vmem:[%s3050 + $0x24] sm:$0xf]
      %v3058 = vld [vmem:[%s3050 + $0x28] sm:$0xf]
      %v3059 = vld [vmem:[%s3050 + $0x30] sm:$0xf]
      %v3060 = vld [vmem:[%s3050 + $0x34] sm:$0xf]
      %v3061 = vld [vmem:[%s3050 + $0x3c] sm:$0xf]
      %v3062 = vld [vmem:[%s3050 + $0x40] sm:$0xf]
      %v3063 = vld [vmem:[%s3050 + $0x48] sm:$0xf]
      %v3064 = vld [vmem:[%s3050 + $0x4c] sm:$0xf]
      %v3065 = vld [vmem:[%s3050 + $0x54] sm:$0xf]
      %v3066 = vld [vmem:[%s3050 + $0x58] sm:$0xf]
      %v3067 = vld [vmem:[%s3050 + $0x60] sm:$0xf]
      %v3068 = vld [vmem:[%s3050 + $0x64] sm:$0xf]
      %v3069 = vld [vmem:[%s3050 + $0x6c] sm:$0xf]
      %v3070 = vld [vmem:[%s3050 + $0x70] sm:$0xf]
      %v3071 = vld [vmem:[%s3050 + $0x78] sm:$0xf]
      %v3072 = vld [vmem:[%s3050 + $0x7c] sm:$0xf]
      %v3073 = vld [vmem:[%s3050 + $0x84] sm:$0xf]
      %v3074 = vld [vmem:[%s3050 + $0x88] sm:$0xf]
      %v3075 = vld [vmem:[%s3050 + $0x90] sm:$0xf]
      %v3076 = vld [vmem:[%s3050 + $0x94] sm:$0xf]
      %v3077 = vld [vmem:[%s3050 + $0x9c] sm:$0xf]
      %v3078 = vld [vmem:[%s3050 + $0xa0] sm:$0xf]
      %v3079 = vld [vmem:[%s3050 + $0xa8] sm:$0xf]
      %v3080 = vld [vmem:[%s3050 + $0xac] sm:$0xf]
      %v3081 = vld [vmem:[%s3050 + $0xb4] sm:$0xf]
      %v3082 = vld [vmem:[%s3050 + $0xb8] sm:$0xf]
      %3083 = vst [vmem:[#allocation3 + $0x18] sm:$0xf] %v3051
      %3084 = vst [vmem:[#allocation3 + $0x3c] sm:$0xf] %v3052
      %3085 = vst [vmem:[#allocation3 + $0x60] sm:$0xf] %v3053
      %3086 = vst [vmem:[#allocation3 + $0x84] sm:$0xf] %v3054
      %3087 = vst [vmem:[#allocation3 + $0xa8] sm:$0xf] %v3055
      %3088 = vst [vmem:[#allocation3 + $0xcc] sm:$0xf] %v3056
      %3089 = vst [vmem:[#allocation3 + $0xf0] sm:$0xf] %v3057
      %3090 = vst [vmem:[#allocation3 + $0x114] sm:$0xf] %v3058
      %3091 = vst [vmem:[#allocation3 + $0x138] sm:$0xf] %v3059
      %3092 = vst [vmem:[#allocation3 + $0x15c] sm:$0xf] %v3060
      %3093 = vst [vmem:[#allocation3 + $0x180] sm:$0xf] %v3061
      %3094 = vst [vmem:[#allocation3 + $0x1a4] sm:$0xf] %v3062
      %3095 = vst [vmem:[#allocation3 + $0x1c8] sm:$0xf] %v3063
      %3096 = vst [vmem:[#allocation3 + $0x1ec] sm:$0xf] %v3064
      %3097 = vst [vmem:[#allocation3 + $0x210] sm:$0xf] %v3065
      %3098 = vst [vmem:[#allocation3 + $0x234] sm:$0xf] %v3066
      %3099 = vst [vmem:[#allocation3 + $0x258] sm:$0xf] %v3067
      %3100 = vst [vmem:[#allocation3 + $0x27c] sm:$0xf] %v3068
      %3101 = vst [vmem:[#allocation3 + $0x2a0] sm:$0xf] %v3069
      %3102 = vst [vmem:[#allocation3 + $0x2c4] sm:$0xf] %v3070
      %3103 = vst [vmem:[#allocation3 + $0x2e8] sm:$0xf] %v3071
      %3104 = vst [vmem:[#allocation3 + $0x30c] sm:$0xf] %v3072
      %3105 = vst [vmem:[#allocation3 + $0x330] sm:$0xf] %v3073
      %3106 = vst [vmem:[#allocation3 + $0x354] sm:$0xf] %v3074
      %3107 = vst [vmem:[#allocation3 + $0x378] sm:$0xf] %v3075
      %3108 = vst [vmem:[#allocation3 + $0x39c] sm:$0xf] %v3076
      %3109 = vst [vmem:[#allocation3 + $0x3c0] sm:$0xf] %v3077
      %3110 = vst [vmem:[#allocation3 + $0x3e4] sm:$0xf] %v3078
      %3111 = vst [vmem:[#allocation3 + $0x408] sm:$0xf] %v3079
      %3112 = vst [vmem:[#allocation3 + $0x42c] sm:$0xf] %v3080
      %3113 = vst [vmem:[#allocation3 + $0x450] sm:$0xf] %v3081
      %3114 = vst [vmem:[#allocation3 + $0x474] sm:$0xf] %v3082
      %v3115 = vld [vmem:[%s3050] sm:$0xf]
      %v3116 = vld [vmem:[%s3050 + $0x4] sm:$0xf]
      %v3117 = vld [vmem:[%s3050 + $0x8] sm:$0x1]
      %v3118 = vld [vmem:[%s3050 + $0xc] sm:$0xf]
      %v3119 = vld [vmem:[%s3050 + $0x10] sm:$0xf]
      %v3120 = vld [vmem:[%s3050 + $0x14] sm:$0x1]
      %v3121 = vld [vmem:[%s3050 + $0x18] sm:$0xf]
      %v3122 = vld [vmem:[%s3050 + $0x1c] sm:$0xf]
      %v3123 = vld [vmem:[%s3050 + $0x20] sm:$0x1]
      %v3124 = vld [vmem:[%s3050 + $0x24] sm:$0xf]
      %v3125 = vld [vmem:[%s3050 + $0x28] sm:$0xf]
      %v3126 = vld [vmem:[%s3050 + $0x2c] sm:$0x1]
      %v3127 = vld [vmem:[%s3050 + $0x30] sm:$0xf]
      %v3128 = vld [vmem:[%s3050 + $0x34] sm:$0xf]
      %v3129 = vld [vmem:[%s3050 + $0x38] sm:$0x1]
      %v3130 = vld [vmem:[%s3050 + $0x3c] sm:$0xf]
      %v3131 = vld [vmem:[%s3050 + $0x40] sm:$0xf]
      %v3132 = vld [vmem:[%s3050 + $0x44] sm:$0x1]
      %v3133 = vld [vmem:[%s3050 + $0x48] sm:$0xf]
      %v3134 = vld [vmem:[%s3050 + $0x4c] sm:$0xf]
      %v3135 = vld [vmem:[%s3050 + $0x50] sm:$0x1]
      %v3136 = vld [vmem:[%s3050 + $0x54] sm:$0xf]
      %v3137 = vld [vmem:[%s3050 + $0x58] sm:$0xf]
      %v3138 = vld [vmem:[%s3050 + $0x5c] sm:$0x1]
      %v3139 = vld [vmem:[%s3050 + $0x60] sm:$0xf]
      %v3140 = vld [vmem:[%s3050 + $0x64] sm:$0xf]
      %v3141 = vld [vmem:[%s3050 + $0x68] sm:$0x1]
      %v3142 = vld [vmem:[%s3050 + $0x6c] sm:$0xf]
      %v3143 = vld [vmem:[%s3050 + $0x70] sm:$0xf]
      %v3144 = vld [vmem:[%s3050 + $0x74] sm:$0x1]
      %v3145 = vld [vmem:[%s3050 + $0x78] sm:$0xf]
      %v3146 = vld [vmem:[%s3050 + $0x7c] sm:$0xf]
      %v3147 = vld [vmem:[%s3050 + $0x80] sm:$0x1]
      %v3148 = vld [vmem:[%s3050 + $0x84] sm:$0xf]
      %v3149 = vld [vmem:[%s3050 + $0x88] sm:$0xf]
      %v3150 = vld [vmem:[%s3050 + $0x8c] sm:$0x1]
      %v3151 = vld [vmem:[%s3050 + $0x90] sm:$0xf]
      %v3152 = vld [vmem:[%s3050 + $0x94] sm:$0xf]
      %v3153 = vld [vmem:[%s3050 + $0x98] sm:$0x1]
      %v3154 = vld [vmem:[%s3050 + $0x9c] sm:$0xf]
      %v3155 = vld [vmem:[%s3050 + $0xa0] sm:$0xf]
      %v3156 = vld [vmem:[%s3050 + $0xa4] sm:$0x1]
      %v3157 = vld [vmem:[%s3050 + $0xa8] sm:$0xf]
      %v3158 = vld [vmem:[%s3050 + $0xac] sm:$0xf]
      %v3159 = vld [vmem:[%s3050 + $0xb0] sm:$0x1]
      %v3160 = vld [vmem:[%s3050 + $0xb4] sm:$0xf]
      %v3161 = vld [vmem:[%s3050 + $0xb8] sm:$0xf]
      %v3162 = vld [vmem:[%s3050 + $0xbc] sm:$0x1]
      %v3164 = vshrl.u32 %v3115, 16
      %v3166 = vrot.slane %v3164, 4
      %v3167 = vshll.u32 %v3115, 16
      %v3169 = vrot.slane %v3167, 5
      %v3170 = vor.u32 %v3166, %v3169
      %v3171 = vrot.slane %v3170, 4
      %v3173 = vshll.u32 %v3116, 16
      %v3175 = vrot.slane %v3173, 5
      %v3176 = vsel %vm1494, %v3171, %v3175
      %v3177 = vshrl.u32 %v3116, 16
      %v3179 = vrot.slane %v3177, 4
      %v3180 = vor.u32 %v3179, %v3175
      %v3181 = vrot.slane %v3180, 4
      %v3183 = vshll.u32 %v3117, 16
      %v3185 = vrot.slane %v3183, 5
      %v3186 = vsel %vm1494, %v3181, %v3185
      %v3188 = vshrl.u32 %v3118, 16
      %v3190 = vrot.slane %v3188, 4
      %v3191 = vshll.u32 %v3118, 16
      %v3193 = vrot.slane %v3191, 5
      %v3194 = vor.u32 %v3190, %v3193
      %v3195 = vrot.slane %v3194, 4
      %v3197 = vshll.u32 %v3119, 16
      %v3199 = vrot.slane %v3197, 5
      %v3200 = vsel %vm1494, %v3195, %v3199
      %v3201 = vshrl.u32 %v3119, 16
      %v3203 = vrot.slane %v3201, 4
      %v3204 = vor.u32 %v3203, %v3199
      %v3205 = vrot.slane %v3204, 4
      %v3207 = vshll.u32 %v3120, 16
      %v3209 = vrot.slane %v3207, 5
      %v3210 = vsel %vm1494, %v3205, %v3209
      %v3212 = vshrl.u32 %v3121, 16
      %v3214 = vrot.slane %v3212, 4
      %v3215 = vshll.u32 %v3121, 16
      %v3217 = vrot.slane %v3215, 5
      %v3218 = vor.u32 %v3214, %v3217
      %v3219 = vrot.slane %v3218, 4
      %v3221 = vshll.u32 %v3122, 16
      %v3223 = vrot.slane %v3221, 5
      %v3224 = vsel %vm1494, %v3219, %v3223
      %v3225 = vshrl.u32 %v3122, 16
      %v3227 = vrot.slane %v3225, 4
      %v3228 = vor.u32 %v3227, %v3223
      %v3229 = vrot.slane %v3228, 4
      %v3231 = vshll.u32 %v3123, 16
      %v3233 = vrot.slane %v3231, 5
      %v3234 = vsel %vm1494, %v3229, %v3233
      %v3236 = vshrl.u32 %v3124, 16
      %v3238 = vrot.slane %v3236, 4
      %v3239 = vshll.u32 %v3124, 16
      %v3241 = vrot.slane %v3239, 5
      %v3242 = vor.u32 %v3238, %v3241
      %v3243 = vrot.slane %v3242, 4
      %v3245 = vshll.u32 %v3125, 16
      %v3247 = vrot.slane %v3245, 5
      %v3248 = vsel %vm1494, %v3243, %v3247
      %v3249 = vshrl.u32 %v3125, 16
      %v3251 = vrot.slane %v3249, 4
      %v3252 = vor.u32 %v3251, %v3247
      %v3253 = vrot.slane %v3252, 4
      %v3255 = vshll.u32 %v3126, 16
      %v3257 = vrot.slane %v3255, 5
      %v3258 = vsel %vm1494, %v3253, %v3257
      %v3260 = vshrl.u32 %v3127, 16
      %v3262 = vrot.slane %v3260, 4
      %v3263 = vshll.u32 %v3127, 16
      %v3265 = vrot.slane %v3263, 5
      %v3266 = vor.u32 %v3262, %v3265
      %v3267 = vrot.slane %v3266, 4
      %v3269 = vshll.u32 %v3128, 16
      %v3271 = vrot.slane %v3269, 5
      %v3272 = vsel %vm1494, %v3267, %v3271
      %v3273 = vshrl.u32 %v3128, 16
      %v3275 = vrot.slane %v3273, 4
      %v3276 = vor.u32 %v3275, %v3271
      %v3277 = vrot.slane %v3276, 4
      %v3279 = vshll.u32 %v3129, 16
      %v3281 = vrot.slane %v3279, 5
      %v3282 = vsel %vm1494, %v3277, %v3281
      %v3284 = vshrl.u32 %v3130, 16
      %v3286 = vrot.slane %v3284, 4
      %v3287 = vshll.u32 %v3130, 16
      %v3289 = vrot.slane %v3287, 5
      %v3290 = vor.u32 %v3286, %v3289
      %v3291 = vrot.slane %v3290, 4
      %v3293 = vshll.u32 %v3131, 16
      %v3295 = vrot.slane %v3293, 5
      %v3296 = vsel %vm1494, %v3291, %v3295
      %v3297 = vshrl.u32 %v3131, 16
      %v3299 = vrot.slane %v3297, 4
      %v3300 = vor.u32 %v3299, %v3295
      %v3301 = vrot.slane %v3300, 4
      %v3303 = vshll.u32 %v3132, 16
      %v3305 = vrot.slane %v3303, 5
      %v3306 = vsel %vm1494, %v3301, %v3305
      %v3308 = vshrl.u32 %v3133, 16
      %v3310 = vrot.slane %v3308, 4
      %v3311 = vshll.u32 %v3133, 16
      %v3313 = vrot.slane %v3311, 5
      %v3314 = vor.u32 %v3310, %v3313
      %v3315 = vrot.slane %v3314, 4
      %v3317 = vshll.u32 %v3134, 16
      %v3319 = vrot.slane %v3317, 5
      %v3320 = vsel %vm1494, %v3315, %v3319
      %v3321 = vshrl.u32 %v3134, 16
      %v3323 = vrot.slane %v3321, 4
      %v3324 = vor.u32 %v3323, %v3319
      %v3325 = vrot.slane %v3324, 4
      %v3327 = vshll.u32 %v3135, 16
      %v3329 = vrot.slane %v3327, 5
      %v3330 = vsel %vm1494, %v3325, %v3329
      %v3332 = vshrl.u32 %v3136, 16
      %v3334 = vrot.slane %v3332, 4
      %v3335 = vshll.u32 %v3136, 16
      %v3337 = vrot.slane %v3335, 5
      %v3338 = vor.u32 %v3334, %v3337
      %v3339 = vrot.slane %v3338, 4
      %v3341 = vshll.u32 %v3137, 16
      %v3343 = vrot.slane %v3341, 5
      %v3344 = vsel %vm1494, %v3339, %v3343
      %v3345 = vshrl.u32 %v3137, 16
      %v3347 = vrot.slane %v3345, 4
      %v3348 = vor.u32 %v3347, %v3343
      %v3349 = vrot.slane %v3348, 4
      %v3351 = vshll.u32 %v3138, 16
      %v3353 = vrot.slane %v3351, 5
      %v3354 = vsel %vm1494, %v3349, %v3353
      %v3356 = vshrl.u32 %v3139, 16
      %v3358 = vrot.slane %v3356, 4
      %v3359 = vshll.u32 %v3139, 16
      %v3361 = vrot.slane %v3359, 5
      %v3362 = vor.u32 %v3358, %v3361
      %v3363 = vrot.slane %v3362, 4
      %v3365 = vshll.u32 %v3140, 16
      %v3367 = vrot.slane %v3365, 5
      %v3368 = vsel %vm1494, %v3363, %v3367
      %v3369 = vshrl.u32 %v3140, 16
      %v3371 = vrot.slane %v3369, 4
      %v3372 = vor.u32 %v3371, %v3367
      %v3373 = vrot.slane %v3372, 4
      %v3375 = vshll.u32 %v3141, 16
      %v3377 = vrot.slane %v3375, 5
      %v3378 = vsel %vm1494, %v3373, %v3377
      %v3380 = vshrl.u32 %v3142, 16
      %v3382 = vrot.slane %v3380, 4
      %v3383 = vshll.u32 %v3142, 16
      %v3385 = vrot.slane %v3383, 5
      %v3386 = vor.u32 %v3382, %v3385
      %v3387 = vrot.slane %v3386, 4
      %v3389 = vshll.u32 %v3143, 16
      %v3391 = vrot.slane %v3389, 5
      %v3392 = vsel %vm1494, %v3387, %v3391
      %v3393 = vshrl.u32 %v3143, 16
      %v3395 = vrot.slane %v3393, 4
      %v3396 = vor.u32 %v3395, %v3391
      %v3397 = vrot.slane %v3396, 4
      %v3399 = vshll.u32 %v3144, 16
      %v3401 = vrot.slane %v3399, 5
      %v3402 = vsel %vm1494, %v3397, %v3401
      %v3404 = vshrl.u32 %v3145, 16
      %v3406 = vrot.slane %v3404, 4
      %v3407 = vshll.u32 %v3145, 16
      %v3409 = vrot.slane %v3407, 5
      %v3410 = vor.u32 %v3406, %v3409
      %v3411 = vrot.slane %v3410, 4
      %v3413 = vshll.u32 %v3146, 16
      %v3415 = vrot.slane %v3413, 5
      %v3416 = vsel %vm1494, %v3411, %v3415
      %v3417 = vshrl.u32 %v3146, 16
      %v3419 = vrot.slane %v3417, 4
      %v3420 = vor.u32 %v3419, %v3415
      %v3421 = vrot.slane %v3420, 4
      %v3423 = vshll.u32 %v3147, 16
      %v3425 = vrot.slane %v3423, 5
      %v3426 = vsel %vm1494, %v3421, %v3425
      %v3428 = vshrl.u32 %v3148, 16
      %v3430 = vrot.slane %v3428, 4
      %v3431 = vshll.u32 %v3148, 16
      %v3433 = vrot.slane %v3431, 5
      %v3434 = vor.u32 %v3430, %v3433
      %v3435 = vrot.slane %v3434, 4
      %v3437 = vshll.u32 %v3149, 16
      %v3439 = vrot.slane %v3437, 5
      %v3440 = vsel %vm1494, %v3435, %v3439
      %v3441 = vshrl.u32 %v3149, 16
      %v3443 = vrot.slane %v3441, 4
      %v3444 = vor.u32 %v3443, %v3439
      %v3445 = vrot.slane %v3444, 4
      %v3447 = vshll.u32 %v3150, 16
      %v3449 = vrot.slane %v3447, 5
      %v3450 = vsel %vm1494, %v3445, %v3449
      %v3452 = vshrl.u32 %v3151, 16
      %v3454 = vrot.slane %v3452, 4
      %v3455 = vshll.u32 %v3151, 16
      %v3457 = vrot.slane %v3455, 5
      %v3458 = vor.u32 %v3454, %v3457
      %v3459 = vrot.slane %v3458, 4
      %v3461 = vshll.u32 %v3152, 16
      %v3463 = vrot.slane %v3461, 5
      %v3464 = vsel %vm1494, %v3459, %v3463
      %v3465 = vshrl.u32 %v3152, 16
      %v3467 = vrot.slane %v3465, 4
      %v3468 = vor.u32 %v3467, %v3463
      %v3469 = vrot.slane %v3468, 4
      %v3471 = vshll.u32 %v3153, 16
      %v3473 = vrot.slane %v3471, 5
      %v3474 = vsel %vm1494, %v3469, %v3473
      %v3476 = vshrl.u32 %v3154, 16
      %v3478 = vrot.slane %v3476, 4
      %v3479 = vshll.u32 %v3154, 16
      %v3481 = vrot.slane %v3479, 5
      %v3482 = vor.u32 %v3478, %v3481
      %v3483 = vrot.slane %v3482, 4
      %v3485 = vshll.u32 %v3155, 16
      %v3487 = vrot.slane %v3485, 5
      %v3488 = vsel %vm1494, %v3483, %v3487
      %v3489 = vshrl.u32 %v3155, 16
      %v3491 = vrot.slane %v3489, 4
      %v3492 = vor.u32 %v3491, %v3487
      %v3493 = vrot.slane %v3492, 4
      %v3495 = vshll.u32 %v3156, 16
      %v3497 = vrot.slane %v3495, 5
      %v3498 = vsel %vm1494, %v3493, %v3497
      %v3500 = vshrl.u32 %v3157, 16
      %v3502 = vrot.slane %v3500, 4
      %v3503 = vshll.u32 %v3157, 16
      %v3505 = vrot.slane %v3503, 5
      %v3506 = vor.u32 %v3502, %v3505
      %v3507 = vrot.slane %v3506, 4
      %v3509 = vshll.u32 %v3158, 16
      %v3511 = vrot.slane %v3509, 5
      %v3512 = vsel %vm1494, %v3507, %v3511
      %v3513 = vshrl.u32 %v3158, 16
      %v3515 = vrot.slane %v3513, 4
      %v3516 = vor.u32 %v3515, %v3511
      %v3517 = vrot.slane %v3516, 4
      %v3519 = vshll.u32 %v3159, 16
      %v3521 = vrot.slane %v3519, 5
      %v3522 = vsel %vm1494, %v3517, %v3521
      %v3524 = vshrl.u32 %v3160, 16
      %v3526 = vrot.slane %v3524, 4
      %v3527 = vshll.u32 %v3160, 16
      %v3529 = vrot.slane %v3527, 5
      %v3530 = vor.u32 %v3526, %v3529
      %v3531 = vrot.slane %v3530, 4
      %v3533 = vshll.u32 %v3161, 16
      %v3535 = vrot.slane %v3533, 5
      %v3536 = vsel %vm1494, %v3531, %v3535
      %v3537 = vshrl.u32 %v3161, 16
      %v3539 = vrot.slane %v3537, 4
      %v3540 = vor.u32 %v3539, %v3535
      %v3541 = vrot.slane %v3540, 4
      %v3543 = vshll.u32 %v3162, 16
      %v3545 = vrot.slane %v3543, 5
      %v3546 = vsel %vm1494, %v3541, %v3545
      %3579 = vst [vmem:[#allocation3 + $0x1c] sm:$0xf] %v3176
      %3580 = vst [vmem:[#allocation3 + $0x40] sm:$0xf] %v3186
      %3581 = vst [vmem:[#allocation3 + $0x64] sm:$0xf] %v3200
      %3582 = vst [vmem:[#allocation3 + $0x88] sm:$0xf] %v3210
      %3583 = vst [vmem:[#allocation3 + $0xac] sm:$0xf] %v3224
      %3584 = vst [vmem:[#allocation3 + $0xd0] sm:$0xf] %v3234
      %3585 = vst [vmem:[#allocation3 + $0xf4] sm:$0xf] %v3248
      %3586 = vst [vmem:[#allocation3 + $0x118] sm:$0xf] %v3258
      %3587 = vst [vmem:[#allocation3 + $0x13c] sm:$0xf] %v3272
      %3588 = vst [vmem:[#allocation3 + $0x160] sm:$0xf] %v3282
      %3589 = vst [vmem:[#allocation3 + $0x184] sm:$0xf] %v3296
      %3590 = vst [vmem:[#allocation3 + $0x1a8] sm:$0xf] %v3306
      %3591 = vst [vmem:[#allocation3 + $0x1cc] sm:$0xf] %v3320
      %3592 = vst [vmem:[#allocation3 + $0x1f0] sm:$0xf] %v3330
      %3593 = vst [vmem:[#allocation3 + $0x214] sm:$0xf] %v3344
      %3594 = vst [vmem:[#allocation3 + $0x238] sm:$0xf] %v3354
      %3595 = vst [vmem:[#allocation3 + $0x25c] sm:$0xf] %v3368
      %3596 = vst [vmem:[#allocation3 + $0x280] sm:$0xf] %v3378
      %3597 = vst [vmem:[#allocation3 + $0x2a4] sm:$0xf] %v3392
      %3598 = vst [vmem:[#allocation3 + $0x2c8] sm:$0xf] %v3402
      %3599 = vst [vmem:[#allocation3 + $0x2ec] sm:$0xf] %v3416
      %3600 = vst [vmem:[#allocation3 + $0x310] sm:$0xf] %v3426
      %3601 = vst [vmem:[#allocation3 + $0x334] sm:$0xf] %v3440
      %3602 = vst [vmem:[#allocation3 + $0x358] sm:$0xf] %v3450
      %3603 = vst [vmem:[#allocation3 + $0x37c] sm:$0xf] %v3464
      %3604 = vst [vmem:[#allocation3 + $0x3a0] sm:$0xf] %v3474
      %3605 = vst [vmem:[#allocation3 + $0x3c4] sm:$0xf] %v3488
      %3606 = vst [vmem:[#allocation3 + $0x3e8] sm:$0xf] %v3498
      %3607 = vst [vmem:[#allocation3 + $0x40c] sm:$0xf] %v3512
      %3608 = vst [vmem:[#allocation3 + $0x430] sm:$0xf] %v3522
      %3609 = vst [vmem:[#allocation3 + $0x454] sm:$0xf] %v3536
      %3610 = vst [vmem:[#allocation3 + $0x478] sm:$0xf] %v3546
      %v3611 = vld [vmem:[%s3050] sm:$0xe]
      %v3612 = vld [vmem:[%s3050 + $0x4] sm:$0xf]
      %v3613 = vld [vmem:[%s3050 + $0x8] sm:$0x1]
      %v3614 = vld [vmem:[%s3050 + $0xc] sm:$0xe]
      %v3615 = vld [vmem:[%s3050 + $0x10] sm:$0xf]
      %v3616 = vld [vmem:[%s3050 + $0x14] sm:$0x1]
      %v3617 = vld [vmem:[%s3050 + $0x18] sm:$0xe]
      %v3618 = vld [vmem:[%s3050 + $0x1c] sm:$0xf]
      %v3619 = vld [vmem:[%s3050 + $0x20] sm:$0x1]
      %v3620 = vld [vmem:[%s3050 + $0x24] sm:$0xe]
      %v3621 = vld [vmem:[%s3050 + $0x28] sm:$0xf]
      %v3622 = vld [vmem:[%s3050 + $0x2c] sm:$0x1]
      %v3623 = vld [vmem:[%s3050 + $0x30] sm:$0xe]
      %v3624 = vld [vmem:[%s3050 + $0x34] sm:$0xf]
      %v3625 = vld [vmem:[%s3050 + $0x38] sm:$0x1]
      %v3626 = vld [vmem:[%s3050 + $0x3c] sm:$0xe]
      %v3627 = vld [vmem:[%s3050 + $0x40] sm:$0xf]
      %v3628 = vld [vmem:[%s3050 + $0x44] sm:$0x1]
      %v3629 = vld [vmem:[%s3050 + $0x48] sm:$0xe]
      %v3630 = vld [vmem:[%s3050 + $0x4c] sm:$0xf]
      %v3631 = vld [vmem:[%s3050 + $0x50] sm:$0x1]
      %v3632 = vld [vmem:[%s3050 + $0x54] sm:$0xe]
      %v3633 = vld [vmem:[%s3050 + $0x58] sm:$0xf]
      %v3634 = vld [vmem:[%s3050 + $0x5c] sm:$0x1]
      %v3635 = vld [vmem:[%s3050 + $0x60] sm:$0xe]
      %v3636 = vld [vmem:[%s3050 + $0x64] sm:$0xf]
      %v3637 = vld [vmem:[%s3050 + $0x68] sm:$0x1]
      %v3638 = vld [vmem:[%s3050 + $0x6c] sm:$0xe]
      %v3639 = vld [vmem:[%s3050 + $0x70] sm:$0xf]
      %v3640 = vld [vmem:[%s3050 + $0x74] sm:$0x1]
      %v3641 = vld [vmem:[%s3050 + $0x78] sm:$0xe]
      %v3642 = vld [vmem:[%s3050 + $0x7c] sm:$0xf]
      %v3643 = vld [vmem:[%s3050 + $0x80] sm:$0x1]
      %v3644 = vld [vmem:[%s3050 + $0x84] sm:$0xe]
      %v3645 = vld [vmem:[%s3050 + $0x88] sm:$0xf]
      %v3646 = vld [vmem:[%s3050 + $0x8c] sm:$0x1]
      %v3647 = vld [vmem:[%s3050 + $0x90] sm:$0xe]
      %v3648 = vld [vmem:[%s3050 + $0x94] sm:$0xf]
      %v3649 = vld [vmem:[%s3050 + $0x98] sm:$0x1]
      %v3650 = vld [vmem:[%s3050 + $0x9c] sm:$0xe]
      %v3651 = vld [vmem:[%s3050 + $0xa0] sm:$0xf]
      %v3652 = vld [vmem:[%s3050 + $0xa4] sm:$0x1]
      %v3653 = vld [vmem:[%s3050 + $0xa8] sm:$0xe]
      %v3654 = vld [vmem:[%s3050 + $0xac] sm:$0xf]
      %v3655 = vld [vmem:[%s3050 + $0xb0] sm:$0x1]
      %v3656 = vld [vmem:[%s3050 + $0xb4] sm:$0xe]
      %v3657 = vld [vmem:[%s3050 + $0xb8] sm:$0xf]
      %v3658 = vld [vmem:[%s3050 + $0xbc] sm:$0x1]
      %v3707 = vrot.slane %v3611, 5
      %v3708 = vrot.slane %v3707, 4
      %v3709 = vrot.slane %v3612, 5
      %v3710 = vsel %vm2041, %v3708, %v3709
      %v3711 = vrot.slane %v3709, 4
      %v3712 = vrot.slane %v3613, 5
      %v3713 = vsel %vm2041, %v3711, %v3712
      %v3714 = vrot.slane %v3614, 5
      %v3715 = vrot.slane %v3714, 4
      %v3716 = vrot.slane %v3615, 5
      %v3717 = vsel %vm2041, %v3715, %v3716
      %v3718 = vrot.slane %v3716, 4
      %v3719 = vrot.slane %v3616, 5
      %v3720 = vsel %vm2041, %v3718, %v3719
      %v3721 = vrot.slane %v3617, 5
      %v3722 = vrot.slane %v3721, 4
      %v3723 = vrot.slane %v3618, 5
      %v3724 = vsel %vm2041, %v3722, %v3723
      %v3725 = vrot.slane %v3723, 4
      %v3726 = vrot.slane %v3619, 5
      %v3727 = vsel %vm2041, %v3725, %v3726
      %v3728 = vrot.slane %v3620, 5
      %v3729 = vrot.slane %v3728, 4
      %v3730 = vrot.slane %v3621, 5
      %v3731 = vsel %vm2041, %v3729, %v3730
      %v3732 = vrot.slane %v3730, 4
      %v3733 = vrot.slane %v3622, 5
      %v3734 = vsel %vm2041, %v3732, %v3733
      %v3735 = vrot.slane %v3623, 5
      %v3736 = vrot.slane %v3735, 4
      %v3737 = vrot.slane %v3624, 5
      %v3738 = vsel %vm2041, %v3736, %v3737
      %v3739 = vrot.slane %v3737, 4
      %v3740 = vrot.slane %v3625, 5
      %v3741 = vsel %vm2041, %v3739, %v3740
      %v3742 = vrot.slane %v3626, 5
      %v3743 = vrot.slane %v3742, 4
      %v3744 = vrot.slane %v3627, 5
      %v3745 = vsel %vm2041, %v3743, %v3744
      %v3746 = vrot.slane %v3744, 4
      %v3747 = vrot.slane %v3628, 5
      %v3748 = vsel %vm2041, %v3746, %v3747
      %v3749 = vrot.slane %v3629, 5
      %v3750 = vrot.slane %v3749, 4
      %v3751 = vrot.slane %v3630, 5
      %v3752 = vsel %vm2041, %v3750, %v3751
      %v3753 = vrot.slane %v3751, 4
      %v3754 = vrot.slane %v3631, 5
      %v3755 = vsel %vm2041, %v3753, %v3754
      %v3756 = vrot.slane %v3632, 5
      %v3757 = vrot.slane %v3756, 4
      %v3758 = vrot.slane %v3633, 5
      %v3759 = vsel %vm2041, %v3757, %v3758
      %v3760 = vrot.slane %v3758, 4
      %v3761 = vrot.slane %v3634, 5
      %v3762 = vsel %vm2041, %v3760, %v3761
      %v3763 = vrot.slane %v3635, 5
      %v3764 = vrot.slane %v3763, 4
      %v3765 = vrot.slane %v3636, 5
      %v3766 = vsel %vm2041, %v3764, %v3765
      %v3767 = vrot.slane %v3765, 4
      %v3768 = vrot.slane %v3637, 5
      %v3769 = vsel %vm2041, %v3767, %v3768
      %v3770 = vrot.slane %v3638, 5
      %v3771 = vrot.slane %v3770, 4
      %v3772 = vrot.slane %v3639, 5
      %v3773 = vsel %vm2041, %v3771, %v3772
      %v3774 = vrot.slane %v3772, 4
      %v3775 = vrot.slane %v3640, 5
      %v3776 = vsel %vm2041, %v3774, %v3775
      %v3777 = vrot.slane %v3641, 5
      %v3778 = vrot.slane %v3777, 4
      %v3779 = vrot.slane %v3642, 5
      %v3780 = vsel %vm2041, %v3778, %v3779
      %v3781 = vrot.slane %v3779, 4
      %v3782 = vrot.slane %v3643, 5
      %v3783 = vsel %vm2041, %v3781, %v3782
      %v3784 = vrot.slane %v3644, 5
      %v3785 = vrot.slane %v3784, 4
      %v3786 = vrot.slane %v3645, 5
      %v3787 = vsel %vm2041, %v3785, %v3786
      %v3788 = vrot.slane %v3786, 4
      %v3789 = vrot.slane %v3646, 5
      %v3790 = vsel %vm2041, %v3788, %v3789
      %v3791 = vrot.slane %v3647, 5
      %v3792 = vrot.slane %v3791, 4
      %v3793 = vrot.slane %v3648, 5
      %v3794 = vsel %vm2041, %v3792, %v3793
      %v3795 = vrot.slane %v3793, 4
      %v3796 = vrot.slane %v3649, 5
      %v3797 = vsel %vm2041, %v3795, %v3796
      %v3798 = vrot.slane %v3650, 5
      %v3799 = vrot.slane %v3798, 4
      %v3800 = vrot.slane %v3651, 5
      %v3801 = vsel %vm2041, %v3799, %v3800
      %v3802 = vrot.slane %v3800, 4
      %v3803 = vrot.slane %v3652, 5
      %v3804 = vsel %vm2041, %v3802, %v3803
      %v3805 = vrot.slane %v3653, 5
      %v3806 = vrot.slane %v3805, 4
      %v3807 = vrot.slane %v3654, 5
      %v3808 = vsel %vm2041, %v3806, %v3807
      %v3809 = vrot.slane %v3807, 4
      %v3810 = vrot.slane %v3655, 5
      %v3811 = vsel %vm2041, %v3809, %v3810
      %v3812 = vrot.slane %v3656, 5
      %v3813 = vrot.slane %v3812, 4
      %v3814 = vrot.slane %v3657, 5
      %v3815 = vsel %vm2041, %v3813, %v3814
      %v3816 = vrot.slane %v3814, 4
      %v3817 = vrot.slane %v3658, 5
      %v3818 = vsel %vm2041, %v3816, %v3817
      %3851 = vst [vmem:[#allocation3 + $0x20] sm:$0xf] %v3710
      %3852 = vst [vmem:[#allocation3 + $0x44] sm:$0xf] %v3713
      %3853 = vst [vmem:[#allocation3 + $0x68] sm:$0xf] %v3717
      %3854 = vst [vmem:[#allocation3 + $0x8c] sm:$0xf] %v3720
      %3855 = vst [vmem:[#allocation3 + $0xb0] sm:$0xf] %v3724
      %3856 = vst [vmem:[#allocation3 + $0xd4] sm:$0xf] %v3727
      %3857 = vst [vmem:[#allocation3 + $0xf8] sm:$0xf] %v3731
      %3858 = vst [vmem:[#allocation3 + $0x11c] sm:$0xf] %v3734
      %3859 = vst [vmem:[#allocation3 + $0x140] sm:$0xf] %v3738
      %3860 = vst [vmem:[#allocation3 + $0x164] sm:$0xf] %v3741
      %3861 = vst [vmem:[#allocation3 + $0x188] sm:$0xf] %v3745
      %3862 = vst [vmem:[#allocation3 + $0x1ac] sm:$0xf] %v3748
      %3863 = vst [vmem:[#allocation3 + $0x1d0] sm:$0xf] %v3752
      %3864 = vst [vmem:[#allocation3 + $0x1f4] sm:$0xf] %v3755
      %3865 = vst [vmem:[#allocation3 + $0x218] sm:$0xf] %v3759
      %3866 = vst [vmem:[#allocation3 + $0x23c] sm:$0xf] %v3762
      %3867 = vst [vmem:[#allocation3 + $0x260] sm:$0xf] %v3766
      %3868 = vst [vmem:[#allocation3 + $0x284] sm:$0xf] %v3769
      %3869 = vst [vmem:[#allocation3 + $0x2a8] sm:$0xf] %v3773
      %3870 = vst [vmem:[#allocation3 + $0x2cc] sm:$0xf] %v3776
      %3871 = vst [vmem:[#allocation3 + $0x2f0] sm:$0xf] %v3780
      %3872 = vst [vmem:[#allocation3 + $0x314] sm:$0xf] %v3783
      %3873 = vst [vmem:[#allocation3 + $0x338] sm:$0xf] %v3787
      %3874 = vst [vmem:[#allocation3 + $0x35c] sm:$0xf] %v3790
      %3875 = vst [vmem:[#allocation3 + $0x380] sm:$0xf] %v3794
      %3876 = vst [vmem:[#allocation3 + $0x3a4] sm:$0xf] %v3797
      %3877 = vst [vmem:[#allocation3 + $0x3c8] sm:$0xf] %v3801
      %3878 = vst [vmem:[#allocation3 + $0x3ec] sm:$0xf] %v3804
      %3879 = vst [vmem:[#allocation3 + $0x410] sm:$0xf] %v3808
      %3880 = vst [vmem:[#allocation3 + $0x434] sm:$0xf] %v3811
      %3881 = vst [vmem:[#allocation3 + $0x458] sm:$0xf] %v3815
      %3882 = vst [vmem:[#allocation3 + $0x47c] sm:$0xf] %v3818
      %v3883 = vld [vmem:[#allocation3] sm:$0xff]
      %v3884 = vld [vmem:[#allocation3 + $0x8] sm:$0xff]
      %v3885 = vld [vmem:[#allocation3 + $0x10] sm:$0xff]
      %v3886 = vld [vmem:[#allocation3 + $0x18] sm:$0xff]
      %v3887 = vld [vmem:[#allocation3 + $0x20] sm:$0xf]
      %v3888 = vld [vmem:[#allocation3 + $0x24] sm:$0xff]
      %v3889 = vld [vmem:[#allocation3 + $0x2c] sm:$0xff]
      %v3890 = vld [vmem:[#allocation3 + $0x34] sm:$0xff]
      %v3891 = vld [vmem:[#allocation3 + $0x3c] sm:$0xff]
      %v3892 = vld [vmem:[#allocation3 + $0x44] sm:$0xf]
      %v3893 = vld [vmem:[#allocation3 + $0x48] sm:$0xff]
      %v3894 = vld [vmem:[#allocation3 + $0x50] sm:$0xff]
      %v3895 = vld [vmem:[#allocation3 + $0x58] sm:$0xff]
      %v3896 = vld [vmem:[#allocation3 + $0x60] sm:$0xff]
      %v3897 = vld [vmem:[#allocation3 + $0x68] sm:$0xf]
      %v3898 = vld [vmem:[#allocation3 + $0x6c] sm:$0xff]
      %v3899 = vld [vmem:[#allocation3 + $0x74] sm:$0xff]
      %v3900 = vld [vmem:[#allocation3 + $0x7c] sm:$0xff]
      %v3901 = vld [vmem:[#allocation3 + $0x84] sm:$0xff]
      %v3902 = vld [vmem:[#allocation3 + $0x8c] sm:$0xf]
      %v3903 = vld [vmem:[#allocation3 + $0x90] sm:$0xff]
      %v3904 = vld [vmem:[#allocation3 + $0x98] sm:$0xff]
      %v3905 = vld [vmem:[#allocation3 + $0xa0] sm:$0xff]
      %v3906 = vld [vmem:[#allocation3 + $0xa8] sm:$0xff]
      %v3907 = vld [vmem:[#allocation3 + $0xb0] sm:$0xf]
      %v3908 = vld [vmem:[#allocation3 + $0xb4] sm:$0xff]
      %v3909 = vld [vmem:[#allocation3 + $0xbc] sm:$0xff]
      %v3910 = vld [vmem:[#allocation3 + $0xc4] sm:$0xff]
      %v3911 = vld [vmem:[#allocation3 + $0xcc] sm:$0xff]
      %v3912 = vld [vmem:[#allocation3 + $0xd4] sm:$0xf]
      %v3913 = vld [vmem:[#allocation3 + $0xd8] sm:$0xff]
      %v3914 = vld [vmem:[#allocation3 + $0xe0] sm:$0xff]
      %v3915 = vld [vmem:[#allocation3 + $0xe8] sm:$0xff]
      %v3916 = vld [vmem:[#allocation3 + $0xf0] sm:$0xff]
      %v3917 = vld [vmem:[#allocation3 + $0xf8] sm:$0xf]
      %v3918 = vld [vmem:[#allocation3 + $0xfc] sm:$0xff]
      %v3919 = vld [vmem:[#allocation3 + $0x104] sm:$0xff]
      %v3920 = vld [vmem:[#allocation3 + $0x10c] sm:$0xff]
      %v3921 = vld [vmem:[#allocation3 + $0x114] sm:$0xff]
      %v3922 = vld [vmem:[#allocation3 + $0x11c] sm:$0xf]
      %v3923 = vld [vmem:[#allocation3 + $0x120] sm:$0xff]
      %v3924 = vld [vmem:[#allocation3 + $0x128] sm:$0xff]
      %v3925 = vld [vmem:[#allocation3 + $0x130] sm:$0xff]
      %v3926 = vld [vmem:[#allocation3 + $0x138] sm:$0xff]
      %v3927 = vld [vmem:[#allocation3 + $0x140] sm:$0xf]
      %v3928 = vld [vmem:[#allocation3 + $0x144] sm:$0xff]
      %v3929 = vld [vmem:[#allocation3 + $0x14c] sm:$0xff]
      %v3930 = vld [vmem:[#allocation3 + $0x154] sm:$0xff]
      %v3931 = vld [vmem:[#allocation3 + $0x15c] sm:$0xff]
      %v3932 = vld [vmem:[#allocation3 + $0x164] sm:$0xf]
      %v3933 = vld [vmem:[#allocation3 + $0x168] sm:$0xff]
      %v3934 = vld [vmem:[#allocation3 + $0x170] sm:$0xff]
      %v3935 = vld [vmem:[#allocation3 + $0x178] sm:$0xff]
      %v3936 = vld [vmem:[#allocation3 + $0x180] sm:$0xff]
      %v3937 = vld [vmem:[#allocation3 + $0x188] sm:$0xf]
      %v3938 = vld [vmem:[#allocation3 + $0x18c] sm:$0xff]
      %v3939 = vld [vmem:[#allocation3 + $0x194] sm:$0xff]
      %v3940 = vld [vmem:[#allocation3 + $0x19c] sm:$0xff]
      %v3941 = vld [vmem:[#allocation3 + $0x1a4] sm:$0xff]
      %v3942 = vld [vmem:[#allocation3 + $0x1ac] sm:$0xf]
      %v3943 = vld [vmem:[#allocation3 + $0x1b0] sm:$0xff]
      %v3944 = vld [vmem:[#allocation3 + $0x1b8] sm:$0xff]
      %v3945 = vld [vmem:[#allocation3 + $0x1c0] sm:$0xff]
      %v3946 = vld [vmem:[#allocation3 + $0x1c8] sm:$0xff]
      %v3947 = vld [vmem:[#allocation3 + $0x1d0] sm:$0xf]
      %v3948 = vld [vmem:[#allocation3 + $0x1d4] sm:$0xff]
      %v3949 = vld [vmem:[#allocation3 + $0x1dc] sm:$0xff]
      %v3950 = vld [vmem:[#allocation3 + $0x1e4] sm:$0xff]
      %v3951 = vld [vmem:[#allocation3 + $0x1ec] sm:$0xff]
      %v3952 = vld [vmem:[#allocation3 + $0x1f4] sm:$0xf]
      %v3953 = vld [vmem:[#allocation3 + $0x1f8] sm:$0xff]
      %v3954 = vld [vmem:[#allocation3 + $0x200] sm:$0xff]
      %v3955 = vld [vmem:[#allocation3 + $0x208] sm:$0xff]
      %v3956 = vld [vmem:[#allocation3 + $0x210] sm:$0xff]
      %v3957 = vld [vmem:[#allocation3 + $0x218] sm:$0xf]
      %v3958 = vld [vmem:[#allocation3 + $0x21c] sm:$0xff]
      %v3959 = vld [vmem:[#allocation3 + $0x224] sm:$0xff]
      %v3960 = vld [vmem:[#allocation3 + $0x22c] sm:$0xff]
      %v3961 = vld [vmem:[#allocation3 + $0x234] sm:$0xff]
      %v3962 = vld [vmem:[#allocation3 + $0x23c] sm:$0xf]
      %v3963 = vld [vmem:[#allocation3 + $0x240] sm:$0xff]
      %v3964 = vld [vmem:[#allocation3 + $0x248] sm:$0xff]
      %v3965 = vld [vmem:[#allocation3 + $0x250] sm:$0xff]
      %v3966 = vld [vmem:[#allocation3 + $0x258] sm:$0xff]
      %v3967 = vld [vmem:[#allocation3 + $0x260] sm:$0xf]
      %v3968 = vld [vmem:[#allocation3 + $0x264] sm:$0xff]
      %v3969 = vld [vmem:[#allocation3 + $0x26c] sm:$0xff]
      %v3970 = vld [vmem:[#allocation3 + $0x274] sm:$0xff]
      %v3971 = vld [vmem:[#allocation3 + $0x27c] sm:$0xff]
      %v3972 = vld [vmem:[#allocation3 + $0x284] sm:$0xf]
      %v3973 = vld [vmem:[#allocation3 + $0x288] sm:$0xff]
      %v3974 = vld [vmem:[#allocation3 + $0x290] sm:$0xff]
      %v3975 = vld [vmem:[#allocation3 + $0x298] sm:$0xff]
      %v3976 = vld [vmem:[#allocation3 + $0x2a0] sm:$0xff]
      %v3977 = vld [vmem:[#allocation3 + $0x2a8] sm:$0xf]
      %v3978 = vld [vmem:[#allocation3 + $0x2ac] sm:$0xff]
      %v3979 = vld [vmem:[#allocation3 + $0x2b4] sm:$0xff]
      %v3980 = vld [vmem:[#allocation3 + $0x2bc] sm:$0xff]
      %v3981 = vld [vmem:[#allocation3 + $0x2c4] sm:$0xff]
      %v3982 = vld [vmem:[#allocation3 + $0x2cc] sm:$0xf]
      %v3983 = vld [vmem:[#allocation3 + $0x2d0] sm:$0xff]
      %v3984 = vld [vmem:[#allocation3 + $0x2d8] sm:$0xff]
      %v3985 = vld [vmem:[#allocation3 + $0x2e0] sm:$0xff]
      %v3986 = vld [vmem:[#allocation3 + $0x2e8] sm:$0xff]
      %v3987 = vld [vmem:[#allocation3 + $0x2f0] sm:$0xf]
      %v3988 = vld [vmem:[#allocation3 + $0x2f4] sm:$0xff]
      %v3989 = vld [vmem:[#allocation3 + $0x2fc] sm:$0xff]
      %v3990 = vld [vmem:[#allocation3 + $0x304] sm:$0xff]
      %v3991 = vld [vmem:[#allocation3 + $0x30c] sm:$0xff]
      %v3992 = vld [vmem:[#allocation3 + $0x314] sm:$0xf]
      %v3993 = vld [vmem:[#allocation3 + $0x318] sm:$0xff]
      %v3994 = vld [vmem:[#allocation3 + $0x320] sm:$0xff]
      %v3995 = vld [vmem:[#allocation3 + $0x328] sm:$0xff]
      %v3996 = vld [vmem:[#allocation3 + $0x330] sm:$0xff]
      %v3997 = vld [vmem:[#allocation3 + $0x338] sm:$0xf]
      %v3998 = vld [vmem:[#allocation3 + $0x33c] sm:$0xff]
      %v3999 = vld [vmem:[#allocation3 + $0x344] sm:$0xff]
      %v4000 = vld [vmem:[#allocation3 + $0x34c] sm:$0xff]
      %v4001 = vld [vmem:[#allocation3 + $0x354] sm:$0xff]
      %v4002 = vld [vmem:[#allocation3 + $0x35c] sm:$0xf]
      %v4003 = vld [vmem:[#allocation3 + $0x360] sm:$0xff]
      %v4004 = vld [vmem:[#allocation3 + $0x368] sm:$0xff]
      %v4005 = vld [vmem:[#allocation3 + $0x370] sm:$0xff]
      %v4006 = vld [vmem:[#allocation3 + $0x378] sm:$0xff]
      %v4007 = vld [vmem:[#allocation3 + $0x380] sm:$0xf]
      %v4008 = vld [vmem:[#allocation3 + $0x384] sm:$0xff]
      %v4009 = vld [vmem:[#allocation3 + $0x38c] sm:$0xff]
      %v4010 = vld [vmem:[#allocation3 + $0x394] sm:$0xff]
      %v4011 = vld [vmem:[#allocation3 + $0x39c] sm:$0xff]
      %v4012 = vld [vmem:[#allocation3 + $0x3a4] sm:$0xf]
      %v4013 = vld [vmem:[#allocation3 + $0x3a8] sm:$0xff]
      %v4014 = vld [vmem:[#allocation3 + $0x3b0] sm:$0xff]
      %v4015 = vld [vmem:[#allocation3 + $0x3b8] sm:$0xff]
      %v4016 = vld [vmem:[#allocation3 + $0x3c0] sm:$0xff]
      %v4017 = vld [vmem:[#allocation3 + $0x3c8] sm:$0xf]
      %v4018 = vld [vmem:[#allocation3 + $0x3cc] sm:$0xff]
      %v4019 = vld [vmem:[#allocation3 + $0x3d4] sm:$0xff]
      %v4020 = vld [vmem:[#allocation3 + $0x3dc] sm:$0xff]
      %v4021 = vld [vmem:[#allocation3 + $0x3e4] sm:$0xff]
      %v4022 = vld [vmem:[#allocation3 + $0x3ec] sm:$0xf]
      %v4023 = vld [vmem:[#allocation3 + $0x3f0] sm:$0xff]
      %v4024 = vld [vmem:[#allocation3 + $0x3f8] sm:$0xff]
      %v4025 = vld [vmem:[#allocation3 + $0x400] sm:$0xff]
      %v4026 = vld [vmem:[#allocation3 + $0x408] sm:$0xff]
      %v4027 = vld [vmem:[#allocation3 + $0x410] sm:$0xf]
      %v4028 = vld [vmem:[#allocation3 + $0x414] sm:$0xff]
      %v4029 = vld [vmem:[#allocation3 + $0x41c] sm:$0xff]
      %v4030 = vld [vmem:[#allocation3 + $0x424] sm:$0xff]
      %v4031 = vld [vmem:[#allocation3 + $0x42c] sm:$0xff]
      %v4032 = vld [vmem:[#allocation3 + $0x434] sm:$0xf]
      %v4033 = vld [vmem:[#allocation3 + $0x438] sm:$0xff]
      %v4034 = vld [vmem:[#allocation3 + $0x440] sm:$0xff]
      %v4035 = vld [vmem:[#allocation3 + $0x448] sm:$0xff]
      %v4036 = vld [vmem:[#allocation3 + $0x450] sm:$0xff]
      %v4037 = vld [vmem:[#allocation3 + $0x458] sm:$0xf]
      %v4038 = vld [vmem:[#allocation3 + $0x45c] sm:$0xff]
      %v4039 = vld [vmem:[#allocation3 + $0x464] sm:$0xff]
      %v4040 = vld [vmem:[#allocation3 + $0x46c] sm:$0xff]
      %v4041 = vld [vmem:[#allocation3 + $0x474] sm:$0xff]
      %v4042 = vld [vmem:[#allocation3 + $0x47c] sm:$0xf]
      %v4043 = vld [vmem:[%s5] sm:$0xf]
      %v4044 = vld [vmem:[%s5 + $0x4] sm:$0xf]
      %v4045 = vld [vmem:[%s5 + $0x8] sm:$0xf]
      %v4046 = vld [vmem:[%s5 + $0xc] sm:$0xf]
      %v4047 = vld [vmem:[%s5 + $0x10] sm:$0xf]
      %v4048 = vld [vmem:[%s5 + $0x14] sm:$0xf]
      %v4049 = vld [vmem:[%s5 + $0x18] sm:$0xf]
      %v4050 = vld [vmem:[%s5 + $0x1c] sm:$0xf]
      %v4051 = vld [vmem:[%s5 + $0x20] sm:$0xf]
      %v4052 = vld [vmem:[%s5 + $0x24] sm:$0xf]
      %v4053 = vld [vmem:[%s5 + $0x28] sm:$0xf]
      %v4054 = vld [vmem:[%s5 + $0x2c] sm:$0xf]
      %v4055 = vld [vmem:[%s5 + $0x30] sm:$0xf]
      %v4056 = vld [vmem:[%s5 + $0x34] sm:$0xf]
      %v4057 = vld [vmem:[%s5 + $0x38] sm:$0xf]
      %v4058 = vld [vmem:[%s5 + $0x3c] sm:$0xf]
      %v4059 = vld [vmem:[%s5 + $0x40] sm:$0xf]
      %v4060 = vld [vmem:[%s5 + $0x44] sm:$0xf]
      %v4061 = vld [vmem:[%s5 + $0x48] sm:$0xf]
      %v4062 = vld [vmem:[%s5 + $0x4c] sm:$0xf]
      %v4063 = vld [vmem:[%s5 + $0x50] sm:$0xf]
      %v4064 = vld [vmem:[%s5 + $0x54] sm:$0xf]
      %v4065 = vld [vmem:[%s5 + $0x58] sm:$0xf]
      %v4066 = vld [vmem:[%s5 + $0x5c] sm:$0xf]
      %v4067 = vld [vmem:[%s5 + $0x60] sm:$0xf]
      %v4068 = vld [vmem:[%s5 + $0x64] sm:$0xf]
      %v4069 = vld [vmem:[%s5 + $0x68] sm:$0xf]
      %v4070 = vld [vmem:[%s5 + $0x6c] sm:$0xf]
      %v4071 = vld [vmem:[%s5 + $0x70] sm:$0xf]
      %v4072 = vld [vmem:[%s5 + $0x74] sm:$0xf]
      %v4073 = vld [vmem:[%s5 + $0x78] sm:$0xf]
      %v4074 = vld [vmem:[%s5 + $0x7c] sm:$0xf]
      %v4075 = vld [vmem:[%s5 + $0x80] sm:$0xf]
      %v4076 = vld [vmem:[%s5 + $0x84] sm:$0xf]
      %v4077 = vld [vmem:[%s5 + $0x88] sm:$0xf]
      %v4078 = vld [vmem:[%s5 + $0x8c] sm:$0xf]
      %v4079 = vld [vmem:[%s5 + $0x90] sm:$0xf]
      %v4080 = vld [vmem:[%s5 + $0x94] sm:$0xf]
      %v4081 = vld [vmem:[%s5 + $0x98] sm:$0xf]
      %v4082 = vld [vmem:[%s5 + $0x9c] sm:$0xf]
      %v4083 = vld [vmem:[%s5 + $0xa0] sm:$0xf]
      %v4084 = vld [vmem:[%s5 + $0xa4] sm:$0xf]
      %v4085 = vld [vmem:[%s5 + $0xa8] sm:$0xf]
      %v4086 = vld [vmem:[%s5 + $0xac] sm:$0xf]
      %v4087 = vld [vmem:[%s5 + $0xb0] sm:$0xf]
      %v4088 = vld [vmem:[%s5 + $0xb4] sm:$0xf]
      %v4089 = vld [vmem:[%s5 + $0xb8] sm:$0xf]
      %v4090 = vld [vmem:[%s5 + $0xbc] sm:$0xf]
      %v4091 = vld [vmem:[%s5 + $0xc0] sm:$0xf]
      %v4092 = vld [vmem:[%s5 + $0xc4] sm:$0xf]
      %v4093 = vld [vmem:[%s5 + $0xc8] sm:$0xf]
      %v4094 = vld [vmem:[%s5 + $0xcc] sm:$0xf]
      %v4095 = vld [vmem:[%s5 + $0xd0] sm:$0xf]
      %v4096 = vld [vmem:[%s5 + $0xd4] sm:$0xf]
      %v4097 = vld [vmem:[%s5 + $0xd8] sm:$0xf]
      %v4098 = vld [vmem:[%s5 + $0xdc] sm:$0xf]
      %v4099 = vld [vmem:[%s5 + $0xe0] sm:$0xf]
      %v4100 = vld [vmem:[%s5 + $0xe4] sm:$0xf]
      %v4101 = vld [vmem:[%s5 + $0xe8] sm:$0xf]
      %v4102 = vld [vmem:[%s5 + $0xec] sm:$0xf]
      %v4103 = vld [vmem:[%s5 + $0xf0] sm:$0xf]
      %v4104 = vld [vmem:[%s5 + $0xf4] sm:$0xf]
      %v4105 = vld [vmem:[%s5 + $0xf8] sm:$0xf]
      %v4106 = vld [vmem:[%s5 + $0xfc] sm:$0xf]
      %v4107 = vld [vmem:[%s5 + $0x100] sm:$0xf]
      %v4108 = vld [vmem:[%s5 + $0x104] sm:$0xf]
      %v4109 = vld [vmem:[%s5 + $0x108] sm:$0xf]
      %v4110 = vld [vmem:[%s5 + $0x10c] sm:$0xf]
      %v4111 = vld [vmem:[%s5 + $0x110] sm:$0xf]
      %v4112 = vld [vmem:[%s5 + $0x114] sm:$0xf]
      %v4113 = vld [vmem:[%s5 + $0x118] sm:$0xf]
      %v4114 = vld [vmem:[%s5 + $0x11c] sm:$0xf]
      %v4115 = vld [vmem:[%s5 + $0x120] sm:$0xf]
      %v4116 = vld [vmem:[%s5 + $0x124] sm:$0xf]
      %v4117 = vld [vmem:[%s5 + $0x128] sm:$0xf]
      %v4118 = vld [vmem:[%s5 + $0x12c] sm:$0xf]
      %v4119 = vld [vmem:[%s5 + $0x130] sm:$0xf]
      %v4120 = vld [vmem:[%s5 + $0x134] sm:$0xf]
      %v4121 = vld [vmem:[%s5 + $0x138] sm:$0xf]
      %v4122 = vld [vmem:[%s5 + $0x13c] sm:$0xf]
      %v4123 = vld [vmem:[%s5 + $0x140] sm:$0xf]
      %v4124 = vld [vmem:[%s5 + $0x144] sm:$0xf]
      %v4125 = vld [vmem:[%s5 + $0x148] sm:$0xf]
      %v4126 = vld [vmem:[%s5 + $0x14c] sm:$0xf]
      %v4127 = vld [vmem:[%s5 + $0x150] sm:$0xf]
      %v4128 = vld [vmem:[%s5 + $0x154] sm:$0xf]
      %v4129 = vld [vmem:[%s5 + $0x158] sm:$0xf]
      %v4130 = vld [vmem:[%s5 + $0x15c] sm:$0xf]
      %v4131 = vld [vmem:[%s5 + $0x160] sm:$0xf]
      %v4132 = vld [vmem:[%s5 + $0x164] sm:$0xf]
      %v4133 = vld [vmem:[%s5 + $0x168] sm:$0xf]
      %v4134 = vld [vmem:[%s5 + $0x16c] sm:$0xf]
      %v4135 = vld [vmem:[%s5 + $0x170] sm:$0xf]
      %v4136 = vld [vmem:[%s5 + $0x174] sm:$0xf]
      %v4137 = vld [vmem:[%s5 + $0x178] sm:$0xf]
      %v4138 = vld [vmem:[%s5 + $0x17c] sm:$0xf]
      %v4139 = vld [vmem:[%s5 + $0x180] sm:$0xf]
      %v4140 = vld [vmem:[%s5 + $0x184] sm:$0xf]
      %v4141 = vld [vmem:[%s5 + $0x188] sm:$0xf]
      %v4142 = vld [vmem:[%s5 + $0x18c] sm:$0xf]
      %v4143 = vld [vmem:[%s5 + $0x190] sm:$0xf]
      %v4144 = vld [vmem:[%s5 + $0x194] sm:$0xf]
      %v4145 = vld [vmem:[%s5 + $0x198] sm:$0xf]
      %v4146 = vld [vmem:[%s5 + $0x19c] sm:$0xf]
      %v4147 = vld [vmem:[%s5 + $0x1a0] sm:$0xf]
      %v4148 = vld [vmem:[%s5 + $0x1a4] sm:$0xf]
      %v4149 = vld [vmem:[%s5 + $0x1a8] sm:$0xf]
      %v4150 = vld [vmem:[%s5 + $0x1ac] sm:$0xf]
      %v4151 = vld [vmem:[%s5 + $0x1b0] sm:$0xf]
      %v4152 = vld [vmem:[%s5 + $0x1b4] sm:$0xf]
      %v4153 = vld [vmem:[%s5 + $0x1b8] sm:$0xf]
      %v4154 = vld [vmem:[%s5 + $0x1bc] sm:$0xf]
      %v4155 = vld [vmem:[%s5 + $0x1c0] sm:$0xf]
      %v4156 = vld [vmem:[%s5 + $0x1c4] sm:$0xf]
      %v4157 = vld [vmem:[%s5 + $0x1c8] sm:$0xf]
      %v4158 = vld [vmem:[%s5 + $0x1cc] sm:$0xf]
      %v4159 = vld [vmem:[%s5 + $0x1d0] sm:$0xf]
      %v4160 = vld [vmem:[%s5 + $0x1d4] sm:$0xf]
      %v4161 = vld [vmem:[%s5 + $0x1d8] sm:$0xf]
      %v4162 = vld [vmem:[%s5 + $0x1dc] sm:$0xf]
      %v4163 = vld [vmem:[%s5 + $0x1e0] sm:$0xf]
      %v4164 = vld [vmem:[%s5 + $0x1e4] sm:$0xf]
      %v4165 = vld [vmem:[%s5 + $0x1e8] sm:$0xf]
      %v4166 = vld [vmem:[%s5 + $0x1ec] sm:$0xf]
      %v4167 = vld [vmem:[%s5 + $0x1f0] sm:$0xf]
      %v4168 = vld [vmem:[%s5 + $0x1f4] sm:$0xf]
      %v4169 = vld [vmem:[%s5 + $0x1f8] sm:$0xf]
      %v4170 = vld [vmem:[%s5 + $0x1fc] sm:$0xf]
      %v4171 = vld [vmem:[%s5 + $0x200] sm:$0xf]
      %v4172 = vld [vmem:[%s5 + $0x204] sm:$0xf]
      %v4173 = vld [vmem:[%s5 + $0x208] sm:$0xf]
      %v4174 = vld [vmem:[%s5 + $0x20c] sm:$0xf]
      %v4175 = vld [vmem:[%s5 + $0x210] sm:$0xf]
      %v4176 = vld [vmem:[%s5 + $0x214] sm:$0xf]
      %v4177 = vld [vmem:[%s5 + $0x218] sm:$0xf]
      %v4178 = vld [vmem:[%s5 + $0x21c] sm:$0xf]
      %v4179 = vld [vmem:[%s5 + $0x220] sm:$0xf]
      %v4180 = vld [vmem:[%s5 + $0x224] sm:$0xf]
      %v4181 = vld [vmem:[%s5 + $0x228] sm:$0xf]
      %v4182 = vld [vmem:[%s5 + $0x22c] sm:$0xf]
      %v4183 = vld [vmem:[%s5 + $0x230] sm:$0xf]
      %v4184 = vld [vmem:[%s5 + $0x234] sm:$0xf]
      %v4185 = vld [vmem:[%s5 + $0x238] sm:$0xf]
      %v4186 = vld [vmem:[%s5 + $0x23c] sm:$0xf]
      %v4347 = vunpack.c.l.b16 %v3883
      %v4348 = vunpack.c.h.b16 %v3883
      %v4349 = vunpack.c.l.b16 %v3884
      %v4350 = vunpack.c.h.b16 %v3884
      %v4351 = vunpack.c.l.b16 %v3885
      %v4352 = vunpack.c.h.b16 %v3885
      %v4353 = vunpack.c.l.b16 %v3886
      %v4354 = vunpack.c.h.b16 %v3886
      %v4355 = vunpack.c.l.b16 %v3887
      %v4356 = vunpack.c.l.b16 %v3888
      %v4357 = vunpack.c.h.b16 %v3888
      %v4358 = vunpack.c.l.b16 %v3889
      %v4359 = vunpack.c.h.b16 %v3889
      %v4360 = vunpack.c.l.b16 %v3890
      %v4361 = vunpack.c.h.b16 %v3890
      %v4362 = vunpack.c.l.b16 %v3891
      %v4363 = vunpack.c.h.b16 %v3891
      %v4364 = vunpack.c.l.b16 %v3892
      %v4365 = vunpack.c.l.b16 %v3893
      %v4366 = vunpack.c.h.b16 %v3893
      %v4367 = vunpack.c.l.b16 %v3894
      %v4368 = vunpack.c.h.b16 %v3894
      %v4369 = vunpack.c.l.b16 %v3895
      %v4370 = vunpack.c.h.b16 %v3895
      %v4371 = vunpack.c.l.b16 %v3896
      %v4372 = vunpack.c.h.b16 %v3896
      %v4373 = vunpack.c.l.b16 %v3897
      %v4374 = vunpack.c.l.b16 %v3898
      %v4375 = vunpack.c.h.b16 %v3898
      %v4376 = vunpack.c.l.b16 %v3899
      %v4377 = vunpack.c.h.b16 %v3899
      %v4378 = vunpack.c.l.b16 %v3900
      %v4379 = vunpack.c.h.b16 %v3900
      %v4380 = vunpack.c.l.b16 %v3901
      %v4381 = vunpack.c.h.b16 %v3901
      %v4382 = vunpack.c.l.b16 %v3902
      %v4383 = vunpack.c.l.b16 %v3903
      %v4384 = vunpack.c.h.b16 %v3903
      %v4385 = vunpack.c.l.b16 %v3904
      %v4386 = vunpack.c.h.b16 %v3904
      %v4387 = vunpack.c.l.b16 %v3905
      %v4388 = vunpack.c.h.b16 %v3905
      %v4389 = vunpack.c.l.b16 %v3906
      %v4390 = vunpack.c.h.b16 %v3906
      %v4391 = vunpack.c.l.b16 %v3907
      %v4392 = vunpack.c.l.b16 %v3908
      %v4393 = vunpack.c.h.b16 %v3908
      %v4394 = vunpack.c.l.b16 %v3909
      %v4395 = vunpack.c.h.b16 %v3909
      %v4396 = vunpack.c.l.b16 %v3910
      %v4397 = vunpack.c.h.b16 %v3910
      %v4398 = vunpack.c.l.b16 %v3911
      %v4399 = vunpack.c.h.b16 %v3911
      %v4400 = vunpack.c.l.b16 %v3912
      %v4401 = vunpack.c.l.b16 %v3913
      %v4402 = vunpack.c.h.b16 %v3913
      %v4403 = vunpack.c.l.b16 %v3914
      %v4404 = vunpack.c.h.b16 %v3914
      %v4405 = vunpack.c.l.b16 %v3915
      %v4406 = vunpack.c.h.b16 %v3915
      %v4407 = vunpack.c.l.b16 %v3916
      %v4408 = vunpack.c.h.b16 %v3916
      %v4409 = vunpack.c.l.b16 %v3917
      %v4410 = vunpack.c.l.b16 %v3918
      %v4411 = vunpack.c.h.b16 %v3918
      %v4412 = vunpack.c.l.b16 %v3919
      %v4413 = vunpack.c.h.b16 %v3919
      %v4414 = vunpack.c.l.b16 %v3920
      %v4415 = vunpack.c.h.b16 %v3920
      %v4416 = vunpack.c.l.b16 %v3921
      %v4417 = vunpack.c.h.b16 %v3921
      %v4418 = vunpack.c.l.b16 %v3922
      %v4419 = vunpack.c.l.b16 %v3923
      %v4420 = vunpack.c.h.b16 %v3923
      %v4421 = vunpack.c.l.b16 %v3924
      %v4422 = vunpack.c.h.b16 %v3924
      %v4423 = vunpack.c.l.b16 %v3925
      %v4424 = vunpack.c.h.b16 %v3925
      %v4425 = vunpack.c.l.b16 %v3926
      %v4426 = vunpack.c.h.b16 %v3926
      %v4427 = vunpack.c.l.b16 %v3927
      %v4428 = vunpack.c.l.b16 %v3928
      %v4429 = vunpack.c.h.b16 %v3928
      %v4430 = vunpack.c.l.b16 %v3929
      %v4431 = vunpack.c.h.b16 %v3929
      %v4432 = vunpack.c.l.b16 %v3930
      %v4433 = vunpack.c.h.b16 %v3930
      %v4434 = vunpack.c.l.b16 %v3931
      %v4435 = vunpack.c.h.b16 %v3931
      %v4436 = vunpack.c.l.b16 %v3932
      %v4437 = vunpack.c.l.b16 %v3933
      %v4438 = vunpack.c.h.b16 %v3933
      %v4439 = vunpack.c.l.b16 %v3934
      %v4440 = vunpack.c.h.b16 %v3934
      %v4441 = vunpack.c.l.b16 %v3935
      %v4442 = vunpack.c.h.b16 %v3935
      %v4443 = vunpack.c.l.b16 %v3936
      %v4444 = vunpack.c.h.b16 %v3936
      %v4445 = vunpack.c.l.b16 %v3937
      %v4446 = vunpack.c.l.b16 %v3938
      %v4447 = vunpack.c.h.b16 %v3938
      %v4448 = vunpack.c.l.b16 %v3939
      %v4449 = vunpack.c.h.b16 %v3939
      %v4450 = vunpack.c.l.b16 %v3940
      %v4451 = vunpack.c.h.b16 %v3940
      %v4452 = vunpack.c.l.b16 %v3941
      %v4453 = vunpack.c.h.b16 %v3941
      %v4454 = vunpack.c.l.b16 %v3942
      %v4455 = vunpack.c.l.b16 %v3943
      %v4456 = vunpack.c.h.b16 %v3943
      %v4457 = vunpack.c.l.b16 %v3944
      %v4458 = vunpack.c.h.b16 %v3944
      %v4459 = vunpack.c.l.b16 %v3945
      %v4460 = vunpack.c.h.b16 %v3945
      %v4461 = vunpack.c.l.b16 %v3946
      %v4462 = vunpack.c.h.b16 %v3946
      %v4463 = vunpack.c.l.b16 %v3947
      %v4464 = vunpack.c.l.b16 %v3948
      %v4465 = vunpack.c.h.b16 %v3948
      %v4466 = vunpack.c.l.b16 %v3949
      %v4467 = vunpack.c.h.b16 %v3949
      %v4468 = vunpack.c.l.b16 %v3950
      %v4469 = vunpack.c.h.b16 %v3950
      %v4470 = vunpack.c.l.b16 %v3951
      %v4471 = vunpack.c.h.b16 %v3951
      %v4472 = vunpack.c.l.b16 %v3952
      %v4473 = vunpack.c.l.b16 %v3953
      %v4474 = vunpack.c.h.b16 %v3953
      %v4475 = vunpack.c.l.b16 %v3954
      %v4476 = vunpack.c.h.b16 %v3954
      %v4477 = vunpack.c.l.b16 %v3955
      %v4478 = vunpack.c.h.b16 %v3955
      %v4479 = vunpack.c.l.b16 %v3956
      %v4480 = vunpack.c.h.b16 %v3956
      %v4481 = vunpack.c.l.b16 %v3957
      %v4482 = vunpack.c.l.b16 %v3958
      %v4483 = vunpack.c.h.b16 %v3958
      %v4484 = vunpack.c.l.b16 %v3959
      %v4485 = vunpack.c.h.b16 %v3959
      %v4486 = vunpack.c.l.b16 %v3960
      %v4487 = vunpack.c.h.b16 %v3960
      %v4488 = vunpack.c.l.b16 %v3961
      %v4489 = vunpack.c.h.b16 %v3961
      %v4490 = vunpack.c.l.b16 %v3962
      %v4491 = vunpack.c.l.b16 %v3963
      %v4492 = vunpack.c.h.b16 %v3963
      %v4493 = vunpack.c.l.b16 %v3964
      %v4494 = vunpack.c.h.b16 %v3964
      %v4495 = vunpack.c.l.b16 %v3965
      %v4496 = vunpack.c.h.b16 %v3965
      %v4497 = vunpack.c.l.b16 %v3966
      %v4498 = vunpack.c.h.b16 %v3966
      %v4499 = vunpack.c.l.b16 %v3967
      %v4500 = vunpack.c.l.b16 %v3968
      %v4501 = vunpack.c.h.b16 %v3968
      %v4502 = vunpack.c.l.b16 %v3969
      %v4503 = vunpack.c.h.b16 %v3969
      %v4504 = vunpack.c.l.b16 %v3970
      %v4505 = vunpack.c.h.b16 %v3970
      %v4506 = vunpack.c.l.b16 %v3971
      %v4507 = vunpack.c.h.b16 %v3971
      %v4508 = vunpack.c.l.b16 %v3972
      %v4509 = vunpack.c.l.b16 %v3973
      %v4510 = vunpack.c.h.b16 %v3973
      %v4511 = vunpack.c.l.b16 %v3974
      %v4512 = vunpack.c.h.b16 %v3974
      %v4513 = vunpack.c.l.b16 %v3975
      %v4514 = vunpack.c.h.b16 %v3975
      %v4515 = vunpack.c.l.b16 %v3976
      %v4516 = vunpack.c.h.b16 %v3976
      %v4517 = vunpack.c.l.b16 %v3977
      %v4518 = vunpack.c.l.b16 %v3978
      %v4519 = vunpack.c.h.b16 %v3978
      %v4520 = vunpack.c.l.b16 %v3979
      %v4521 = vunpack.c.h.b16 %v3979
      %v4522 = vunpack.c.l.b16 %v3980
      %v4523 = vunpack.c.h.b16 %v3980
      %v4524 = vunpack.c.l.b16 %v3981
      %v4525 = vunpack.c.h.b16 %v3981
      %v4526 = vunpack.c.l.b16 %v3982
      %v4527 = vunpack.c.l.b16 %v3983
      %v4528 = vunpack.c.h.b16 %v3983
      %v4529 = vunpack.c.l.b16 %v3984
      %v4530 = vunpack.c.h.b16 %v3984
      %v4531 = vunpack.c.l.b16 %v3985
      %v4532 = vunpack.c.h.b16 %v3985
      %v4533 = vunpack.c.l.b16 %v3986
      %v4534 = vunpack.c.h.b16 %v3986
      %v4535 = vunpack.c.l.b16 %v3987
      %v4536 = vunpack.c.l.b16 %v3988
      %v4537 = vunpack.c.h.b16 %v3988
      %v4538 = vunpack.c.l.b16 %v3989
      %v4539 = vunpack.c.h.b16 %v3989
      %v4540 = vunpack.c.l.b16 %v3990
      %v4541 = vunpack.c.h.b16 %v3990
      %v4542 = vunpack.c.l.b16 %v3991
      %v4543 = vunpack.c.h.b16 %v3991
      %v4544 = vunpack.c.l.b16 %v3992
      %v4545 = vunpack.c.l.b16 %v3993
      %v4546 = vunpack.c.h.b16 %v3993
      %v4547 = vunpack.c.l.b16 %v3994
      %v4548 = vunpack.c.h.b16 %v3994
      %v4549 = vunpack.c.l.b16 %v3995
      %v4550 = vunpack.c.h.b16 %v3995
      %v4551 = vunpack.c.l.b16 %v3996
      %v4552 = vunpack.c.h.b16 %v3996
      %v4553 = vunpack.c.l.b16 %v3997
      %v4554 = vunpack.c.l.b16 %v3998
      %v4555 = vunpack.c.h.b16 %v3998
      %v4556 = vunpack.c.l.b16 %v3999
      %v4557 = vunpack.c.h.b16 %v3999
      %v4558 = vunpack.c.l.b16 %v4000
      %v4559 = vunpack.c.h.b16 %v4000
      %v4560 = vunpack.c.l.b16 %v4001
      %v4561 = vunpack.c.h.b16 %v4001
      %v4562 = vunpack.c.l.b16 %v4002
      %v4563 = vunpack.c.l.b16 %v4003
      %v4564 = vunpack.c.h.b16 %v4003
      %v4565 = vunpack.c.l.b16 %v4004
      %v4566 = vunpack.c.h.b16 %v4004
      %v4567 = vunpack.c.l.b16 %v4005
      %v4568 = vunpack.c.h.b16 %v4005
      %v4569 = vunpack.c.l.b16 %v4006
      %v4570 = vunpack.c.h.b16 %v4006
      %v4571 = vunpack.c.l.b16 %v4007
      %v4572 = vunpack.c.l.b16 %v4008
      %v4573 = vunpack.c.h.b16 %v4008
      %v4574 = vunpack.c.l.b16 %v4009
      %v4575 = vunpack.c.h.b16 %v4009
      %v4576 = vunpack.c.l.b16 %v4010
      %v4577 = vunpack.c.h.b16 %v4010
      %v4578 = vunpack.c.l.b16 %v4011
      %v4579 = vunpack.c.h.b16 %v4011
      %v4580 = vunpack.c.l.b16 %v4012
      %v4581 = vunpack.c.l.b16 %v4013
      %v4582 = vunpack.c.h.b16 %v4013
      %v4583 = vunpack.c.l.b16 %v4014
      %v4584 = vunpack.c.h.b16 %v4014
      %v4585 = vunpack.c.l.b16 %v4015
      %v4586 = vunpack.c.h.b16 %v4015
      %v4587 = vunpack.c.l.b16 %v4016
      %v4588 = vunpack.c.h.b16 %v4016
      %v4589 = vunpack.c.l.b16 %v4017
      %v4590 = vunpack.c.l.b16 %v4018
      %v4591 = vunpack.c.h.b16 %v4018
      %v4592 = vunpack.c.l.b16 %v4019
      %v4593 = vunpack.c.h.b16 %v4019
      %v4594 = vunpack.c.l.b16 %v4020
      %v4595 = vunpack.c.h.b16 %v4020
      %v4596 = vunpack.c.l.b16 %v4021
      %v4597 = vunpack.c.h.b16 %v4021
      %v4598 = vunpack.c.l.b16 %v4022
      %v4599 = vunpack.c.l.b16 %v4023
      %v4600 = vunpack.c.h.b16 %v4023
      %v4601 = vunpack.c.l.b16 %v4024
      %v4602 = vunpack.c.h.b16 %v4024
      %v4603 = vunpack.c.l.b16 %v4025
      %v4604 = vunpack.c.h.b16 %v4025
      %v4605 = vunpack.c.l.b16 %v4026
      %v4606 = vunpack.c.h.b16 %v4026
      %v4607 = vunpack.c.l.b16 %v4027
      %v4608 = vunpack.c.l.b16 %v4028
      %v4609 = vunpack.c.h.b16 %v4028
      %v4610 = vunpack.c.l.b16 %v4029
      %v4611 = vunpack.c.h.b16 %v4029
      %v4612 = vunpack.c.l.b16 %v4030
      %v4613 = vunpack.c.h.b16 %v4030
      %v4614 = vunpack.c.l.b16 %v4031
      %v4615 = vunpack.c.h.b16 %v4031
      %v4616 = vunpack.c.l.b16 %v4032
      %v4617 = vunpack.c.l.b16 %v4033
      %v4618 = vunpack.c.h.b16 %v4033
      %v4619 = vunpack.c.l.b16 %v4034
      %v4620 = vunpack.c.h.b16 %v4034
      %v4621 = vunpack.c.l.b16 %v4035
      %v4622 = vunpack.c.h.b16 %v4035
      %v4623 = vunpack.c.l.b16 %v4036
      %v4624 = vunpack.c.h.b16 %v4036
      %v4625 = vunpack.c.l.b16 %v4037
      %v4626 = vunpack.c.l.b16 %v4038
      %v4627 = vunpack.c.h.b16 %v4038
      %v4628 = vunpack.c.l.b16 %v4039
      %v4629 = vunpack.c.h.b16 %v4039
      %v4630 = vunpack.c.l.b16 %v4040
      %v4631 = vunpack.c.h.b16 %v4040
      %v4632 = vunpack.c.l.b16 %v4041
      %v4633 = vunpack.c.h.b16 %v4041
      %v4634 = vunpack.c.l.b16 %v4042
      %v4635 = vpack.c.b16 %v4356, %v4347
      %v4636 = vpack.c.b16 %v4357, %v4348
      %v4637 = vpack.c.b16 %v4358, %v4349
      %v4638 = vpack.c.b16 %v4359, %v4350
      %v4639 = vpack.c.b16 %v4360, %v4351
      %v4640 = vpack.c.b16 %v4361, %v4352
      %v4641 = vpack.c.b16 %v4362, %v4353
      %v4642 = vpack.c.b16 %v4363, %v4354
      %v4643 = vpack.c.b16 %v4364, %v4355
      %v4644 = vpack.c.b16 %v4374, %v4365
      %v4645 = vpack.c.b16 %v4375, %v4366
      %v4646 = vpack.c.b16 %v4376, %v4367
      %v4647 = vpack.c.b16 %v4377, %v4368
      %v4648 = vpack.c.b16 %v4378, %v4369
      %v4649 = vpack.c.b16 %v4379, %v4370
      %v4650 = vpack.c.b16 %v4380, %v4371
      %v4651 = vpack.c.b16 %v4381, %v4372
      %v4652 = vpack.c.b16 %v4382, %v4373
      %v4653 = vpack.c.b16 %v4392, %v4383
      %v4654 = vpack.c.b16 %v4393, %v4384
      %v4655 = vpack.c.b16 %v4394, %v4385
      %v4656 = vpack.c.b16 %v4395, %v4386
      %v4657 = vpack.c.b16 %v4396, %v4387
      %v4658 = vpack.c.b16 %v4397, %v4388
      %v4659 = vpack.c.b16 %v4398, %v4389
      %v4660 = vpack.c.b16 %v4399, %v4390
      %v4661 = vpack.c.b16 %v4400, %v4391
      %v4662 = vpack.c.b16 %v4410, %v4401
      %v4663 = vpack.c.b16 %v4411, %v4402
      %v4664 = vpack.c.b16 %v4412, %v4403
      %v4665 = vpack.c.b16 %v4413, %v4404
      %v4666 = vpack.c.b16 %v4414, %v4405
      %v4667 = vpack.c.b16 %v4415, %v4406
      %v4668 = vpack.c.b16 %v4416, %v4407
      %v4669 = vpack.c.b16 %v4417, %v4408
      %v4670 = vpack.c.b16 %v4418, %v4409
      %v4671 = vpack.c.b16 %v4428, %v4419
      %v4672 = vpack.c.b16 %v4429, %v4420
      %v4673 = vpack.c.b16 %v4430, %v4421
      %v4674 = vpack.c.b16 %v4431, %v4422
      %v4675 = vpack.c.b16 %v4432, %v4423
      %v4676 = vpack.c.b16 %v4433, %v4424
      %v4677 = vpack.c.b16 %v4434, %v4425
      %v4678 = vpack.c.b16 %v4435, %v4426
      %v4679 = vpack.c.b16 %v4436, %v4427
      %v4680 = vpack.c.b16 %v4446, %v4437
      %v4681 = vpack.c.b16 %v4447, %v4438
      %v4682 = vpack.c.b16 %v4448, %v4439
      %v4683 = vpack.c.b16 %v4449, %v4440
      %v4684 = vpack.c.b16 %v4450, %v4441
      %v4685 = vpack.c.b16 %v4451, %v4442
      %v4686 = vpack.c.b16 %v4452, %v4443
      %v4687 = vpack.c.b16 %v4453, %v4444
      %v4688 = vpack.c.b16 %v4454, %v4445
      %v4689 = vpack.c.b16 %v4464, %v4455
      %v4690 = vpack.c.b16 %v4465, %v4456
      %v4691 = vpack.c.b16 %v4466, %v4457
      %v4692 = vpack.c.b16 %v4467, %v4458
      %v4693 = vpack.c.b16 %v4468, %v4459
      %v4694 = vpack.c.b16 %v4469, %v4460
      %v4695 = vpack.c.b16 %v4470, %v4461
      %v4696 = vpack.c.b16 %v4471, %v4462
      %v4697 = vpack.c.b16 %v4472, %v4463
      %v4698 = vpack.c.b16 %v4482, %v4473
      %v4699 = vpack.c.b16 %v4483, %v4474
      %v4700 = vpack.c.b16 %v4484, %v4475
      %v4701 = vpack.c.b16 %v4485, %v4476
      %v4702 = vpack.c.b16 %v4486, %v4477
      %v4703 = vpack.c.b16 %v4487, %v4478
      %v4704 = vpack.c.b16 %v4488, %v4479
      %v4705 = vpack.c.b16 %v4489, %v4480
      %v4706 = vpack.c.b16 %v4490, %v4481
      %v4707 = vpack.c.b16 %v4500, %v4491
      %v4708 = vpack.c.b16 %v4501, %v4492
      %v4709 = vpack.c.b16 %v4502, %v4493
      %v4710 = vpack.c.b16 %v4503, %v4494
      %v4711 = vpack.c.b16 %v4504, %v4495
      %v4712 = vpack.c.b16 %v4505, %v4496
      %v4713 = vpack.c.b16 %v4506, %v4497
      %v4714 = vpack.c.b16 %v4507, %v4498
      %v4715 = vpack.c.b16 %v4508, %v4499
      %v4716 = vpack.c.b16 %v4518, %v4509
      %v4717 = vpack.c.b16 %v4519, %v4510
      %v4718 = vpack.c.b16 %v4520, %v4511
      %v4719 = vpack.c.b16 %v4521, %v4512
      %v4720 = vpack.c.b16 %v4522, %v4513
      %v4721 = vpack.c.b16 %v4523, %v4514
      %v4722 = vpack.c.b16 %v4524, %v4515
      %v4723 = vpack.c.b16 %v4525, %v4516
      %v4724 = vpack.c.b16 %v4526, %v4517
      %v4725 = vpack.c.b16 %v4536, %v4527
      %v4726 = vpack.c.b16 %v4537, %v4528
      %v4727 = vpack.c.b16 %v4538, %v4529
      %v4728 = vpack.c.b16 %v4539, %v4530
      %v4729 = vpack.c.b16 %v4540, %v4531
      %v4730 = vpack.c.b16 %v4541, %v4532
      %v4731 = vpack.c.b16 %v4542, %v4533
      %v4732 = vpack.c.b16 %v4543, %v4534
      %v4733 = vpack.c.b16 %v4544, %v4535
      %v4734 = vpack.c.b16 %v4554, %v4545
      %v4735 = vpack.c.b16 %v4555, %v4546
      %v4736 = vpack.c.b16 %v4556, %v4547
      %v4737 = vpack.c.b16 %v4557, %v4548
      %v4738 = vpack.c.b16 %v4558, %v4549
      %v4739 = vpack.c.b16 %v4559, %v4550
      %v4740 = vpack.c.b16 %v4560, %v4551
      %v4741 = vpack.c.b16 %v4561, %v4552
      %v4742 = vpack.c.b16 %v4562, %v4553
      %v4743 = vpack.c.b16 %v4572, %v4563
      %v4744 = vpack.c.b16 %v4573, %v4564
      %v4745 = vpack.c.b16 %v4574, %v4565
      %v4746 = vpack.c.b16 %v4575, %v4566
      %v4747 = vpack.c.b16 %v4576, %v4567
      %v4748 = vpack.c.b16 %v4577, %v4568
      %v4749 = vpack.c.b16 %v4578, %v4569
      %v4750 = vpack.c.b16 %v4579, %v4570
      %v4751 = vpack.c.b16 %v4580, %v4571
      %v4752 = vpack.c.b16 %v4590, %v4581
      %v4753 = vpack.c.b16 %v4591, %v4582
      %v4754 = vpack.c.b16 %v4592, %v4583
      %v4755 = vpack.c.b16 %v4593, %v4584
      %v4756 = vpack.c.b16 %v4594, %v4585
      %v4757 = vpack.c.b16 %v4595, %v4586
      %v4758 = vpack.c.b16 %v4596, %v4587
      %v4759 = vpack.c.b16 %v4597, %v4588
      %v4760 = vpack.c.b16 %v4598, %v4589
      %v4761 = vpack.c.b16 %v4608, %v4599
      %v4762 = vpack.c.b16 %v4609, %v4600
      %v4763 = vpack.c.b16 %v4610, %v4601
      %v4764 = vpack.c.b16 %v4611, %v4602
      %v4765 = vpack.c.b16 %v4612, %v4603
      %v4766 = vpack.c.b16 %v4613, %v4604
      %v4767 = vpack.c.b16 %v4614, %v4605
      %v4768 = vpack.c.b16 %v4615, %v4606
      %v4769 = vpack.c.b16 %v4616, %v4607
      %v4770 = vpack.c.b16 %v4626, %v4617
      %v4771 = vpack.c.b16 %v4627, %v4618
      %v4772 = vpack.c.b16 %v4628, %v4619
      %v4773 = vpack.c.b16 %v4629, %v4620
      %v4774 = vpack.c.b16 %v4630, %v4621
      %v4775 = vpack.c.b16 %v4631, %v4622
      %v4776 = vpack.c.b16 %v4632, %v4623
      %v4777 = vpack.c.b16 %v4633, %v4624
      %v4778 = vpack.c.b16 %v4634, %v4625
      %v5067 = vunpack.c.l.b16 %v4043
      %v5068 = vunpack.c.l.b16 %v4044
      %v5069 = vunpack.c.l.b16 %v4045
      %v5070 = vunpack.c.l.b16 %v4046
      %v5071 = vunpack.c.l.b16 %v4047
      %v5072 = vunpack.c.l.b16 %v4048
      %v5073 = vunpack.c.l.b16 %v4049
      %v5074 = vunpack.c.l.b16 %v4050
      %v5075 = vunpack.c.l.b16 %v4051
      %v5076 = vunpack.c.l.b16 %v4052
      %v5077 = vunpack.c.l.b16 %v4053
      %v5078 = vunpack.c.l.b16 %v4054
      %v5079 = vunpack.c.l.b16 %v4055
      %v5080 = vunpack.c.l.b16 %v4056
      %v5081 = vunpack.c.l.b16 %v4057
      %v5082 = vunpack.c.l.b16 %v4058
      %v5083 = vunpack.c.l.b16 %v4059
      %v5084 = vunpack.c.l.b16 %v4060
      %v5085 = vunpack.c.l.b16 %v4061
      %v5086 = vunpack.c.l.b16 %v4062
      %v5087 = vunpack.c.l.b16 %v4063
      %v5088 = vunpack.c.l.b16 %v4064
      %v5089 = vunpack.c.l.b16 %v4065
      %v5090 = vunpack.c.l.b16 %v4066
      %v5091 = vunpack.c.l.b16 %v4067
      %v5092 = vunpack.c.l.b16 %v4068
      %v5093 = vunpack.c.l.b16 %v4069
      %v5094 = vunpack.c.l.b16 %v4070
      %v5095 = vunpack.c.l.b16 %v4071
      %v5096 = vunpack.c.l.b16 %v4072
      %v5097 = vunpack.c.l.b16 %v4073
      %v5098 = vunpack.c.l.b16 %v4074
      %v5099 = vunpack.c.l.b16 %v4075
      %v5100 = vunpack.c.l.b16 %v4076
      %v5101 = vunpack.c.l.b16 %v4077
      %v5102 = vunpack.c.l.b16 %v4078
      %v5103 = vunpack.c.l.b16 %v4079
      %v5104 = vunpack.c.l.b16 %v4080
      %v5105 = vunpack.c.l.b16 %v4081
      %v5106 = vunpack.c.l.b16 %v4082
      %v5107 = vunpack.c.l.b16 %v4083
      %v5108 = vunpack.c.l.b16 %v4084
      %v5109 = vunpack.c.l.b16 %v4085
      %v5110 = vunpack.c.l.b16 %v4086
      %v5111 = vunpack.c.l.b16 %v4087
      %v5112 = vunpack.c.l.b16 %v4088
      %v5113 = vunpack.c.l.b16 %v4089
      %v5114 = vunpack.c.l.b16 %v4090
      %v5115 = vunpack.c.l.b16 %v4091
      %v5116 = vunpack.c.l.b16 %v4092
      %v5117 = vunpack.c.l.b16 %v4093
      %v5118 = vunpack.c.l.b16 %v4094
      %v5119 = vunpack.c.l.b16 %v4095
      %v5120 = vunpack.c.l.b16 %v4096
      %v5121 = vunpack.c.l.b16 %v4097
      %v5122 = vunpack.c.l.b16 %v4098
      %v5123 = vunpack.c.l.b16 %v4099
      %v5124 = vunpack.c.l.b16 %v4100
      %v5125 = vunpack.c.l.b16 %v4101
      %v5126 = vunpack.c.l.b16 %v4102
      %v5127 = vunpack.c.l.b16 %v4103
      %v5128 = vunpack.c.l.b16 %v4104
      %v5129 = vunpack.c.l.b16 %v4105
      %v5130 = vunpack.c.l.b16 %v4106
      %v5131 = vunpack.c.l.b16 %v4107
      %v5132 = vunpack.c.l.b16 %v4108
      %v5133 = vunpack.c.l.b16 %v4109
      %v5134 = vunpack.c.l.b16 %v4110
      %v5135 = vunpack.c.l.b16 %v4111
      %v5136 = vunpack.c.l.b16 %v4112
      %v5137 = vunpack.c.l.b16 %v4113
      %v5138 = vunpack.c.l.b16 %v4114
      %v5139 = vunpack.c.l.b16 %v4115
      %v5140 = vunpack.c.l.b16 %v4116
      %v5141 = vunpack.c.l.b16 %v4117
      %v5142 = vunpack.c.l.b16 %v4118
      %v5143 = vunpack.c.l.b16 %v4119
      %v5144 = vunpack.c.l.b16 %v4120
      %v5145 = vunpack.c.l.b16 %v4121
      %v5146 = vunpack.c.l.b16 %v4122
      %v5147 = vunpack.c.l.b16 %v4123
      %v5148 = vunpack.c.l.b16 %v4124
      %v5149 = vunpack.c.l.b16 %v4125
      %v5150 = vunpack.c.l.b16 %v4126
      %v5151 = vunpack.c.l.b16 %v4127
      %v5152 = vunpack.c.l.b16 %v4128
      %v5153 = vunpack.c.l.b16 %v4129
      %v5154 = vunpack.c.l.b16 %v4130
      %v5155 = vunpack.c.l.b16 %v4131
      %v5156 = vunpack.c.l.b16 %v4132
      %v5157 = vunpack.c.l.b16 %v4133
      %v5158 = vunpack.c.l.b16 %v4134
      %v5159 = vunpack.c.l.b16 %v4135
      %v5160 = vunpack.c.l.b16 %v4136
      %v5161 = vunpack.c.l.b16 %v4137
      %v5162 = vunpack.c.l.b16 %v4138
      %v5163 = vunpack.c.l.b16 %v4139
      %v5164 = vunpack.c.l.b16 %v4140
      %v5165 = vunpack.c.l.b16 %v4141
      %v5166 = vunpack.c.l.b16 %v4142
      %v5167 = vunpack.c.l.b16 %v4143
      %v5168 = vunpack.c.l.b16 %v4144
      %v5169 = vunpack.c.l.b16 %v4145
      %v5170 = vunpack.c.l.b16 %v4146
      %v5171 = vunpack.c.l.b16 %v4147
      %v5172 = vunpack.c.l.b16 %v4148
      %v5173 = vunpack.c.l.b16 %v4149
      %v5174 = vunpack.c.l.b16 %v4150
      %v5175 = vunpack.c.l.b16 %v4151
      %v5176 = vunpack.c.l.b16 %v4152
      %v5177 = vunpack.c.l.b16 %v4153
      %v5178 = vunpack.c.l.b16 %v4154
      %v5179 = vunpack.c.l.b16 %v4155
      %v5180 = vunpack.c.l.b16 %v4156
      %v5181 = vunpack.c.l.b16 %v4157
      %v5182 = vunpack.c.l.b16 %v4158
      %v5183 = vunpack.c.l.b16 %v4159
      %v5184 = vunpack.c.l.b16 %v4160
      %v5185 = vunpack.c.l.b16 %v4161
      %v5186 = vunpack.c.l.b16 %v4162
      %v5187 = vunpack.c.l.b16 %v4163
      %v5188 = vunpack.c.l.b16 %v4164
      %v5189 = vunpack.c.l.b16 %v4165
      %v5190 = vunpack.c.l.b16 %v4166
      %v5191 = vunpack.c.l.b16 %v4167
      %v5192 = vunpack.c.l.b16 %v4168
      %v5193 = vunpack.c.l.b16 %v4169
      %v5194 = vunpack.c.l.b16 %v4170
      %v5195 = vunpack.c.l.b16 %v4171
      %v5196 = vunpack.c.l.b16 %v4172
      %v5197 = vunpack.c.l.b16 %v4173
      %v5198 = vunpack.c.l.b16 %v4174
      %v5199 = vunpack.c.l.b16 %v4175
      %v5200 = vunpack.c.l.b16 %v4176
      %v5201 = vunpack.c.l.b16 %v4177
      %v5202 = vunpack.c.l.b16 %v4178
      %v5203 = vunpack.c.l.b16 %v4179
      %v5204 = vunpack.c.l.b16 %v4180
      %v5205 = vunpack.c.l.b16 %v4181
      %v5206 = vunpack.c.l.b16 %v4182
      %v5207 = vunpack.c.l.b16 %v4183
      %v5208 = vunpack.c.l.b16 %v4184
      %v5209 = vunpack.c.l.b16 %v4185
      %v5210 = vunpack.c.l.b16 %v4186
      %v5211 = vpack.c.b16 %v5068, %v5067
      %v5212 = vpack.c.b16 %v5070, %v5069
      %v5213 = vpack.c.b16 %v5072, %v5071
      %v5214 = vpack.c.b16 %v5074, %v5073
      %v5215 = vpack.c.b16 %v5076, %v5075
      %v5216 = vpack.c.b16 %v5078, %v5077
      %v5217 = vpack.c.b16 %v5080, %v5079
      %v5218 = vpack.c.b16 %v5082, %v5081
      %v5219 = vpack.c.b16 %v5084, %v5083
      %v5220 = vpack.c.b16 %v5086, %v5085
      %v5221 = vpack.c.b16 %v5088, %v5087
      %v5222 = vpack.c.b16 %v5090, %v5089
      %v5223 = vpack.c.b16 %v5092, %v5091
      %v5224 = vpack.c.b16 %v5094, %v5093
      %v5225 = vpack.c.b16 %v5096, %v5095
      %v5226 = vpack.c.b16 %v5098, %v5097
      %v5227 = vpack.c.b16 %v5100, %v5099
      %v5228 = vpack.c.b16 %v5102, %v5101
      %v5229 = vpack.c.b16 %v5104, %v5103
      %v5230 = vpack.c.b16 %v5106, %v5105
      %v5231 = vpack.c.b16 %v5108, %v5107
      %v5232 = vpack.c.b16 %v5110, %v5109
      %v5233 = vpack.c.b16 %v5112, %v5111
      %v5234 = vpack.c.b16 %v5114, %v5113
      %v5235 = vpack.c.b16 %v5116, %v5115
      %v5236 = vpack.c.b16 %v5118, %v5117
      %v5237 = vpack.c.b16 %v5120, %v5119
      %v5238 = vpack.c.b16 %v5122, %v5121
      %v5239 = vpack.c.b16 %v5124, %v5123
      %v5240 = vpack.c.b16 %v5126, %v5125
      %v5241 = vpack.c.b16 %v5128, %v5127
      %v5242 = vpack.c.b16 %v5130, %v5129
      %v5243 = vpack.c.b16 %v5132, %v5131
      %v5244 = vpack.c.b16 %v5134, %v5133
      %v5245 = vpack.c.b16 %v5136, %v5135
      %v5246 = vpack.c.b16 %v5138, %v5137
      %v5247 = vpack.c.b16 %v5140, %v5139
      %v5248 = vpack.c.b16 %v5142, %v5141
      %v5249 = vpack.c.b16 %v5144, %v5143
      %v5250 = vpack.c.b16 %v5146, %v5145
      %v5251 = vpack.c.b16 %v5148, %v5147
      %v5252 = vpack.c.b16 %v5150, %v5149
      %v5253 = vpack.c.b16 %v5152, %v5151
      %v5254 = vpack.c.b16 %v5154, %v5153
      %v5255 = vpack.c.b16 %v5156, %v5155
      %v5256 = vpack.c.b16 %v5158, %v5157
      %v5257 = vpack.c.b16 %v5160, %v5159
      %v5258 = vpack.c.b16 %v5162, %v5161
      %v5259 = vpack.c.b16 %v5164, %v5163
      %v5260 = vpack.c.b16 %v5166, %v5165
      %v5261 = vpack.c.b16 %v5168, %v5167
      %v5262 = vpack.c.b16 %v5170, %v5169
      %v5263 = vpack.c.b16 %v5172, %v5171
      %v5264 = vpack.c.b16 %v5174, %v5173
      %v5265 = vpack.c.b16 %v5176, %v5175
      %v5266 = vpack.c.b16 %v5178, %v5177
      %v5267 = vpack.c.b16 %v5180, %v5179
      %v5268 = vpack.c.b16 %v5182, %v5181
      %v5269 = vpack.c.b16 %v5184, %v5183
      %v5270 = vpack.c.b16 %v5186, %v5185
      %v5271 = vpack.c.b16 %v5188, %v5187
      %v5272 = vpack.c.b16 %v5190, %v5189
      %v5273 = vpack.c.b16 %v5192, %v5191
      %v5274 = vpack.c.b16 %v5194, %v5193
      %v5275 = vpack.c.b16 %v5196, %v5195
      %v5276 = vpack.c.b16 %v5198, %v5197
      %v5277 = vpack.c.b16 %v5200, %v5199
      %v5278 = vpack.c.b16 %v5202, %v5201
      %v5279 = vpack.c.b16 %v5204, %v5203
      %v5280 = vpack.c.b16 %v5206, %v5205
      %v5281 = vpack.c.b16 %v5208, %v5207
      %v5282 = vpack.c.b16 %v5210, %v5209
      %5355 = vmatprep.subr.bf16.mxu0 0
      %5356 = vmatpush1.bf16.msra.mxu0 %v5218
      %5357 = vmatprep.subr.bf16.mxu0 0
      %5358 = vmatpush1.bf16.msra.mxu0 %v5217
      %5359 = vmatprep.subr.bf16.mxu0 0
      %5360 = vmatpush1.bf16.msra.mxu0 %v5216
      %5361 = vmatprep.subr.bf16.mxu0 0
      %5362 = vmatpush1.bf16.msra.mxu0 %v5215
      %5363 = vmatprep.subr.bf16.mxu0 0
      %5364 = vmatpush1.bf16.msra.mxu0 %v5214
      %5365 = vmatprep.subr.bf16.mxu0 0
      %5366 = vmatpush1.bf16.msra.mxu0 %v5213
      %5367 = vmatprep.subr.bf16.mxu0 0
      %5368 = vmatpush1.bf16.msra.mxu0 %v5212
      %5369 = vmatprep.subr.bf16.mxu0 0
      %5370 = vmatpush1.bf16.msra.mxu0 %v5211
      %5371 = vmatprep.subr.bf16.mxu0 0
      %5372 = vmatpush2.bf16.msra.mxu0 %v5226
      %5373 = vmatprep.subr.bf16.mxu0 0
      %5374 = vmatpush2.bf16.msra.mxu0 %v5225
      %5375 = vmatprep.subr.bf16.mxu0 0
      %5376 = vmatpush2.bf16.msra.mxu0 %v5224
      %5377 = vmatprep.subr.bf16.mxu0 0
      %5378 = vmatpush2.bf16.msra.mxu0 %v5223
      %5379 = vmatprep.subr.bf16.mxu0 0
      %5380 = vmatpush2.bf16.msra.mxu0 %v5222
      %5381 = vmatprep.subr.bf16.mxu0 0
      %5382 = vmatpush2.bf16.msra.mxu0 %v5221
      %5383 = vmatprep.subr.bf16.mxu0 0
      %5384 = vmatpush2.bf16.msra.mxu0 %v5220
      %5385 = vmatprep.subr.bf16.mxu0 0
      %5386 = vmatpush2.bf16.msra.mxu0 %v5219
      %5387 = vmatprep.mubr.bf16.mxu0 %v4636
      %5388 = vmatmul.mubr.bf16.gmra.mxu0 %v4635
      %v5389 = vpop.f32.mrf.mxu0
      %v5390 = vadd.f32 0.0, %v5389
      %v5391 = vpop.f32.mrf.mxu0
      %v5392 = vpop.f32.mrf.mxu0
      %v5393 = vadd.f32 0.0, %v5392
      %v5394 = vpop.f32.mrf.mxu0
      %5395 = vmatprep.mubr.bf16.mxu0 %v4645
      %5396 = vmatmul.mubr.bf16.gmra.mxu0 %v4644
      %v5397 = vpop.f32.mrf.mxu0
      %v5398 = vadd.f32 0.0, %v5397
      %v5399 = vpop.f32.mrf.mxu0
      %v5400 = vpop.f32.mrf.mxu0
      %v5401 = vadd.f32 0.0, %v5400
      %v5402 = vpop.f32.mrf.mxu0
      %5403 = vmatprep.mubr.bf16.mxu0 %v4654
      %5404 = vmatmul.mubr.bf16.gmra.mxu0 %v4653
      %v5405 = vpop.f32.mrf.mxu0
      %v5406 = vadd.f32 0.0, %v5405
      %v5407 = vpop.f32.mrf.mxu0
      %v5408 = vpop.f32.mrf.mxu0
      %v5409 = vadd.f32 0.0, %v5408
      %v5410 = vpop.f32.mrf.mxu0
      %5411 = vmatprep.mubr.bf16.mxu0 %v4663
      %5412 = vmatmul.mubr.bf16.gmra.mxu0 %v4662
      %v5413 = vpop.f32.mrf.mxu0
      %v5414 = vadd.f32 0.0, %v5413
      %v5415 = vpop.f32.mrf.mxu0
      %v5416 = vpop.f32.mrf.mxu0
      %v5417 = vadd.f32 0.0, %v5416
      %v5418 = vpop.f32.mrf.mxu0
      %5419 = vmatprep.mubr.bf16.mxu0 %v4672
      %5420 = vmatmul.mubr.bf16.gmra.mxu0 %v4671
      %v5421 = vpop.f32.mrf.mxu0
      %v5422 = vadd.f32 0.0, %v5421
      %v5423 = vpop.f32.mrf.mxu0
      %v5424 = vpop.f32.mrf.mxu0
      %v5425 = vadd.f32 0.0, %v5424
      %v5426 = vpop.f32.mrf.mxu0
      %5427 = vmatprep.mubr.bf16.mxu0 %v4681
      %5428 = vmatmul.mubr.bf16.gmra.mxu0 %v4680
      %v5429 = vpop.f32.mrf.mxu0
      %v5430 = vadd.f32 0.0, %v5429
      %v5431 = vpop.f32.mrf.mxu0
      %v5432 = vpop.f32.mrf.mxu0
      %v5433 = vadd.f32 0.0, %v5432
      %v5434 = vpop.f32.mrf.mxu0
      %5435 = vmatprep.mubr.bf16.mxu0 %v4690
      %5436 = vmatmul.mubr.bf16.gmra.mxu0 %v4689
      %v5437 = vpop.f32.mrf.mxu0
      %v5438 = vadd.f32 0.0, %v5437
      %v5439 = vpop.f32.mrf.mxu0
      %v5440 = vpop.f32.mrf.mxu0
      %v5441 = vadd.f32 0.0, %v5440
      %v5442 = vpop.f32.mrf.mxu0
      %5443 = vmatprep.mubr.bf16.mxu0 %v4699
      %5444 = vmatmul.mubr.bf16.gmra.mxu0 %v4698
      %v5445 = vpop.f32.mrf.mxu0
      %v5446 = vadd.f32 0.0, %v5445
      %v5447 = vpop.f32.mrf.mxu0
      %v5448 = vpop.f32.mrf.mxu0
      %v5449 = vadd.f32 0.0, %v5448
      %v5450 = vpop.f32.mrf.mxu0
      %5451 = vmatprep.mubr.bf16.mxu0 %v4708
      %5452 = vmatmul.mubr.bf16.gmra.mxu0 %v4707
      %v5453 = vpop.f32.mrf.mxu0
      %v5454 = vadd.f32 0.0, %v5453
      %v5455 = vpop.f32.mrf.mxu0
      %v5456 = vpop.f32.mrf.mxu0
      %v5457 = vadd.f32 0.0, %v5456
      %v5458 = vpop.f32.mrf.mxu0
      %5459 = vmatprep.mubr.bf16.mxu0 %v4717
      %5460 = vmatmul.mubr.bf16.gmra.mxu0 %v4716
      %v5461 = vpop.f32.mrf.mxu0
      %v5462 = vadd.f32 0.0, %v5461
      %v5463 = vpop.f32.mrf.mxu0
      %v5464 = vpop.f32.mrf.mxu0
      %v5465 = vadd.f32 0.0, %v5464
      %v5466 = vpop.f32.mrf.mxu0
      %5467 = vmatprep.mubr.bf16.mxu0 %v4726
      %5468 = vmatmul.mubr.bf16.gmra.mxu0 %v4725
      %v5469 = vpop.f32.mrf.mxu0
      %v5470 = vadd.f32 0.0, %v5469
      %v5471 = vpop.f32.mrf.mxu0
      %v5472 = vpop.f32.mrf.mxu0
      %v5473 = vadd.f32 0.0, %v5472
      %v5474 = vpop.f32.mrf.mxu0
      %5475 = vmatprep.mubr.bf16.mxu0 %v4735
      %5476 = vmatmul.mubr.bf16.gmra.mxu0 %v4734
      %v5477 = vpop.f32.mrf.mxu0
      %v5478 = vadd.f32 0.0, %v5477
      %v5479 = vpop.f32.mrf.mxu0
      %v5480 = vpop.f32.mrf.mxu0
      %v5481 = vadd.f32 0.0, %v5480
      %v5482 = vpop.f32.mrf.mxu0
      %5483 = vmatprep.mubr.bf16.mxu0 %v4744
      %5484 = vmatmul.mubr.bf16.gmra.mxu0 %v4743
      %v5485 = vpop.f32.mrf.mxu0
      %v5486 = vadd.f32 0.0, %v5485
      %v5487 = vpop.f32.mrf.mxu0
      %v5488 = vpop.f32.mrf.mxu0
      %v5489 = vadd.f32 0.0, %v5488
      %v5490 = vpop.f32.mrf.mxu0
      %5491 = vmatprep.mubr.bf16.mxu0 %v4753
      %5492 = vmatmul.mubr.bf16.gmra.mxu0 %v4752
      %v5493 = vpop.f32.mrf.mxu0
      %v5494 = vadd.f32 0.0, %v5493
      %v5495 = vpop.f32.mrf.mxu0
      %v5496 = vpop.f32.mrf.mxu0
      %v5497 = vadd.f32 0.0, %v5496
      %v5498 = vpop.f32.mrf.mxu0
      %5499 = vmatprep.mubr.bf16.mxu0 %v4762
      %5500 = vmatmul.mubr.bf16.gmra.mxu0 %v4761
      %v5501 = vpop.f32.mrf.mxu0
      %v5502 = vadd.f32 0.0, %v5501
      %v5503 = vpop.f32.mrf.mxu0
      %v5504 = vpop.f32.mrf.mxu0
      %v5505 = vadd.f32 0.0, %v5504
      %v5506 = vpop.f32.mrf.mxu0
      %5507 = vmatprep.mubr.bf16.mxu0 %v4771
      %5508 = vmatmul.mubr.bf16.gmra.mxu0 %v4770
      %v5509 = vpop.f32.mrf.mxu0
      %v5510 = vadd.f32 0.0, %v5509
      %v5511 = vpop.f32.mrf.mxu0
      %v5512 = vpop.f32.mrf.mxu0
      %v5513 = vadd.f32 0.0, %v5512
      %v5514 = vpop.f32.mrf.mxu0
      %5515 = vdwg.mxu0
      %5516 = vmatprep.subr.bf16.mxu0 0
      %5517 = vmatpush1.bf16.msra.mxu0 %v5234
      %5518 = vmatprep.subr.bf16.mxu0 0
      %5519 = vmatpush1.bf16.msra.mxu0 %v5233
      %5520 = vmatprep.subr.bf16.mxu0 0
      %5521 = vmatpush1.bf16.msra.mxu0 %v5232
      %5522 = vmatprep.subr.bf16.mxu0 0
      %5523 = vmatpush1.bf16.msra.mxu0 %v5231
      %5524 = vmatprep.subr.bf16.mxu0 0
      %5525 = vmatpush1.bf16.msra.mxu0 %v5230
      %5526 = vmatprep.subr.bf16.mxu0 0
      %5527 = vmatpush1.bf16.msra.mxu0 %v5229
      %5528 = vmatprep.subr.bf16.mxu0 0
      %5529 = vmatpush1.bf16.msra.mxu0 %v5228
      %5530 = vmatprep.subr.bf16.mxu0 0
      %5531 = vmatpush1.bf16.msra.mxu0 %v5227
      %5532 = vmatprep.subr.bf16.mxu0 0
      %5533 = vmatpush2.bf16.msra.mxu0 %v5242
      %5534 = vmatprep.subr.bf16.mxu0 0
      %5535 = vmatpush2.bf16.msra.mxu0 %v5241
      %5536 = vmatprep.subr.bf16.mxu0 0
      %5537 = vmatpush2.bf16.msra.mxu0 %v5240
      %5538 = vmatprep.subr.bf16.mxu0 0
      %5539 = vmatpush2.bf16.msra.mxu0 %v5239
      %5540 = vmatprep.subr.bf16.mxu0 0
      %5541 = vmatpush2.bf16.msra.mxu0 %v5238
      %5542 = vmatprep.subr.bf16.mxu0 0
      %5543 = vmatpush2.bf16.msra.mxu0 %v5237
      %5544 = vmatprep.subr.bf16.mxu0 0
      %5545 = vmatpush2.bf16.msra.mxu0 %v5236
      %5546 = vmatprep.subr.bf16.mxu0 0
      %5547 = vmatpush2.bf16.msra.mxu0 %v5235
      %5548 = vmatprep.mubr.bf16.mxu0 %v4638
      %5549 = vmatmul.mubr.bf16.gmra.mxu0 %v4637
      %v5550 = vpop.f32.mrf.mxu0
      %v5551 = vadd.f32 %v5390, %v5550
      %v5552 = vpop.f32.mrf.mxu0
      %v5553 = vpop.f32.mrf.mxu0
      %v5554 = vadd.f32 %v5393, %v5553
      %v5555 = vpop.f32.mrf.mxu0
      %5556 = vmatprep.mubr.bf16.mxu0 %v4647
      %5557 = vmatmul.mubr.bf16.gmra.mxu0 %v4646
      %v5558 = vpop.f32.mrf.mxu0
      %v5559 = vadd.f32 %v5398, %v5558
      %v5560 = vpop.f32.mrf.mxu0
      %v5561 = vpop.f32.mrf.mxu0
      %v5562 = vadd.f32 %v5401, %v5561
      %v5563 = vpop.f32.mrf.mxu0
      %5564 = vmatprep.mubr.bf16.mxu0 %v4656
      %5565 = vmatmul.mubr.bf16.gmra.mxu0 %v4655
      %v5566 = vpop.f32.mrf.mxu0
      %v5567 = vadd.f32 %v5406, %v5566
      %v5568 = vpop.f32.mrf.mxu0
      %v5569 = vpop.f32.mrf.mxu0
      %v5570 = vadd.f32 %v5409, %v5569
      %v5571 = vpop.f32.mrf.mxu0
      %5572 = vmatprep.mubr.bf16.mxu0 %v4665
      %5573 = vmatmul.mubr.bf16.gmra.mxu0 %v4664
      %v5574 = vpop.f32.mrf.mxu0
      %v5575 = vadd.f32 %v5414, %v5574
      %v5576 = vpop.f32.mrf.mxu0
      %v5577 = vpop.f32.mrf.mxu0
      %v5578 = vadd.f32 %v5417, %v5577
      %v5579 = vpop.f32.mrf.mxu0
      %5580 = vmatprep.mubr.bf16.mxu0 %v4674
      %5581 = vmatmul.mubr.bf16.gmra.mxu0 %v4673
      %v5582 = vpop.f32.mrf.mxu0
      %v5583 = vadd.f32 %v5422, %v5582
      %v5584 = vpop.f32.mrf.mxu0
      %v5585 = vpop.f32.mrf.mxu0
      %v5586 = vadd.f32 %v5425, %v5585
      %v5587 = vpop.f32.mrf.mxu0
      %5588 = vmatprep.mubr.bf16.mxu0 %v4683
      %5589 = vmatmul.mubr.bf16.gmra.mxu0 %v4682
      %v5590 = vpop.f32.mrf.mxu0
      %v5591 = vadd.f32 %v5430, %v5590
      %v5592 = vpop.f32.mrf.mxu0
      %v5593 = vpop.f32.mrf.mxu0
      %v5594 = vadd.f32 %v5433, %v5593
      %v5595 = vpop.f32.mrf.mxu0
      %5596 = vmatprep.mubr.bf16.mxu0 %v4692
      %5597 = vmatmul.mubr.bf16.gmra.mxu0 %v4691
      %v5598 = vpop.f32.mrf.mxu0
      %v5599 = vadd.f32 %v5438, %v5598
      %v5600 = vpop.f32.mrf.mxu0
      %v5601 = vpop.f32.mrf.mxu0
      %v5602 = vadd.f32 %v5441, %v5601
      %v5603 = vpop.f32.mrf.mxu0
      %5604 = vmatprep.mubr.bf16.mxu0 %v4701
      %5605 = vmatmul.mubr.bf16.gmra.mxu0 %v4700
      %v5606 = vpop.f32.mrf.mxu0
      %v5607 = vadd.f32 %v5446, %v5606
      %v5608 = vpop.f32.mrf.mxu0
      %v5609 = vpop.f32.mrf.mxu0
      %v5610 = vadd.f32 %v5449, %v5609
      %v5611 = vpop.f32.mrf.mxu0
      %5612 = vmatprep.mubr.bf16.mxu0 %v4710
      %5613 = vmatmul.mubr.bf16.gmra.mxu0 %v4709
      %v5614 = vpop.f32.mrf.mxu0
      %v5615 = vadd.f32 %v5454, %v5614
      %v5616 = vpop.f32.mrf.mxu0
      %v5617 = vpop.f32.mrf.mxu0
      %v5618 = vadd.f32 %v5457, %v5617
      %v5619 = vpop.f32.mrf.mxu0
      %5620 = vmatprep.mubr.bf16.mxu0 %v4719
      %5621 = vmatmul.mubr.bf16.gmra.mxu0 %v4718
      %v5622 = vpop.f32.mrf.mxu0
      %v5623 = vadd.f32 %v5462, %v5622
      %v5624 = vpop.f32.mrf.mxu0
      %v5625 = vpop.f32.mrf.mxu0
      %v5626 = vadd.f32 %v5465, %v5625
      %v5627 = vpop.f32.mrf.mxu0
      %5628 = vmatprep.mubr.bf16.mxu0 %v4728
      %5629 = vmatmul.mubr.bf16.gmra.mxu0 %v4727
      %v5630 = vpop.f32.mrf.mxu0
      %v5631 = vadd.f32 %v5470, %v5630
      %v5632 = vpop.f32.mrf.mxu0
      %v5633 = vpop.f32.mrf.mxu0
      %v5634 = vadd.f32 %v5473, %v5633
      %v5635 = vpop.f32.mrf.mxu0
      %5636 = vmatprep.mubr.bf16.mxu0 %v4737
      %5637 = vmatmul.mubr.bf16.gmra.mxu0 %v4736
      %v5638 = vpop.f32.mrf.mxu0
      %v5639 = vadd.f32 %v5478, %v5638
      %v5640 = vpop.f32.mrf.mxu0
      %v5641 = vpop.f32.mrf.mxu0
      %v5642 = vadd.f32 %v5481, %v5641
      %v5643 = vpop.f32.mrf.mxu0
      %5644 = vmatprep.mubr.bf16.mxu0 %v4746
      %5645 = vmatmul.mubr.bf16.gmra.mxu0 %v4745
      %v5646 = vpop.f32.mrf.mxu0
      %v5647 = vadd.f32 %v5486, %v5646
      %v5648 = vpop.f32.mrf.mxu0
      %v5649 = vpop.f32.mrf.mxu0
      %v5650 = vadd.f32 %v5489, %v5649
      %v5651 = vpop.f32.mrf.mxu0
      %5652 = vmatprep.mubr.bf16.mxu0 %v4755
      %5653 = vmatmul.mubr.bf16.gmra.mxu0 %v4754
      %v5654 = vpop.f32.mrf.mxu0
      %v5655 = vadd.f32 %v5494, %v5654
      %v5656 = vpop.f32.mrf.mxu0
      %v5657 = vpop.f32.mrf.mxu0
      %v5658 = vadd.f32 %v5497, %v5657
      %v5659 = vpop.f32.mrf.mxu0
      %5660 = vmatprep.mubr.bf16.mxu0 %v4764
      %5661 = vmatmul.mubr.bf16.gmra.mxu0 %v4763
      %v5662 = vpop.f32.mrf.mxu0
      %v5663 = vadd.f32 %v5502, %v5662
      %v5664 = vpop.f32.mrf.mxu0
      %v5665 = vpop.f32.mrf.mxu0
      %v5666 = vadd.f32 %v5505, %v5665
      %v5667 = vpop.f32.mrf.mxu0
      %5668 = vmatprep.mubr.bf16.mxu0 %v4773
      %5669 = vmatmul.mubr.bf16.gmra.mxu0 %v4772
      %v5670 = vpop.f32.mrf.mxu0
      %v5671 = vadd.f32 %v5510, %v5670
      %v5672 = vpop.f32.mrf.mxu0
      %v5673 = vpop.f32.mrf.mxu0
      %v5674 = vadd.f32 %v5513, %v5673
      %v5675 = vpop.f32.mrf.mxu0
      %5676 = vdwg.mxu0
      %5677 = vmatprep.subr.bf16.mxu0 0
      %5678 = vmatpush1.bf16.msra.mxu0 %v5250
      %5679 = vmatprep.subr.bf16.mxu0 0
      %5680 = vmatpush1.bf16.msra.mxu0 %v5249
      %5681 = vmatprep.subr.bf16.mxu0 0
      %5682 = vmatpush1.bf16.msra.mxu0 %v5248
      %5683 = vmatprep.subr.bf16.mxu0 0
      %5684 = vmatpush1.bf16.msra.mxu0 %v5247
      %5685 = vmatprep.subr.bf16.mxu0 0
      %5686 = vmatpush1.bf16.msra.mxu0 %v5246
      %5687 = vmatprep.subr.bf16.mxu0 0
      %5688 = vmatpush1.bf16.msra.mxu0 %v5245
      %5689 = vmatprep.subr.bf16.mxu0 0
      %5690 = vmatpush1.bf16.msra.mxu0 %v5244
      %5691 = vmatprep.subr.bf16.mxu0 0
      %5692 = vmatpush1.bf16.msra.mxu0 %v5243
      %5693 = vmatprep.subr.bf16.mxu0 0
      %5694 = vmatpush2.bf16.msra.mxu0 %v5258
      %5695 = vmatprep.subr.bf16.mxu0 0
      %5696 = vmatpush2.bf16.msra.mxu0 %v5257
      %5697 = vmatprep.subr.bf16.mxu0 0
      %5698 = vmatpush2.bf16.msra.mxu0 %v5256
      %5699 = vmatprep.subr.bf16.mxu0 0
      %5700 = vmatpush2.bf16.msra.mxu0 %v5255
      %5701 = vmatprep.subr.bf16.mxu0 0
      %5702 = vmatpush2.bf16.msra.mxu0 %v5254
      %5703 = vmatprep.subr.bf16.mxu0 0
      %5704 = vmatpush2.bf16.msra.mxu0 %v5253
      %5705 = vmatprep.subr.bf16.mxu0 0
      %5706 = vmatpush2.bf16.msra.mxu0 %v5252
      %5707 = vmatprep.subr.bf16.mxu0 0
      %5708 = vmatpush2.bf16.msra.mxu0 %v5251
      %5709 = vmatprep.mubr.bf16.mxu0 %v4640
      %5710 = vmatmul.mubr.bf16.gmra.mxu0 %v4639
      %v5711 = vpop.f32.mrf.mxu0
      %v5712 = vadd.f32 %v5551, %v5711
      %v5713 = vpop.f32.mrf.mxu0
      %v5714 = vpop.f32.mrf.mxu0
      %v5715 = vadd.f32 %v5554, %v5714
      %v5716 = vpop.f32.mrf.mxu0
      %5717 = vmatprep.mubr.bf16.mxu0 %v4649
      %5718 = vmatmul.mubr.bf16.gmra.mxu0 %v4648
      %v5719 = vpop.f32.mrf.mxu0
      %v5720 = vadd.f32 %v5559, %v5719
      %v5721 = vpop.f32.mrf.mxu0
      %v5722 = vpop.f32.mrf.mxu0
      %v5723 = vadd.f32 %v5562, %v5722
      %v5724 = vpop.f32.mrf.mxu0
      %5725 = vmatprep.mubr.bf16.mxu0 %v4658
      %5726 = vmatmul.mubr.bf16.gmra.mxu0 %v4657
      %v5727 = vpop.f32.mrf.mxu0
      %v5728 = vadd.f32 %v5567, %v5727
      %v5729 = vpop.f32.mrf.mxu0
      %v5730 = vpop.f32.mrf.mxu0
      %v5731 = vadd.f32 %v5570, %v5730
      %v5732 = vpop.f32.mrf.mxu0
      %5733 = vmatprep.mubr.bf16.mxu0 %v4667
      %5734 = vmatmul.mubr.bf16.gmra.mxu0 %v4666
      %v5735 = vpop.f32.mrf.mxu0
      %v5736 = vadd.f32 %v5575, %v5735
      %v5737 = vpop.f32.mrf.mxu0
      %v5738 = vpop.f32.mrf.mxu0
      %v5739 = vadd.f32 %v5578, %v5738
      %v5740 = vpop.f32.mrf.mxu0
      %5741 = vmatprep.mubr.bf16.mxu0 %v4676
      %5742 = vmatmul.mubr.bf16.gmra.mxu0 %v4675
      %v5743 = vpop.f32.mrf.mxu0
      %v5744 = vadd.f32 %v5583, %v5743
      %v5745 = vpop.f32.mrf.mxu0
      %v5746 = vpop.f32.mrf.mxu0
      %v5747 = vadd.f32 %v5586, %v5746
      %v5748 = vpop.f32.mrf.mxu0
      %5749 = vmatprep.mubr.bf16.mxu0 %v4685
      %5750 = vmatmul.mubr.bf16.gmra.mxu0 %v4684
      %v5751 = vpop.f32.mrf.mxu0
      %v5752 = vadd.f32 %v5591, %v5751
      %v5753 = vpop.f32.mrf.mxu0
      %v5754 = vpop.f32.mrf.mxu0
      %v5755 = vadd.f32 %v5594, %v5754
      %v5756 = vpop.f32.mrf.mxu0
      %5757 = vmatprep.mubr.bf16.mxu0 %v4694
      %5758 = vmatmul.mubr.bf16.gmra.mxu0 %v4693
      %v5759 = vpop.f32.mrf.mxu0
      %v5760 = vadd.f32 %v5599, %v5759
      %v5761 = vpop.f32.mrf.mxu0
      %v5762 = vpop.f32.mrf.mxu0
      %v5763 = vadd.f32 %v5602, %v5762
      %v5764 = vpop.f32.mrf.mxu0
      %5765 = vmatprep.mubr.bf16.mxu0 %v4703
      %5766 = vmatmul.mubr.bf16.gmra.mxu0 %v4702
      %v5767 = vpop.f32.mrf.mxu0
      %v5768 = vadd.f32 %v5607, %v5767
      %v5769 = vpop.f32.mrf.mxu0
      %v5770 = vpop.f32.mrf.mxu0
      %v5771 = vadd.f32 %v5610, %v5770
      %v5772 = vpop.f32.mrf.mxu0
      %5773 = vmatprep.mubr.bf16.mxu0 %v4712
      %5774 = vmatmul.mubr.bf16.gmra.mxu0 %v4711
      %v5775 = vpop.f32.mrf.mxu0
      %v5776 = vadd.f32 %v5615, %v5775
      %v5777 = vpop.f32.mrf.mxu0
      %v5778 = vpop.f32.mrf.mxu0
      %v5779 = vadd.f32 %v5618, %v5778
      %v5780 = vpop.f32.mrf.mxu0
      %5781 = vmatprep.mubr.bf16.mxu0 %v4721
      %5782 = vmatmul.mubr.bf16.gmra.mxu0 %v4720
      %v5783 = vpop.f32.mrf.mxu0
      %v5784 = vadd.f32 %v5623, %v5783
      %v5785 = vpop.f32.mrf.mxu0
      %v5786 = vpop.f32.mrf.mxu0
      %v5787 = vadd.f32 %v5626, %v5786
      %v5788 = vpop.f32.mrf.mxu0
      %5789 = vmatprep.mubr.bf16.mxu0 %v4730
      %5790 = vmatmul.mubr.bf16.gmra.mxu0 %v4729
      %v5791 = vpop.f32.mrf.mxu0
      %v5792 = vadd.f32 %v5631, %v5791
      %v5793 = vpop.f32.mrf.mxu0
      %v5794 = vpop.f32.mrf.mxu0
      %v5795 = vadd.f32 %v5634, %v5794
      %v5796 = vpop.f32.mrf.mxu0
      %5797 = vmatprep.mubr.bf16.mxu0 %v4739
      %5798 = vmatmul.mubr.bf16.gmra.mxu0 %v4738
      %v5799 = vpop.f32.mrf.mxu0
      %v5800 = vadd.f32 %v5639, %v5799
      %v5801 = vpop.f32.mrf.mxu0
      %v5802 = vpop.f32.mrf.mxu0
      %v5803 = vadd.f32 %v5642, %v5802
      %v5804 = vpop.f32.mrf.mxu0
      %5805 = vmatprep.mubr.bf16.mxu0 %v4748
      %5806 = vmatmul.mubr.bf16.gmra.mxu0 %v4747
      %v5807 = vpop.f32.mrf.mxu0
      %v5808 = vadd.f32 %v5647, %v5807
      %v5809 = vpop.f32.mrf.mxu0
      %v5810 = vpop.f32.mrf.mxu0
      %v5811 = vadd.f32 %v5650, %v5810
      %v5812 = vpop.f32.mrf.mxu0
      %5813 = vmatprep.mubr.bf16.mxu0 %v4757
      %5814 = vmatmul.mubr.bf16.gmra.mxu0 %v4756
      %v5815 = vpop.f32.mrf.mxu0
      %v5816 = vadd.f32 %v5655, %v5815
      %v5817 = vpop.f32.mrf.mxu0
      %v5818 = vpop.f32.mrf.mxu0
      %v5819 = vadd.f32 %v5658, %v5818
      %v5820 = vpop.f32.mrf.mxu0
      %5821 = vmatprep.mubr.bf16.mxu0 %v4766
      %5822 = vmatmul.mubr.bf16.gmra.mxu0 %v4765
      %v5823 = vpop.f32.mrf.mxu0
      %v5824 = vadd.f32 %v5663, %v5823
      %v5825 = vpop.f32.mrf.mxu0
      %v5826 = vpop.f32.mrf.mxu0
      %v5827 = vadd.f32 %v5666, %v5826
      %v5828 = vpop.f32.mrf.mxu0
      %5829 = vmatprep.mubr.bf16.mxu0 %v4775
      %5830 = vmatmul.mubr.bf16.gmra.mxu0 %v4774
      %v5831 = vpop.f32.mrf.mxu0
      %v5832 = vadd.f32 %v5671, %v5831
      %v5833 = vpop.f32.mrf.mxu0
      %v5834 = vpop.f32.mrf.mxu0
      %v5835 = vadd.f32 %v5674, %v5834
      %v5836 = vpop.f32.mrf.mxu0
      %5837 = vdwg.mxu0
      %5838 = vmatprep.subr.bf16.mxu0 0
      %5839 = vmatpush1.bf16.msra.mxu0 %v5266
      %5840 = vmatprep.subr.bf16.mxu0 0
      %5841 = vmatpush1.bf16.msra.mxu0 %v5265
      %5842 = vmatprep.subr.bf16.mxu0 0
      %5843 = vmatpush1.bf16.msra.mxu0 %v5264
      %5844 = vmatprep.subr.bf16.mxu0 0
      %5845 = vmatpush1.bf16.msra.mxu0 %v5263
      %5846 = vmatprep.subr.bf16.mxu0 0
      %5847 = vmatpush1.bf16.msra.mxu0 %v5262
      %5848 = vmatprep.subr.bf16.mxu0 0
      %5849 = vmatpush1.bf16.msra.mxu0 %v5261
      %5850 = vmatprep.subr.bf16.mxu0 0
      %5851 = vmatpush1.bf16.msra.mxu0 %v5260
      %5852 = vmatprep.subr.bf16.mxu0 0
      %5853 = vmatpush1.bf16.msra.mxu0 %v5259
      %5854 = vmatprep.subr.bf16.mxu0 0
      %5855 = vmatpush2.bf16.msra.mxu0 %v5274
      %5856 = vmatprep.subr.bf16.mxu0 0
      %5857 = vmatpush2.bf16.msra.mxu0 %v5273
      %5858 = vmatprep.subr.bf16.mxu0 0
      %5859 = vmatpush2.bf16.msra.mxu0 %v5272
      %5860 = vmatprep.subr.bf16.mxu0 0
      %5861 = vmatpush2.bf16.msra.mxu0 %v5271
      %5862 = vmatprep.subr.bf16.mxu0 0
      %5863 = vmatpush2.bf16.msra.mxu0 %v5270
      %5864 = vmatprep.subr.bf16.mxu0 0
      %5865 = vmatpush2.bf16.msra.mxu0 %v5269
      %5866 = vmatprep.subr.bf16.mxu0 0
      %5867 = vmatpush2.bf16.msra.mxu0 %v5268
      %5868 = vmatprep.subr.bf16.mxu0 0
      %5869 = vmatpush2.bf16.msra.mxu0 %v5267
      %5870 = vmatprep.mubr.bf16.mxu0 %v4642
      %5871 = vmatmul.mubr.bf16.gmra.mxu0 %v4641
      %v5872 = vpop.f32.mrf.mxu0
      %v5873 = vadd.f32 %v5712, %v5872
      %v5874 = vpop.f32.mrf.mxu0
      %v5875 = vpop.f32.mrf.mxu0
      %v5876 = vadd.f32 %v5715, %v5875
      %v5877 = vpop.f32.mrf.mxu0
      %5878 = vmatprep.mubr.bf16.mxu0 %v4651
      %5879 = vmatmul.mubr.bf16.gmra.mxu0 %v4650
      %v5880 = vpop.f32.mrf.mxu0
      %v5881 = vadd.f32 %v5720, %v5880
      %v5882 = vpop.f32.mrf.mxu0
      %v5883 = vpop.f32.mrf.mxu0
      %v5884 = vadd.f32 %v5723, %v5883
      %v5885 = vpop.f32.mrf.mxu0
      %5886 = vmatprep.mubr.bf16.mxu0 %v4660
      %5887 = vmatmul.mubr.bf16.gmra.mxu0 %v4659
      %v5888 = vpop.f32.mrf.mxu0
      %v5889 = vadd.f32 %v5728, %v5888
      %v5890 = vpop.f32.mrf.mxu0
      %v5891 = vpop.f32.mrf.mxu0
      %v5892 = vadd.f32 %v5731, %v5891
      %v5893 = vpop.f32.mrf.mxu0
      %5894 = vmatprep.mubr.bf16.mxu0 %v4669
      %5895 = vmatmul.mubr.bf16.gmra.mxu0 %v4668
      %v5896 = vpop.f32.mrf.mxu0
      %v5897 = vadd.f32 %v5736, %v5896
      %v5898 = vpop.f32.mrf.mxu0
      %v5899 = vpop.f32.mrf.mxu0
      %v5900 = vadd.f32 %v5739, %v5899
      %v5901 = vpop.f32.mrf.mxu0
      %5902 = vmatprep.mubr.bf16.mxu0 %v4678
      %5903 = vmatmul.mubr.bf16.gmra.mxu0 %v4677
      %v5904 = vpop.f32.mrf.mxu0
      %v5905 = vadd.f32 %v5744, %v5904
      %v5906 = vpop.f32.mrf.mxu0
      %v5907 = vpop.f32.mrf.mxu0
      %v5908 = vadd.f32 %v5747, %v5907
      %v5909 = vpop.f32.mrf.mxu0
      %5910 = vmatprep.mubr.bf16.mxu0 %v4687
      %5911 = vmatmul.mubr.bf16.gmra.mxu0 %v4686
      %v5912 = vpop.f32.mrf.mxu0
      %v5913 = vadd.f32 %v5752, %v5912
      %v5914 = vpop.f32.mrf.mxu0
      %v5915 = vpop.f32.mrf.mxu0
      %v5916 = vadd.f32 %v5755, %v5915
      %v5917 = vpop.f32.mrf.mxu0
      %5918 = vmatprep.mubr.bf16.mxu0 %v4696
      %5919 = vmatmul.mubr.bf16.gmra.mxu0 %v4695
      %v5920 = vpop.f32.mrf.mxu0
      %v5921 = vadd.f32 %v5760, %v5920
      %v5922 = vpop.f32.mrf.mxu0
      %v5923 = vpop.f32.mrf.mxu0
      %v5924 = vadd.f32 %v5763, %v5923
      %v5925 = vpop.f32.mrf.mxu0
      %5926 = vmatprep.mubr.bf16.mxu0 %v4705
      %5927 = vmatmul.mubr.bf16.gmra.mxu0 %v4704
      %v5928 = vpop.f32.mrf.mxu0
      %v5929 = vadd.f32 %v5768, %v5928
      %v5930 = vpop.f32.mrf.mxu0
      %v5931 = vpop.f32.mrf.mxu0
      %v5932 = vadd.f32 %v5771, %v5931
      %v5933 = vpop.f32.mrf.mxu0
      %5934 = vmatprep.mubr.bf16.mxu0 %v4714
      %5935 = vmatmul.mubr.bf16.gmra.mxu0 %v4713
      %v5936 = vpop.f32.mrf.mxu0
      %v5937 = vadd.f32 %v5776, %v5936
      %v5938 = vpop.f32.mrf.mxu0
      %v5939 = vpop.f32.mrf.mxu0
      %v5940 = vadd.f32 %v5779, %v5939
      %v5941 = vpop.f32.mrf.mxu0
      %5942 = vmatprep.mubr.bf16.mxu0 %v4723
      %5943 = vmatmul.mubr.bf16.gmra.mxu0 %v4722
      %v5944 = vpop.f32.mrf.mxu0
      %v5945 = vadd.f32 %v5784, %v5944
      %v5946 = vpop.f32.mrf.mxu0
      %v5947 = vpop.f32.mrf.mxu0
      %v5948 = vadd.f32 %v5787, %v5947
      %v5949 = vpop.f32.mrf.mxu0
      %5950 = vmatprep.mubr.bf16.mxu0 %v4732
      %5951 = vmatmul.mubr.bf16.gmra.mxu0 %v4731
      %v5952 = vpop.f32.mrf.mxu0
      %v5953 = vadd.f32 %v5792, %v5952
      %v5954 = vpop.f32.mrf.mxu0
      %v5955 = vpop.f32.mrf.mxu0
      %v5956 = vadd.f32 %v5795, %v5955
      %v5957 = vpop.f32.mrf.mxu0
      %5958 = vmatprep.mubr.bf16.mxu0 %v4741
      %5959 = vmatmul.mubr.bf16.gmra.mxu0 %v4740
      %v5960 = vpop.f32.mrf.mxu0
      %v5961 = vadd.f32 %v5800, %v5960
      %v5962 = vpop.f32.mrf.mxu0
      %v5963 = vpop.f32.mrf.mxu0
      %v5964 = vadd.f32 %v5803, %v5963
      %v5965 = vpop.f32.mrf.mxu0
      %5966 = vmatprep.mubr.bf16.mxu0 %v4750
      %5967 = vmatmul.mubr.bf16.gmra.mxu0 %v4749
      %v5968 = vpop.f32.mrf.mxu0
      %v5969 = vadd.f32 %v5808, %v5968
      %v5970 = vpop.f32.mrf.mxu0
      %v5971 = vpop.f32.mrf.mxu0
      %v5972 = vadd.f32 %v5811, %v5971
      %v5973 = vpop.f32.mrf.mxu0
      %5974 = vmatprep.mubr.bf16.mxu0 %v4759
      %5975 = vmatmul.mubr.bf16.gmra.mxu0 %v4758
      %v5976 = vpop.f32.mrf.mxu0
      %v5977 = vadd.f32 %v5816, %v5976
      %v5978 = vpop.f32.mrf.mxu0
      %v5979 = vpop.f32.mrf.mxu0
      %v5980 = vadd.f32 %v5819, %v5979
      %v5981 = vpop.f32.mrf.mxu0
      %5982 = vmatprep.mubr.bf16.mxu0 %v4768
      %5983 = vmatmul.mubr.bf16.gmra.mxu0 %v4767
      %v5984 = vpop.f32.mrf.mxu0
      %v5985 = vadd.f32 %v5824, %v5984
      %v5986 = vpop.f32.mrf.mxu0
      %v5987 = vpop.f32.mrf.mxu0
      %v5988 = vadd.f32 %v5827, %v5987
      %v5989 = vpop.f32.mrf.mxu0
      %5990 = vmatprep.mubr.bf16.mxu0 %v4777
      %5991 = vmatmul.mubr.bf16.gmra.mxu0 %v4776
      %v5992 = vpop.f32.mrf.mxu0
      %v5993 = vadd.f32 %v5832, %v5992
      %v5994 = vpop.f32.mrf.mxu0
      %v5995 = vpop.f32.mrf.mxu0
      %v5996 = vadd.f32 %v5835, %v5995
      %v5997 = vpop.f32.mrf.mxu0
      %5998 = vdwg.mxu0
      %5999 = vmatprep.subr.bf16.mxu0 0
      %6000 = vmatpush1.bf16.msra.mxu0 %v5282
      %6001 = vmatprep.subr.bf16.mxu0 0
      %6002 = vmatpush1.bf16.msra.mxu0 %v5281
      %6003 = vmatprep.subr.bf16.mxu0 0
      %6004 = vmatpush1.bf16.msra.mxu0 %v5280
      %6005 = vmatprep.subr.bf16.mxu0 0
      %6006 = vmatpush1.bf16.msra.mxu0 %v5279
      %6007 = vmatprep.subr.bf16.mxu0 0
      %6008 = vmatpush1.bf16.msra.mxu0 %v5278
      %6009 = vmatprep.subr.bf16.mxu0 0
      %6010 = vmatpush1.bf16.msra.mxu0 %v5277
      %6011 = vmatprep.subr.bf16.mxu0 0
      %6012 = vmatpush1.bf16.msra.mxu0 %v5276
      %6013 = vmatprep.subr.bf16.mxu0 0
      %6014 = vmatpush1.bf16.msra.mxu0 %v5275
      %6015 = vmatprep.subr.bf16.mxu0 0
      %6016 = vmatpush2.bf16.msra.mxu0 0
      %6017 = vmatprep.subr.bf16.mxu0 0
      %6018 = vmatpush2.bf16.msra.mxu0 0
      %6019 = vmatprep.subr.bf16.mxu0 0
      %6020 = vmatpush2.bf16.msra.mxu0 0
      %6021 = vmatprep.subr.bf16.mxu0 0
      %6022 = vmatpush2.bf16.msra.mxu0 0
      %6023 = vmatprep.subr.bf16.mxu0 0
      %6024 = vmatpush2.bf16.msra.mxu0 0
      %6025 = vmatprep.subr.bf16.mxu0 0
      %6026 = vmatpush2.bf16.msra.mxu0 0
      %6027 = vmatprep.subr.bf16.mxu0 0
      %6028 = vmatpush2.bf16.msra.mxu0 0
      %6029 = vmatprep.subr.bf16.mxu0 0
      %6030 = vmatpush2.bf16.msra.mxu0 0
      %6031 = vmatprep.mubr.bf16.mxu0 0
      %6032 = vmatmul.mubr.bf16.gmra.mxu0 %v4643
      %v6033 = vpop.f32.mrf.mxu0
      %v6034 = vadd.f32 %v5873, %v6033
      %v6035 = vpop.f32.mrf.mxu0
      %v6036 = vpop.f32.mrf.mxu0
      %v6037 = vadd.f32 %v5876, %v6036
      %v6038 = vpop.f32.mrf.mxu0
      %6039 = vmatprep.mubr.bf16.mxu0 0
      %6040 = vmatmul.mubr.bf16.gmra.mxu0 %v4652
      %v6041 = vpop.f32.mrf.mxu0
      %v6042 = vadd.f32 %v5881, %v6041
      %v6043 = vpop.f32.mrf.mxu0
      %v6044 = vpop.f32.mrf.mxu0
      %v6045 = vadd.f32 %v5884, %v6044
      %v6046 = vpop.f32.mrf.mxu0
      %6047 = vmatprep.mubr.bf16.mxu0 0
      %6048 = vmatmul.mubr.bf16.gmra.mxu0 %v4661
      %v6049 = vpop.f32.mrf.mxu0
      %v6050 = vadd.f32 %v5889, %v6049
      %v6051 = vpop.f32.mrf.mxu0
      %v6052 = vpop.f32.mrf.mxu0
      %v6053 = vadd.f32 %v5892, %v6052
      %v6054 = vpop.f32.mrf.mxu0
      %6055 = vmatprep.mubr.bf16.mxu0 0
      %6056 = vmatmul.mubr.bf16.gmra.mxu0 %v4670
      %v6057 = vpop.f32.mrf.mxu0
      %v6058 = vadd.f32 %v5897, %v6057
      %v6059 = vpop.f32.mrf.mxu0
      %v6060 = vpop.f32.mrf.mxu0
      %v6061 = vadd.f32 %v5900, %v6060
      %v6062 = vpop.f32.mrf.mxu0
      %6063 = vmatprep.mubr.bf16.mxu0 0
      %6064 = vmatmul.mubr.bf16.gmra.mxu0 %v4679
      %v6065 = vpop.f32.mrf.mxu0
      %v6066 = vadd.f32 %v5905, %v6065
      %v6067 = vpop.f32.mrf.mxu0
      %v6068 = vpop.f32.mrf.mxu0
      %v6069 = vadd.f32 %v5908, %v6068
      %v6070 = vpop.f32.mrf.mxu0
      %6071 = vmatprep.mubr.bf16.mxu0 0
      %6072 = vmatmul.mubr.bf16.gmra.mxu0 %v4688
      %v6073 = vpop.f32.mrf.mxu0
      %v6074 = vadd.f32 %v5913, %v6073
      %v6075 = vpop.f32.mrf.mxu0
      %v6076 = vpop.f32.mrf.mxu0
      %v6077 = vadd.f32 %v5916, %v6076
      %v6078 = vpop.f32.mrf.mxu0
      %6079 = vmatprep.mubr.bf16.mxu0 0
      %6080 = vmatmul.mubr.bf16.gmra.mxu0 %v4697
      %v6081 = vpop.f32.mrf.mxu0
      %v6082 = vadd.f32 %v5921, %v6081
      %v6083 = vpop.f32.mrf.mxu0
      %v6084 = vpop.f32.mrf.mxu0
      %v6085 = vadd.f32 %v5924, %v6084
      %v6086 = vpop.f32.mrf.mxu0
      %6087 = vmatprep.mubr.bf16.mxu0 0
      %6088 = vmatmul.mubr.bf16.gmra.mxu0 %v4706
      %v6089 = vpop.f32.mrf.mxu0
      %v6090 = vadd.f32 %v5929, %v6089
      %v6091 = vpop.f32.mrf.mxu0
      %v6092 = vpop.f32.mrf.mxu0
      %v6093 = vadd.f32 %v5932, %v6092
      %v6094 = vpop.f32.mrf.mxu0
      %6095 = vmatprep.mubr.bf16.mxu0 0
      %6096 = vmatmul.mubr.bf16.gmra.mxu0 %v4715
      %v6097 = vpop.f32.mrf.mxu0
      %v6098 = vadd.f32 %v5937, %v6097
      %v6099 = vpop.f32.mrf.mxu0
      %v6100 = vpop.f32.mrf.mxu0
      %v6101 = vadd.f32 %v5940, %v6100
      %v6102 = vpop.f32.mrf.mxu0
      %6103 = vmatprep.mubr.bf16.mxu0 0
      %6104 = vmatmul.mubr.bf16.gmra.mxu0 %v4724
      %v6105 = vpop.f32.mrf.mxu0
      %v6106 = vadd.f32 %v5945, %v6105
      %v6107 = vpop.f32.mrf.mxu0
      %v6108 = vpop.f32.mrf.mxu0
      %v6109 = vadd.f32 %v5948, %v6108
      %v6110 = vpop.f32.mrf.mxu0
      %6111 = vmatprep.mubr.bf16.mxu0 0
      %6112 = vmatmul.mubr.bf16.gmra.mxu0 %v4733
      %v6113 = vpop.f32.mrf.mxu0
      %v6114 = vadd.f32 %v5953, %v6113
      %v6115 = vpop.f32.mrf.mxu0
      %v6116 = vpop.f32.mrf.mxu0
      %v6117 = vadd.f32 %v5956, %v6116
      %v6118 = vpop.f32.mrf.mxu0
      %6119 = vmatprep.mubr.bf16.mxu0 0
      %6120 = vmatmul.mubr.bf16.gmra.mxu0 %v4742
      %v6121 = vpop.f32.mrf.mxu0
      %v6122 = vadd.f32 %v5961, %v6121
      %v6123 = vpop.f32.mrf.mxu0
      %v6124 = vpop.f32.mrf.mxu0
      %v6125 = vadd.f32 %v5964, %v6124
      %v6126 = vpop.f32.mrf.mxu0
      %6127 = vmatprep.mubr.bf16.mxu0 0
      %6128 = vmatmul.mubr.bf16.gmra.mxu0 %v4751
      %v6129 = vpop.f32.mrf.mxu0
      %v6130 = vadd.f32 %v5969, %v6129
      %v6131 = vpop.f32.mrf.mxu0
      %v6132 = vpop.f32.mrf.mxu0
      %v6133 = vadd.f32 %v5972, %v6132
      %v6134 = vpop.f32.mrf.mxu0
      %6135 = vmatprep.mubr.bf16.mxu0 0
      %6136 = vmatmul.mubr.bf16.gmra.mxu0 %v4760
      %v6137 = vpop.f32.mrf.mxu0
      %v6138 = vadd.f32 %v5977, %v6137
      %v6139 = vpop.f32.mrf.mxu0
      %v6140 = vpop.f32.mrf.mxu0
      %v6141 = vadd.f32 %v5980, %v6140
      %v6142 = vpop.f32.mrf.mxu0
      %6143 = vmatprep.mubr.bf16.mxu0 0
      %6144 = vmatmul.mubr.bf16.gmra.mxu0 %v4769
      %v6145 = vpop.f32.mrf.mxu0
      %v6146 = vadd.f32 %v5985, %v6145
      %v6147 = vpop.f32.mrf.mxu0
      %v6148 = vpop.f32.mrf.mxu0
      %v6149 = vadd.f32 %v5988, %v6148
      %v6150 = vpop.f32.mrf.mxu0
      %6151 = vmatprep.mubr.bf16.mxu0 0
      %6152 = vmatmul.mubr.bf16.gmra.mxu0 %v4778
      %v6153 = vpop.f32.mrf.mxu0
      %v6154 = vadd.f32 %v5993, %v6153
      %v6155 = vpop.f32.mrf.mxu0
      %v6156 = vpop.f32.mrf.mxu0
      %v6157 = vadd.f32 %v5996, %v6156
      %v6158 = vpop.f32.mrf.mxu0
      %6159 = vdwg.mxu0
      %v6160 = vadd.f32 %v6034, %v6037
      %v6161 = vadd.f32 %v6160, %v6042
      %v6162 = vadd.f32 %v6161, %v6045
      %v6163 = vadd.f32 %v6162, %v6050
      %v6164 = vadd.f32 %v6163, %v6053
      %v6165 = vadd.f32 %v6164, %v6058
      %v6166 = vadd.f32 %v6165, %v6061
      %v6167 = vadd.f32 %v6166, %v6066
      %v6168 = vadd.f32 %v6167, %v6069
      %v6169 = vadd.f32 %v6168, %v6074
      %v6170 = vadd.f32 %v6169, %v6077
      %v6171 = vadd.f32 %v6170, %v6082
      %v6172 = vadd.f32 %v6171, %v6085
      %v6173 = vadd.f32 %v6172, %v6090
      %v6174 = vadd.f32 %v6173, %v6093
      %v6175 = vadd.f32 %v6174, %v6098
      %v6176 = vadd.f32 %v6175, %v6101
      %v6177 = vadd.f32 %v6176, %v6106
      %v6178 = vadd.f32 %v6177, %v6109
      %v6179 = vadd.f32 %v6178, %v6114
      %v6180 = vadd.f32 %v6179, %v6117
      %v6181 = vadd.f32 %v6180, %v6122
      %v6182 = vadd.f32 %v6181, %v6125
      %v6183 = vadd.f32 %v6182, %v6130
      %v6184 = vadd.f32 %v6183, %v6133
      %v6185 = vadd.f32 %v6184, %v6138
      %v6186 = vadd.f32 %v6185, %v6141
      %v6187 = vadd.f32 %v6186, %v6146
      %v6188 = vadd.f32 %v6187, %v6149
      %v6189 = vadd.f32 %v6188, %v6154
      %v6190 = vadd.f32 %v6189, %v6157
      %v6191 = vrot.slane %v6190, 4
      %v6192 = vadd.f32 %v6190, %v6191
      %v6193 = vrot.slane %v6192, 2
      %v6194 = vadd.f32 %v6192, %v6193
      %v6195 = vrot.slane %v6194, 1
      %v6196 = vadd.f32 %v6194, %v6195
      %v6197 = vmul.f32 %v6034, %v6034
      %v6198 = vmul.f32 %v6037, %v6037
      %v6199 = vmul.f32 %v6042, %v6042
      %v6200 = vmul.f32 %v6045, %v6045
      %v6201 = vmul.f32 %v6050, %v6050
      %v6202 = vmul.f32 %v6053, %v6053
      %v6203 = vmul.f32 %v6058, %v6058
      %v6204 = vmul.f32 %v6061, %v6061
      %v6205 = vmul.f32 %v6066, %v6066
      %v6206 = vmul.f32 %v6069, %v6069
      %v6207 = vmul.f32 %v6074, %v6074
      %v6208 = vmul.f32 %v6077, %v6077
      %v6209 = vmul.f32 %v6082, %v6082
      %v6210 = vmul.f32 %v6085, %v6085
      %v6211 = vmul.f32 %v6090, %v6090
      %v6212 = vmul.f32 %v6093, %v6093
      %v6213 = vmul.f32 %v6098, %v6098
      %v6214 = vmul.f32 %v6101, %v6101
      %v6215 = vmul.f32 %v6106, %v6106
      %v6216 = vmul.f32 %v6109, %v6109
      %v6217 = vmul.f32 %v6114, %v6114
      %v6218 = vmul.f32 %v6117, %v6117
      %v6219 = vmul.f32 %v6122, %v6122
      %v6220 = vmul.f32 %v6125, %v6125
      %v6221 = vmul.f32 %v6130, %v6130
      %v6222 = vmul.f32 %v6133, %v6133
      %v6223 = vmul.f32 %v6138, %v6138
      %v6224 = vmul.f32 %v6141, %v6141
      %v6225 = vmul.f32 %v6146, %v6146
      %v6226 = vmul.f32 %v6149, %v6149
      %v6227 = vmul.f32 %v6154, %v6154
      %v6228 = vmul.f32 %v6157, %v6157
      %v6229 = vadd.f32 %v6197, %v6198
      %v6230 = vadd.f32 %v6229, %v6199
      %v6231 = vadd.f32 %v6230, %v6200
      %v6232 = vadd.f32 %v6231, %v6201
      %v6233 = vadd.f32 %v6232, %v6202
      %v6234 = vadd.f32 %v6233, %v6203
      %v6235 = vadd.f32 %v6234, %v6204
      %v6236 = vadd.f32 %v6235, %v6205
      %v6237 = vadd.f32 %v6236, %v6206
      %v6238 = vadd.f32 %v6237, %v6207
      %v6239 = vadd.f32 %v6238, %v6208
      %v6240 = vadd.f32 %v6239, %v6209
      %v6241 = vadd.f32 %v6240, %v6210
      %v6242 = vadd.f32 %v6241, %v6211
      %v6243 = vadd.f32 %v6242, %v6212
      %v6244 = vadd.f32 %v6243, %v6213
      %v6245 = vadd.f32 %v6244, %v6214
      %v6246 = vadd.f32 %v6245, %v6215
      %v6247 = vadd.f32 %v6246, %v6216
      %v6248 = vadd.f32 %v6247, %v6217
      %v6249 = vadd.f32 %v6248, %v6218
      %v6250 = vadd.f32 %v6249, %v6219
      %v6251 = vadd.f32 %v6250, %v6220
      %v6252 = vadd.f32 %v6251, %v6221
      %v6253 = vadd.f32 %v6252, %v6222
      %v6254 = vadd.f32 %v6253, %v6223
      %v6255 = vadd.f32 %v6254, %v6224
      %v6256 = vadd.f32 %v6255, %v6225
      %v6257 = vadd.f32 %v6256, %v6226
      %v6258 = vadd.f32 %v6257, %v6227
      %v6259 = vadd.f32 %v6258, %v6228
      %v6260 = vrot.slane %v6259, 4
      %v6261 = vadd.f32 %v6259, %v6260
      %v6262 = vrot.slane %v6261, 2
      %v6263 = vadd.f32 %v6261, %v6262
      %v6264 = vrot.slane %v6263, 1
      %v6265 = vadd.f32 %v6263, %v6264
      %vm6266 = vcmask 1040384
      %v6267 = vsel %vm6266, %v6196, %v6265
      %6268 = vst [vmem:[%s465] sm:$0x3] %v6267
      %v6269 = vpack.c.bf16 %v6037, %v6034
      %v6270 = vpack.c.bf16 %v6045, %v6042
      %v6271 = vpack.c.bf16 %v6053, %v6050
      %v6272 = vpack.c.bf16 %v6061, %v6058
      %v6273 = vpack.c.bf16 %v6069, %v6066
      %v6274 = vpack.c.bf16 %v6077, %v6074
      %v6275 = vpack.c.bf16 %v6085, %v6082
      %v6276 = vpack.c.bf16 %v6093, %v6090
      %v6277 = vpack.c.bf16 %v6101, %v6098
      %v6278 = vpack.c.bf16 %v6109, %v6106
      %v6279 = vpack.c.bf16 %v6117, %v6114
      %v6280 = vpack.c.bf16 %v6125, %v6122
      %v6281 = vpack.c.bf16 %v6133, %v6130
      %v6282 = vpack.c.bf16 %v6141, %v6138
      %v6283 = vpack.c.bf16 %v6149, %v6146
      %v6284 = vpack.c.bf16 %v6157, %v6154
      %v6301 = vunpack.c.l.b16 %v6269
      %v6302 = vunpack.c.h.b16 %v6269
      %v6303 = vunpack.c.l.b16 %v6270
      %v6304 = vunpack.c.h.b16 %v6270
      %v6305 = vunpack.c.l.b16 %v6271
      %v6306 = vunpack.c.h.b16 %v6271
      %v6307 = vunpack.c.l.b16 %v6272
      %v6308 = vunpack.c.h.b16 %v6272
      %v6309 = vunpack.c.l.b16 %v6273
      %v6310 = vunpack.c.h.b16 %v6273
      %v6311 = vunpack.c.l.b16 %v6274
      %v6312 = vunpack.c.h.b16 %v6274
      %v6313 = vunpack.c.l.b16 %v6275
      %v6314 = vunpack.c.h.b16 %v6275
      %v6315 = vunpack.c.l.b16 %v6276
      %v6316 = vunpack.c.h.b16 %v6276
      %v6317 = vunpack.c.l.b16 %v6277
      %v6318 = vunpack.c.h.b16 %v6277
      %v6319 = vunpack.c.l.b16 %v6278
      %v6320 = vunpack.c.h.b16 %v6278
      %v6321 = vunpack.c.l.b16 %v6279
      %v6322 = vunpack.c.h.b16 %v6279
      %v6323 = vunpack.c.l.b16 %v6280
      %v6324 = vunpack.c.h.b16 %v6280
      %v6325 = vunpack.c.l.b16 %v6281
      %v6326 = vunpack.c.h.b16 %v6281
      %v6327 = vunpack.c.l.b16 %v6282
      %v6328 = vunpack.c.h.b16 %v6282
      %v6329 = vunpack.c.l.b16 %v6283
      %v6330 = vunpack.c.h.b16 %v6283
      %v6331 = vunpack.c.l.b16 %v6284
      %v6332 = vunpack.c.h.b16 %v6284
      %v6333 = vpack.c.b16 %v6301, %v6301
      %v6334 = vpack.c.b16 %v6302, %v6302
      %v6335 = vpack.c.b16 %v6303, %v6303
      %v6336 = vpack.c.b16 %v6304, %v6304
      %v6337 = vpack.c.b16 %v6305, %v6305
      %v6338 = vpack.c.b16 %v6306, %v6306
      %v6339 = vpack.c.b16 %v6307, %v6307
      %v6340 = vpack.c.b16 %v6308, %v6308
      %v6341 = vpack.c.b16 %v6309, %v6309
      %v6342 = vpack.c.b16 %v6310, %v6310
      %v6343 = vpack.c.b16 %v6311, %v6311
      %v6344 = vpack.c.b16 %v6312, %v6312
      %v6345 = vpack.c.b16 %v6313, %v6313
      %v6346 = vpack.c.b16 %v6314, %v6314
      %v6347 = vpack.c.b16 %v6315, %v6315
      %v6348 = vpack.c.b16 %v6316, %v6316
      %v6349 = vpack.c.b16 %v6317, %v6317
      %v6350 = vpack.c.b16 %v6318, %v6318
      %v6351 = vpack.c.b16 %v6319, %v6319
      %v6352 = vpack.c.b16 %v6320, %v6320
      %v6353 = vpack.c.b16 %v6321, %v6321
      %v6354 = vpack.c.b16 %v6322, %v6322
      %v6355 = vpack.c.b16 %v6323, %v6323
      %v6356 = vpack.c.b16 %v6324, %v6324
      %v6357 = vpack.c.b16 %v6325, %v6325
      %v6358 = vpack.c.b16 %v6326, %v6326
      %v6359 = vpack.c.b16 %v6327, %v6327
      %v6360 = vpack.c.b16 %v6328, %v6328
      %v6361 = vpack.c.b16 %v6329, %v6329
      %v6362 = vpack.c.b16 %v6330, %v6330
      %v6363 = vpack.c.b16 %v6331, %v6331
      %v6364 = vpack.c.b16 %v6332, %v6332
      %6397 = vst [vmem:[%s457] sm:$0xf] %v6333
      %6398 = vst [vmem:[%s457 + $0x4] sm:$0xf] %v6334
      %6399 = vst [vmem:[%s457 + $0x8] sm:$0xf] %v6335
      %6400 = vst [vmem:[%s457 + $0xc] sm:$0xf] %v6336
      %6401 = vst [vmem:[%s457 + $0x10] sm:$0xf] %v6337
      %6402 = vst [vmem:[%s457 + $0x14] sm:$0xf] %v6338
      %6403 = vst [vmem:[%s457 + $0x18] sm:$0xf] %v6339
      %6404 = vst [vmem:[%s457 + $0x1c] sm:$0xf] %v6340
      %6405 = vst [vmem:[%s457 + $0x20] sm:$0xf] %v6341
      %6406 = vst [vmem:[%s457 + $0x24] sm:$0xf] %v6342
      %6407 = vst [vmem:[%s457 + $0x28] sm:$0xf] %v6343
      %6408 = vst [vmem:[%s457 + $0x2c] sm:$0xf] %v6344
      %6409 = vst [vmem:[%s457 + $0x30] sm:$0xf] %v6345
      %6410 = vst [vmem:[%s457 + $0x34] sm:$0xf] %v6346
      %6411 = vst [vmem:[%s457 + $0x38] sm:$0xf] %v6347
      %6412 = vst [vmem:[%s457 + $0x3c] sm:$0xf] %v6348
      %6413 = vst [vmem:[%s457 + $0x40] sm:$0xf] %v6349
      %6414 = vst [vmem:[%s457 + $0x44] sm:$0xf] %v6350
      %6415 = vst [vmem:[%s457 + $0x48] sm:$0xf] %v6351
      %6416 = vst [vmem:[%s457 + $0x4c] sm:$0xf] %v6352
      %6417 = vst [vmem:[%s457 + $0x50] sm:$0xf] %v6353
      %6418 = vst [vmem:[%s457 + $0x54] sm:$0xf] %v6354
      %6419 = vst [vmem:[%s457 + $0x58] sm:$0xf] %v6355
      %6420 = vst [vmem:[%s457 + $0x5c] sm:$0xf] %v6356
      %6421 = vst [vmem:[%s457 + $0x60] sm:$0xf] %v6357
      %6422 = vst [vmem:[%s457 + $0x64] sm:$0xf] %v6358
      %6423 = vst [vmem:[%s457 + $0x68] sm:$0xf] %v6359
      %6424 = vst [vmem:[%s457 + $0x6c] sm:$0xf] %v6360
      %6425 = vst [vmem:[%s457 + $0x70] sm:$0xf] %v6361
      %6426 = vst [vmem:[%s457 + $0x74] sm:$0xf] %v6362
      %6427 = vst [vmem:[%s457 + $0x78] sm:$0xf] %v6363
      %6428 = vst [vmem:[%s457 + $0x7c] sm:$0xf] %v6364
      %s6429 = smul.u32 16, %s24
      %p6430 = scmp.lt.s32.totalorder %s23, 1
      %s6431 = scalar_select %p6430, %s23, 1
      %p6432 = scmp.lt.s32.totalorder %s6429, 15
      %s6433 = scalar_select %p6432, %s6429, 15
      %s6434 = smul.addr %s6433, 2
      %s6435 = smul.addr %s6431, 32
      %s6436 = sadd.s32 %s6434, %s6435
      %s6437 = smul.addr %s6436, 4
      %s6438 = scalar_lea.vmem %s6, %s6437
      %p6439 = scmp.lt.s32.totalorder %s23, 1
      %s6440 = scalar_select %p6439, %s23, 1
      %p6441 = scmp.lt.s32.totalorder %s24, 0
      %s6442 = scalar_select %p6441, %s24, 0
      %s6443 = sadd.s32 %s6442, %s6440
      %s6444 = smul.addr %s6443, 2
      %s6445 = scalar_lea.vmem %s7, %s6444
      // Predicated region
      $region45: #{in_conv_forward.4} parent=43 // pred_check
        %p6446 = pneg %p214
      $region46: #{in_conv_forward.4} parent=43 // pred_check_branch
        %6448 = sbr.rel (%p6446) target = $region48
      $region47: #{in_conv_forward.4} parent=43 // pred_region
        %s6449 = smul.u32 16, %s24
      $region48: #{in_conv_forward.4} parent=43 // pred_fallthru
        _
      // Predicated region
      $region49: #{in_conv_forward.4} parent=43 // pred_check
        %p6450 = pneg %p242
      $region50: #{in_conv_forward.4} parent=43 // pred_check_branch
        %6452 = sbr.rel (%p6450) target = $region52
      $region51: #{in_conv_forward.4} parent=43 // pred_region
        _
      $region52: #{in_conv_forward.4} parent=43 // pred_fallthru
        _
    $region44: #{in_conv_forward.4} parent=5 // pred_fallthru
      _
    %p6453 = scmp.le.s32.totalorder 2, %s14
    // Predicated region
    $region53: #{in_conv_forward.4} parent=5 // pred_check
      %p6454 = pneg %p6453
    $region54: #{in_conv_forward.4} parent=5 // pred_check_branch
      %6456 = sbr.rel (%p6454) target = $region56
    $region55: #{in_conv_forward.4} parent=5 // pred_region
      %s6457 = ssub.s32 %s14, 2
      // Predicated region
      $region57: #{in_conv_forward.4} parent=55 // pred_check
        %p6458 = pneg %p220
      $region58: #{in_conv_forward.4} parent=55 // pred_check_branch
        %6460 = sbr.rel (%p6458) target = $region60
      $region59: #{in_conv_forward.4} parent=55 // pred_region
        %s6461 = smul.u32 16, %s26
        %p6462 = scmp.lt.s32.totalorder %s25, 1
        %s6463 = scalar_select %p6462, %s25, 1
        %p6464 = scmp.lt.s32.totalorder %s6461, 15
        %s6465 = scalar_select %p6464, %s6461, 15
        %s6466 = smul.addr %s6465, 2
        %s6467 = smul.addr %s6463, 32
        %s6468 = sadd.s32 %s6466, %s6467
        %s6469 = smul.addr %s6468, 4
        %s6470 = scalar_lea.vmem %s6, %s6469
      $region60: #{in_conv_forward.4} parent=55 // pred_fallthru
        _
      // Predicated region
      $region61: #{in_conv_forward.4} parent=55 // pred_check
        %p6471 = pneg %p248
      $region62: #{in_conv_forward.4} parent=55 // pred_check_branch
        %6473 = sbr.rel (%p6471) target = $region64
      $region63: #{in_conv_forward.4} parent=55 // pred_region
        %p6474 = scmp.lt.s32.totalorder %s25, 1
        %s6475 = scalar_select %p6474, %s25, 1
        %p6476 = scmp.lt.s32.totalorder %s26, 0
        %s6477 = scalar_select %p6476, %s26, 0
        %s6478 = sadd.s32 %s6477, %s6475
        %s6479 = smul.addr %s6478, 2
        %s6480 = scalar_lea.vmem %s7, %s6479
      $region64: #{in_conv_forward.4} parent=55 // pred_fallthru
        _
    $region56: #{in_conv_forward.4} parent=5 // pred_fallthru
      _
  $region6: #{in_conv_forward.4} parent=0 // loop_footer
    %s18 = sadd.s32 1, %s14
  $region7: #{in_conv_forward.4} parent=0 // loop_footer_branch
    %13 = sbr.rel target = $region3
  $region8: #{in_conv_forward.4} parent=0 // loop_exit
    _

</llo_original>
